<compile_context>
chip_gen: v7x
topology: tpu7x:2x2x1
jax: 0.10.0
libtpu: 0.0.40
codegen_flags: <defaults>
</compile_context>

<pallas_src>
from functools import partial

import jax
import jax.numpy as jnp
from jax.experimental import pallas as pl
from jax.experimental.pallas import tpu as pltpu


# ----------------------------- in-kernel helpers -----------------------------

def _layernorm(x, g, b, eps):
    # x: (R, C) f32, g/b: (1, C) f32
    mu = jnp.mean(x, axis=-1, keepdims=True)
    d = x - mu
    var = jnp.mean(d * d, axis=-1, keepdims=True)
    return d * jax.lax.rsqrt(var + eps) * g + b


_SQRT_2_OVER_PI = 0.7978845608028654


def _gelu_tanh(x):
    # TODO(synk): PyTorch nn.GELU() defaults to the exact erf form; the tanh approximation
    # (EUP-friendly, guaranteed to lower on Mosaic) differs by ~3e-4 absolute.
    return 0.5 * x * (1.0 + jnp.tanh(_SQRT_2_OVER_PI * (x + 0.044715 * (x * x * x))))


def _mha_out(q, k, v, wp, num_heads):
    """softmax(q k^T) v projected through wp, accumulated per head (no lane concat).

    q: (R, C) f32 with the attention scale pre-folded into the Q projection.
    k, v: (M, C) (any float dtype).  wp: (C, C) bf16.
    Returns (R, C) f32 = sum_h [softmax(q_h k_h^T) v_h] @ wp[h*dh:(h+1)*dh, :]  (bias NOT added).
    """
    R, C = q.shape
    dh = C // num_heads
    acc = jnp.zeros((R, C), jnp.float32)
    for h in range(num_heads):
        sl = slice(h * dh, (h + 1) * dh)
        qh = q[:, sl].astype(jnp.bfloat16)
        kh = k[:, sl].astype(jnp.bfloat16)
        vh = v[:, sl].astype(jnp.bfloat16)
        s = jax.lax.dot_general(qh, kh, (((1,), (1,)), ((), ())),
                                preferred_element_type=jnp.float32)
        s = s - jnp.max(s, axis=-1, keepdims=True)
        p = jnp.exp(s)
        l = jnp.sum(p, axis=-1, keepdims=True)
        pv = jnp.dot(p.astype(jnp.bfloat16), vh, preferred_element_type=jnp.float32)
        # post-PV normalization: (R, dh) multiply by an EUP reciprocal instead of a (R, M) divide
        oh = pv * pl.reciprocal(l, approx=True)
        acc = acc + jnp.dot(oh.astype(jnp.bfloat16), wp[sl, :],
                            preferred_element_type=jnp.float32)
    return acc


# --------------------------------- kernels -----------------------------------

def _kv_prep_kernel(xp_ref, gt_ref, g1_ref, b1_ref,
                    wsr_ref, bsr_ref, gsr_ref, bsrb_ref,
                    wq_ref, bq_ref, wk_ref, bk_ref, wv_ref, bv_ref,
                    wp_ref, bp_ref,
                    k_ref, v_ref, gt_out_ref,
                    *, sr, num_heads, eps_ln, eps_sr):
    """norm1 + spatial-reduction + SR-LN + K/V projections + gt-token attention."""
    C = gt_ref.shape[-1]
    gt = gt_ref[0].astype(jnp.float32)                       # (G, C) raw global tokens
    g1, b1 = g1_ref[...], b1_ref[...]

    if sr > 1:
        # Conv2d(C, C, k=sr, s=sr) on norm1(x), decomposed into sr*sr lane-dense matmuls.
        # Phase ph = ki*sr + kj holds tokens (hs*sr+ki, ws*sr+kj); norm1 is fused per phase.
        Np = xp_ref.shape[2]
        acc = jnp.zeros((Np, C), jnp.float32)
        for ph in range(sr * sr):
            blk = _layernorm(xp_ref[0, ph].astype(jnp.float32), g1, b1, eps_ln)
            acc = acc + jnp.dot(blk.astype(jnp.bfloat16), wsr_ref[ph],
                                preferred_element_type=jnp.float32)
        tokens = _layernorm(acc + bsr_ref[...], gsr_ref[...], bsrb_ref[...], eps_sr)
    else:
        tokens = _layernorm(xp_ref[0, 0].astype(jnp.float32), g1, b1, eps_ln)

    # KV source ordered [tokens ; gt]: softmax over keys is permutation invariant (K and V
    # rows move together and never leave these kernels), and tokens-first keeps the hot
    # (Np, C) block at sublane offset 0.  gt rows are NOT layer-normed (matches reference).
    kv_src = jnp.concatenate([tokens, gt], axis=0).astype(jnp.bfloat16)     # (M, C)
    k_mat = jnp.dot(kv_src, wk_ref[...], preferred_element_type=jnp.float32) + bk_ref[...]
    v_mat = jnp.dot(kv_src, wv_ref[...], preferred_element_type=jnp.float32) + bv_ref[...]
    k_ref[0] = k_mat.astype(k_ref.dtype)
    v_ref[0] = v_mat.astype(v_ref.dtype)

    # Global-token queries (tiny: G rows) share the same K/V; attention scale is folded
    # into wq/bq in the wrapper.
    q_gt = jnp.dot(gt.astype(jnp.bfloat16), wq_ref[...],
                   preferred_element_type=jnp.float32) + bq_ref[...]
    o_gt = _mha_out(q_gt, k_mat, v_mat, wp_ref[...], num_heads)
    gt_out_ref[0] = (o_gt + bp_ref[...]).astype(gt_out_ref.dtype)


def _attn_kernel(x_ref, k_ref, v_ref, g1_ref, b1_ref, wq_ref, bq_ref,
                 wp_ref, bp_ref, o_ref, *, num_heads, eps_ln):
    """Per (batch, query-tile): fused norm1 -> Q proj -> attention -> out proj -> +residual."""
    x = x_ref[0].astype(jnp.float32)                         # (Tq, C) raw image tokens (skip)
    xn = _layernorm(x, g1_ref[...], b1_ref[...], eps_ln)     # norm1 fused (recomputed per tile)
    q = jnp.dot(xn.astype(jnp.bfloat16), wq_ref[...],
                preferred_element_type=jnp.float32) + bq_ref[...]
    out = _mha_out(q, k_ref[0], v_ref[0], wp_ref[...], num_heads)
    o_ref[0] = (x + out + bp_ref[...]).astype(o_ref.dtype)   # drop_path = identity (eval)


def _mlp_kernel(xc_ref, x_hbm, g2_ref, b2_ref, w1_ref, fb1_ref, dww_ref, dwb_ref,
                w2_ref, fb2_ref, o_ref, halo_buf, hid_ref, sem, *, W, Tn, eps_ln):
    """Per (batch, token-tile): norm2 -> fc1 -> 3x3 depthwise conv -> GELU -> fc2 -> +residual.

    The central (Tn, C) x block arrives through the auto-pipelined BlockSpec; only the tiny
    +-W halo rows are fetched with a manual DMA (overlapped with the central fc1 matmul).
    The 3x3 depthwise conv reads 9 static-offset slices of a zero-padded VMEM scratch; only
    the two dj=+-1 column masks are needed.
    """
    b = pl.program_id(0)
    t = pl.program_id(1)
    nt = pl.num_programs(1)
    start = pl.multiple_of(t * Tn, W)
    Hd = hid_ref.shape[-1]
    BASE = 8                                                 # aligned base offset of hid in scratch

    # Kick off the tiny halo DMAs; they overlap with the central fc1 matmul below.
    @pl.when(t > 0)
    def _():
        pltpu.make_async_copy(x_hbm.at[b, pl.ds(start - W, W), :],
                              halo_buf.at[pl.ds(0, W), :], sem.at[0]).start()

    @pl.when(t < nt - 1)
    def _():
        pltpu.make_async_copy(x_hbm.at[b, pl.ds(start + Tn, W), :],
                              halo_buf.at[pl.ds(W, W), :], sem.at[1]).start()

    g2, b2 = g2_ref[...], b2_ref[...]
    w1, fb1 = w1_ref[...], fb1_ref[...]

    # Central rows: norm2 + fc1 (the big matmul), stored into the padded scratch.
    x_c = xc_ref[0].astype(jnp.float32)                      # (Tn, C) post-attention residual
    hid_c = jnp.dot(_layernorm(x_c, g2, b2, eps_ln).astype(jnp.bfloat16), w1,
                    preferred_element_type=jnp.float32) + fb1
    hid_ref[pl.ds(BASE + W, Tn), :] = hid_c

    # Halo rows: wait for the DMAs, fc1 on (2W, C), scatter into the scratch pad regions.
    @pl.when(t > 0)
    def _():
        pltpu.make_async_copy(x_hbm.at[b, pl.ds(start - W, W), :],
                              halo_buf.at[pl.ds(0, W), :], sem.at[0]).wait()

    @pl.when(t < nt - 1)
    def _():
        pltpu.make_async_copy(x_hbm.at[b, pl.ds(start + Tn, W), :],
                              halo_buf.at[pl.ds(W, W), :], sem.at[1]).wait()

    x_h = halo_buf[...].astype(jnp.float32)                  # (2W, C); stale halves zeroed below
    hid_h = jnp.dot(_layernorm(x_h, g2, b2, eps_ln).astype(jnp.bfloat16), w1,
                    preferred_element_type=jnp.float32) + fb1
    hid_ref[pl.ds(BASE, W), :] = hid_h[:W]
    hid_ref[pl.ds(BASE + W + Tn, W), :] = hid_h[W:]

    # Zero padding at the image top / bottom (the 3x3 conv uses zero padding).
    @pl.when(t == 0)
    def _():
        hid_ref[pl.ds(BASE, W), :] = jnp.zeros((W, Hd), jnp.float32)

    @pl.when(t == nt - 1)
    def _():
        hid_ref[pl.ds(BASE + W + Tn, W), :] = jnp.zeros((W, Hd), jnp.float32)

    # 3x3 depthwise conv: 9 static-offset slices of the padded scratch (vld slot, no XLU
    # rolls); only the dj=+-1 column masks are needed (row padding handled by the scratch).
    col = jax.lax.broadcasted_iota(jnp.int32, (Tn, 1), 0) % W
    mask_l = col > 0
    mask_r = col < (W - 1)
    acc = jnp.zeros((Tn, Hd), jnp.float32)
    for ki in range(3):
        for kj in range(3):
            off = (ki - 1) * W + (kj - 1)
            tap = hid_ref[pl.ds(BASE + W + off, Tn), :]
            if kj == 0:
                tap = jnp.where(mask_l, tap, 0.0)
            elif kj == 2:
                tap = jnp.where(mask_r, tap, 0.0)
            acc = acc + tap * dww_ref[ki * 3 + kj]
    g = _gelu_tanh(acc + dwb_ref[...])

    out = jnp.dot(g.astype(jnp.bfloat16), w2_ref[...],
                  preferred_element_type=jnp.float32) + fb2_ref[...]
    o_ref[0] = (x_c + out).astype(o_ref.dtype)               # drop_path = identity (eval)


# --------------------------------- wrappers -----------------------------------

def _rep_spec(shape):
    """Full-array spec replicated across all grid steps (weights / LN params / biases)."""
    n = len(shape)
    return pl.BlockSpec(shape, lambda *_, _n=n: (0,) * _n)


def _device_kind():
    try:
        return jax.devices()[0].device_kind.lower()
    except Exception:
        return ""


def _vmem_hard_cap():
    """Generation-aware scoped-VMEM ceiling: ~48 MiB on 64-MiB parts, ~96 MiB on 128-MiB parts."""
    cap = 64 << 20
    try:
        cap = int(pltpu.get_tpu_info().vmem_capacity_bytes)
    except Exception:
        pass
    return min((cap * 3) // 4, 100 << 20)


def _compiler_params(dimension_semantics, blocks):
    """Budget scoped VMEM from the actual per-step blocks (double-buffered) + headroom."""
    total = 0
    for shape, dtype in blocks:
        n = 1
        for d in shape:
            n *= int(d)
        total += 2 * n * jnp.dtype(dtype).itemsize
    limit = int(min(max(3 * total + (2 << 20), 32 << 20), _vmem_hard_cap()))
    return pltpu.CompilerParams(dimension_semantics=dimension_semantics,
                                vmem_limit_bytes=limit)


def _pick_q_tile(n, m):
    # v5e: smaller effective MXU / single vst slot -> cap the query tile at 256.
    cap = 256 if "v5" in _device_kind() else 512
    # Bound the (Tq, M) f32 softmax temporaries (s and p) to ~16 MiB.
    while cap > 64 and cap * m * 8 > (16 << 20):
        cap //= 2
    t = cap
    while t >= 8:
        if n % t == 0:
            return t
        t //= 2
    return n


def _pick_mlp_tile(H, W):
    # Largest whole-image-row tile (multiple of W, divides N) up to ~2048 tokens.
    best = 1
    for tr in range(1, H + 1):
        if H % tr == 0 and tr * W <= 2048:
            best = tr
    return best * W


def block_forward(x, gt, H, W, p):
    """x: (B, H*W, C) tokens; gt: (gt_num, C) or (B, gt_num, C) global tokens."""
    B, N_, C = x.shape
    G, sr, heads = p["gt_num"], p["sr_ratio"], p["num_heads"]
    dh = C // heads
    scale = float(dh) ** -0.5
    bf16 = jnp.bfloat16

    gt_b = gt if gt.ndim == 3 else jnp.broadcast_to(gt[None], (B, G, C))

    # Weights used on the MXU are cast once to bf16; biases / LN params stay f32.
    # The attention scale is folded into the Q projection (saves a (Tq, M) VPU multiply).
    wq = (p["wq"] * scale).astype(bf16)
    bq = p["bq"] * scale
    # Split the fused KV projection so both halves store lane-dense (C often % 128 != 0).
    wk = p["wkv"][:, :C].astype(bf16)
    wv = p["wkv"][:, C:].astype(bf16)
    bk = p["bkv"][:, :C]
    bv = p["bkv"][:, C:]
    wp, bp = p["wp"].astype(bf16), p["bp"]
    wsr = p["w_sr"].astype(bf16)
    w1, w2 = p["w1"].astype(bf16), p["w2"].astype(bf16)

    # Spatial-reduction patchify of RAW x (norm1 applied per-token inside the kernel).
    # TODO(synk): fold this XLA transpose into the kv-prep DMA (strided / phase-axis BlockSpec)
    # to save one extra HBM round trip of x at large shapes.
    if sr > 1:
        Hs, Ws = H // sr, W // sr
        Np = Hs * Ws
        sr2 = sr * sr
        xpatch = (x.reshape(B, Hs, sr, Ws, sr, C)
                   .transpose(0, 2, 4, 1, 3, 5)
                   .reshape(B, sr2, Np, C))
    else:
        Np, sr2 = N_, 1
        xpatch = x.reshape(B, 1, N_, C)
    M = Np + G

    # ---- 1) kv-prep: K, V (bf16) + gt-token attention output ------------------------------
    k_arr, v_arr, gt_out = pl.pallas_call(
        partial(_kv_prep_kernel, sr=sr, num_heads=heads,
                eps_ln=1e-6, eps_sr=1e-5),    # norm1 eps=1e-6 (SegFormer), SR LN eps=1e-5
        out_shape=(jax.ShapeDtypeStruct((B, M, C), bf16),
                   jax.ShapeDtypeStruct((B, M, C), bf16),
                   jax.ShapeDtypeStruct((B, G, C), x.dtype)),
        grid=(B,),
        in_specs=[
            pl.BlockSpec((1, sr2, Np, C), lambda b: (b, 0, 0, 0)),
            pl.BlockSpec((1, G, C), lambda b: (b, 0, 0)),
            _rep_spec(p["g1"].shape), _rep_spec(p["b1"].shape),
            _rep_spec(wsr.shape), _rep_spec(p["b_sr"].shape),
            _rep_spec(p["g_srn"].shape), _rep_spec(p["b_srn"].shape),
            _rep_spec(wq.shape), _rep_spec(bq.shape),
            _rep_spec(wk.shape), _rep_spec(bk.shape),
            _rep_spec(wv.shape), _rep_spec(bv.shape),
            _rep_spec(wp.shape), _rep_spec(bp.shape),
        ],
        out_specs=(pl.BlockSpec((1, M, C), lambda b: (b, 0, 0)),
                   pl.BlockSpec((1, M, C), lambda b: (b, 0, 0)),
                   pl.BlockSpec((1, G, C), lambda b: (b, 0, 0))),
        compiler_params=_compiler_params(
            ("parallel",),
            [((1, sr2, Np, C), x.dtype), ((1, G, C), x.dtype),
             (wsr.shape, bf16), (wq.shape, bf16), (wk.shape, bf16),
             (wv.shape, bf16), (wp.shape, bf16),
             ((1, M, C), bf16), ((1, M, C), bf16), ((1, G, C), x.dtype),
             ((M, 3 * C), jnp.float32)]),
    )(xpatch, gt_b, p["g1"], p["b1"], wsr, p["b_sr"], p["g_srn"], p["b_srn"],
      wq, bq, wk, bk, wv, bv, wp, bp)

    # ---- 2) attention over query tiles (norm1, Q proj, softmax, out proj, +residual) ------
    Tq = _pick_q_tile(N_, M)
    nq = N_ // Tq
    x1 = pl.pallas_call(
        partial(_attn_kernel, num_heads=heads, eps_ln=1e-6),
        out_shape=jax.ShapeDtypeStruct((B, N_, C), x.dtype),
        grid=(B, nq),
        in_specs=[
            pl.BlockSpec((1, Tq, C), lambda b, q: (b, q, 0)),
            pl.BlockSpec((1, M, C), lambda b, q: (b, 0, 0)),
            pl.BlockSpec((1, M, C), lambda b, q: (b, 0, 0)),
            _rep_spec(p["g1"].shape), _rep_spec(p["b1"].shape),
            _rep_spec(wq.shape), _rep_spec(bq.shape),
            _rep_spec(wp.shape), _rep_spec(bp.shape),
        ],
        out_specs=pl.BlockSpec((1, Tq, C), lambda b, q: (b, q, 0)),
        compiler_params=_compiler_params(
            ("parallel", "parallel"),
            [((1, Tq, C), x.dtype), ((1, M, C), bf16), ((1, M, C), bf16),
             (wq.shape, bf16), (wp.shape, bf16), ((1, Tq, C), x.dtype),
             ((Tq, M), jnp.float32), ((Tq, M), jnp.float32)]),
    )(x, k_arr, v_arr, p["g1"], p["b1"], wq, bq, wp, bp)

    # ---- 3) MLP (token-tiled: norm2, fc1, depthwise 3x3 via padded scratch, GELU, fc2) ----
    Hd = w1.shape[1]
    Tn = _pick_mlp_tile(H, W)
    nt = N_ // Tn
    x2 = pl.pallas_call(
        partial(_mlp_kernel, W=W, Tn=Tn, eps_ln=1e-6),
        out_shape=jax.ShapeDtypeStruct((B, N_, C), x.dtype),
        grid=(B, nt),
        in_specs=[
            pl.BlockSpec((1, Tn, C), lambda b, t: (b, t, 0)),
            pl.BlockSpec(memory_space=pl.ANY),            # same x1, raw HBM ref for halo DMA
            _rep_spec(p["g2"].shape), _rep_spec(p["b2"].shape),
            _rep_spec(w1.shape), _rep_spec(p["b1m"].shape),
            _rep_spec(p["dww"].shape), _rep_spec(p["dwb"].shape),
            _rep_spec(w2.shape), _rep_spec(p["b2m"].shape),
        ],
        out_specs=pl.BlockSpec((1, Tn, C), lambda b, t: (b, t, 0)),
        scratch_shapes=[pltpu.VMEM((2 * W, C), x.dtype),
                        pltpu.VMEM((Tn + 2 * W + 16, Hd), jnp.float32),
                        pltpu.SemaphoreType.DMA((2,))],
        compiler_params=_compiler_params(
            ("parallel", "parallel"),
            [((1, Tn, C), x.dtype), (w1.shape, bf16), (w2.shape, bf16),
             (p["dww"].shape, jnp.float32), ((1, Tn, C), x.dtype),
             ((Tn + 2 * W + 16, Hd), jnp.float32),
             ((Tn, Hd), jnp.float32), ((Tn, Hd), jnp.float32)]),
    )(x1, x1, p["g2"], p["b2"], w1, p["b1m"], p["dww"], p["dwb"], w2, p["b2m"])

    return x2, gt_out


# ------------------------------ parameter setup --------------------------------

def init_params(key, C, heads, gt_num, sr, mlp_ratio):
    Hd = C * mlp_ratio
    ks = jax.random.split(key, 14)
    nrm = lambda k, s: 0.02 * jax.random.normal(k, s, jnp.float32)

    wq, bq = nrm(ks[0], (C, C)), nrm(ks[1], (1, C))
    wkv, bkv = nrm(ks[2], (C, 2 * C)), nrm(ks[3], (1, 2 * C))
    wp, bp = nrm(ks[4], (C, C)), nrm(ks[5], (1, C))
    sr2 = sr * sr if sr > 1 else 1
    # SR conv weight convention: w_sr[k, ci, co] == torch_conv_w[co, ci, k // sr, k % sr]
    w_sr, b_sr = nrm(ks[6], (sr2, C, C)), nrm(ks[7], (1, C))
    w1, b1m = nrm(ks[8], (C, Hd)), nrm(ks[9], (1, Hd))
    # depthwise conv weight convention: dww[k, 0, c] == torch_dw_w[c, 0, k // 3, k % 3]
    dww, dwb = nrm(ks[10], (9, 1, Hd)), nrm(ks[11], (1, Hd))
    w2, b2m = nrm(ks[12], (Hd, C)), nrm(ks[13], (1, C))

    return dict(
        gt_num=gt_num, sr_ratio=sr, num_heads=heads,
        g1=jnp.ones((1, C), jnp.float32), b1=jnp.zeros((1, C), jnp.float32),
        g2=jnp.ones((1, C), jnp.float32), b2=jnp.zeros((1, C), jnp.float32),
        g_srn=jnp.ones((1, C), jnp.float32), b_srn=jnp.zeros((1, C), jnp.float32),
        wq=wq, bq=bq, wkv=wkv, bkv=bkv, wp=wp, bp=bp,
        w_sr=w_sr, b_sr=b_sr,
        w1=w1, b1m=b1m, dww=dww, dwb=dwb, w2=w2, b2m=b2m,
    )


# ----------------------------------- main --------------------------------------

if __name__ == "__main__":
    B, H, W, C = 2, 8, 8, 64
    num_heads, gt_num, sr_ratio, mlp_ratio = 2, 1, 2, 4

    key = jax.random.PRNGKey(0)
    k_x, k_gt, k_p = jax.random.split(key, 3)
    x = jax.random.normal(k_x, (B, H * W, C), jnp.float32)
    gt = jax.random.normal(k_gt, (gt_num, C), jnp.float32)
    params = init_params(k_p, C, num_heads, gt_num, sr_ratio, mlp_ratio)

    fwd = jax.jit(lambda xx, gg: block_forward(xx, gg, H, W, params))
    out_x, out_gt = fwd(x, gt)
    jax.block_until_ready((out_x, out_gt))
    assert out_x.shape == (B, H * W, C) and out_gt.shape == (B, gt_num, C)
    print("KERNEL_OK")
</pallas_src>

<mosaic_0001>
module attributes {stable_mosaic.version = 11 : i64} {
  func.func @_attn_kernel(%arg0: i32, %arg1: i32, %arg2: memref<1x64x64xf32, #tpu.memory_space<vmem>>, %arg3: memref<1x17x64xbf16, #tpu.memory_space<vmem>>, %arg4: memref<1x17x64xbf16, #tpu.memory_space<vmem>>, %arg5: memref<1x64xf32, #tpu.memory_space<vmem>>, %arg6: memref<1x64xf32, #tpu.memory_space<vmem>>, %arg7: memref<64x64xbf16, #tpu.memory_space<vmem>>, %arg8: memref<1x64xf32, #tpu.memory_space<vmem>>, %arg9: memref<64x64xbf16, #tpu.memory_space<vmem>>, %arg10: memref<1x64xf32, #tpu.memory_space<vmem>>, %arg11: memref<1x64x64xf32, #tpu.memory_space<vmem>>) attributes {dimension_semantics = [#tpu.dimension_semantics<parallel>, #tpu.dimension_semantics<parallel>], iteration_bounds = array<i64: 2, 1>, scalar_prefetch = 0 : i64, scratch_operands = 0 : i64, tpu.core_type = #tpu.core_type<tc>, window_params = [{transform_indices = @transform_0, window_bounds = array<i64: 1, 64, 64>}, {transform_indices = @transform_1, window_bounds = array<i64: 1, 17, 64>}, {transform_indices = @transform_2, window_bounds = array<i64: 1, 17, 64>}, {pipeline_mode = #tpu.pipeline_mode<synchronous>, transform_indices = @transform_3, window_bounds = array<i64: 1, 64>}, {pipeline_mode = #tpu.pipeline_mode<synchronous>, transform_indices = @transform_4, window_bounds = array<i64: 1, 64>}, {pipeline_mode = #tpu.pipeline_mode<synchronous>, transform_indices = @transform_5, window_bounds = array<i64: 64, 64>}, {pipeline_mode = #tpu.pipeline_mode<synchronous>, transform_indices = @transform_6, window_bounds = array<i64: 1, 64>}, {pipeline_mode = #tpu.pipeline_mode<synchronous>, transform_indices = @transform_7, window_bounds = array<i64: 64, 64>}, {pipeline_mode = #tpu.pipeline_mode<synchronous>, transform_indices = @transform_8, window_bounds = array<i64: 1, 64>}, {transform_indices = @transform_9, window_bounds = array<i64: 1, 64, 64>}]} {
    %c0 = arith.constant 0 : index
    %c0_0 = arith.constant 0 : index
    %c0_1 = arith.constant 0 : index
    %0 = vector.load %arg2[%c0, %c0_0, %c0_1] : memref<1x64x64xf32, #tpu.memory_space<vmem>>, vector<1x64x64xf32>
    %1 = vector.shape_cast %0 : vector<1x64x64xf32> to vector<64x64xf32>
    %c0_2 = arith.constant 0 : index
    %c0_3 = arith.constant 0 : index
    %2 = vector.load %arg5[%c0_2, %c0_3] : memref<1x64xf32, #tpu.memory_space<vmem>>, vector<1x64xf32>
    %c0_4 = arith.constant 0 : index
    %c0_5 = arith.constant 0 : index
    %3 = vector.load %arg6[%c0_4, %c0_5] : memref<1x64xf32, #tpu.memory_space<vmem>>, vector<1x64xf32>
    %cst = arith.constant dense<0.000000e+00> : vector<64xf32>
    %4 = vector.multi_reduction <add>, %1, %cst [1] : vector<64x64xf32> to vector<64xf32>
    %5 = vector.shape_cast %4 : vector<64xf32> to vector<64x1xf32>
    %cst_6 = arith.constant 6.400000e+01 : f32
    %6 = vector.broadcast %cst_6 : f32 to vector<64x1xf32>
    %7 = arith.divf %5, %6 : vector<64x1xf32>
    %8 = vector.broadcast %7 : vector<64x1xf32> to vector<64x64xf32>
    %9 = arith.subf %1, %8 : vector<64x64xf32>
    %10 = arith.mulf %9, %9 : vector<64x64xf32>
    %cst_7 = arith.constant dense<0.000000e+00> : vector<64xf32>
    %11 = vector.multi_reduction <add>, %10, %cst_7 [1] : vector<64x64xf32> to vector<64xf32>
    %12 = vector.shape_cast %11 : vector<64xf32> to vector<64x1xf32>
    %cst_8 = arith.constant 6.400000e+01 : f32
    %13 = vector.broadcast %cst_8 : f32 to vector<64x1xf32>
    %14 = arith.divf %12, %13 : vector<64x1xf32>
    %cst_9 = arith.constant 9.99999997E-7 : f32
    %15 = vector.broadcast %cst_9 : f32 to vector<64x1xf32>
    %16 = arith.addf %14, %15 : vector<64x1xf32>
    %17 = math.rsqrt %16 : vector<64x1xf32>
    %18 = vector.broadcast %17 : vector<64x1xf32> to vector<64x64xf32>
    %19 = arith.mulf %9, %18 : vector<64x64xf32>
    %20 = vector.broadcast %2 : vector<1x64xf32> to vector<64x64xf32>
    %21 = arith.mulf %19, %20 : vector<64x64xf32>
    %22 = vector.broadcast %3 : vector<1x64xf32> to vector<64x64xf32>
    %23 = arith.addf %21, %22 : vector<64x64xf32>
    %24 = arith.truncf %23 : vector<64x64xf32> to vector<64x64xbf16>
    %c0_10 = arith.constant 0 : index
    %c0_11 = arith.constant 0 : index
    %25 = vector.load %arg7[%c0_10, %c0_11] : memref<64x64xbf16, #tpu.memory_space<vmem>>, vector<64x64xbf16>
    %cst_12 = arith.constant dense<0.000000e+00> : vector<64x64xf32>
    %26 = tpu.matmul %24, %25, %cst_12 {dimension_numbers = #tpu.dot_dimension_numbers<[1], [0], [0], [1], [0, 0, 1, 1], [], []>} : vector<64x64xbf16>, vector<64x64xbf16>, vector<64x64xf32> -> vector<64x64xf32>
    %c0_13 = arith.constant 0 : index
    %c0_14 = arith.constant 0 : index
    %27 = vector.load %arg8[%c0_13, %c0_14] : memref<1x64xf32, #tpu.memory_space<vmem>>, vector<1x64xf32>
    %28 = vector.broadcast %27 : vector<1x64xf32> to vector<64x64xf32>
    %29 = arith.addf %26, %28 : vector<64x64xf32>
    %c0_15 = arith.constant 0 : index
    %c0_16 = arith.constant 0 : index
    %c0_17 = arith.constant 0 : index
    %30 = vector.load %arg3[%c0_15, %c0_16, %c0_17] : memref<1x17x64xbf16, #tpu.memory_space<vmem>>, vector<1x17x64xbf16>
    %31 = vector.shape_cast %30 : vector<1x17x64xbf16> to vector<17x64xbf16>
    %c0_18 = arith.constant 0 : index
    %c0_19 = arith.constant 0 : index
    %c0_20 = arith.constant 0 : index
    %32 = vector.load %arg4[%c0_18, %c0_19, %c0_20] : memref<1x17x64xbf16, #tpu.memory_space<vmem>>, vector<1x17x64xbf16>
    %33 = vector.shape_cast %32 : vector<1x17x64xbf16> to vector<17x64xbf16>
    %c0_21 = arith.constant 0 : index
    %c0_22 = arith.constant 0 : index
    %34 = vector.load %arg9[%c0_21, %c0_22] : memref<64x64xbf16, #tpu.memory_space<vmem>>, vector<64x64xbf16>
    %cst_23 = arith.constant 0.000000e+00 : f32
    %35 = vector.broadcast %cst_23 : f32 to vector<64x64xf32>
    %36 = vector.extract_strided_slice %29 {offsets = [0, 0], sizes = [64, 32], strides = [1, 1]} : vector<64x64xf32> to vector<64x32xf32>
    %37 = arith.truncf %36 : vector<64x32xf32> to vector<64x32xbf16>
    %38 = vector.extract_strided_slice %31 {offsets = [0, 0], sizes = [17, 32], strides = [1, 1]} : vector<17x64xbf16> to vector<17x32xbf16>
    %39 = vector.extract_strided_slice %33 {offsets = [0, 0], sizes = [17, 32], strides = [1, 1]} : vector<17x64xbf16> to vector<17x32xbf16>
    %cst_24 = arith.constant dense<0.000000e+00> : vector<64x17xf32>
    %40 = tpu.matmul %37, %38, %cst_24 {dimension_numbers = #tpu.dot_dimension_numbers<[1], [1], [0], [0], [0, 0, 1, 0], [], []>} : vector<64x32xbf16>, vector<17x32xbf16>, vector<64x17xf32> -> vector<64x17xf32>
    %cst_25 = arith.constant dense<0xFF800000> : vector<64xf32>
    %41 = vector.multi_reduction <maximumf>, %40, %cst_25 [1] : vector<64x17xf32> to vector<64xf32>
    %42 = vector.shape_cast %41 : vector<64xf32> to vector<64x1xf32>
    %43 = vector.broadcast %42 : vector<64x1xf32> to vector<64x17xf32>
    %44 = arith.subf %40, %43 : vector<64x17xf32>
    %45 = math.exp %44 : vector<64x17xf32>
    %cst_26 = arith.constant dense<0.000000e+00> : vector<64xf32>
    %46 = vector.multi_reduction <add>, %45, %cst_26 [1] : vector<64x17xf32> to vector<64xf32>
    %47 = vector.shape_cast %46 : vector<64xf32> to vector<64x1xf32>
    %48 = arith.truncf %45 : vector<64x17xf32> to vector<64x17xbf16>
    %cst_27 = arith.constant dense<0.000000e+00> : vector<64x32xf32>
    %49 = tpu.matmul %48, %39, %cst_27 {dimension_numbers = #tpu.dot_dimension_numbers<[1], [0], [0], [1], [0, 0, 1, 1], [], []>} : vector<64x17xbf16>, vector<17x32xbf16>, vector<64x32xf32> -> vector<64x32xf32>
    %50 = tpu.reciprocal %47 {approx = true} : vector<64x1xf32> -> vector<64x1xf32>
    %51 = vector.broadcast %50 : vector<64x1xf32> to vector<64x32xf32>
    %52 = arith.mulf %49, %51 : vector<64x32xf32>
    %53 = arith.truncf %52 : vector<64x32xf32> to vector<64x32xbf16>
    %54 = vector.extract_strided_slice %34 {offsets = [0, 0], sizes = [32, 64], strides = [1, 1]} : vector<64x64xbf16> to vector<32x64xbf16>
    %cst_28 = arith.constant dense<0.000000e+00> : vector<64x64xf32>
    %55 = tpu.matmul %53, %54, %cst_28 {dimension_numbers = #tpu.dot_dimension_numbers<[1], [0], [0], [1], [0, 0, 1, 1], [], []>} : vector<64x32xbf16>, vector<32x64xbf16>, vector<64x64xf32> -> vector<64x64xf32>
    %56 = arith.addf %35, %55 : vector<64x64xf32>
    %57 = vector.extract_strided_slice %29 {offsets = [0, 32], sizes = [64, 32], strides = [1, 1]} : vector<64x64xf32> to vector<64x32xf32>
    %58 = arith.truncf %57 : vector<64x32xf32> to vector<64x32xbf16>
    %59 = vector.extract_strided_slice %31 {offsets = [0, 32], sizes = [17, 32], strides = [1, 1]} : vector<17x64xbf16> to vector<17x32xbf16>
    %60 = vector.extract_strided_slice %33 {offsets = [0, 32], sizes = [17, 32], strides = [1, 1]} : vector<17x64xbf16> to vector<17x32xbf16>
    %cst_29 = arith.constant dense<0.000000e+00> : vector<64x17xf32>
    %61 = tpu.matmul %58, %59, %cst_29 {dimension_numbers = #tpu.dot_dimension_numbers<[1], [1], [0], [0], [0, 0, 1, 0], [], []>} : vector<64x32xbf16>, vector<17x32xbf16>, vector<64x17xf32> -> vector<64x17xf32>
    %cst_30 = arith.constant dense<0xFF800000> : vector<64xf32>
    %62 = vector.multi_reduction <maximumf>, %61, %cst_30 [1] : vector<64x17xf32> to vector<64xf32>
    %63 = vector.shape_cast %62 : vector<64xf32> to vector<64x1xf32>
    %64 = vector.broadcast %63 : vector<64x1xf32> to vector<64x17xf32>
    %65 = arith.subf %61, %64 : vector<64x17xf32>
    %66 = math.exp %65 : vector<64x17xf32>
    %cst_31 = arith.constant dense<0.000000e+00> : vector<64xf32>
    %67 = vector.multi_reduction <add>, %66, %cst_31 [1] : vector<64x17xf32> to vector<64xf32>
    %68 = vector.shape_cast %67 : vector<64xf32> to vector<64x1xf32>
    %69 = arith.truncf %66 : vector<64x17xf32> to vector<64x17xbf16>
    %cst_32 = arith.constant dense<0.000000e+00> : vector<64x32xf32>
    %70 = tpu.matmul %69, %60, %cst_32 {dimension_numbers = #tpu.dot_dimension_numbers<[1], [0], [0], [1], [0, 0, 1, 1], [], []>} : vector<64x17xbf16>, vector<17x32xbf16>, vector<64x32xf32> -> vector<64x32xf32>
    %71 = tpu.reciprocal %68 {approx = true} : vector<64x1xf32> -> vector<64x1xf32>
    %72 = vector.broadcast %71 : vector<64x1xf32> to vector<64x32xf32>
    %73 = arith.mulf %70, %72 : vector<64x32xf32>
    %74 = arith.truncf %73 : vector<64x32xf32> to vector<64x32xbf16>
    %75 = vector.extract_strided_slice %34 {offsets = [32, 0], sizes = [32, 64], strides = [1, 1]} : vector<64x64xbf16> to vector<32x64xbf16>
    %cst_33 = arith.constant dense<0.000000e+00> : vector<64x64xf32>
    %76 = tpu.matmul %74, %75, %cst_33 {dimension_numbers = #tpu.dot_dimension_numbers<[1], [0], [0], [1], [0, 0, 1, 1], [], []>} : vector<64x32xbf16>, vector<32x64xbf16>, vector<64x64xf32> -> vector<64x64xf32>
    %77 = arith.addf %56, %76 : vector<64x64xf32>
    %78 = arith.addf %1, %77 : vector<64x64xf32>
    %c0_34 = arith.constant 0 : index
    %c0_35 = arith.constant 0 : index
    %79 = vector.load %arg10[%c0_34, %c0_35] : memref<1x64xf32, #tpu.memory_space<vmem>>, vector<1x64xf32>
    %80 = vector.broadcast %79 : vector<1x64xf32> to vector<64x64xf32>
    %81 = arith.addf %78, %80 : vector<64x64xf32>
    %c0_36 = arith.constant 0 : index
    %c0_37 = arith.constant 0 : index
    %c0_38 = arith.constant 0 : index
    %82 = vector.load %arg11[%c0_36, %c0_37, %c0_38] : memref<1x64x64xf32, #tpu.memory_space<vmem>>, vector<1x64x64xf32>
    %83 = vector.shape_cast %82 : vector<1x64x64xf32> to vector<64x64xf32>
    %84 = vector.shape_cast %81 : vector<64x64xf32> to vector<1x64x64xf32>
    tpu.vector_store %arg11[%c0_36, %c0_37, %c0_38], %84 {strides = array<i32>} : memref<1x64x64xf32, #tpu.memory_space<vmem>>, vector<1x64x64xf32>,
    return
  }
  func.func @transform_0(%arg0: i32, %arg1: i32) -> (i32, i32, i32) {
    %c0_i32 = arith.constant 0 : i32
    %c0_i32_0 = arith.constant 0 : i32
    return %arg0, %arg1, %c0_i32 : i32, i32, i32
  }
  func.func @transform_1(%arg0: i32, %arg1: i32) -> (i32, i32, i32) {
    %c0_i32 = arith.constant 0 : i32
    %c0_i32_0 = arith.constant 0 : i32
    %c0_i32_1 = arith.constant 0 : i32
    return %arg0, %c0_i32, %c0_i32_0 : i32, i32, i32
  }
  func.func @transform_2(%arg0: i32, %arg1: i32) -> (i32, i32, i32) {
    %c0_i32 = arith.constant 0 : i32
    %c0_i32_0 = arith.constant 0 : i32
    %c0_i32_1 = arith.constant 0 : i32
    return %arg0, %c0_i32, %c0_i32_0 : i32, i32, i32
  }
  func.func @transform_3(%arg0: i32, %arg1: i32) -> (i32, i32) {
    %c0_i32 = arith.constant 0 : i32
    %c0_i32_0 = arith.constant 0 : i32
    %c0_i32_1 = arith.constant 0 : i32
    return %c0_i32, %c0_i32_0 : i32, i32
  }
  func.func @transform_4(%arg0: i32, %arg1: i32) -> (i32, i32) {
    %c0_i32 = arith.constant 0 : i32
    %c0_i32_0 = arith.constant 0 : i32
    %c0_i32_1 = arith.constant 0 : i32
    return %c0_i32, %c0_i32_0 : i32, i32
  }
  func.func @transform_5(%arg0: i32, %arg1: i32) -> (i32, i32) {
    %c0_i32 = arith.constant 0 : i32
    %c0_i32_0 = arith.constant 0 : i32
    %c0_i32_1 = arith.constant 0 : i32
    return %c0_i32, %c0_i32_0 : i32, i32
  }
  func.func @transform_6(%arg0: i32, %arg1: i32) -> (i32, i32) {
    %c0_i32 = arith.constant 0 : i32
    %c0_i32_0 = arith.constant 0 : i32
    %c0_i32_1 = arith.constant 0 : i32
    return %c0_i32, %c0_i32_0 : i32, i32
  }
  func.func @transform_7(%arg0: i32, %arg1: i32) -> (i32, i32) {
    %c0_i32 = arith.constant 0 : i32
    %c0_i32_0 = arith.constant 0 : i32
    %c0_i32_1 = arith.constant 0 : i32
    return %c0_i32, %c0_i32_0 : i32, i32
  }
  func.func @transform_8(%arg0: i32, %arg1: i32) -> (i32, i32) {
    %c0_i32 = arith.constant 0 : i32
    %c0_i32_0 = arith.constant 0 : i32
    %c0_i32_1 = arith.constant 0 : i32
    return %c0_i32, %c0_i32_0 : i32, i32
  }
  func.func @transform_9(%arg0: i32, %arg1: i32) -> (i32, i32, i32) {
    %c0_i32 = arith.constant 0 : i32
    %c0_i32_0 = arith.constant 0 : i32
    return %arg0, %arg1, %c0_i32 : i32, i32, i32
  }
}

module attributes {stable_mosaic.version = 11 : i64} {
  func.func @_kv_prep_kernel(%arg0: i32, %arg1: memref<1x4x16x64xf32, #tpu.memory_space<vmem>>, %arg2: memref<1x1x64xf32, #tpu.memory_space<vmem>>, %arg3: memref<1x64xf32, #tpu.memory_space<vmem>>, %arg4: memref<1x64xf32, #tpu.memory_space<vmem>>, %arg5: memref<4x64x64xbf16, #tpu.memory_space<vmem>>, %arg6: memref<1x64xf32, #tpu.memory_space<vmem>>, %arg7: memref<1x64xf32, #tpu.memory_space<vmem>>, %arg8: memref<1x64xf32, #tpu.memory_space<vmem>>, %arg9: memref<64x64xbf16, #tpu.memory_space<vmem>>, %arg10: memref<1x64xf32, #tpu.memory_space<vmem>>, %arg11: memref<64x64xbf16, #tpu.memory_space<vmem>>, %arg12: memref<1x64xf32, #tpu.memory_space<vmem>>, %arg13: memref<64x64xbf16, #tpu.memory_space<vmem>>, %arg14: memref<1x64xf32, #tpu.memory_space<vmem>>, %arg15: memref<64x64xbf16, #tpu.memory_space<vmem>>, %arg16: memref<1x64xf32, #tpu.memory_space<vmem>>, %arg17: memref<1x17x64xbf16, #tpu.memory_space<vmem>>, %arg18: memref<1x17x64xbf16, #tpu.memory_space<vmem>>, %arg19: memref<1x1x64xf32, #tpu.memory_space<vmem>>) attributes {dimension_semantics = [#tpu.dimension_semantics<parallel>], iteration_bounds = array<i64: 2>, scalar_prefetch = 0 : i64, scratch_operands = 0 : i64, tpu.core_type = #tpu.core_type<tc>, window_params = [{transform_indices = @transform_0, window_bounds = array<i64: 1, 4, 16, 64>}, {transform_indices = @transform_1, window_bounds = array<i64: 1, 1, 64>}, {pipeline_mode = #tpu.pipeline_mode<synchronous>, transform_indices = @transform_2, window_bounds = array<i64: 1, 64>}, {pipeline_mode = #tpu.pipeline_mode<synchronous>, transform_indices = @transform_3, window_bounds = array<i64: 1, 64>}, {pipeline_mode = #tpu.pipeline_mode<synchronous>, transform_indices = @transform_4, window_bounds = array<i64: 4, 64, 64>}, {pipeline_mode = #tpu.pipeline_mode<synchronous>, transform_indices = @transform_5, window_bounds = array<i64: 1, 64>}, {pipeline_mode = #tpu.pipeline_mode<synchronous>, transform_indices = @transform_6, window_bounds = array<i64: 1, 64>}, {pipeline_mode = #tpu.pipeline_mode<synchronous>, transform_indices = @transform_7, window_bounds = array<i64: 1, 64>}, {pipeline_mode = #tpu.pipeline_mode<synchronous>, transform_indices = @transform_8, window_bounds = array<i64: 64, 64>}, {pipeline_mode = #tpu.pipeline_mode<synchronous>, transform_indices = @transform_9, window_bounds = array<i64: 1, 64>}, {pipeline_mode = #tpu.pipeline_mode<synchronous>, transform_indices = @transform_10, window_bounds = array<i64: 64, 64>}, {pipeline_mode = #tpu.pipeline_mode<synchronous>, transform_indices = @transform_11, window_bounds = array<i64: 1, 64>}, {pipeline_mode = #tpu.pipeline_mode<synchronous>, transform_indices = @transform_12, window_bounds = array<i64: 64, 64>}, {pipeline_mode = #tpu.pipeline_mode<synchronous>, transform_indices = @transform_13, window_bounds = array<i64: 1, 64>}, {pipeline_mode = #tpu.pipeline_mode<synchronous>, transform_indices = @transform_14, window_bounds = array<i64: 64, 64>}, {pipeline_mode = #tpu.pipeline_mode<synchronous>, transform_indices = @transform_15, window_bounds = array<i64: 1, 64>}, {transform_indices = @transform_16, window_bounds = array<i64: 1, 17, 64>}, {transform_indices = @transform_17, window_bounds = array<i64: 1, 17, 64>}, {transform_indices = @transform_18, window_bounds = array<i64: 1, 1, 64>}]} {
    %c0 = arith.constant 0 : index
    %c0_0 = arith.constant 0 : index
    %c0_1 = arith.constant 0 : index
    %0 = vector.load %arg2[%c0, %c0_0, %c0_1] : memref<1x1x64xf32, #tpu.memory_space<vmem>>, vector<1x1x64xf32>
    %1 = vector.shape_cast %0 : vector<1x1x64xf32> to vector<1x64xf32>
    %c0_2 = arith.constant 0 : index
    %c0_3 = arith.constant 0 : index
    %2 = vector.load %arg3[%c0_2, %c0_3] : memref<1x64xf32, #tpu.memory_space<vmem>>, vector<1x64xf32>
    %c0_4 = arith.constant 0 : index
    %c0_5 = arith.constant 0 : index
    %3 = vector.load %arg4[%c0_4, %c0_5] : memref<1x64xf32, #tpu.memory_space<vmem>>, vector<1x64xf32>
    %cst = arith.constant 0.000000e+00 : f32
    %4 = vector.broadcast %cst : f32 to vector<16x64xf32>
    %c0_6 = arith.constant 0 : index
    %c0_7 = arith.constant 0 : index
    %c0_8 = arith.constant 0 : index
    %c0_9 = arith.constant 0 : index
    %5 = vector.load %arg1[%c0_6, %c0_7, %c0_8, %c0_9] : memref<1x4x16x64xf32, #tpu.memory_space<vmem>>, vector<1x1x16x64xf32>
    %6 = vector.shape_cast %5 : vector<1x1x16x64xf32> to vector<16x64xf32>
    %cst_10 = arith.constant dense<0.000000e+00> : vector<16xf32>
    %7 = vector.multi_reduction <add>, %6, %cst_10 [1] : vector<16x64xf32> to vector<16xf32>
    %8 = vector.shape_cast %7 : vector<16xf32> to vector<16x1xf32>
    %cst_11 = arith.constant 6.400000e+01 : f32
    %9 = vector.broadcast %cst_11 : f32 to vector<16x1xf32>
    %10 = arith.divf %8, %9 : vector<16x1xf32>
    %11 = vector.broadcast %10 : vector<16x1xf32> to vector<16x64xf32>
    %12 = arith.subf %6, %11 : vector<16x64xf32>
    %13 = arith.mulf %12, %12 : vector<16x64xf32>
    %cst_12 = arith.constant dense<0.000000e+00> : vector<16xf32>
    %14 = vector.multi_reduction <add>, %13, %cst_12 [1] : vector<16x64xf32> to vector<16xf32>
    %15 = vector.shape_cast %14 : vector<16xf32> to vector<16x1xf32>
    %cst_13 = arith.constant 6.400000e+01 : f32
    %16 = vector.broadcast %cst_13 : f32 to vector<16x1xf32>
    %17 = arith.divf %15, %16 : vector<16x1xf32>
    %cst_14 = arith.constant 9.99999997E-7 : f32
    %18 = vector.broadcast %cst_14 : f32 to vector<16x1xf32>
    %19 = arith.addf %17, %18 : vector<16x1xf32>
    %20 = math.rsqrt %19 : vector<16x1xf32>
    %21 = vector.broadcast %20 : vector<16x1xf32> to vector<16x64xf32>
    %22 = arith.mulf %12, %21 : vector<16x64xf32>
    %23 = vector.broadcast %2 : vector<1x64xf32> to vector<16x64xf32>
    %24 = arith.mulf %22, %23 : vector<16x64xf32>
    %25 = vector.broadcast %3 : vector<1x64xf32> to vector<16x64xf32>
    %26 = arith.addf %24, %25 : vector<16x64xf32>
    %27 = arith.truncf %26 : vector<16x64xf32> to vector<16x64xbf16>
    %c0_15 = arith.constant 0 : index
    %c0_16 = arith.constant 0 : index
    %c0_17 = arith.constant 0 : index
    %28 = vector.load %arg5[%c0_15, %c0_16, %c0_17] : memref<4x64x64xbf16, #tpu.memory_space<vmem>>, vector<1x64x64xbf16>
    %29 = vector.shape_cast %28 : vector<1x64x64xbf16> to vector<64x64xbf16>
    %cst_18 = arith.constant dense<0.000000e+00> : vector<16x64xf32>
    %30 = tpu.matmul %27, %29, %cst_18 {dimension_numbers = #tpu.dot_dimension_numbers<[1], [0], [0], [1], [0, 0, 1, 1], [], []>} : vector<16x64xbf16>, vector<64x64xbf16>, vector<16x64xf32> -> vector<16x64xf32>
    %31 = arith.addf %4, %30 : vector<16x64xf32>
    %c0_19 = arith.constant 0 : index
    %c1 = arith.constant 1 : index
    %c0_20 = arith.constant 0 : index
    %c0_21 = arith.constant 0 : index
    %32 = vector.load %arg1[%c0_19, %c1, %c0_20, %c0_21] : memref<1x4x16x64xf32, #tpu.memory_space<vmem>>, vector<1x1x16x64xf32>
    %33 = vector.shape_cast %32 : vector<1x1x16x64xf32> to vector<16x64xf32>
    %cst_22 = arith.constant dense<0.000000e+00> : vector<16xf32>
    %34 = vector.multi_reduction <add>, %33, %cst_22 [1] : vector<16x64xf32> to vector<16xf32>
    %35 = vector.shape_cast %34 : vector<16xf32> to vector<16x1xf32>
    %cst_23 = arith.constant 6.400000e+01 : f32
    %36 = vector.broadcast %cst_23 : f32 to vector<16x1xf32>
    %37 = arith.divf %35, %36 : vector<16x1xf32>
    %38 = vector.broadcast %37 : vector<16x1xf32> to vector<16x64xf32>
    %39 = arith.subf %33, %38 : vector<16x64xf32>
    %40 = arith.mulf %39, %39 : vector<16x64xf32>
    %cst_24 = arith.constant dense<0.000000e+00> : vector<16xf32>
    %41 = vector.multi_reduction <add>, %40, %cst_24 [1] : vector<16x64xf32> to vector<16xf32>
    %42 = vector.shape_cast %41 : vector<16xf32> to vector<16x1xf32>
    %cst_25 = arith.constant 6.400000e+01 : f32
    %43 = vector.broadcast %cst_25 : f32 to vector<16x1xf32>
    %44 = arith.divf %42, %43 : vector<16x1xf32>
    %cst_26 = arith.constant 9.99999997E-7 : f32
    %45 = vector.broadcast %cst_26 : f32 to vector<16x1xf32>
    %46 = arith.addf %44, %45 : vector<16x1xf32>
    %47 = math.rsqrt %46 : vector<16x1xf32>
    %48 = vector.broadcast %47 : vector<16x1xf32> to vector<16x64xf32>
    %49 = arith.mulf %39, %48 : vector<16x64xf32>
    %50 = vector.broadcast %2 : vector<1x64xf32> to vector<16x64xf32>
    %51 = arith.mulf %49, %50 : vector<16x64xf32>
    %52 = vector.broadcast %3 : vector<1x64xf32> to vector<16x64xf32>
    %53 = arith.addf %51, %52 : vector<16x64xf32>
    %54 = arith.truncf %53 : vector<16x64xf32> to vector<16x64xbf16>
    %c1_27 = arith.constant 1 : index
    %c0_28 = arith.constant 0 : index
    %c0_29 = arith.constant 0 : index
    %55 = vector.load %arg5[%c1_27, %c0_28, %c0_29] : memref<4x64x64xbf16, #tpu.memory_space<vmem>>, vector<1x64x64xbf16>
    %56 = vector.shape_cast %55 : vector<1x64x64xbf16> to vector<64x64xbf16>
    %cst_30 = arith.constant dense<0.000000e+00> : vector<16x64xf32>
    %57 = tpu.matmul %54, %56, %cst_30 {dimension_numbers = #tpu.dot_dimension_numbers<[1], [0], [0], [1], [0, 0, 1, 1], [], []>} : vector<16x64xbf16>, vector<64x64xbf16>, vector<16x64xf32> -> vector<16x64xf32>
    %58 = arith.addf %31, %57 : vector<16x64xf32>
    %c0_31 = arith.constant 0 : index
    %c2 = arith.constant 2 : index
    %c0_32 = arith.constant 0 : index
    %c0_33 = arith.constant 0 : index
    %59 = vector.load %arg1[%c0_31, %c2, %c0_32, %c0_33] : memref<1x4x16x64xf32, #tpu.memory_space<vmem>>, vector<1x1x16x64xf32>
    %60 = vector.shape_cast %59 : vector<1x1x16x64xf32> to vector<16x64xf32>
    %cst_34 = arith.constant dense<0.000000e+00> : vector<16xf32>
    %61 = vector.multi_reduction <add>, %60, %cst_34 [1] : vector<16x64xf32> to vector<16xf32>
    %62 = vector.shape_cast %61 : vector<16xf32> to vector<16x1xf32>
    %cst_35 = arith.constant 6.400000e+01 : f32
    %63 = vector.broadcast %cst_35 : f32 to vector<16x1xf32>
    %64 = arith.divf %62, %63 : vector<16x1xf32>
    %65 = vector.broadcast %64 : vector<16x1xf32> to vector<16x64xf32>
    %66 = arith.subf %60, %65 : vector<16x64xf32>
    %67 = arith.mulf %66, %66 : vector<16x64xf32>
    %cst_36 = arith.constant dense<0.000000e+00> : vector<16xf32>
    %68 = vector.multi_reduction <add>, %67, %cst_36 [1] : vector<16x64xf32> to vector<16xf32>
    %69 = vector.shape_cast %68 : vector<16xf32> to vector<16x1xf32>
    %cst_37 = arith.constant 6.400000e+01 : f32
    %70 = vector.broadcast %cst_37 : f32 to vector<16x1xf32>
    %71 = arith.divf %69, %70 : vector<16x1xf32>
    %cst_38 = arith.constant 9.99999997E-7 : f32
    %72 = vector.broadcast %cst_38 : f32 to vector<16x1xf32>
    %73 = arith.addf %71, %72 : vector<16x1xf32>
    %74 = math.rsqrt %73 : vector<16x1xf32>
    %75 = vector.broadcast %74 : vector<16x1xf32> to vector<16x64xf32>
    %76 = arith.mulf %66, %75 : vector<16x64xf32>
    %77 = vector.broadcast %2 : vector<1x64xf32> to vector<16x64xf32>
    %78 = arith.mulf %76, %77 : vector<16x64xf32>
    %79 = vector.broadcast %3 : vector<1x64xf32> to vector<16x64xf32>
    %80 = arith.addf %78, %79 : vector<16x64xf32>
    %81 = arith.truncf %80 : vector<16x64xf32> to vector<16x64xbf16>
    %c2_39 = arith.constant 2 : index
    %c0_40 = arith.constant 0 : index
    %c0_41 = arith.constant 0 : index
    %82 = vector.load %arg5[%c2_39, %c0_40, %c0_41] : memref<4x64x64xbf16, #tpu.memory_space<vmem>>, vector<1x64x64xbf16>
    %83 = vector.shape_cast %82 : vector<1x64x64xbf16> to vector<64x64xbf16>
    %cst_42 = arith.constant dense<0.000000e+00> : vector<16x64xf32>
    %84 = tpu.matmul %81, %83, %cst_42 {dimension_numbers = #tpu.dot_dimension_numbers<[1], [0], [0], [1], [0, 0, 1, 1], [], []>} : vector<16x64xbf16>, vector<64x64xbf16>, vector<16x64xf32> -> vector<16x64xf32>
    %85 = arith.addf %58, %84 : vector<16x64xf32>
    %c0_43 = arith.constant 0 : index
    %c3 = arith.constant 3 : index
    %c0_44 = arith.constant 0 : index
    %c0_45 = arith.constant 0 : index
    %86 = vector.load %arg1[%c0_43, %c3, %c0_44, %c0_45] : memref<1x4x16x64xf32, #tpu.memory_space<vmem>>, vector<1x1x16x64xf32>
    %87 = vector.shape_cast %86 : vector<1x1x16x64xf32> to vector<16x64xf32>
    %cst_46 = arith.constant dense<0.000000e+00> : vector<16xf32>
    %88 = vector.multi_reduction <add>, %87, %cst_46 [1] : vector<16x64xf32> to vector<16xf32>
    %89 = vector.shape_cast %88 : vector<16xf32> to vector<16x1xf32>
    %cst_47 = arith.constant 6.400000e+01 : f32
    %90 = vector.broadcast %cst_47 : f32 to vector<16x1xf32>
    %91 = arith.divf %89, %90 : vector<16x1xf32>
    %92 = vector.broadcast %91 : vector<16x1xf32> to vector<16x64xf32>
    %93 = arith.subf %87, %92 : vector<16x64xf32>
    %94 = arith.mulf %93, %93 : vector<16x64xf32>
    %cst_48 = arith.constant dense<0.000000e+00> : vector<16xf32>
    %95 = vector.multi_reduction <add>, %94, %cst_48 [1] : vector<16x64xf32> to vector<16xf32>
    %96 = vector.shape_cast %95 : vector<16xf32> to vector<16x1xf32>
    %cst_49 = arith.constant 6.400000e+01 : f32
    %97 = vector.broadcast %cst_49 : f32 to vector<16x1xf32>
    %98 = arith.divf %96, %97 : vector<16x1xf32>
    %cst_50 = arith.constant 9.99999997E-7 : f32
    %99 = vector.broadcast %cst_50 : f32 to vector<16x1xf32>
    %100 = arith.addf %98, %99 : vector<16x1xf32>
    %101 = math.rsqrt %100 : vector<16x1xf32>
    %102 = vector.broadcast %101 : vector<16x1xf32> to vector<16x64xf32>
    %103 = arith.mulf %93, %102 : vector<16x64xf32>
    %104 = vector.broadcast %2 : vector<1x64xf32> to vector<16x64xf32>
    %105 = arith.mulf %103, %104 : vector<16x64xf32>
    %106 = vector.broadcast %3 : vector<1x64xf32> to vector<16x64xf32>
    %107 = arith.addf %105, %106 : vector<16x64xf32>
    %108 = arith.truncf %107 : vector<16x64xf32> to vector<16x64xbf16>
    %c3_51 = arith.constant 3 : index
    %c0_52 = arith.constant 0 : index
    %c0_53 = arith.constant 0 : index
    %109 = vector.load %arg5[%c3_51, %c0_52, %c0_53] : memref<4x64x64xbf16, #tpu.memory_space<vmem>>, vector<1x64x64xbf16>
    %110 = vector.shape_cast %109 : vector<1x64x64xbf16> to vector<64x64xbf16>
    %cst_54 = arith.constant dense<0.000000e+00> : vector<16x64xf32>
    %111 = tpu.matmul %108, %110, %cst_54 {dimension_numbers = #tpu.dot_dimension_numbers<[1], [0], [0], [1], [0, 0, 1, 1], [], []>} : vector<16x64xbf16>, vector<64x64xbf16>, vector<16x64xf32> -> vector<16x64xf32>
    %112 = arith.addf %85, %111 : vector<16x64xf32>
    %c0_55 = arith.constant 0 : index
    %c0_56 = arith.constant 0 : index
    %113 = vector.load %arg6[%c0_55, %c0_56] : memref<1x64xf32, #tpu.memory_space<vmem>>, vector<1x64xf32>
    %114 = vector.broadcast %113 : vector<1x64xf32> to vector<16x64xf32>
    %115 = arith.addf %112, %114 : vector<16x64xf32>
    %c0_57 = arith.constant 0 : index
    %c0_58 = arith.constant 0 : index
    %116 = vector.load %arg7[%c0_57, %c0_58] : memref<1x64xf32, #tpu.memory_space<vmem>>, vector<1x64xf32>
    %c0_59 = arith.constant 0 : index
    %c0_60 = arith.constant 0 : index
    %117 = vector.load %arg8[%c0_59, %c0_60] : memref<1x64xf32, #tpu.memory_space<vmem>>, vector<1x64xf32>
    %cst_61 = arith.constant dense<0.000000e+00> : vector<16xf32>
    %118 = vector.multi_reduction <add>, %115, %cst_61 [1] : vector<16x64xf32> to vector<16xf32>
    %119 = vector.shape_cast %118 : vector<16xf32> to vector<16x1xf32>
    %cst_62 = arith.constant 6.400000e+01 : f32
    %120 = vector.broadcast %cst_62 : f32 to vector<16x1xf32>
    %121 = arith.divf %119, %120 : vector<16x1xf32>
    %122 = vector.broadcast %121 : vector<16x1xf32> to vector<16x64xf32>
    %123 = arith.subf %115, %122 : vector<16x64xf32>
    %124 = arith.mulf %123, %123 : vector<16x64xf32>
    %cst_63 = arith.constant dense<0.000000e+00> : vector<16xf32>
    %125 = vector.multi_reduction <add>, %124, %cst_63 [1] : vector<16x64xf32> to vector<16xf32>
    %126 = vector.shape_cast %125 : vector<16xf32> to vector<16x1xf32>
    %cst_64 = arith.constant 6.400000e+01 : f32
    %127 = vector.broadcast %cst_64 : f32 to vector<16x1xf32>
    %128 = arith.divf %126, %127 : vector<16x1xf32>
    %cst_65 = arith.constant 9.99999974E-6 : f32
    %129 = vector.broadcast %cst_65 : f32 to vector<16x1xf32>
    %130 = arith.addf %128, %129 : vector<16x1xf32>
    %131 = math.rsqrt %130 : vector<16x1xf32>
    %132 = vector.broadcast %131 : vector<16x1xf32> to vector<16x64xf32>
    %133 = arith.mulf %123, %132 : vector<16x64xf32>
    %134 = vector.broadcast %116 : vector<1x64xf32> to vector<16x64xf32>
    %135 = arith.mulf %133, %134 : vector<16x64xf32>
    %136 = vector.broadcast %117 : vector<1x64xf32> to vector<16x64xf32>
    %137 = arith.addf %135, %136 : vector<16x64xf32>
    %138 = tpu.concatenate %137, %1 in 0 : vector<16x64xf32>, vector<1x64xf32> -> vector<17x64xf32>
    %139 = arith.truncf %138 : vector<17x64xf32> to vector<17x64xbf16>
    %c0_66 = arith.constant 0 : index
    %c0_67 = arith.constant 0 : index
    %140 = vector.load %arg11[%c0_66, %c0_67] : memref<64x64xbf16, #tpu.memory_space<vmem>>, vector<64x64xbf16>
    %cst_68 = arith.constant dense<0.000000e+00> : vector<17x64xf32>
    %141 = tpu.matmul %139, %140, %cst_68 {dimension_numbers = #tpu.dot_dimension_numbers<[1], [0], [0], [1], [0, 0, 1, 1], [], []>} : vector<17x64xbf16>, vector<64x64xbf16>, vector<17x64xf32> -> vector<17x64xf32>
    %c0_69 = arith.constant 0 : index
    %c0_70 = arith.constant 0 : index
    %142 = vector.load %arg12[%c0_69, %c0_70] : memref<1x64xf32, #tpu.memory_space<vmem>>, vector<1x64xf32>
    %143 = vector.broadcast %142 : vector<1x64xf32> to vector<17x64xf32>
    %144 = arith.addf %141, %143 : vector<17x64xf32>
    %c0_71 = arith.constant 0 : index
    %c0_72 = arith.constant 0 : index
    %145 = vector.load %arg13[%c0_71, %c0_72] : memref<64x64xbf16, #tpu.memory_space<vmem>>, vector<64x64xbf16>
    %cst_73 = arith.constant dense<0.000000e+00> : vector<17x64xf32>
    %146 = tpu.matmul %139, %145, %cst_73 {dimension_numbers = #tpu.dot_dimension_numbers<[1], [0], [0], [1], [0, 0, 1, 1], [], []>} : vector<17x64xbf16>, vector<64x64xbf16>, vector<17x64xf32> -> vector<17x64xf32>
    %c0_74 = arith.constant 0 : index
    %c0_75 = arith.constant 0 : index
    %147 = vector.load %arg14[%c0_74, %c0_75] : memref<1x64xf32, #tpu.memory_space<vmem>>, vector<1x64xf32>
    %148 = vector.broadcast %147 : vector<1x64xf32> to vector<17x64xf32>
    %149 = arith.addf %146, %148 : vector<17x64xf32>
    %150 = arith.truncf %144 : vector<17x64xf32> to vector<17x64xbf16>
    %c0_76 = arith.constant 0 : index
    %c0_77 = arith.constant 0 : index
    %c0_78 = arith.constant 0 : index
    %151 = vector.load %arg17[%c0_76, %c0_77, %c0_78] : memref<1x17x64xbf16, #tpu.memory_space<vmem>>, vector<1x17x64xbf16>
    %152 = vector.shape_cast %151 : vector<1x17x64xbf16> to vector<17x64xbf16>
    %153 = vector.shape_cast %150 : vector<17x64xbf16> to vector<1x17x64xbf16>
    tpu.vector_store %arg17[%c0_76, %c0_77, %c0_78], %153 {strides = array<i32>} : memref<1x17x64xbf16, #tpu.memory_space<vmem>>, vector<1x17x64xbf16>,
    %154 = arith.truncf %149 : vector<17x64xf32> to vector<17x64xbf16>
    %c0_79 = arith.constant 0 : index
    %c0_80 = arith.constant 0 : index
    %c0_81 = arith.constant 0 : index
    %155 = vector.load %arg18[%c0_79, %c0_80, %c0_81] : memref<1x17x64xbf16, #tpu.memory_space<vmem>>, vector<1x17x64xbf16>
    %156 = vector.shape_cast %155 : vector<1x17x64xbf16> to vector<17x64xbf16>
    %157 = vector.shape_cast %154 : vector<17x64xbf16> to vector<1x17x64xbf16>
    tpu.vector_store %arg18[%c0_79, %c0_80, %c0_81], %157 {strides = array<i32>} : memref<1x17x64xbf16, #tpu.memory_space<vmem>>, vector<1x17x64xbf16>,
    %158 = arith.truncf %1 : vector<1x64xf32> to vector<1x64xbf16>
    %c0_82 = arith.constant 0 : index
    %c0_83 = arith.constant 0 : index
    %159 = vector.load %arg9[%c0_82, %c0_83] : memref<64x64xbf16, #tpu.memory_space<vmem>>, vector<64x64xbf16>
    %cst_84 = arith.constant dense<0.000000e+00> : vector<1x64xf32>
    %160 = tpu.matmul %158, %159, %cst_84 {dimension_numbers = #tpu.dot_dimension_numbers<[1], [0], [0], [1], [0, 0, 1, 1], [], []>} : vector<1x64xbf16>, vector<64x64xbf16>, vector<1x64xf32> -> vector<1x64xf32>
    %c0_85 = arith.constant 0 : index
    %c0_86 = arith.constant 0 : index
    %161 = vector.load %arg10[%c0_85, %c0_86] : memref<1x64xf32, #tpu.memory_space<vmem>>, vector<1x64xf32>
    %162 = arith.addf %160, %161 : vector<1x64xf32>
    %c0_87 = arith.constant 0 : index
    %c0_88 = arith.constant 0 : index
    %163 = vector.load %arg15[%c0_87, %c0_88] : memref<64x64xbf16, #tpu.memory_space<vmem>>, vector<64x64xbf16>
    %cst_89 = arith.constant 0.000000e+00 : f32
    %164 = vector.broadcast %cst_89 : f32 to vector<1x64xf32>
    %165 = vector.extract_strided_slice %162 {offsets = [0, 0], sizes = [1, 32], strides = [1, 1]} : vector<1x64xf32> to vector<1x32xf32>
    %166 = arith.truncf %165 : vector<1x32xf32> to vector<1x32xbf16>
    %167 = vector.extract_strided_slice %144 {offsets = [0, 0], sizes = [17, 32], strides = [1, 1]} : vector<17x64xf32> to vector<17x32xf32>
    %168 = arith.truncf %167 : vector<17x32xf32> to vector<17x32xbf16>
    %169 = vector.extract_strided_slice %149 {offsets = [0, 0], sizes = [17, 32], strides = [1, 1]} : vector<17x64xf32> to vector<17x32xf32>
    %170 = arith.truncf %169 : vector<17x32xf32> to vector<17x32xbf16>
    %cst_90 = arith.constant dense<0.000000e+00> : vector<1x17xf32>
    %171 = tpu.matmul %166, %168, %cst_90 {dimension_numbers = #tpu.dot_dimension_numbers<[1], [1], [0], [0], [0, 0, 1, 0], [], []>} : vector<1x32xbf16>, vector<17x32xbf16>, vector<1x17xf32> -> vector<1x17xf32>
    %cst_91 = arith.constant dense<0xFF800000> : vector<1xf32>
    %172 = vector.multi_reduction <maximumf>, %171, %cst_91 [1] : vector<1x17xf32> to vector<1xf32>
    %173 = vector.shape_cast %172 : vector<1xf32> to vector<1x1xf32>
    %174 = vector.broadcast %173 : vector<1x1xf32> to vector<1x17xf32>
    %175 = arith.subf %171, %174 : vector<1x17xf32>
    %176 = math.exp %175 : vector<1x17xf32>
    %cst_92 = arith.constant dense<0.000000e+00> : vector<1xf32>
    %177 = vector.multi_reduction <add>, %176, %cst_92 [1] : vector<1x17xf32> to vector<1xf32>
    %178 = vector.shape_cast %177 : vector<1xf32> to vector<1x1xf32>
    %179 = arith.truncf %176 : vector<1x17xf32> to vector<1x17xbf16>
    %cst_93 = arith.constant dense<0.000000e+00> : vector<1x32xf32>
    %180 = tpu.matmul %179, %170, %cst_93 {dimension_numbers = #tpu.dot_dimension_numbers<[1], [0], [0], [1], [0, 0, 1, 1], [], []>} : vector<1x17xbf16>, vector<17x32xbf16>, vector<1x32xf32> -> vector<1x32xf32>
    %181 = tpu.reciprocal %178 {approx = true} : vector<1x1xf32> -> vector<1x1xf32>
    %182 = vector.broadcast %181 : vector<1x1xf32> to vector<1x32xf32>
    %183 = arith.mulf %180, %182 : vector<1x32xf32>
    %184 = arith.truncf %183 : vector<1x32xf32> to vector<1x32xbf16>
    %185 = vector.extract_strided_slice %163 {offsets = [0, 0], sizes = [32, 64], strides = [1, 1]} : vector<64x64xbf16> to vector<32x64xbf16>
    %cst_94 = arith.constant dense<0.000000e+00> : vector<1x64xf32>
    %186 = tpu.matmul %184, %185, %cst_94 {dimension_numbers = #tpu.dot_dimension_numbers<[1], [0], [0], [1], [0, 0, 1, 1], [], []>} : vector<1x32xbf16>, vector<32x64xbf16>, vector<1x64xf32> -> vector<1x64xf32>
    %187 = arith.addf %164, %186 : vector<1x64xf32>
    %188 = vector.extract_strided_slice %162 {offsets = [0, 32], sizes = [1, 32], strides = [1, 1]} : vector<1x64xf32> to vector<1x32xf32>
    %189 = arith.truncf %188 : vector<1x32xf32> to vector<1x32xbf16>
    %190 = vector.extract_strided_slice %144 {offsets = [0, 32], sizes = [17, 32], strides = [1, 1]} : vector<17x64xf32> to vector<17x32xf32>
    %191 = arith.truncf %190 : vector<17x32xf32> to vector<17x32xbf16>
    %192 = vector.extract_strided_slice %149 {offsets = [0, 32], sizes = [17, 32], strides = [1, 1]} : vector<17x64xf32> to vector<17x32xf32>
    %193 = arith.truncf %192 : vector<17x32xf32> to vector<17x32xbf16>
    %cst_95 = arith.constant dense<0.000000e+00> : vector<1x17xf32>
    %194 = tpu.matmul %189, %191, %cst_95 {dimension_numbers = #tpu.dot_dimension_numbers<[1], [1], [0], [0], [0, 0, 1, 0], [], []>} : vector<1x32xbf16>, vector<17x32xbf16>, vector<1x17xf32> -> vector<1x17xf32>
    %cst_96 = arith.constant dense<0xFF800000> : vector<1xf32>
    %195 = vector.multi_reduction <maximumf>, %194, %cst_96 [1] : vector<1x17xf32> to vector<1xf32>
    %196 = vector.shape_cast %195 : vector<1xf32> to vector<1x1xf32>
    %197 = vector.broadcast %196 : vector<1x1xf32> to vector<1x17xf32>
    %198 = arith.subf %194, %197 : vector<1x17xf32>
    %199 = math.exp %198 : vector<1x17xf32>
    %cst_97 = arith.constant dense<0.000000e+00> : vector<1xf32>
    %200 = vector.multi_reduction <add>, %199, %cst_97 [1] : vector<1x17xf32> to vector<1xf32>
    %201 = vector.shape_cast %200 : vector<1xf32> to vector<1x1xf32>
    %202 = arith.truncf %199 : vector<1x17xf32> to vector<1x17xbf16>
    %cst_98 = arith.constant dense<0.000000e+00> : vector<1x32xf32>
    %203 = tpu.matmul %202, %193, %cst_98 {dimension_numbers = #tpu.dot_dimension_numbers<[1], [0], [0], [1], [0, 0, 1, 1], [], []>} : vector<1x17xbf16>, vector<17x32xbf16>, vector<1x32xf32> -> vector<1x32xf32>
    %204 = tpu.reciprocal %201 {approx = true} : vector<1x1xf32> -> vector<1x1xf32>
    %205 = vector.broadcast %204 : vector<1x1xf32> to vector<1x32xf32>
    %206 = arith.mulf %203, %205 : vector<1x32xf32>
    %207 = arith.truncf %206 : vector<1x32xf32> to vector<1x32xbf16>
    %208 = vector.extract_strided_slice %163 {offsets = [32, 0], sizes = [32, 64], strides = [1, 1]} : vector<64x64xbf16> to vector<32x64xbf16>
    %cst_99 = arith.constant dense<0.000000e+00> : vector<1x64xf32>
    %209 = tpu.matmul %207, %208, %cst_99 {dimension_numbers = #tpu.dot_dimension_numbers<[1], [0], [0], [1], [0, 0, 1, 1], [], []>} : vector<1x32xbf16>, vector<32x64xbf16>, vector<1x64xf32> -> vector<1x64xf32>
    %210 = arith.addf %187, %209 : vector<1x64xf32>
    %c0_100 = arith.constant 0 : index
    %c0_101 = arith.constant 0 : index
    %211 = vector.load %arg16[%c0_100, %c0_101] : memref<1x64xf32, #tpu.memory_space<vmem>>, vector<1x64xf32>
    %212 = arith.addf %210, %211 : vector<1x64xf32>
    %c0_102 = arith.constant 0 : index
    %c0_103 = arith.constant 0 : index
    %c0_104 = arith.constant 0 : index
    %213 = vector.load %arg19[%c0_102, %c0_103, %c0_104] : memref<1x1x64xf32, #tpu.memory_space<vmem>>, vector<1x1x64xf32>
    %214 = vector.shape_cast %213 : vector<1x1x64xf32> to vector<1x64xf32>
    %215 = vector.shape_cast %212 : vector<1x64xf32> to vector<1x1x64xf32>
    tpu.vector_store %arg19[%c0_102, %c0_103, %c0_104], %215 {strides = array<i32>} : memref<1x1x64xf32, #tpu.memory_space<vmem>>, vector<1x1x64xf32>,
    return
  }
  func.func @transform_0(%arg0: i32) -> (i32, i32, i32, i32) {
    %c0_i32 = arith.constant 0 : i32
    %c0_i32_0 = arith.constant 0 : i32
    %c0_i32_1 = arith.constant 0 : i32
    %c0_i32_2 = arith.constant 0 : i32
    return %arg0, %c0_i32, %c0_i32_0, %c0_i32_1 : i32, i32, i32, i32
  }
  func.func @transform_1(%arg0: i32) -> (i32, i32, i32) {
    %c0_i32 = arith.constant 0 : i32
    %c0_i32_0 = arith.constant 0 : i32
    %c0_i32_1 = arith.constant 0 : i32
    return %arg0, %c0_i32, %c0_i32_0 : i32, i32, i32
  }
  func.func @transform_2(%arg0: i32) -> (i32, i32) {
    %c0_i32 = arith.constant 0 : i32
    %c0_i32_0 = arith.constant 0 : i32
    %c0_i32_1 = arith.constant 0 : i32
    return %c0_i32, %c0_i32_0 : i32, i32
  }
  func.func @transform_3(%arg0: i32) -> (i32, i32) {
    %c0_i32 = arith.constant 0 : i32
    %c0_i32_0 = arith.constant 0 : i32
    %c0_i32_1 = arith.constant 0 : i32
    return %c0_i32, %c0_i32_0 : i32, i32
  }
  func.func @transform_4(%arg0: i32) -> (i32, i32, i32) {
    %c0_i32 = arith.constant 0 : i32
    %c0_i32_0 = arith.constant 0 : i32
    %c0_i32_1 = arith.constant 0 : i32
    %c0_i32_2 = arith.constant 0 : i32
    return %c0_i32, %c0_i32_0, %c0_i32_1 : i32, i32, i32
  }
  func.func @transform_5(%arg0: i32) -> (i32, i32) {
    %c0_i32 = arith.constant 0 : i32
    %c0_i32_0 = arith.constant 0 : i32
    %c0_i32_1 = arith.constant 0 : i32
    return %c0_i32, %c0_i32_0 : i32, i32
  }
  func.func @transform_6(%arg0: i32) -> (i32, i32) {
    %c0_i32 = arith.constant 0 : i32
    %c0_i32_0 = arith.constant 0 : i32
    %c0_i32_1 = arith.constant 0 : i32
    return %c0_i32, %c0_i32_0 : i32, i32
  }
  func.func @transform_7(%arg0: i32) -> (i32, i32) {
    %c0_i32 = arith.constant 0 : i32
    %c0_i32_0 = arith.constant 0 : i32
    %c0_i32_1 = arith.constant 0 : i32
    return %c0_i32, %c0_i32_0 : i32, i32
  }
  func.func @transform_8(%arg0: i32) -> (i32, i32) {
    %c0_i32 = arith.constant 0 : i32
    %c0_i32_0 = arith.constant 0 : i32
    %c0_i32_1 = arith.constant 0 : i32
    return %c0_i32, %c0_i32_0 : i32, i32
  }
  func.func @transform_9(%arg0: i32) -> (i32, i32) {
    %c0_i32 = arith.constant 0 : i32
    %c0_i32_0 = arith.constant 0 : i32
    %c0_i32_1 = arith.constant 0 : i32
    return %c0_i32, %c0_i32_0 : i32, i32
  }
  func.func @transform_10(%arg0: i32) -> (i32, i32) {
    %c0_i32 = arith.constant 0 : i32
    %c0_i32_0 = arith.constant 0 : i32
    %c0_i32_1 = arith.constant 0 : i32
    return %c0_i32, %c0_i32_0 : i32, i32
  }
  func.func @transform_11(%arg0: i32) -> (i32, i32) {
    %c0_i32 = arith.constant 0 : i32
    %c0_i32_0 = arith.constant 0 : i32
    %c0_i32_1 = arith.constant 0 : i32
    return %c0_i32, %c0_i32_0 : i32, i32
  }
  func.func @transform_12(%arg0: i32) -> (i32, i32) {
    %c0_i32 = arith.constant 0 : i32
    %c0_i32_0 = arith.constant 0 : i32
    %c0_i32_1 = arith.constant 0 : i32
    return %c0_i32, %c0_i32_0 : i32, i32
  }
  func.func @transform_13(%arg0: i32) -> (i32, i32) {
    %c0_i32 = arith.constant 0 : i32
    %c0_i32_0 = arith.constant 0 : i32
    %c0_i32_1 = arith.constant 0 : i32
    return %c0_i32, %c0_i32_0 : i32, i32
  }
  func.func @transform_14(%arg0: i32) -> (i32, i32) {
    %c0_i32 = arith.constant 0 : i32
    %c0_i32_0 = arith.constant 0 : i32
    %c0_i32_1 = arith.constant 0 : i32
    return %c0_i32, %c0_i32_0 : i32, i32
  }
  func.func @transform_15(%arg0: i32) -> (i32, i32) {
    %c0_i32 = arith.constant 0 : i32
    %c0_i32_0 = arith.constant 0 : i32
    %c0_i32_1 = arith.constant 0 : i32
    return %c0_i32, %c0_i32_0 : i32, i32
  }
  func.func @transform_16(%arg0: i32) -> (i32, i32, i32) {
    %c0_i32 = arith.constant 0 : i32
    %c0_i32_0 = arith.constant 0 : i32
    %c0_i32_1 = arith.constant 0 : i32
    return %arg0, %c0_i32, %c0_i32_0 : i32, i32, i32
  }
  func.func @transform_17(%arg0: i32) -> (i32, i32, i32) {
    %c0_i32 = arith.constant 0 : i32
    %c0_i32_0 = arith.constant 0 : i32
    %c0_i32_1 = arith.constant 0 : i32
    return %arg0, %c0_i32, %c0_i32_0 : i32, i32, i32
  }
  func.func @transform_18(%arg0: i32) -> (i32, i32, i32) {
    %c0_i32 = arith.constant 0 : i32
    %c0_i32_0 = arith.constant 0 : i32
    %c0_i32_1 = arith.constant 0 : i32
    return %arg0, %c0_i32, %c0_i32_0 : i32, i32, i32
  }
}

module attributes {stable_mosaic.version = 11 : i64} {
  func.func @_mlp_kernel(%arg0: i32, %arg1: i32, %arg2: memref<1x64x64xf32, #tpu.memory_space<vmem>>, %arg3: memref<2x64x64xf32, #tpu.memory_space<any>>, %arg4: memref<1x64xf32, #tpu.memory_space<vmem>>, %arg5: memref<1x64xf32, #tpu.memory_space<vmem>>, %arg6: memref<64x256xbf16, #tpu.memory_space<vmem>>, %arg7: memref<1x256xf32, #tpu.memory_space<vmem>>, %arg8: memref<9x1x256xf32, #tpu.memory_space<vmem>>, %arg9: memref<1x256xf32, #tpu.memory_space<vmem>>, %arg10: memref<256x64xbf16, #tpu.memory_space<vmem>>, %arg11: memref<1x64xf32, #tpu.memory_space<vmem>>, %arg12: memref<1x64x64xf32, #tpu.memory_space<vmem>>, %arg13: memref<16x64xf32, #tpu.memory_space<vmem>>, %arg14: memref<96x256xf32, #tpu.memory_space<vmem>>, %arg15: memref<2x!tpu.dma_semaphore, #tpu.memory_space<semaphore_mem>>) attributes {dimension_semantics = [#tpu.dimension_semantics<parallel>, #tpu.dimension_semantics<parallel>], iteration_bounds = array<i64: 2, 1>, scalar_prefetch = 0 : i64, scratch_operands = 3 : i64, tpu.core_type = #tpu.core_type<tc>, window_params = [{transform_indices = @transform_0, window_bounds = array<i64: 1, 64, 64>}, {}, {pipeline_mode = #tpu.pipeline_mode<synchronous>, transform_indices = @transform_2, window_bounds = array<i64: 1, 64>}, {pipeline_mode = #tpu.pipeline_mode<synchronous>, transform_indices = @transform_3, window_bounds = array<i64: 1, 64>}, {pipeline_mode = #tpu.pipeline_mode<synchronous>, transform_indices = @transform_4, window_bounds = array<i64: 64, 256>}, {pipeline_mode = #tpu.pipeline_mode<synchronous>, transform_indices = @transform_5, window_bounds = array<i64: 1, 256>}, {pipeline_mode = #tpu.pipeline_mode<synchronous>, transform_indices = @transform_6, window_bounds = array<i64: 9, 1, 256>}, {pipeline_mode = #tpu.pipeline_mode<synchronous>, transform_indices = @transform_7, window_bounds = array<i64: 1, 256>}, {pipeline_mode = #tpu.pipeline_mode<synchronous>, transform_indices = @transform_8, window_bounds = array<i64: 256, 64>}, {pipeline_mode = #tpu.pipeline_mode<synchronous>, transform_indices = @transform_9, window_bounds = array<i64: 1, 64>}, {transform_indices = @transform_10, window_bounds = array<i64: 1, 64, 64>}]} {
    %c64_i32 = arith.constant 64 : i32
    %0 = arith.muli %arg1, %c64_i32 : i32
    %1 = tpu.assume_multiple %0, 8 : i32
    %c0_i32 = arith.constant 0 : i32
    %2 = arith.cmpi sgt, %arg1, %c0_i32 : i32
    %3 = arith.extui %2 : i1 to i32
    %c0_i32_0 = arith.constant 0 : i32
    %4 = arith.cmpi ne, %3, %c0_i32_0 : i32
    scf.if %4 {
      %c8_i32_95 = arith.constant 8 : i32
      %206 = arith.subi %1, %c8_i32_95 : i32
      %c0_i32_96 = arith.constant 0 : i32
      %c0_i32_97 = arith.constant 0 : i32
      %207 = tpu.memref_slice %arg3[%arg0, %206, %c0_i32_97] : memref<2x64x64xf32, #tpu.memory_space<any>> -> memref<1x8x64xf32, #tpu.memory_space<any>>
      %208 = tpu.memref_squeeze %207 : memref<1x8x64xf32, #tpu.memory_space<any>> -> memref<8x64xf32, #tpu.memory_space<any>>
      %c0_i32_98 = arith.constant 0 : i32
      %c0_i32_99 = arith.constant 0 : i32
      %209 = tpu.memref_slice %arg13[%c0_i32_98, %c0_i32_99] : memref<16x64xf32, #tpu.memory_space<vmem>> -> memref<8x64xf32, #tpu.memory_space<vmem>>
      %210 = tpu.memref_slice %arg15[%c0_i32_96] : memref<2x!tpu.dma_semaphore, #tpu.memory_space<semaphore_mem>> -> memref<1x!tpu.dma_semaphore, #tpu.memory_space<semaphore_mem>>
      %211 = tpu.memref_squeeze %210 : memref<1x!tpu.dma_semaphore, #tpu.memory_space<semaphore_mem>> -> memref<!tpu.dma_semaphore, #tpu.memory_space<semaphore_mem>>
      tpu.enqueue_dma source(%208 : memref<8x64xf32, #tpu.memory_space<any>>) target(%209 : memref<8x64xf32, #tpu.memory_space<vmem>>) target_semaphore(%211 : memref<!tpu.dma_semaphore, #tpu.memory_space<semaphore_mem>>)
    } else {
    }
    %c0_i32_1 = arith.constant 0 : i32
    %5 = arith.cmpi slt, %arg1, %c0_i32_1 : i32
    %6 = arith.extui %5 : i1 to i32
    %c0_i32_2 = arith.constant 0 : i32
    %7 = arith.cmpi ne, %6, %c0_i32_2 : i32
    scf.if %7 {
      %c64_i32_95 = arith.constant 64 : i32
      %206 = arith.addi %1, %c64_i32_95 : i32
      %c1_i32_96 = arith.constant 1 : i32
      %c0_i32_97 = arith.constant 0 : i32
      %207 = tpu.memref_slice %arg3[%arg0, %206, %c0_i32_97] : memref<2x64x64xf32, #tpu.memory_space<any>> -> memref<1x8x64xf32, #tpu.memory_space<any>>
      %208 = tpu.memref_squeeze %207 : memref<1x8x64xf32, #tpu.memory_space<any>> -> memref<8x64xf32, #tpu.memory_space<any>>
      %c8_i32_98 = arith.constant 8 : i32
      %c0_i32_99 = arith.constant 0 : i32
      %209 = tpu.memref_slice %arg13[%c8_i32_98, %c0_i32_99] : memref<16x64xf32, #tpu.memory_space<vmem>> -> memref<8x64xf32, #tpu.memory_space<vmem>>
      %210 = tpu.memref_slice %arg15[%c1_i32_96] : memref<2x!tpu.dma_semaphore, #tpu.memory_space<semaphore_mem>> -> memref<1x!tpu.dma_semaphore, #tpu.memory_space<semaphore_mem>>
      %211 = tpu.memref_squeeze %210 : memref<1x!tpu.dma_semaphore, #tpu.memory_space<semaphore_mem>> -> memref<!tpu.dma_semaphore, #tpu.memory_space<semaphore_mem>>
      tpu.enqueue_dma source(%208 : memref<8x64xf32, #tpu.memory_space<any>>) target(%209 : memref<8x64xf32, #tpu.memory_space<vmem>>) target_semaphore(%211 : memref<!tpu.dma_semaphore, #tpu.memory_space<semaphore_mem>>)
    } else {
    }
    %c0 = arith.constant 0 : index
    %c0_3 = arith.constant 0 : index
    %8 = vector.load %arg4[%c0, %c0_3] : memref<1x64xf32, #tpu.memory_space<vmem>>, vector<1x64xf32>
    %c0_4 = arith.constant 0 : index
    %c0_5 = arith.constant 0 : index
    %9 = vector.load %arg5[%c0_4, %c0_5] : memref<1x64xf32, #tpu.memory_space<vmem>>, vector<1x64xf32>
    %c0_6 = arith.constant 0 : index
    %c0_7 = arith.constant 0 : index
    %10 = vector.load %arg6[%c0_6, %c0_7] : memref<64x256xbf16, #tpu.memory_space<vmem>>, vector<64x256xbf16>
    %c0_8 = arith.constant 0 : index
    %c0_9 = arith.constant 0 : index
    %11 = vector.load %arg7[%c0_8, %c0_9] : memref<1x256xf32, #tpu.memory_space<vmem>>, vector<1x256xf32>
    %c0_10 = arith.constant 0 : index
    %c0_11 = arith.constant 0 : index
    %c0_12 = arith.constant 0 : index
    %12 = vector.load %arg2[%c0_10, %c0_11, %c0_12] : memref<1x64x64xf32, #tpu.memory_space<vmem>>, vector<1x64x64xf32>
    %13 = vector.shape_cast %12 : vector<1x64x64xf32> to vector<64x64xf32>
    %cst = arith.constant dense<0.000000e+00> : vector<64xf32>
    %14 = vector.multi_reduction <add>, %13, %cst [1] : vector<64x64xf32> to vector<64xf32>
    %15 = vector.shape_cast %14 : vector<64xf32> to vector<64x1xf32>
    %cst_13 = arith.constant 6.400000e+01 : f32
    %16 = vector.broadcast %cst_13 : f32 to vector<64x1xf32>
    %17 = arith.divf %15, %16 : vector<64x1xf32>
    %18 = vector.broadcast %17 : vector<64x1xf32> to vector<64x64xf32>
    %19 = arith.subf %13, %18 : vector<64x64xf32>
    %20 = arith.mulf %19, %19 : vector<64x64xf32>
    %cst_14 = arith.constant dense<0.000000e+00> : vector<64xf32>
    %21 = vector.multi_reduction <add>, %20, %cst_14 [1] : vector<64x64xf32> to vector<64xf32>
    %22 = vector.shape_cast %21 : vector<64xf32> to vector<64x1xf32>
    %cst_15 = arith.constant 6.400000e+01 : f32
    %23 = vector.broadcast %cst_15 : f32 to vector<64x1xf32>
    %24 = arith.divf %22, %23 : vector<64x1xf32>
    %cst_16 = arith.constant 9.99999997E-7 : f32
    %25 = vector.broadcast %cst_16 : f32 to vector<64x1xf32>
    %26 = arith.addf %24, %25 : vector<64x1xf32>
    %27 = math.rsqrt %26 : vector<64x1xf32>
    %28 = vector.broadcast %27 : vector<64x1xf32> to vector<64x64xf32>
    %29 = arith.mulf %19, %28 : vector<64x64xf32>
    %30 = vector.broadcast %8 : vector<1x64xf32> to vector<64x64xf32>
    %31 = arith.mulf %29, %30 : vector<64x64xf32>
    %32 = vector.broadcast %9 : vector<1x64xf32> to vector<64x64xf32>
    %33 = arith.addf %31, %32 : vector<64x64xf32>
    %34 = arith.truncf %33 : vector<64x64xf32> to vector<64x64xbf16>
    %cst_17 = arith.constant dense<0.000000e+00> : vector<64x256xf32>
    %35 = tpu.matmul %34, %10, %cst_17 {dimension_numbers = #tpu.dot_dimension_numbers<[1], [0], [0], [1], [0, 0, 1, 1], [], []>} : vector<64x64xbf16>, vector<64x256xbf16>, vector<64x256xf32> -> vector<64x256xf32>
    %36 = vector.broadcast %11 : vector<1x256xf32> to vector<64x256xf32>
    %37 = arith.addf %35, %36 : vector<64x256xf32>
    %c16 = arith.constant 16 : index
    %c0_18 = arith.constant 0 : index
    %38 = vector.load %arg14[%c16, %c0_18] : memref<96x256xf32, #tpu.memory_space<vmem>>, vector<64x256xf32>
    tpu.vector_store %arg14[%c16, %c0_18], %37 {strides = array<i32>} : memref<96x256xf32, #tpu.memory_space<vmem>>, vector<64x256xf32>,
    %c0_i32_19 = arith.constant 0 : i32
    %39 = arith.cmpi sgt, %arg1, %c0_i32_19 : i32
    %40 = arith.extui %39 : i1 to i32
    %c0_i32_20 = arith.constant 0 : i32
    %41 = arith.cmpi ne, %40, %c0_i32_20 : i32
    scf.if %41 {
      %c8_i32_95 = arith.constant 8 : i32
      %206 = arith.subi %1, %c8_i32_95 : i32
      %c0_i32_96 = arith.constant 0 : i32
      %c0_i32_97 = arith.constant 0 : i32
      %207 = tpu.memref_slice %arg3[%arg0, %206, %c0_i32_97] : memref<2x64x64xf32, #tpu.memory_space<any>> -> memref<1x8x64xf32, #tpu.memory_space<any>>
      %208 = tpu.memref_squeeze %207 : memref<1x8x64xf32, #tpu.memory_space<any>> -> memref<8x64xf32, #tpu.memory_space<any>>
      %c0_i32_98 = arith.constant 0 : i32
      %c0_i32_99 = arith.constant 0 : i32
      %209 = tpu.memref_slice %arg13[%c0_i32_98, %c0_i32_99] : memref<16x64xf32, #tpu.memory_space<vmem>> -> memref<8x64xf32, #tpu.memory_space<vmem>>
      %210 = tpu.memref_slice %arg15[%c0_i32_96] : memref<2x!tpu.dma_semaphore, #tpu.memory_space<semaphore_mem>> -> memref<1x!tpu.dma_semaphore, #tpu.memory_space<semaphore_mem>>
      %211 = tpu.memref_squeeze %210 : memref<1x!tpu.dma_semaphore, #tpu.memory_space<semaphore_mem>> -> memref<!tpu.dma_semaphore, #tpu.memory_space<semaphore_mem>>
      tpu.wait_dma2 semaphore(%211 : memref<!tpu.dma_semaphore, #tpu.memory_space<semaphore_mem>>) src(%208 : memref<8x64xf32, #tpu.memory_space<any>>) dst(%209 : memref<8x64xf32, #tpu.memory_space<vmem>>)
    } else {
    }
    %c0_i32_21 = arith.constant 0 : i32
    %42 = arith.cmpi slt, %arg1, %c0_i32_21 : i32
    %43 = arith.extui %42 : i1 to i32
    %c0_i32_22 = arith.constant 0 : i32
    %44 = arith.cmpi ne, %43, %c0_i32_22 : i32
    scf.if %44 {
      %c64_i32_95 = arith.constant 64 : i32
      %206 = arith.addi %1, %c64_i32_95 : i32
      %c1_i32_96 = arith.constant 1 : i32
      %c0_i32_97 = arith.constant 0 : i32
      %207 = tpu.memref_slice %arg3[%arg0, %206, %c0_i32_97] : memref<2x64x64xf32, #tpu.memory_space<any>> -> memref<1x8x64xf32, #tpu.memory_space<any>>
      %208 = tpu.memref_squeeze %207 : memref<1x8x64xf32, #tpu.memory_space<any>> -> memref<8x64xf32, #tpu.memory_space<any>>
      %c8_i32_98 = arith.constant 8 : i32
      %c0_i32_99 = arith.constant 0 : i32
      %209 = tpu.memref_slice %arg13[%c8_i32_98, %c0_i32_99] : memref<16x64xf32, #tpu.memory_space<vmem>> -> memref<8x64xf32, #tpu.memory_space<vmem>>
      %210 = tpu.memref_slice %arg15[%c1_i32_96] : memref<2x!tpu.dma_semaphore, #tpu.memory_space<semaphore_mem>> -> memref<1x!tpu.dma_semaphore, #tpu.memory_space<semaphore_mem>>
      %211 = tpu.memref_squeeze %210 : memref<1x!tpu.dma_semaphore, #tpu.memory_space<semaphore_mem>> -> memref<!tpu.dma_semaphore, #tpu.memory_space<semaphore_mem>>
      tpu.wait_dma2 semaphore(%211 : memref<!tpu.dma_semaphore, #tpu.memory_space<semaphore_mem>>) src(%208 : memref<8x64xf32, #tpu.memory_space<any>>) dst(%209 : memref<8x64xf32, #tpu.memory_space<vmem>>)
    } else {
    }
    %c0_23 = arith.constant 0 : index
    %c0_24 = arith.constant 0 : index
    %45 = vector.load %arg13[%c0_23, %c0_24] : memref<16x64xf32, #tpu.memory_space<vmem>>, vector<16x64xf32>
    %cst_25 = arith.constant dense<0.000000e+00> : vector<16xf32>
    %46 = vector.multi_reduction <add>, %45, %cst_25 [1] : vector<16x64xf32> to vector<16xf32>
    %47 = vector.shape_cast %46 : vector<16xf32> to vector<16x1xf32>
    %cst_26 = arith.constant 6.400000e+01 : f32
    %48 = vector.broadcast %cst_26 : f32 to vector<16x1xf32>
    %49 = arith.divf %47, %48 : vector<16x1xf32>
    %50 = vector.broadcast %49 : vector<16x1xf32> to vector<16x64xf32>
    %51 = arith.subf %45, %50 : vector<16x64xf32>
    %52 = arith.mulf %51, %51 : vector<16x64xf32>
    %cst_27 = arith.constant dense<0.000000e+00> : vector<16xf32>
    %53 = vector.multi_reduction <add>, %52, %cst_27 [1] : vector<16x64xf32> to vector<16xf32>
    %54 = vector.shape_cast %53 : vector<16xf32> to vector<16x1xf32>
    %cst_28 = arith.constant 6.400000e+01 : f32
    %55 = vector.broadcast %cst_28 : f32 to vector<16x1xf32>
    %56 = arith.divf %54, %55 : vector<16x1xf32>
    %cst_29 = arith.constant 9.99999997E-7 : f32
    %57 = vector.broadcast %cst_29 : f32 to vector<16x1xf32>
    %58 = arith.addf %56, %57 : vector<16x1xf32>
    %59 = math.rsqrt %58 : vector<16x1xf32>
    %60 = vector.broadcast %59 : vector<16x1xf32> to vector<16x64xf32>
    %61 = arith.mulf %51, %60 : vector<16x64xf32>
    %62 = vector.broadcast %8 : vector<1x64xf32> to vector<16x64xf32>
    %63 = arith.mulf %61, %62 : vector<16x64xf32>
    %64 = vector.broadcast %9 : vector<1x64xf32> to vector<16x64xf32>
    %65 = arith.addf %63, %64 : vector<16x64xf32>
    %66 = arith.truncf %65 : vector<16x64xf32> to vector<16x64xbf16>
    %cst_30 = arith.constant dense<0.000000e+00> : vector<16x256xf32>
    %67 = tpu.matmul %66, %10, %cst_30 {dimension_numbers = #tpu.dot_dimension_numbers<[1], [0], [0], [1], [0, 0, 1, 1], [], []>} : vector<16x64xbf16>, vector<64x256xbf16>, vector<16x256xf32> -> vector<16x256xf32>
    %68 = vector.broadcast %11 : vector<1x256xf32> to vector<16x256xf32>
    %69 = arith.addf %67, %68 : vector<16x256xf32>
    %70 = vector.extract_strided_slice %69 {offsets = [0, 0], sizes = [8, 256], strides = [1, 1]} : vector<16x256xf32> to vector<8x256xf32>
    %c8 = arith.constant 8 : index
    %c0_31 = arith.constant 0 : index
    %71 = vector.load %arg14[%c8, %c0_31] : memref<96x256xf32, #tpu.memory_space<vmem>>, vector<8x256xf32>
    tpu.vector_store %arg14[%c8, %c0_31], %70 {strides = array<i32>} : memref<96x256xf32, #tpu.memory_space<vmem>>, vector<8x256xf32>,
    %72 = vector.extract_strided_slice %69 {offsets = [8, 0], sizes = [8, 256], strides = [1, 1]} : vector<16x256xf32> to vector<8x256xf32>
    %c80 = arith.constant 80 : index
    %c0_32 = arith.constant 0 : index
    %73 = vector.load %arg14[%c80, %c0_32] : memref<96x256xf32, #tpu.memory_space<vmem>>, vector<8x256xf32>
    tpu.vector_store %arg14[%c80, %c0_32], %72 {strides = array<i32>} : memref<96x256xf32, #tpu.memory_space<vmem>>, vector<8x256xf32>,
    %c0_i32_33 = arith.constant 0 : i32
    %74 = arith.cmpi eq, %arg1, %c0_i32_33 : i32
    %75 = arith.extui %74 : i1 to i32
    %c0_i32_34 = arith.constant 0 : i32
    %76 = arith.cmpi ne, %75, %c0_i32_34 : i32
    scf.if %76 {
      %cst_95 = arith.constant 0.000000e+00 : f32
      %206 = vector.broadcast %cst_95 : f32 to vector<8x256xf32>
      %c8_96 = arith.constant 8 : index
      %c0_97 = arith.constant 0 : index
      %207 = vector.load %arg14[%c8_96, %c0_97] : memref<96x256xf32, #tpu.memory_space<vmem>>, vector<8x256xf32>
      tpu.vector_store %arg14[%c8_96, %c0_97], %206 {strides = array<i32>} : memref<96x256xf32, #tpu.memory_space<vmem>>, vector<8x256xf32>,
    } else {
    }
    %c0_i32_35 = arith.constant 0 : i32
    %77 = arith.cmpi eq, %arg1, %c0_i32_35 : i32
    %78 = arith.extui %77 : i1 to i32
    %c0_i32_36 = arith.constant 0 : i32
    %79 = arith.cmpi ne, %78, %c0_i32_36 : i32
    scf.if %79 {
      %cst_95 = arith.constant 0.000000e+00 : f32
      %206 = vector.broadcast %cst_95 : f32 to vector<8x256xf32>
      %c80_96 = arith.constant 80 : index
      %c0_97 = arith.constant 0 : index
      %207 = vector.load %arg14[%c80_96, %c0_97] : memref<96x256xf32, #tpu.memory_space<vmem>>, vector<8x256xf32>
      tpu.vector_store %arg14[%c80_96, %c0_97], %206 {strides = array<i32>} : memref<96x256xf32, #tpu.memory_space<vmem>>, vector<8x256xf32>,
    } else {
    }
    %80 = tpu.iota {dimensions = array<i32: 0>} : vector<64x1xi32>
    %c8_i32 = arith.constant 8 : i32
    %c0_i32_37 = arith.constant 0 : i32
    %81 = arith.cmpi eq, %c8_i32, %c0_i32_37 : i32
    %c1_i32 = arith.constant 1 : i32
    %82 = arith.select %81, %c1_i32, %c8_i32 : i32
    %83 = vector.broadcast %82 : i32 to vector<64x1xi32>
    %84 = arith.remsi %80, %83 : vector<64x1xi32>
    %c0_i32_38 = arith.constant 0 : i32
    %85 = vector.broadcast %c0_i32_38 : i32 to vector<64x1xi32>
    %86 = arith.cmpi ne, %84, %85 : vector<64x1xi32>
    %c0_i32_39 = arith.constant 0 : i32
    %87 = vector.broadcast %c0_i32_39 : i32 to vector<64x1xi32>
    %88 = arith.cmpi slt, %84, %87 : vector<64x1xi32>
    %c0_i32_40 = arith.constant 0 : i32
    %89 = arith.cmpi slt, %82, %c0_i32_40 : i32
    %90 = vector.broadcast %89 : i1 to vector<64x1xi1>
    %91 = vector.broadcast %90 : vector<64x1xi1> to vector<64x1xi1>
    %92 = arith.xori %88, %91 : vector<64x1xi1>
    %93 = arith.andi %92, %86 : vector<64x1xi1>
    %94 = vector.broadcast %82 : i32 to vector<64x1xi32>
    %95 = arith.addi %84, %94 : vector<64x1xi32>
    %96 = arith.select %93, %95, %84 : vector<64x1xi1>, vector<64x1xi32>
    %c0_i32_41 = arith.constant 0 : i32
    %97 = vector.broadcast %c0_i32_41 : i32 to vector<64x1xi32>
    %98 = arith.cmpi sgt, %96, %97 : vector<64x1xi32>
    %c7_i32 = arith.constant 7 : i32
    %99 = vector.broadcast %c7_i32 : i32 to vector<64x1xi32>
    %100 = arith.cmpi slt, %96, %99 : vector<64x1xi32>
    %cst_42 = arith.constant 0.000000e+00 : f32
    %101 = vector.broadcast %cst_42 : f32 to vector<64x256xf32>
    %c7 = arith.constant 7 : index
    %c0_43 = arith.constant 0 : index
    %102 = vector.load %arg14[%c7, %c0_43] : memref<96x256xf32, #tpu.memory_space<vmem>>, vector<64x256xf32>
    %cst_44 = arith.constant 0.000000e+00 : f32
    %103 = vector.shape_cast %98 : vector<64x1xi1> to vector<64x1xi1>
    %104 = vector.broadcast %103 : vector<64x1xi1> to vector<64x256xi1>
    %105 = vector.broadcast %cst_44 : f32 to vector<64x256xf32>
    %106 = arith.select %104, %102, %105 : vector<64x256xi1>, vector<64x256xf32>
    %c0_45 = arith.constant 0 : index
    %c0_46 = arith.constant 0 : index
    %c0_47 = arith.constant 0 : index
    %107 = vector.load %arg8[%c0_45, %c0_46, %c0_47] : memref<9x1x256xf32, #tpu.memory_space<vmem>>, vector<1x1x256xf32>
    %108 = vector.shape_cast %107 : vector<1x1x256xf32> to vector<1x256xf32>
    %109 = vector.broadcast %108 : vector<1x256xf32> to vector<64x256xf32>
    %110 = arith.mulf %106, %109 : vector<64x256xf32>
    %111 = arith.addf %101, %110 : vector<64x256xf32>
    %c8_48 = arith.constant 8 : index
    %c0_49 = arith.constant 0 : index
    %112 = vector.load %arg14[%c8_48, %c0_49] : memref<96x256xf32, #tpu.memory_space<vmem>>, vector<64x256xf32>
    %c1 = arith.constant 1 : index
    %c0_50 = arith.constant 0 : index
    %c0_51 = arith.constant 0 : index
    %113 = vector.load %arg8[%c1, %c0_50, %c0_51] : memref<9x1x256xf32, #tpu.memory_space<vmem>>, vector<1x1x256xf32>
    %114 = vector.shape_cast %113 : vector<1x1x256xf32> to vector<1x256xf32>
    %115 = vector.broadcast %114 : vector<1x256xf32> to vector<64x256xf32>
    %116 = arith.mulf %112, %115 : vector<64x256xf32>
    %117 = arith.addf %111, %116 : vector<64x256xf32>
    %c9 = arith.constant 9 : index
    %c0_52 = arith.constant 0 : index
    %118 = vector.load %arg14[%c9, %c0_52] : memref<96x256xf32, #tpu.memory_space<vmem>>, vector<64x256xf32>
    %cst_53 = arith.constant 0.000000e+00 : f32
    %119 = vector.shape_cast %100 : vector<64x1xi1> to vector<64x1xi1>
    %120 = vector.broadcast %119 : vector<64x1xi1> to vector<64x256xi1>
    %121 = vector.broadcast %cst_53 : f32 to vector<64x256xf32>
    %122 = arith.select %120, %118, %121 : vector<64x256xi1>, vector<64x256xf32>
    %c2 = arith.constant 2 : index
    %c0_54 = arith.constant 0 : index
    %c0_55 = arith.constant 0 : index
    %123 = vector.load %arg8[%c2, %c0_54, %c0_55] : memref<9x1x256xf32, #tpu.memory_space<vmem>>, vector<1x1x256xf32>
    %124 = vector.shape_cast %123 : vector<1x1x256xf32> to vector<1x256xf32>
    %125 = vector.broadcast %124 : vector<1x256xf32> to vector<64x256xf32>
    %126 = arith.mulf %122, %125 : vector<64x256xf32>
    %127 = arith.addf %117, %126 : vector<64x256xf32>
    %c15 = arith.constant 15 : index
    %c0_56 = arith.constant 0 : index
    %128 = vector.load %arg14[%c15, %c0_56] : memref<96x256xf32, #tpu.memory_space<vmem>>, vector<64x256xf32>
    %cst_57 = arith.constant 0.000000e+00 : f32
    %129 = vector.shape_cast %98 : vector<64x1xi1> to vector<64x1xi1>
    %130 = vector.broadcast %129 : vector<64x1xi1> to vector<64x256xi1>
    %131 = vector.broadcast %cst_57 : f32 to vector<64x256xf32>
    %132 = arith.select %130, %128, %131 : vector<64x256xi1>, vector<64x256xf32>
    %c3 = arith.constant 3 : index
    %c0_58 = arith.constant 0 : index
    %c0_59 = arith.constant 0 : index
    %133 = vector.load %arg8[%c3, %c0_58, %c0_59] : memref<9x1x256xf32, #tpu.memory_space<vmem>>, vector<1x1x256xf32>
    %134 = vector.shape_cast %133 : vector<1x1x256xf32> to vector<1x256xf32>
    %135 = vector.broadcast %134 : vector<1x256xf32> to vector<64x256xf32>
    %136 = arith.mulf %132, %135 : vector<64x256xf32>
    %137 = arith.addf %127, %136 : vector<64x256xf32>
    %c16_60 = arith.constant 16 : index
    %c0_61 = arith.constant 0 : index
    %138 = vector.load %arg14[%c16_60, %c0_61] : memref<96x256xf32, #tpu.memory_space<vmem>>, vector<64x256xf32>
    %c4 = arith.constant 4 : index
    %c0_62 = arith.constant 0 : index
    %c0_63 = arith.constant 0 : index
    %139 = vector.load %arg8[%c4, %c0_62, %c0_63] : memref<9x1x256xf32, #tpu.memory_space<vmem>>, vector<1x1x256xf32>
    %140 = vector.shape_cast %139 : vector<1x1x256xf32> to vector<1x256xf32>
    %141 = vector.broadcast %140 : vector<1x256xf32> to vector<64x256xf32>
    %142 = arith.mulf %138, %141 : vector<64x256xf32>
    %143 = arith.addf %137, %142 : vector<64x256xf32>
    %c17 = arith.constant 17 : index
    %c0_64 = arith.constant 0 : index
    %144 = vector.load %arg14[%c17, %c0_64] : memref<96x256xf32, #tpu.memory_space<vmem>>, vector<64x256xf32>
    %cst_65 = arith.constant 0.000000e+00 : f32
    %145 = vector.shape_cast %100 : vector<64x1xi1> to vector<64x1xi1>
    %146 = vector.broadcast %145 : vector<64x1xi1> to vector<64x256xi1>
    %147 = vector.broadcast %cst_65 : f32 to vector<64x256xf32>
    %148 = arith.select %146, %144, %147 : vector<64x256xi1>, vector<64x256xf32>
    %c5 = arith.constant 5 : index
    %c0_66 = arith.constant 0 : index
    %c0_67 = arith.constant 0 : index
    %149 = vector.load %arg8[%c5, %c0_66, %c0_67] : memref<9x1x256xf32, #tpu.memory_space<vmem>>, vector<1x1x256xf32>
    %150 = vector.shape_cast %149 : vector<1x1x256xf32> to vector<1x256xf32>
    %151 = vector.broadcast %150 : vector<1x256xf32> to vector<64x256xf32>
    %152 = arith.mulf %148, %151 : vector<64x256xf32>
    %153 = arith.addf %143, %152 : vector<64x256xf32>
    %c23 = arith.constant 23 : index
    %c0_68 = arith.constant 0 : index
    %154 = vector.load %arg14[%c23, %c0_68] : memref<96x256xf32, #tpu.memory_space<vmem>>, vector<64x256xf32>
    %cst_69 = arith.constant 0.000000e+00 : f32
    %155 = vector.shape_cast %98 : vector<64x1xi1> to vector<64x1xi1>
    %156 = vector.broadcast %155 : vector<64x1xi1> to vector<64x256xi1>
    %157 = vector.broadcast %cst_69 : f32 to vector<64x256xf32>
    %158 = arith.select %156, %154, %157 : vector<64x256xi1>, vector<64x256xf32>
    %c6 = arith.constant 6 : index
    %c0_70 = arith.constant 0 : index
    %c0_71 = arith.constant 0 : index
    %159 = vector.load %arg8[%c6, %c0_70, %c0_71] : memref<9x1x256xf32, #tpu.memory_space<vmem>>, vector<1x1x256xf32>
    %160 = vector.shape_cast %159 : vector<1x1x256xf32> to vector<1x256xf32>
    %161 = vector.broadcast %160 : vector<1x256xf32> to vector<64x256xf32>
    %162 = arith.mulf %158, %161 : vector<64x256xf32>
    %163 = arith.addf %153, %162 : vector<64x256xf32>
    %c24 = arith.constant 24 : index
    %c0_72 = arith.constant 0 : index
    %164 = vector.load %arg14[%c24, %c0_72] : memref<96x256xf32, #tpu.memory_space<vmem>>, vector<64x256xf32>
    %c7_73 = arith.constant 7 : index
    %c0_74 = arith.constant 0 : index
    %c0_75 = arith.constant 0 : index
    %165 = vector.load %arg8[%c7_73, %c0_74, %c0_75] : memref<9x1x256xf32, #tpu.memory_space<vmem>>, vector<1x1x256xf32>
    %166 = vector.shape_cast %165 : vector<1x1x256xf32> to vector<1x256xf32>
    %167 = vector.broadcast %166 : vector<1x256xf32> to vector<64x256xf32>
    %168 = arith.mulf %164, %167 : vector<64x256xf32>
    %169 = arith.addf %163, %168 : vector<64x256xf32>
    %c25 = arith.constant 25 : index
    %c0_76 = arith.constant 0 : index
    %170 = vector.load %arg14[%c25, %c0_76] : memref<96x256xf32, #tpu.memory_space<vmem>>, vector<64x256xf32>
    %cst_77 = arith.constant 0.000000e+00 : f32
    %171 = vector.shape_cast %100 : vector<64x1xi1> to vector<64x1xi1>
    %172 = vector.broadcast %171 : vector<64x1xi1> to vector<64x256xi1>
    %173 = vector.broadcast %cst_77 : f32 to vector<64x256xf32>
    %174 = arith.select %172, %170, %173 : vector<64x256xi1>, vector<64x256xf32>
    %c8_78 = arith.constant 8 : index
    %c0_79 = arith.constant 0 : index
    %c0_80 = arith.constant 0 : index
    %175 = vector.load %arg8[%c8_78, %c0_79, %c0_80] : memref<9x1x256xf32, #tpu.memory_space<vmem>>, vector<1x1x256xf32>
    %176 = vector.shape_cast %175 : vector<1x1x256xf32> to vector<1x256xf32>
    %177 = vector.broadcast %176 : vector<1x256xf32> to vector<64x256xf32>
    %178 = arith.mulf %174, %177 : vector<64x256xf32>
    %179 = arith.addf %169, %178 : vector<64x256xf32>
    %c0_81 = arith.constant 0 : index
    %c0_82 = arith.constant 0 : index
    %180 = vector.load %arg9[%c0_81, %c0_82] : memref<1x256xf32, #tpu.memory_space<vmem>>, vector<1x256xf32>
    %181 = vector.broadcast %180 : vector<1x256xf32> to vector<64x256xf32>
    %182 = arith.addf %179, %181 : vector<64x256xf32>
    %cst_83 = arith.constant 5.000000e-01 : f32
    %183 = vector.broadcast %cst_83 : f32 to vector<64x256xf32>
    %184 = arith.mulf %183, %182 : vector<64x256xf32>
    %185 = arith.mulf %182, %182 : vector<64x256xf32>
    %186 = arith.mulf %185, %182 : vector<64x256xf32>
    %cst_84 = arith.constant 4.471500e-02 : f32
    %187 = vector.broadcast %cst_84 : f32 to vector<64x256xf32>
    %188 = arith.mulf %187, %186 : vector<64x256xf32>
    %189 = arith.addf %182, %188 : vector<64x256xf32>
    %cst_85 = arith.constant 0.797884583 : f32
    %190 = vector.broadcast %cst_85 : f32 to vector<64x256xf32>
    %191 = arith.mulf %190, %189 : vector<64x256xf32>
    %192 = math.tanh %191 : vector<64x256xf32>
    %cst_86 = arith.constant 1.000000e+00 : f32
    %193 = vector.broadcast %cst_86 : f32 to vector<64x256xf32>
    %194 = arith.addf %193, %192 : vector<64x256xf32>
    %195 = arith.mulf %184, %194 : vector<64x256xf32>
    %196 = arith.truncf %195 : vector<64x256xf32> to vector<64x256xbf16>
    %c0_87 = arith.constant 0 : index
    %c0_88 = arith.constant 0 : index
    %197 = vector.load %arg10[%c0_87, %c0_88] : memref<256x64xbf16, #tpu.memory_space<vmem>>, vector<256x64xbf16>
    %cst_89 = arith.constant dense<0.000000e+00> : vector<64x64xf32>
    %198 = tpu.matmul %196, %197, %cst_89 {dimension_numbers = #tpu.dot_dimension_numbers<[1], [0], [0], [1], [0, 0, 1, 1], [], []>} : vector<64x256xbf16>, vector<256x64xbf16>, vector<64x64xf32> -> vector<64x64xf32>
    %c0_90 = arith.constant 0 : index
    %c0_91 = arith.constant 0 : index
    %199 = vector.load %arg11[%c0_90, %c0_91] : memref<1x64xf32, #tpu.memory_space<vmem>>, vector<1x64xf32>
    %200 = vector.broadcast %199 : vector<1x64xf32> to vector<64x64xf32>
    %201 = arith.addf %198, %200 : vector<64x64xf32>
    %202 = arith.addf %13, %201 : vector<64x64xf32>
    %c0_92 = arith.constant 0 : index
    %c0_93 = arith.constant 0 : index
    %c0_94 = arith.constant 0 : index
    %203 = vector.load %arg12[%c0_92, %c0_93, %c0_94] : memref<1x64x64xf32, #tpu.memory_space<vmem>>, vector<1x64x64xf32>
    %204 = vector.shape_cast %203 : vector<1x64x64xf32> to vector<64x64xf32>
    %205 = vector.shape_cast %202 : vector<64x64xf32> to vector<1x64x64xf32>
    tpu.vector_store %arg12[%c0_92, %c0_93, %c0_94], %205 {strides = array<i32>} : memref<1x64x64xf32, #tpu.memory_space<vmem>>, vector<1x64x64xf32>,
    return
  }
  func.func @transform_0(%arg0: i32, %arg1: i32) -> (i32, i32, i32) {
    %c0_i32 = arith.constant 0 : i32
    %c0_i32_0 = arith.constant 0 : i32
    return %arg0, %arg1, %c0_i32 : i32, i32, i32
  }
  func.func @transform_2(%arg0: i32, %arg1: i32) -> (i32, i32) {
    %c0_i32 = arith.constant 0 : i32
    %c0_i32_0 = arith.constant 0 : i32
    %c0_i32_1 = arith.constant 0 : i32
    return %c0_i32, %c0_i32_0 : i32, i32
  }
  func.func @transform_3(%arg0: i32, %arg1: i32) -> (i32, i32) {
    %c0_i32 = arith.constant 0 : i32
    %c0_i32_0 = arith.constant 0 : i32
    %c0_i32_1 = arith.constant 0 : i32
    return %c0_i32, %c0_i32_0 : i32, i32
  }
  func.func @transform_4(%arg0: i32, %arg1: i32) -> (i32, i32) {
    %c0_i32 = arith.constant 0 : i32
    %c0_i32_0 = arith.constant 0 : i32
    %c0_i32_1 = arith.constant 0 : i32
    return %c0_i32, %c0_i32_0 : i32, i32
  }
  func.func @transform_5(%arg0: i32, %arg1: i32) -> (i32, i32) {
    %c0_i32 = arith.constant 0 : i32
    %c0_i32_0 = arith.constant 0 : i32
    %c0_i32_1 = arith.constant 0 : i32
    return %c0_i32, %c0_i32_0 : i32, i32
  }
  func.func @transform_6(%arg0: i32, %arg1: i32) -> (i32, i32, i32) {
    %c0_i32 = arith.constant 0 : i32
    %c0_i32_0 = arith.constant 0 : i32
    %c0_i32_1 = arith.constant 0 : i32
    %c0_i32_2 = arith.constant 0 : i32
    return %c0_i32, %c0_i32_0, %c0_i32_1 : i32, i32, i32
  }
  func.func @transform_7(%arg0: i32, %arg1: i32) -> (i32, i32) {
    %c0_i32 = arith.constant 0 : i32
    %c0_i32_0 = arith.constant 0 : i32
    %c0_i32_1 = arith.constant 0 : i32
    return %c0_i32, %c0_i32_0 : i32, i32
  }
  func.func @transform_8(%arg0: i32, %arg1: i32) -> (i32, i32) {
    %c0_i32 = arith.constant 0 : i32
    %c0_i32_0 = arith.constant 0 : i32
    %c0_i32_1 = arith.constant 0 : i32
    return %c0_i32, %c0_i32_0 : i32, i32
  }
  func.func @transform_9(%arg0: i32, %arg1: i32) -> (i32, i32) {
    %c0_i32 = arith.constant 0 : i32
    %c0_i32_0 = arith.constant 0 : i32
    %c0_i32_1 = arith.constant 0 : i32
    return %c0_i32, %c0_i32_0 : i32, i32
  }
  func.func @transform_10(%arg0: i32, %arg1: i32) -> (i32, i32, i32) {
    %c0_i32 = arith.constant 0 : i32
    %c0_i32_0 = arith.constant 0 : i32
    return %arg0, %arg1, %c0_i32 : i32, i32, i32
  }
}

</mosaic_0001>

<llo_original>
// kernel: _lambda_.4
$region0: #{_lambda_.4}
  #allocation0 [shape = 'u32[]', space=smem, size = 0x4, offset = 0x4, fixed_abs, tag = 'smem constant byte address 0x4 - core index']
  #allocation1 [shape = 'u32[144,128]{1,0:T(1,128)}', space=vmem, size = 0x12000, scoped, tag = 'internal scratch']
  %s0 = inlined_call_operand.vmem [shape: f32[2,64,64], index: 0, kind: input, shape index: {}]
  %s1 = inlined_call_operand.vmem [shape: bf16[2,17,64], index: 1, kind: input, shape index: {}]
  %s2 = inlined_call_operand.vmem [shape: bf16[2,17,64], index: 2, kind: input, shape index: {}]
  %s3 = inlined_call_operand.vmem [shape: f32[1,64], index: 3, kind: input, shape index: {}]
  %s4 = inlined_call_operand.vmem [shape: f32[1,64], index: 4, kind: input, shape index: {}]
  %s5 = inlined_call_operand.vmem [shape: bf16[64,64], index: 5, kind: input, shape index: {}]
  %s6 = inlined_call_operand.vmem [shape: f32[1,64], index: 6, kind: input, shape index: {}]
  %s7 = inlined_call_operand.vmem [shape: bf16[64,64], index: 7, kind: input, shape index: {}]
  %s8 = inlined_call_operand.vmem [shape: f32[1,64], index: 8, kind: input, shape index: {}]
  %s9 = inlined_call_operand.vmem [shape: f32[2,64,64], index: 9, kind: output, shape index: {}]
  %s10 = sld [smem:[#allocation0]]
  $region69: #{_lambda_.4} parent=0
    _
  %s12 = ssub.s32 1, %s10
  %s13 = scalar_select 0, %s12, %s10
  loop: start=0, step=1, limit=4
  $region2: #{_lambda_.4} parent=0 // loop_pre_header
    _
  $region3: #{_lambda_.4} parent=0 // loop_header
    %s15 = sphi 0, %s19
    %p16 = scmp.ge.s32.totalorder %s15, 4
    %s22 = sphi 0, %s34
    %s23 = sphi 0, %s30
    %s24 = sphi 0, %s22
    %s25 = sphi 0, %s23
    %s26 = sphi 0, %s24
    %s27 = sphi 0, %s25
    %s39 = sphi 0, %s41
    %s42 = sphi 0, %s39
    %s43 = sphi 0, %s42
    %s59 = sphi 0, %s43
    %s65 = sphi 0, %s67
    %s68 = sphi 0, %s65
    %s69 = sphi 0, %s68
    %s85 = sphi 0, %s69
    %s91 = sphi 0, %s93
    %s94 = sphi 0, %s91
    %s95 = sphi 0, %s94
    %s111 = sphi 0, %s95
    %s115 = sphi 0, %s115
    %s117 = sphi 0, %s115
    %s118 = sphi 0, %s117
    %s132 = sphi 0, %s118
    %s136 = sphi 0, %s136
    %s138 = sphi 0, %s136
    %s139 = sphi 0, %s138
    %s153 = sphi 0, %s139
    %s157 = sphi 0, %s157
    %s159 = sphi 0, %s157
    %s160 = sphi 0, %s159
    %s174 = sphi 0, %s160
    %s178 = sphi 0, %s178
    %s180 = sphi 0, %s178
    %s181 = sphi 0, %s180
    %s195 = sphi 0, %s181
    %s199 = sphi 0, %s199
    %s201 = sphi 0, %s199
    %s202 = sphi 0, %s201
    %s216 = sphi 0, %s202
    %s220 = sphi 0, %s220
    %s222 = sphi 0, %s220
    %s223 = sphi 0, %s222
    %s237 = sphi 0, %s223
    %s245 = sphi 0, %s247
    %s248 = sphi 0, %s245
    %s249 = sphi 0, %s248
    %s265 = sphi 0, %s249
  $region4: #{_lambda_.4} parent=0 // loop_header_branch
    %18 = sbr.rel (%p16) target = $region8
  $region5: #{_lambda_.4} parent=0 // loop_body
    %s20 = ssub.s32 %s15, 1
    %s21 = ssub.s32 %s15, 2
    %s28 = sadd.s32 1, %s23
    %p29 = scmp.ge.s32.totalorder %s28, 1
    %s30 = scalar_select %p29, 0, %s28
    %s31 = sadd.s32 1, %s22
    %s32 = scalar_select %p29, %s31, %s22
    %p33 = scmp.ge.s32.totalorder %s32, 2
    %s34 = scalar_select %p33, 0, %s32
    %s35 = ssub.s32 %s22, %s34
    %s36 = ssub.s32 %s23, %s30
    %s37 = sor.u32 %s35, %s36
    %p38 = scmp.eq.s32.totalorder %s37, 0
    %s40 = sadd.s32 %s39, 1
    %s41 = scalar_select %p38, %s39, %s40
    %p44 = pneg %p38
    %p45 = scmp.eq.s32.totalorder %s15, 1
    %p46 = por %p44, %p45
    %p47 = scmp.ne.s32.totalorder %s39, %s42
    %p48 = scmp.eq.s32.totalorder %s15, 0
    %p49 = por %p47, %p48
    %p50 = scmp.ne.s32.totalorder %s39, %s42
    %p51 = scmp.eq.s32.totalorder %s20, 1
    %p52 = por %p50, %p51
    %p53 = scmp.ne.s32.totalorder %s42, %s43
    %p54 = scmp.eq.s32.totalorder %s20, 0
    %p55 = por %p53, %p54
    %p56 = scmp.ne.s32.totalorder %s42, %s43
    %p57 = scmp.eq.s32.totalorder %s21, 1
    %p58 = por %p56, %p57
    %p60 = scmp.ne.s32.totalorder %s43, %s59
    %p61 = scmp.eq.s32.totalorder %s21, 0
    %p62 = por %p60, %p61
    %s63 = ssub.s32 %s22, %s34
    %p64 = scmp.eq.s32.totalorder %s63, 0
    %s66 = sadd.s32 %s65, 1
    %s67 = scalar_select %p64, %s65, %s66
    %p70 = pneg %p64
    %p71 = scmp.eq.s32.totalorder %s15, 1
    %p72 = por %p70, %p71
    %p73 = scmp.ne.s32.totalorder %s65, %s68
    %p74 = scmp.eq.s32.totalorder %s15, 0
    %p75 = por %p73, %p74
    %p76 = scmp.ne.s32.totalorder %s65, %s68
    %p77 = scmp.eq.s32.totalorder %s20, 1
    %p78 = por %p76, %p77
    %p79 = scmp.ne.s32.totalorder %s68, %s69
    %p80 = scmp.eq.s32.totalorder %s20, 0
    %p81 = por %p79, %p80
    %p82 = scmp.ne.s32.totalorder %s68, %s69
    %p83 = scmp.eq.s32.totalorder %s21, 1
    %p84 = por %p82, %p83
    %p86 = scmp.ne.s32.totalorder %s69, %s85
    %p87 = scmp.eq.s32.totalorder %s21, 0
    %p88 = por %p86, %p87
    %s89 = ssub.s32 %s22, %s34
    %p90 = scmp.eq.s32.totalorder %s89, 0
    %s92 = sadd.s32 %s91, 1
    %s93 = scalar_select %p90, %s91, %s92
    %p96 = pneg %p90
    %p97 = scmp.eq.s32.totalorder %s15, 1
    %p98 = por %p96, %p97
    %p99 = scmp.ne.s32.totalorder %s91, %s94
    %p100 = scmp.eq.s32.totalorder %s15, 0
    %p101 = por %p99, %p100
    %p102 = scmp.ne.s32.totalorder %s91, %s94
    %p103 = scmp.eq.s32.totalorder %s20, 1
    %p104 = por %p102, %p103
    %p105 = scmp.ne.s32.totalorder %s94, %s95
    %p106 = scmp.eq.s32.totalorder %s20, 0
    %p107 = por %p105, %p106
    %p108 = scmp.ne.s32.totalorder %s94, %s95
    %p109 = scmp.eq.s32.totalorder %s21, 1
    %p110 = por %p108, %p109
    %p112 = scmp.ne.s32.totalorder %s95, %s111
    %p113 = scmp.eq.s32.totalorder %s21, 0
    %p114 = por %p112, %p113
    %s116 = sadd.s32 %s115, 1
    %p119 = scmp.eq.s32.totalorder %s15, 1
    %p120 = scmp.ne.s32.totalorder %s115, %s117
    %p121 = scmp.eq.s32.totalorder %s15, 0
    %p122 = por %p120, %p121
    %p123 = scmp.ne.s32.totalorder %s115, %s117
    %p124 = scmp.eq.s32.totalorder %s20, 1
    %p125 = por %p123, %p124
    %p126 = scmp.ne.s32.totalorder %s117, %s118
    %p127 = scmp.eq.s32.totalorder %s20, 0
    %p128 = por %p126, %p127
    %p129 = scmp.ne.s32.totalorder %s117, %s118
    %p130 = scmp.eq.s32.totalorder %s21, 1
    %p131 = por %p129, %p130
    %p133 = scmp.ne.s32.totalorder %s118, %s132
    %p134 = scmp.eq.s32.totalorder %s21, 0
    %p135 = por %p133, %p134
    %s137 = sadd.s32 %s136, 1
    %p140 = scmp.eq.s32.totalorder %s15, 1
    %p141 = scmp.ne.s32.totalorder %s136, %s138
    %p142 = scmp.eq.s32.totalorder %s15, 0
    %p143 = por %p141, %p142
    %p144 = scmp.ne.s32.totalorder %s136, %s138
    %p145 = scmp.eq.s32.totalorder %s20, 1
    %p146 = por %p144, %p145
    %p147 = scmp.ne.s32.totalorder %s138, %s139
    %p148 = scmp.eq.s32.totalorder %s20, 0
    %p149 = por %p147, %p148
    %p150 = scmp.ne.s32.totalorder %s138, %s139
    %p151 = scmp.eq.s32.totalorder %s21, 1
    %p152 = por %p150, %p151
    %p154 = scmp.ne.s32.totalorder %s139, %s153
    %p155 = scmp.eq.s32.totalorder %s21, 0
    %p156 = por %p154, %p155
    %s158 = sadd.s32 %s157, 1
    %p161 = scmp.eq.s32.totalorder %s15, 1
    %p162 = scmp.ne.s32.totalorder %s157, %s159
    %p163 = scmp.eq.s32.totalorder %s15, 0
    %p164 = por %p162, %p163
    %p165 = scmp.ne.s32.totalorder %s157, %s159
    %p166 = scmp.eq.s32.totalorder %s20, 1
    %p167 = por %p165, %p166
    %p168 = scmp.ne.s32.totalorder %s159, %s160
    %p169 = scmp.eq.s32.totalorder %s20, 0
    %p170 = por %p168, %p169
    %p171 = scmp.ne.s32.totalorder %s159, %s160
    %p172 = scmp.eq.s32.totalorder %s21, 1
    %p173 = por %p171, %p172
    %p175 = scmp.ne.s32.totalorder %s160, %s174
    %p176 = scmp.eq.s32.totalorder %s21, 0
    %p177 = por %p175, %p176
    %s179 = sadd.s32 %s178, 1
    %p182 = scmp.eq.s32.totalorder %s15, 1
    %p183 = scmp.ne.s32.totalorder %s178, %s180
    %p184 = scmp.eq.s32.totalorder %s15, 0
    %p185 = por %p183, %p184
    %p186 = scmp.ne.s32.totalorder %s178, %s180
    %p187 = scmp.eq.s32.totalorder %s20, 1
    %p188 = por %p186, %p187
    %p189 = scmp.ne.s32.totalorder %s180, %s181
    %p190 = scmp.eq.s32.totalorder %s20, 0
    %p191 = por %p189, %p190
    %p192 = scmp.ne.s32.totalorder %s180, %s181
    %p193 = scmp.eq.s32.totalorder %s21, 1
    %p194 = por %p192, %p193
    %p196 = scmp.ne.s32.totalorder %s181, %s195
    %p197 = scmp.eq.s32.totalorder %s21, 0
    %p198 = por %p196, %p197
    %s200 = sadd.s32 %s199, 1
    %p203 = scmp.eq.s32.totalorder %s15, 1
    %p204 = scmp.ne.s32.totalorder %s199, %s201
    %p205 = scmp.eq.s32.totalorder %s15, 0
    %p206 = por %p204, %p205
    %p207 = scmp.ne.s32.totalorder %s199, %s201
    %p208 = scmp.eq.s32.totalorder %s20, 1
    %p209 = por %p207, %p208
    %p210 = scmp.ne.s32.totalorder %s201, %s202
    %p211 = scmp.eq.s32.totalorder %s20, 0
    %p212 = por %p210, %p211
    %p213 = scmp.ne.s32.totalorder %s201, %s202
    %p214 = scmp.eq.s32.totalorder %s21, 1
    %p215 = por %p213, %p214
    %p217 = scmp.ne.s32.totalorder %s202, %s216
    %p218 = scmp.eq.s32.totalorder %s21, 0
    %p219 = por %p217, %p218
    %s221 = sadd.s32 %s220, 1
    %p224 = scmp.eq.s32.totalorder %s15, 1
    %p225 = scmp.ne.s32.totalorder %s220, %s222
    %p226 = scmp.eq.s32.totalorder %s15, 0
    %p227 = por %p225, %p226
    %p228 = scmp.ne.s32.totalorder %s220, %s222
    %p229 = scmp.eq.s32.totalorder %s20, 1
    %p230 = por %p228, %p229
    %p231 = scmp.ne.s32.totalorder %s222, %s223
    %p232 = scmp.eq.s32.totalorder %s20, 0
    %p233 = por %p231, %p232
    %p234 = scmp.ne.s32.totalorder %s222, %s223
    %p235 = scmp.eq.s32.totalorder %s21, 1
    %p236 = por %p234, %p235
    %p238 = scmp.ne.s32.totalorder %s223, %s237
    %p239 = scmp.eq.s32.totalorder %s21, 0
    %p240 = por %p238, %p239
    %s241 = ssub.s32 %s22, %s34
    %s242 = ssub.s32 %s23, %s30
    %s243 = sor.u32 %s241, %s242
    %p244 = scmp.eq.s32.totalorder %s243, 0
    %s246 = sadd.s32 %s245, 1
    %s247 = scalar_select %p244, %s245, %s246
    %p250 = pneg %p244
    %p251 = scmp.eq.s32.totalorder %s15, 1
    %p252 = por %p250, %p251
    %p253 = scmp.ne.s32.totalorder %s245, %s248
    %p254 = scmp.eq.s32.totalorder %s15, 0
    %p255 = por %p253, %p254
    %p256 = scmp.ne.s32.totalorder %s245, %s248
    %p257 = scmp.eq.s32.totalorder %s20, 1
    %p258 = por %p256, %p257
    %p259 = scmp.ne.s32.totalorder %s248, %s249
    %p260 = scmp.eq.s32.totalorder %s20, 0
    %p261 = por %p259, %p260
    %p262 = scmp.ne.s32.totalorder %s248, %s249
    %p263 = scmp.eq.s32.totalorder %s21, 1
    %p264 = por %p262, %p263
    %p266 = scmp.ne.s32.totalorder %s249, %s265
    %p267 = scmp.eq.s32.totalorder %s21, 0
    %p268 = por %p266, %p267
    %p269 = scmp.le.s32.totalorder 1, %s15
    %p270 = scmp.lt.s32.totalorder %s15, 3
    %p271 = pnand %p269, %p270
    %p272 = pneg %p271
    // Predicated region
    $region9: #{_lambda_.4} parent=5 // pred_check
      _
    $region10: #{_lambda_.4} parent=5 // pred_check_branch
      %274 = sbr.rel (%p271) target = $region12
    $region11: #{_lambda_.4} parent=5 // pred_region
      %s275 = ssub.s32 %s15, 1
      // Predicated region
      $region13: #{_lambda_.4} parent=11 // pred_check
        %p276 = pneg %p128
      $region14: #{_lambda_.4} parent=11 // pred_check_branch
        %278 = sbr.rel (%p276) target = $region16
      $region15: #{_lambda_.4} parent=11 // pred_region
        _
      $region16: #{_lambda_.4} parent=11 // pred_fallthru
        _
      // Predicated region
      $region17: #{_lambda_.4} parent=11 // pred_check
        %p279 = pneg %p149
      $region18: #{_lambda_.4} parent=11 // pred_check_branch
        %281 = sbr.rel (%p279) target = $region20
      $region19: #{_lambda_.4} parent=11 // pred_region
        _
      $region20: #{_lambda_.4} parent=11 // pred_fallthru
        _
      // Predicated region
      $region21: #{_lambda_.4} parent=11 // pred_check
        %p282 = pneg %p170
      $region22: #{_lambda_.4} parent=11 // pred_check_branch
        %284 = sbr.rel (%p282) target = $region24
      $region23: #{_lambda_.4} parent=11 // pred_region
        _
      $region24: #{_lambda_.4} parent=11 // pred_fallthru
        _
      // Predicated region
      $region25: #{_lambda_.4} parent=11 // pred_check
        %p285 = pneg %p191
      $region26: #{_lambda_.4} parent=11 // pred_check_branch
        %287 = sbr.rel (%p285) target = $region28
      $region27: #{_lambda_.4} parent=11 // pred_region
        _
      $region28: #{_lambda_.4} parent=11 // pred_fallthru
        _
      // Predicated region
      $region29: #{_lambda_.4} parent=11 // pred_check
        %p288 = pneg %p212
      $region30: #{_lambda_.4} parent=11 // pred_check_branch
        %290 = sbr.rel (%p288) target = $region32
      $region31: #{_lambda_.4} parent=11 // pred_region
        _
      $region32: #{_lambda_.4} parent=11 // pred_fallthru
        _
      // Predicated region
      $region33: #{_lambda_.4} parent=11 // pred_check
        %p291 = pneg %p233
      $region34: #{_lambda_.4} parent=11 // pred_check_branch
        %293 = sbr.rel (%p291) target = $region36
      $region35: #{_lambda_.4} parent=11 // pred_region
        _
      $region36: #{_lambda_.4} parent=11 // pred_fallthru
        _
    $region12: #{_lambda_.4} parent=5 // pred_fallthru
      _
    %p294 = scmp.lt.s32.totalorder %s15, 2
    // Predicated region
    $region37: #{_lambda_.4} parent=5 // pred_check
      %p295 = pneg %p294
    $region38: #{_lambda_.4} parent=5 // pred_check_branch
      %297 = sbr.rel (%p295) target = $region40
    $region39: #{_lambda_.4} parent=5 // pred_region
      // Predicated region
      $region41: #{_lambda_.4} parent=39 // pred_check
        %p298 = pneg %p49
      $region42: #{_lambda_.4} parent=39 // pred_check_branch
        %300 = sbr.rel (%p298) target = $region44
      $region43: #{_lambda_.4} parent=39 // pred_region
        %s301 = smul.u32 8, %s23
        %p302 = scmp.lt.s32.totalorder %s22, 1
        %s303 = scalar_select %p302, %s22, 1
        %p304 = scmp.lt.s32.totalorder %s301, 7
        %s305 = scalar_select %p304, %s301, 7
        %s306 = smul.addr %s303, 8
        %s307 = sadd.s32 %s305, %s306
        %s308 = smul.addr %s307, 8
        %s309 = scalar_lea.vmem %s0, %s308
        %s310 = smul.u32 8, %s23
      $region44: #{_lambda_.4} parent=39 // pred_fallthru
        _
      // Predicated region
      $region45: #{_lambda_.4} parent=39 // pred_check
        %p311 = pneg %p75
      $region46: #{_lambda_.4} parent=39 // pred_check_branch
        %313 = sbr.rel (%p311) target = $region48
      $region47: #{_lambda_.4} parent=39 // pred_region
        %p314 = scmp.lt.s32.totalorder %s22, 1
        %s315 = scalar_select %p314, %s22, 1
        %s316 = smul.addr %s315, 3
        %s317 = smul.addr %s316, 4
        %s318 = scalar_lea.vmem %s1, %s317
      $region48: #{_lambda_.4} parent=39 // pred_fallthru
        _
      // Predicated region
      $region49: #{_lambda_.4} parent=39 // pred_check
        %p319 = pneg %p101
      $region50: #{_lambda_.4} parent=39 // pred_check_branch
        %321 = sbr.rel (%p319) target = $region52
      $region51: #{_lambda_.4} parent=39 // pred_region
        %p322 = scmp.lt.s32.totalorder %s22, 1
        %s323 = scalar_select %p322, %s22, 1
        %s324 = smul.addr %s323, 3
        %s325 = smul.addr %s324, 4
        %s326 = scalar_lea.vmem %s2, %s325
      $region52: #{_lambda_.4} parent=39 // pred_fallthru
        _
    $region40: #{_lambda_.4} parent=5 // pred_fallthru
      _
    %p327 = scmp.le.s32.totalorder 1, %s15
    %p328 = scmp.lt.s32.totalorder %s15, 3
    %p329 = pnand %p327, %p328
    %p330 = pneg %p329
    // Predicated region
    $region53: #{_lambda_.4} parent=5 // pred_check
      _
    $region54: #{_lambda_.4} parent=5 // pred_check_branch
      %332 = sbr.rel (%p329) target = $region56
    $region55: #{_lambda_.4} parent=5 // pred_region
      %s333 = ssub.s32 %s15, 1
      %s334 = smul.u32 8, %s25
      %p335 = scmp.lt.s32.totalorder %s24, 1
      %s336 = scalar_select %p335, %s24, 1
      %p337 = scmp.lt.s32.totalorder %s334, 7
      %s338 = scalar_select %p337, %s334, 7
      %s339 = smul.addr %s336, 8
      %s340 = sadd.s32 %s338, %s339
      %s341 = smul.addr %s340, 8
      %s342 = scalar_lea.vmem %s0, %s341
      %p343 = pneg %p55
      %p344 = pneg %p52
      %p345 = scmp.lt.s32.totalorder %s24, 1
      %s346 = scalar_select %p345, %s24, 1
      %s347 = smul.addr %s346, 3
      %s348 = smul.addr %s347, 4
      %s349 = scalar_lea.vmem %s1, %s348
      %p350 = pneg %p81
      %p351 = pneg %p78
      %p352 = scmp.lt.s32.totalorder %s24, 1
      %s353 = scalar_select %p352, %s24, 1
      %s354 = smul.addr %s353, 3
      %s355 = smul.addr %s354, 4
      %s356 = scalar_lea.vmem %s2, %s355
      %p357 = pneg %p107
      %p358 = pneg %p104
      %p359 = pneg %p128
      %p360 = pneg %p125
      %p361 = pneg %p149
      %p362 = pneg %p146
      %p363 = pneg %p170
      %p364 = pneg %p167
      %p365 = pneg %p191
      %p366 = pneg %p188
      %p367 = pneg %p212
      %p368 = pneg %p209
      %p369 = pneg %p233
      %p370 = pneg %p230
      %p371 = pneg %p261
      %p372 = pneg %p258
      %s373 = smul.u32 8, %s25
      %p374 = scmp.lt.s32.totalorder %s24, 1
      %s375 = scalar_select %p374, %s24, 1
      %p376 = scmp.lt.s32.totalorder %s373, 7
      %s377 = scalar_select %p376, %s373, 7
      %s378 = smul.addr %s375, 8
      %s379 = sadd.s32 %s377, %s378
      %s380 = smul.addr %s379, 8
      %s381 = scalar_lea.vmem %s9, %s380
      %s382 = smul.u32 8, %s25
      %p383 = scmp.lt.s32.totalorder %s24, 1
      %s384 = scalar_select %p383, %s24, 1
      %p385 = scmp.lt.s32.totalorder %s382, 7
      %s386 = scalar_select %p385, %s382, 7
      %s387 = smul.addr %s384, 8
      %s388 = sadd.s32 %s386, %s387
      %s389 = smul.addr %s388, 8
      %s390 = scalar_lea.vmem %s0, %s389
      %s391 = smul.u32 8, %s25
      %p392 = scmp.lt.s32.totalorder %s24, 1
      %s393 = scalar_select %p392, %s24, 1
      %s394 = smul.addr %s393, 3
      %s395 = smul.addr %s394, 4
      %s396 = scalar_lea.vmem %s1, %s395
      %p397 = scmp.lt.s32.totalorder %s24, 1
      %s398 = scalar_select %p397, %s24, 1
      %s399 = smul.addr %s398, 3
      %s400 = smul.addr %s399, 4
      %s401 = scalar_lea.vmem %s2, %s400
      %s402 = smul.u32 8, %s25
      %p403 = scmp.lt.s32.totalorder %s24, 1
      %s404 = scalar_select %p403, %s24, 1
      %p405 = scmp.lt.s32.totalorder %s402, 7
      %s406 = scalar_select %p405, %s402, 7
      %s407 = smul.addr %s404, 8
      %s408 = sadd.s32 %s406, %s407
      %s409 = smul.addr %s408, 8
      %s410 = scalar_lea.vmem %s9, %s409
      %s411 = smul.u32 8, %s25
      %v413 = vld [vmem:[%s390] sm:$0xff]
      %v414 = vld [vmem:[%s390 + $0x8] sm:$0xff]
      %v415 = vld [vmem:[%s390 + $0x10] sm:$0xff]
      %v416 = vld [vmem:[%s390 + $0x18] sm:$0xff]
      %v417 = vld [vmem:[%s390 + $0x20] sm:$0xff]
      %v418 = vld [vmem:[%s390 + $0x28] sm:$0xff]
      %v419 = vld [vmem:[%s390 + $0x30] sm:$0xff]
      %v420 = vld [vmem:[%s390 + $0x38] sm:$0xff]
      %v421 = vld [vmem:[%s3] sm:$0x1]
      %v422 = vld [vmem:[%s4] sm:$0x1]
      %vm423 = vcmask 523264
      %v424 = vsel %vm423, %v413, 0.0
      %425 = vadd.xlane.f32.xlu0 %v424
      %v426 = vpop.xlane.xlu0 %425
      %v427 = vsel %vm423, %v414, 0.0
      %428 = vadd.xlane.f32.xlu0 %v427
      %v429 = vpop.xlane.xlu0 %428
      %v430 = vsel %vm423, %v415, 0.0
      %431 = vadd.xlane.f32.xlu0 %v430
      %v432 = vpop.xlane.xlu0 %431
      %v433 = vsel %vm423, %v416, 0.0
      %434 = vadd.xlane.f32.xlu0 %v433
      %v435 = vpop.xlane.xlu0 %434
      %v436 = vsel %vm423, %v417, 0.0
      %437 = vadd.xlane.f32.xlu0 %v436
      %v438 = vpop.xlane.xlu0 %437
      %v439 = vsel %vm423, %v418, 0.0
      %440 = vadd.xlane.f32.xlu0 %v439
      %v441 = vpop.xlane.xlu0 %440
      %v442 = vsel %vm423, %v419, 0.0
      %443 = vadd.xlane.f32.xlu0 %v442
      %v444 = vpop.xlane.xlu0 %443
      %v445 = vsel %vm423, %v420, 0.0
      %446 = vadd.xlane.f32.xlu0 %v445
      %v447 = vpop.xlane.xlu0 %446
      %v448 = vrcp.pop 64.0
      %v449 = vmul.f32 %v426, %v448
      %v450 = vmul.f32 %v429, %v448
      %v451 = vmul.f32 %v432, %v448
      %v452 = vmul.f32 %v435, %v448
      %v453 = vmul.f32 %v438, %v448
      %v454 = vmul.f32 %v441, %v448
      %v455 = vmul.f32 %v444, %v448
      %v456 = vmul.f32 %v447, %v448
      %v457 = vsub.f32 %v413, %v449
      %v458 = vsub.f32 %v414, %v450
      %v459 = vsub.f32 %v415, %v451
      %v460 = vsub.f32 %v416, %v452
      %v461 = vsub.f32 %v417, %v453
      %v462 = vsub.f32 %v418, %v454
      %v463 = vsub.f32 %v419, %v455
      %v464 = vsub.f32 %v420, %v456
      %v465 = vmul.f32 %v457, %v457
      %v466 = vmul.f32 %v458, %v458
      %v467 = vmul.f32 %v459, %v459
      %v468 = vmul.f32 %v460, %v460
      %v469 = vmul.f32 %v461, %v461
      %v470 = vmul.f32 %v462, %v462
      %v471 = vmul.f32 %v463, %v463
      %v472 = vmul.f32 %v464, %v464
      %v473 = vsel %vm423, %v465, 0.0
      %474 = vadd.xlane.f32.xlu0 %v473
      %v475 = vpop.xlane.xlu0 %474
      %v476 = vsel %vm423, %v466, 0.0
      %477 = vadd.xlane.f32.xlu0 %v476
      %v478 = vpop.xlane.xlu0 %477
      %v479 = vsel %vm423, %v467, 0.0
      %480 = vadd.xlane.f32.xlu0 %v479
      %v481 = vpop.xlane.xlu0 %480
      %v482 = vsel %vm423, %v468, 0.0
      %483 = vadd.xlane.f32.xlu0 %v482
      %v484 = vpop.xlane.xlu0 %483
      %v485 = vsel %vm423, %v469, 0.0
      %486 = vadd.xlane.f32.xlu0 %v485
      %v487 = vpop.xlane.xlu0 %486
      %v488 = vsel %vm423, %v470, 0.0
      %489 = vadd.xlane.f32.xlu0 %v488
      %v490 = vpop.xlane.xlu0 %489
      %v491 = vsel %vm423, %v471, 0.0
      %492 = vadd.xlane.f32.xlu0 %v491
      %v493 = vpop.xlane.xlu0 %492
      %v494 = vsel %vm423, %v472, 0.0
      %495 = vadd.xlane.f32.xlu0 %v494
      %v496 = vpop.xlane.xlu0 %495
      %v497 = vmul.f32 %v475, %v448
      %v498 = vmul.f32 %v478, %v448
      %v499 = vmul.f32 %v481, %v448
      %v500 = vmul.f32 %v484, %v448
      %v501 = vmul.f32 %v487, %v448
      %v502 = vmul.f32 %v490, %v448
      %v503 = vmul.f32 %v493, %v448
      %v504 = vmul.f32 %v496, %v448
      %v505 = vadd.f32 %v497, 1e-06
      %v506 = vadd.f32 %v498, 1e-06
      %v507 = vadd.f32 %v499, 1e-06
      %v508 = vadd.f32 %v500, 1e-06
      %v509 = vadd.f32 %v501, 1e-06
      %v510 = vadd.f32 %v502, 1e-06
      %v511 = vadd.f32 %v503, 1e-06
      %v512 = vadd.f32 %v504, 1e-06
      %v513 = vrsqrt.pop %v505
      %v514 = vrsqrt.pop %v506
      %v515 = vrsqrt.pop %v507
      %v516 = vrsqrt.pop %v508
      %v517 = vrsqrt.pop %v509
      %v518 = vrsqrt.pop %v510
      %v519 = vrsqrt.pop %v511
      %v520 = vrsqrt.pop %v512
      %v521 = vmul.f32 %v457, %v513
      %v522 = vmul.f32 %v458, %v514
      %v523 = vmul.f32 %v459, %v515
      %v524 = vmul.f32 %v460, %v516
      %v525 = vmul.f32 %v461, %v517
      %v526 = vmul.f32 %v462, %v518
      %v527 = vmul.f32 %v463, %v519
      %v528 = vmul.f32 %v464, %v520
      %v530 = vlaneseq
      %v531 = vshrl.u32 %v530, 7
      %v532 = vsub.s32 0, %v531
      %v533 = vrot.slane %v421, %v532
      %v535 = vmul.f32 %v521, %v533
      %v536 = vmul.f32 %v522, %v533
      %v537 = vmul.f32 %v523, %v533
      %v538 = vmul.f32 %v524, %v533
      %v539 = vmul.f32 %v525, %v533
      %v540 = vmul.f32 %v526, %v533
      %v541 = vmul.f32 %v527, %v533
      %v542 = vmul.f32 %v528, %v533
      %v544 = vlaneseq
      %v545 = vshrl.u32 %v544, 7
      %v546 = vsub.s32 0, %v545
      %v547 = vrot.slane %v422, %v546
      %v549 = vadd.f32 %v535, %v547
      %v550 = vadd.f32 %v536, %v547
      %v551 = vadd.f32 %v537, %v547
      %v552 = vadd.f32 %v538, %v547
      %v553 = vadd.f32 %v539, %v547
      %v554 = vadd.f32 %v540, %v547
      %v555 = vadd.f32 %v541, %v547
      %v556 = vadd.f32 %v542, %v547
      %v557 = vpack.c.bf16 %v550, %v549
      %v558 = vpack.c.bf16 %v552, %v551
      %v559 = vpack.c.bf16 %v554, %v553
      %v560 = vpack.c.bf16 %v556, %v555
      %v561 = vld [vmem:[%s5] sm:$0xf]
      %v562 = vld [vmem:[%s5 + $0x4] sm:$0xf]
      %v563 = vld [vmem:[%s5 + $0x8] sm:$0xf]
      %v564 = vld [vmem:[%s5 + $0xc] sm:$0xf]
      %v565 = vld [vmem:[%s5 + $0x10] sm:$0xf]
      %v566 = vld [vmem:[%s5 + $0x14] sm:$0xf]
      %v567 = vld [vmem:[%s5 + $0x18] sm:$0xf]
      %v568 = vld [vmem:[%s5 + $0x1c] sm:$0xf]
      %v569 = vld [vmem:[%s6] sm:$0x1]
      %v571 = vlaneseq
      %v572 = vshrl.u32 %v571, 7
      %v573 = vsub.s32 0, %v572
      %v574 = vrot.slane %v569, %v573
      %v584 = vunpack.c.l.b16 %v561
      %v585 = vunpack.c.l.b16 %v562
      %v586 = vunpack.c.l.b16 %v563
      %v587 = vunpack.c.l.b16 %v564
      %v588 = vunpack.c.l.b16 %v565
      %v589 = vunpack.c.l.b16 %v566
      %v590 = vunpack.c.l.b16 %v567
      %v591 = vunpack.c.l.b16 %v568
      %v592 = vpack.c.b16 %v585, %v584
      %v593 = vpack.c.b16 %v587, %v586
      %v594 = vpack.c.b16 %v589, %v588
      %v595 = vpack.c.b16 %v591, %v590
      %v601 = vsel %vm423, %v557, 0
      %v604 = vsel %vm423, %v558, 0
      %v607 = vsel %vm423, %v559, 0
      %v610 = vsel %vm423, %v560, 0
      %612 = vmatprep.subr.bf16.mxu0 0
      %613 = vmatpush1.bf16.msra.mxu0 %v592
      %614 = vmatprep.subr.bf16.mxu0 0
      %615 = vmatpush1.bf16.msra.mxu0 %v593
      %616 = vmatprep.subr.bf16.mxu0 0
      %617 = vmatpush1.bf16.msra.mxu0 %v594
      %618 = vmatprep.subr.bf16.mxu0 0
      %619 = vmatpush1.bf16.msra.mxu0 %v595
      %620 = vmatprep.subr.bf16.mxu0 0
      %621 = vmatpush1.bf16.msra.mxu0 0
      %622 = vmatprep.subr.bf16.mxu0 0
      %623 = vmatpush1.bf16.msra.mxu0 0
      %624 = vmatprep.subr.bf16.mxu0 0
      %625 = vmatpush1.bf16.msra.mxu0 0
      %626 = vmatprep.subr.bf16.mxu0 0
      %627 = vmatpush1.bf16.msra.mxu0 0
      %628 = vmatprep.subr.bf16.mxu0 0
      %629 = vmatpush1.bf16.msra.mxu0 0
      %630 = vmatprep.subr.bf16.mxu0 0
      %631 = vmatpush1.bf16.msra.mxu0 0
      %632 = vmatprep.subr.bf16.mxu0 0
      %633 = vmatpush1.bf16.msra.mxu0 0
      %634 = vmatprep.subr.bf16.mxu0 0
      %635 = vmatpush1.bf16.msra.mxu0 0
      %636 = vmatprep.subr.bf16.mxu0 0
      %637 = vmatpush1.bf16.msra.mxu0 0
      %638 = vmatprep.subr.bf16.mxu0 0
      %639 = vmatpush1.bf16.msra.mxu0 0
      %640 = vmatprep.subr.bf16.mxu0 0
      %641 = vmatpush1.bf16.msra.mxu0 0
      %642 = vmatprep.subr.bf16.mxu0 0
      %643 = vmatpush1.bf16.msra.mxu0 0
      %644 = vmatprep.mubr.bf16.mxu0 0
      %645 = vmatmul.mubr.bf16.gmra.mrb[0].mxu0 %v601
      %v646 = vpop.f32.mrb[0].mxu0
      %v647 = vadd.f32 %v574, %v646
      %v648 = vpop.f32.mrb[0].mxu0
      %v649 = vpop.f32.mrb[0].mxu0
      %v650 = vadd.f32 %v574, %v649
      %v651 = vpop.f32.mrb[0].mxu0
      %652 = vmatprep.mubr.bf16.mxu0 0
      %653 = vmatmul.mubr.bf16.gmra.mrb[0].mxu0 %v604
      %v654 = vpop.f32.mrb[0].mxu0
      %v655 = vadd.f32 %v574, %v654
      %v656 = vpop.f32.mrb[0].mxu0
      %v657 = vpop.f32.mrb[0].mxu0
      %v658 = vadd.f32 %v574, %v657
      %v659 = vpop.f32.mrb[0].mxu0
      %660 = vmatprep.mubr.bf16.mxu0 0
      %661 = vmatmul.mubr.bf16.gmra.mrb[0].mxu0 %v607
      %v662 = vpop.f32.mrb[0].mxu0
      %v663 = vadd.f32 %v574, %v662
      %v664 = vpop.f32.mrb[0].mxu0
      %v665 = vpop.f32.mrb[0].mxu0
      %v666 = vadd.f32 %v574, %v665
      %v667 = vpop.f32.mrb[0].mxu0
      %668 = vmatprep.mubr.bf16.mxu0 0
      %669 = vmatmul.mubr.bf16.gmra.mrb[0].mxu0 %v610
      %v670 = vpop.f32.mrb[0].mxu0
      %v671 = vadd.f32 %v574, %v670
      %v672 = vpop.f32.mrb[0].mxu0
      %v673 = vpop.f32.mrb[0].mxu0
      %v674 = vadd.f32 %v574, %v673
      %v675 = vpop.f32.mrb[0].mxu0
      %676 = vdwg.mxu0
      %v677 = vld [vmem:[%s396] sm:$0xf]
      %v678 = vld [vmem:[%s396 + $0x4] sm:$0xf]
      %v679 = vld [vmem:[%s396 + $0x8] sm:$0x1]
      %v680 = vld [vmem:[%s401] sm:$0xf]
      %v681 = vld [vmem:[%s401 + $0x4] sm:$0xf]
      %v682 = vld [vmem:[%s401 + $0x8] sm:$0x1]
      %v683 = vld [vmem:[%s7] sm:$0xf]
      %v684 = vld [vmem:[%s7 + $0x4] sm:$0xf]
      %v685 = vld [vmem:[%s7 + $0x8] sm:$0xf]
      %v686 = vld [vmem:[%s7 + $0xc] sm:$0xf]
      %v687 = vld [vmem:[%s7 + $0x10] sm:$0xf]
      %v688 = vld [vmem:[%s7 + $0x14] sm:$0xf]
      %v689 = vld [vmem:[%s7 + $0x18] sm:$0xf]
      %v690 = vld [vmem:[%s7 + $0x1c] sm:$0xf]
      %v691 = vpack.c.bf16 %v650, %v647
      %v692 = vpack.c.bf16 %v658, %v655
      %v693 = vpack.c.bf16 %v666, %v663
      %v694 = vpack.c.bf16 %v674, %v671
      %v698 = vunpack.c.l.b16 %v677
      %v699 = vunpack.c.l.b16 %v678
      %v700 = vunpack.c.l.b16 %v679
      %v701 = vpack.c.b16 %v699, %v698
      %v702 = vpack.c.b16 %v700, %v700
      %vm703 = vcmask 261120
      %v705 = vsel %vm703, %v691, 0
      %v708 = vsel %vm703, %v692, 0
      %v711 = vsel %vm703, %v693, 0
      %v714 = vsel %vm703, %v694, 0
      %v717 = vsel %vm703, %v701, 0
      %v720 = vsel %vm703, %v702, 0
      %722 = vmatprep.subr.bf16.mxu0 0
      %723 = vmatpush1.bf16.xpose.msra.mxu0 %v717
      %724 = vmatprep.subr.bf16.mxu0 0
      %725 = vmatpush1.bf16.xpose.msra.mxu0 %v720
      %726 = vmatprep.subr.bf16.mxu0 0
      %727 = vmatpush1.bf16.xpose.msra.mxu0 0
      %728 = vmatprep.subr.bf16.mxu0 0
      %729 = vmatpush1.bf16.xpose.msra.mxu0 0
      %730 = vmatprep.subr.bf16.mxu0 0
      %731 = vmatpush1.bf16.xpose.msra.mxu0 0
      %732 = vmatprep.subr.bf16.mxu0 0
      %733 = vmatpush1.bf16.xpose.msra.mxu0 0
      %734 = vmatprep.subr.bf16.mxu0 0
      %735 = vmatpush1.bf16.xpose.msra.mxu0 0
      %736 = vmatprep.subr.bf16.mxu0 0
      %737 = vmatpush1.bf16.xpose.msra.mxu0 0
      %738 = vmatprep.subr.bf16.mxu0 0
      %739 = vmatpush1.bf16.xpose.msra.mxu0 0
      %740 = vmatprep.subr.bf16.mxu0 0
      %741 = vmatpush1.bf16.xpose.msra.mxu0 0
      %742 = vmatprep.subr.bf16.mxu0 0
      %743 = vmatpush1.bf16.xpose.msra.mxu0 0
      %744 = vmatprep.subr.bf16.mxu0 0
      %745 = vmatpush1.bf16.xpose.msra.mxu0 0
      %746 = vmatprep.subr.bf16.mxu0 0
      %747 = vmatpush1.bf16.xpose.msra.mxu0 0
      %748 = vmatprep.subr.bf16.mxu0 0
      %749 = vmatpush1.bf16.xpose.msra.mxu0 0
      %750 = vmatprep.subr.bf16.mxu0 0
      %751 = vmatpush1.bf16.xpose.msra.mxu0 0
      %752 = vmatprep.subr.bf16.mxu0 0
      %753 = vmatpush1.bf16.xpose.msra.mxu0 0
      %754 = vmatprep.mubr.bf16.mxu0 0
      %755 = vmatmul.mubr.bf16.gmra.mrb[0].mxu0 %v705
      %v756 = vpop.f32.mrb[0].mxu0
      %v757 = vadd.f32 0.0, %v756
      %v758 = vpop.f32.mrb[0].mxu0
      %v759 = vpop.f32.mrb[0].mxu0
      %v760 = vadd.f32 0.0, %v759
      %v761 = vpop.f32.mrb[0].mxu0
      %762 = vmatprep.mubr.bf16.mxu0 0
      %763 = vmatmul.mubr.bf16.gmra.mrb[0].mxu0 %v708
      %v764 = vpop.f32.mrb[0].mxu0
      %v765 = vadd.f32 0.0, %v764
      %v766 = vpop.f32.mrb[0].mxu0
      %v767 = vpop.f32.mrb[0].mxu0
      %v768 = vadd.f32 0.0, %v767
      %v769 = vpop.f32.mrb[0].mxu0
      %770 = vmatprep.mubr.bf16.mxu0 0
      %771 = vmatmul.mubr.bf16.gmra.mrb[0].mxu0 %v711
      %v772 = vpop.f32.mrb[0].mxu0
      %v773 = vadd.f32 0.0, %v772
      %v774 = vpop.f32.mrb[0].mxu0
      %v775 = vpop.f32.mrb[0].mxu0
      %v776 = vadd.f32 0.0, %v775
      %v777 = vpop.f32.mrb[0].mxu0
      %778 = vmatprep.mubr.bf16.mxu0 0
      %779 = vmatmul.mubr.bf16.gmra.mrb[0].mxu0 %v714
      %v780 = vpop.f32.mrb[0].mxu0
      %v781 = vadd.f32 0.0, %v780
      %v782 = vpop.f32.mrb[0].mxu0
      %v783 = vpop.f32.mrb[0].mxu0
      %v784 = vadd.f32 0.0, %v783
      %v785 = vpop.f32.mrb[0].mxu0
      %786 = vdwg.mxu0
      %vm787 = vcmask 138240
      %v788 = vsel %vm787, %v757, -inf
      %789 = vmax.xlane.f32.xlu0 %v788
      %v790 = vpop.xlane.xlu0 %789
      %v791 = vsel %vm787, %v760, -inf
      %792 = vmax.xlane.f32.xlu0 %v791
      %v793 = vpop.xlane.xlu0 %792
      %v794 = vsel %vm787, %v765, -inf
      %795 = vmax.xlane.f32.xlu0 %v794
      %v796 = vpop.xlane.xlu0 %795
      %v797 = vsel %vm787, %v768, -inf
      %798 = vmax.xlane.f32.xlu0 %v797
      %v799 = vpop.xlane.xlu0 %798
      %v800 = vsel %vm787, %v773, -inf
      %801 = vmax.xlane.f32.xlu0 %v800
      %v802 = vpop.xlane.xlu0 %801
      %v803 = vsel %vm787, %v776, -inf
      %804 = vmax.xlane.f32.xlu0 %v803
      %v805 = vpop.xlane.xlu0 %804
      %v806 = vsel %vm787, %v781, -inf
      %807 = vmax.xlane.f32.xlu0 %v806
      %v808 = vpop.xlane.xlu0 %807
      %v809 = vsel %vm787, %v784, -inf
      %810 = vmax.xlane.f32.xlu0 %v809
      %v811 = vpop.xlane.xlu0 %810
      %v812 = vsub.f32 %v757, %v790
      %v813 = vsub.f32 %v760, %v793
      %v814 = vsub.f32 %v765, %v796
      %v815 = vsub.f32 %v768, %v799
      %v816 = vsub.f32 %v773, %v802
      %v817 = vsub.f32 %v776, %v805
      %v818 = vsub.f32 %v781, %v808
      %v819 = vsub.f32 %v784, %v811
      %v820 = vmul.f32 %v812, 1.442695
      %v821 = vpow.pop %v820
      %v822 = vmul.f32 %v813, 1.442695
      %v823 = vpow.pop %v822
      %v824 = vmul.f32 %v814, 1.442695
      %v825 = vpow.pop %v824
      %v826 = vmul.f32 %v815, 1.442695
      %v827 = vpow.pop %v826
      %v828 = vmul.f32 %v816, 1.442695
      %v829 = vpow.pop %v828
      %v830 = vmul.f32 %v817, 1.442695
      %v831 = vpow.pop %v830
      %v832 = vmul.f32 %v818, 1.442695
      %v833 = vpow.pop %v832
      %v834 = vmul.f32 %v819, 1.442695
      %v835 = vpow.pop %v834
      %v836 = vsel %vm787, %v821, 0.0
      %837 = vadd.xlane.f32.xlu0 %v836
      %v838 = vpop.xlane.xlu0 %837
      %v839 = vsel %vm787, %v823, 0.0
      %840 = vadd.xlane.f32.xlu0 %v839
      %v841 = vpop.xlane.xlu0 %840
      %v842 = vsel %vm787, %v825, 0.0
      %843 = vadd.xlane.f32.xlu0 %v842
      %v844 = vpop.xlane.xlu0 %843
      %v845 = vsel %vm787, %v827, 0.0
      %846 = vadd.xlane.f32.xlu0 %v845
      %v847 = vpop.xlane.xlu0 %846
      %v848 = vsel %vm787, %v829, 0.0
      %849 = vadd.xlane.f32.xlu0 %v848
      %v850 = vpop.xlane.xlu0 %849
      %v851 = vsel %vm787, %v831, 0.0
      %852 = vadd.xlane.f32.xlu0 %v851
      %v853 = vpop.xlane.xlu0 %852
      %v854 = vsel %vm787, %v833, 0.0
      %855 = vadd.xlane.f32.xlu0 %v854
      %v856 = vpop.xlane.xlu0 %855
      %v857 = vsel %vm787, %v835, 0.0
      %858 = vadd.xlane.f32.xlu0 %v857
      %v859 = vpop.xlane.xlu0 %858
      %v860 = vpack.c.bf16 %v823, %v821
      %v861 = vpack.c.bf16 %v827, %v825
      %v862 = vpack.c.bf16 %v831, %v829
      %v863 = vpack.c.bf16 %v835, %v833
      %v867 = vunpack.c.l.b16 %v680
      %v868 = vunpack.c.l.b16 %v681
      %v869 = vunpack.c.l.b16 %v682
      %v870 = vpack.c.b16 %v868, %v867
      %v871 = vpack.c.b16 %v869, %v869
      %v874 = vsel %vm787, %v860, 0
      %v877 = vsel %vm787, %v861, 0
      %v880 = vsel %vm787, %v862, 0
      %v883 = vsel %vm787, %v863, 0
      %vm885 = vcmask 1040384
      %v886 = vsel 0, 4294967295, 65535
      %v887 = vsel %vm885, %v886, 0
      %v889 = vand.u32 %v871, %v887
      %891 = vmatprep.subr.bf16.mxu0 0
      %892 = vmatpush1.bf16.msra.mxu0 %v870
      %893 = vmatprep.subr.bf16.mxu0 0
      %894 = vmatpush1.bf16.msra.mxu0 %v889
      %895 = vmatprep.subr.bf16.mxu0 0
      %896 = vmatpush1.bf16.msra.mxu0 0
      %897 = vmatprep.subr.bf16.mxu0 0
      %898 = vmatpush1.bf16.msra.mxu0 0
      %899 = vmatprep.subr.bf16.mxu0 0
      %900 = vmatpush1.bf16.msra.mxu0 0
      %901 = vmatprep.subr.bf16.mxu0 0
      %902 = vmatpush1.bf16.msra.mxu0 0
      %903 = vmatprep.subr.bf16.mxu0 0
      %904 = vmatpush1.bf16.msra.mxu0 0
      %905 = vmatprep.subr.bf16.mxu0 0
      %906 = vmatpush1.bf16.msra.mxu0 0
      %907 = vmatprep.subr.bf16.mxu0 0
      %908 = vmatpush1.bf16.msra.mxu0 0
      %909 = vmatprep.subr.bf16.mxu0 0
      %910 = vmatpush1.bf16.msra.mxu0 0
      %911 = vmatprep.subr.bf16.mxu0 0
      %912 = vmatpush1.bf16.msra.mxu0 0
      %913 = vmatprep.subr.bf16.mxu0 0
      %914 = vmatpush1.bf16.msra.mxu0 0
      %915 = vmatprep.subr.bf16.mxu0 0
      %916 = vmatpush1.bf16.msra.mxu0 0
      %917 = vmatprep.subr.bf16.mxu0 0
      %918 = vmatpush1.bf16.msra.mxu0 0
      %919 = vmatprep.subr.bf16.mxu0 0
      %920 = vmatpush1.bf16.msra.mxu0 0
      %921 = vmatprep.subr.bf16.mxu0 0
      %922 = vmatpush1.bf16.msra.mxu0 0
      %923 = vmatprep.mubr.bf16.mxu0 0
      %924 = vmatmul.mubr.bf16.gmra.mrb[0].mxu0 %v874
      %v925 = vpop.f32.mrb[0].mxu0
      %v926 = vadd.f32 0.0, %v925
      %v927 = vpop.f32.mrb[0].mxu0
      %v928 = vpop.f32.mrb[0].mxu0
      %v929 = vadd.f32 0.0, %v928
      %v930 = vpop.f32.mrb[0].mxu0
      %931 = vmatprep.mubr.bf16.mxu0 0
      %932 = vmatmul.mubr.bf16.gmra.mrb[0].mxu0 %v877
      %v933 = vpop.f32.mrb[0].mxu0
      %v934 = vadd.f32 0.0, %v933
      %v935 = vpop.f32.mrb[0].mxu0
      %v936 = vpop.f32.mrb[0].mxu0
      %v937 = vadd.f32 0.0, %v936
      %v938 = vpop.f32.mrb[0].mxu0
      %939 = vmatprep.mubr.bf16.mxu0 0
      %940 = vmatmul.mubr.bf16.gmra.mrb[0].mxu0 %v880
      %v941 = vpop.f32.mrb[0].mxu0
      %v942 = vadd.f32 0.0, %v941
      %v943 = vpop.f32.mrb[0].mxu0
      %v944 = vpop.f32.mrb[0].mxu0
      %v945 = vadd.f32 0.0, %v944
      %v946 = vpop.f32.mrb[0].mxu0
      %947 = vmatprep.mubr.bf16.mxu0 0
      %948 = vmatmul.mubr.bf16.gmra.mrb[0].mxu0 %v883
      %v949 = vpop.f32.mrb[0].mxu0
      %v950 = vadd.f32 0.0, %v949
      %v951 = vpop.f32.mrb[0].mxu0
      %v952 = vpop.f32.mrb[0].mxu0
      %v953 = vadd.f32 0.0, %v952
      %v954 = vpop.f32.mrb[0].mxu0
      %955 = vdwg.mxu0
      %v956 = vrcp.pop %v838
      %v957 = vrcp.pop %v841
      %v958 = vrcp.pop %v844
      %v959 = vrcp.pop %v847
      %v960 = vrcp.pop %v850
      %v961 = vrcp.pop %v853
      %v962 = vrcp.pop %v856
      %v963 = vrcp.pop %v859
      %v964 = vmul.f32 %v926, %v956
      %v965 = vmul.f32 %v929, %v957
      %v966 = vmul.f32 %v934, %v958
      %v967 = vmul.f32 %v937, %v959
      %v968 = vmul.f32 %v942, %v960
      %v969 = vmul.f32 %v945, %v961
      %v970 = vmul.f32 %v950, %v962
      %v971 = vmul.f32 %v953, %v963
      %v972 = vpack.c.bf16 %v965, %v964
      %v973 = vpack.c.bf16 %v967, %v966
      %v974 = vpack.c.bf16 %v969, %v968
      %v975 = vpack.c.bf16 %v971, %v970
      %980 = vrot.lane.b32.xlu0 %v691, 96
      %v981 = vpop.permute.xlu0 %980
      %982 = vrot.lane.b32.xlu0 %v692, 96
      %v983 = vpop.permute.xlu0 %982
      %984 = vrot.lane.b32.xlu0 %v693, 96
      %v985 = vpop.permute.xlu0 %984
      %986 = vrot.lane.b32.xlu0 %v694, 96
      %v987 = vpop.permute.xlu0 %986
      %988 = vrot.lane.b32.xlu0 %v701, 96
      %v989 = vpop.permute.xlu0 %988
      %990 = vrot.lane.b32.xlu0 %v702, 96
      %v991 = vpop.permute.xlu0 %990
      %v993 = vsel %vm703, %v981, 0
      %v996 = vsel %vm703, %v983, 0
      %v999 = vsel %vm703, %v985, 0
      %v1002 = vsel %vm703, %v987, 0
      %v1005 = vsel %vm703, %v989, 0
      %v1008 = vsel %vm703, %v991, 0
      %1010 = vmatprep.subr.bf16.mxu0 0
      %1011 = vmatpush1.bf16.xpose.msra.mxu0 %v1005
      %1012 = vmatprep.subr.bf16.mxu0 0
      %1013 = vmatpush1.bf16.xpose.msra.mxu0 %v1008
      %1014 = vmatprep.subr.bf16.mxu0 0
      %1015 = vmatpush1.bf16.xpose.msra.mxu0 0
      %1016 = vmatprep.subr.bf16.mxu0 0
      %1017 = vmatpush1.bf16.xpose.msra.mxu0 0
      %1018 = vmatprep.subr.bf16.mxu0 0
      %1019 = vmatpush1.bf16.xpose.msra.mxu0 0
      %1020 = vmatprep.subr.bf16.mxu0 0
      %1021 = vmatpush1.bf16.xpose.msra.mxu0 0
      %1022 = vmatprep.subr.bf16.mxu0 0
      %1023 = vmatpush1.bf16.xpose.msra.mxu0 0
      %1024 = vmatprep.subr.bf16.mxu0 0
      %1025 = vmatpush1.bf16.xpose.msra.mxu0 0
      %1026 = vmatprep.subr.bf16.mxu0 0
      %1027 = vmatpush1.bf16.xpose.msra.mxu0 0
      %1028 = vmatprep.subr.bf16.mxu0 0
      %1029 = vmatpush1.bf16.xpose.msra.mxu0 0
      %1030 = vmatprep.subr.bf16.mxu0 0
      %1031 = vmatpush1.bf16.xpose.msra.mxu0 0
      %1032 = vmatprep.subr.bf16.mxu0 0
      %1033 = vmatpush1.bf16.xpose.msra.mxu0 0
      %1034 = vmatprep.subr.bf16.mxu0 0
      %1035 = vmatpush1.bf16.xpose.msra.mxu0 0
      %1036 = vmatprep.subr.bf16.mxu0 0
      %1037 = vmatpush1.bf16.xpose.msra.mxu0 0
      %1038 = vmatprep.subr.bf16.mxu0 0
      %1039 = vmatpush1.bf16.xpose.msra.mxu0 0
      %1040 = vmatprep.subr.bf16.mxu0 0
      %1041 = vmatpush1.bf16.xpose.msra.mxu0 0
      %1042 = vmatprep.mubr.bf16.mxu0 0
      %1043 = vmatmul.mubr.bf16.gmra.mrb[0].mxu0 %v993
      %v1044 = vpop.f32.mrb[0].mxu0
      %v1045 = vadd.f32 0.0, %v1044
      %v1046 = vpop.f32.mrb[0].mxu0
      %v1047 = vpop.f32.mrb[0].mxu0
      %v1048 = vadd.f32 0.0, %v1047
      %v1049 = vpop.f32.mrb[0].mxu0
      %1050 = vmatprep.mubr.bf16.mxu0 0
      %1051 = vmatmul.mubr.bf16.gmra.mrb[0].mxu0 %v996
      %v1052 = vpop.f32.mrb[0].mxu0
      %v1053 = vadd.f32 0.0, %v1052
      %v1054 = vpop.f32.mrb[0].mxu0
      %v1055 = vpop.f32.mrb[0].mxu0
      %v1056 = vadd.f32 0.0, %v1055
      %v1057 = vpop.f32.mrb[0].mxu0
      %1058 = vmatprep.mubr.bf16.mxu0 0
      %1059 = vmatmul.mubr.bf16.gmra.mrb[0].mxu0 %v999
      %v1060 = vpop.f32.mrb[0].mxu0
      %v1061 = vadd.f32 0.0, %v1060
      %v1062 = vpop.f32.mrb[0].mxu0
      %v1063 = vpop.f32.mrb[0].mxu0
      %v1064 = vadd.f32 0.0, %v1063
      %v1065 = vpop.f32.mrb[0].mxu0
      %1066 = vmatprep.mubr.bf16.mxu0 0
      %1067 = vmatmul.mubr.bf16.gmra.mrb[0].mxu0 %v1002
      %v1068 = vpop.f32.mrb[0].mxu0
      %v1069 = vadd.f32 0.0, %v1068
      %v1070 = vpop.f32.mrb[0].mxu0
      %v1071 = vpop.f32.mrb[0].mxu0
      %v1072 = vadd.f32 0.0, %v1071
      %v1073 = vpop.f32.mrb[0].mxu0
      %1074 = vdwg.mxu0
      %v1075 = vsel %vm787, %v1045, -inf
      %1076 = vmax.xlane.f32.xlu0 %v1075
      %v1077 = vpop.xlane.xlu0 %1076
      %v1078 = vsel %vm787, %v1048, -inf
      %1079 = vmax.xlane.f32.xlu0 %v1078
      %v1080 = vpop.xlane.xlu0 %1079
      %v1081 = vsel %vm787, %v1053, -inf
      %1082 = vmax.xlane.f32.xlu0 %v1081
      %v1083 = vpop.xlane.xlu0 %1082
      %v1084 = vsel %vm787, %v1056, -inf
      %1085 = vmax.xlane.f32.xlu0 %v1084
      %v1086 = vpop.xlane.xlu0 %1085
      %v1087 = vsel %vm787, %v1061, -inf
      %1088 = vmax.xlane.f32.xlu0 %v1087
      %v1089 = vpop.xlane.xlu0 %1088
      %v1090 = vsel %vm787, %v1064, -inf
      %1091 = vmax.xlane.f32.xlu0 %v1090
      %v1092 = vpop.xlane.xlu0 %1091
      %v1093 = vsel %vm787, %v1069, -inf
      %1094 = vmax.xlane.f32.xlu0 %v1093
      %v1095 = vpop.xlane.xlu0 %1094
      %v1096 = vsel %vm787, %v1072, -inf
      %1097 = vmax.xlane.f32.xlu0 %v1096
      %v1098 = vpop.xlane.xlu0 %1097
      %v1099 = vsub.f32 %v1045, %v1077
      %v1100 = vsub.f32 %v1048, %v1080
      %v1101 = vsub.f32 %v1053, %v1083
      %v1102 = vsub.f32 %v1056, %v1086
      %v1103 = vsub.f32 %v1061, %v1089
      %v1104 = vsub.f32 %v1064, %v1092
      %v1105 = vsub.f32 %v1069, %v1095
      %v1106 = vsub.f32 %v1072, %v1098
      %v1107 = vmul.f32 %v1099, 1.442695
      %v1108 = vpow.pop %v1107
      %v1109 = vmul.f32 %v1100, 1.442695
      %v1110 = vpow.pop %v1109
      %v1111 = vmul.f32 %v1101, 1.442695
      %v1112 = vpow.pop %v1111
      %v1113 = vmul.f32 %v1102, 1.442695
      %v1114 = vpow.pop %v1113
      %v1115 = vmul.f32 %v1103, 1.442695
      %v1116 = vpow.pop %v1115
      %v1117 = vmul.f32 %v1104, 1.442695
      %v1118 = vpow.pop %v1117
      %v1119 = vmul.f32 %v1105, 1.442695
      %v1120 = vpow.pop %v1119
      %v1121 = vmul.f32 %v1106, 1.442695
      %v1122 = vpow.pop %v1121
      %v1123 = vsel %vm787, %v1108, 0.0
      %1124 = vadd.xlane.f32.xlu0 %v1123
      %v1125 = vpop.xlane.xlu0 %1124
      %v1126 = vsel %vm787, %v1110, 0.0
      %1127 = vadd.xlane.f32.xlu0 %v1126
      %v1128 = vpop.xlane.xlu0 %1127
      %v1129 = vsel %vm787, %v1112, 0.0
      %1130 = vadd.xlane.f32.xlu0 %v1129
      %v1131 = vpop.xlane.xlu0 %1130
      %v1132 = vsel %vm787, %v1114, 0.0
      %1133 = vadd.xlane.f32.xlu0 %v1132
      %v1134 = vpop.xlane.xlu0 %1133
      %v1135 = vsel %vm787, %v1116, 0.0
      %1136 = vadd.xlane.f32.xlu0 %v1135
      %v1137 = vpop.xlane.xlu0 %1136
      %v1138 = vsel %vm787, %v1118, 0.0
      %1139 = vadd.xlane.f32.xlu0 %v1138
      %v1140 = vpop.xlane.xlu0 %1139
      %v1141 = vsel %vm787, %v1120, 0.0
      %1142 = vadd.xlane.f32.xlu0 %v1141
      %v1143 = vpop.xlane.xlu0 %1142
      %v1144 = vsel %vm787, %v1122, 0.0
      %1145 = vadd.xlane.f32.xlu0 %v1144
      %v1146 = vpop.xlane.xlu0 %1145
      %v1147 = vpack.c.bf16 %v1110, %v1108
      %v1148 = vpack.c.bf16 %v1114, %v1112
      %v1149 = vpack.c.bf16 %v1118, %v1116
      %v1150 = vpack.c.bf16 %v1122, %v1120
      %1151 = vrot.lane.b32.xlu0 %v870, 96
      %v1152 = vpop.permute.xlu0 %1151
      %1153 = vrot.lane.b32.xlu0 %v871, 96
      %v1154 = vpop.permute.xlu0 %1153
      %v1157 = vsel %vm787, %v1147, 0
      %v1160 = vsel %vm787, %v1148, 0
      %v1163 = vsel %vm787, %v1149, 0
      %v1166 = vsel %vm787, %v1150, 0
      %v1169 = vand.u32 %v1154, %v887
      %1171 = vmatprep.subr.bf16.mxu0 0
      %1172 = vmatpush1.bf16.msra.mxu0 %v1152
      %1173 = vmatprep.subr.bf16.mxu0 0
      %1174 = vmatpush1.bf16.msra.mxu0 %v1169
      %1175 = vmatprep.subr.bf16.mxu0 0
      %1176 = vmatpush1.bf16.msra.mxu0 0
      %1177 = vmatprep.subr.bf16.mxu0 0
      %1178 = vmatpush1.bf16.msra.mxu0 0
      %1179 = vmatprep.subr.bf16.mxu0 0
      %1180 = vmatpush1.bf16.msra.mxu0 0
      %1181 = vmatprep.subr.bf16.mxu0 0
      %1182 = vmatpush1.bf16.msra.mxu0 0
      %1183 = vmatprep.subr.bf16.mxu0 0
      %1184 = vmatpush1.bf16.msra.mxu0 0
      %1185 = vmatprep.subr.bf16.mxu0 0
      %1186 = vmatpush1.bf16.msra.mxu0 0
      %1187 = vmatprep.subr.bf16.mxu0 0
      %1188 = vmatpush1.bf16.msra.mxu0 0
      %1189 = vmatprep.subr.bf16.mxu0 0
      %1190 = vmatpush1.bf16.msra.mxu0 0
      %1191 = vmatprep.subr.bf16.mxu0 0
      %1192 = vmatpush1.bf16.msra.mxu0 0
      %1193 = vmatprep.subr.bf16.mxu0 0
      %1194 = vmatpush1.bf16.msra.mxu0 0
      %1195 = vmatprep.subr.bf16.mxu0 0
      %1196 = vmatpush1.bf16.msra.mxu0 0
      %1197 = vmatprep.subr.bf16.mxu0 0
      %1198 = vmatpush1.bf16.msra.mxu0 0
      %1199 = vmatprep.subr.bf16.mxu0 0
      %1200 = vmatpush1.bf16.msra.mxu0 0
      %1201 = vmatprep.subr.bf16.mxu0 0
      %1202 = vmatpush1.bf16.msra.mxu0 0
      %1203 = vmatprep.mubr.bf16.mxu0 0
      %1204 = vmatmul.mubr.bf16.gmra.mrb[0].mxu0 %v1157
      %v1205 = vpop.f32.mrb[0].mxu0
      %v1206 = vadd.f32 0.0, %v1205
      %v1207 = vpop.f32.mrb[0].mxu0
      %v1208 = vpop.f32.mrb[0].mxu0
      %v1209 = vadd.f32 0.0, %v1208
      %v1210 = vpop.f32.mrb[0].mxu0
      %1211 = vmatprep.mubr.bf16.mxu0 0
      %1212 = vmatmul.mubr.bf16.gmra.mrb[0].mxu0 %v1160
      %v1213 = vpop.f32.mrb[0].mxu0
      %v1214 = vadd.f32 0.0, %v1213
      %v1215 = vpop.f32.mrb[0].mxu0
      %v1216 = vpop.f32.mrb[0].mxu0
      %v1217 = vadd.f32 0.0, %v1216
      %v1218 = vpop.f32.mrb[0].mxu0
      %1219 = vmatprep.mubr.bf16.mxu0 0
      %1220 = vmatmul.mubr.bf16.gmra.mrb[0].mxu0 %v1163
      %v1221 = vpop.f32.mrb[0].mxu0
      %v1222 = vadd.f32 0.0, %v1221
      %v1223 = vpop.f32.mrb[0].mxu0
      %v1224 = vpop.f32.mrb[0].mxu0
      %v1225 = vadd.f32 0.0, %v1224
      %v1226 = vpop.f32.mrb[0].mxu0
      %1227 = vmatprep.mubr.bf16.mxu0 0
      %1228 = vmatmul.mubr.bf16.gmra.mrb[0].mxu0 %v1166
      %v1229 = vpop.f32.mrb[0].mxu0
      %v1230 = vadd.f32 0.0, %v1229
      %v1231 = vpop.f32.mrb[0].mxu0
      %v1232 = vpop.f32.mrb[0].mxu0
      %v1233 = vadd.f32 0.0, %v1232
      %v1234 = vpop.f32.mrb[0].mxu0
      %1235 = vdwg.mxu0
      %v1236 = vrcp.pop %v1125
      %v1237 = vrcp.pop %v1128
      %v1238 = vrcp.pop %v1131
      %v1239 = vrcp.pop %v1134
      %v1240 = vrcp.pop %v1137
      %v1241 = vrcp.pop %v1140
      %v1242 = vrcp.pop %v1143
      %v1243 = vrcp.pop %v1146
      %v1244 = vmul.f32 %v1206, %v1236
      %v1245 = vmul.f32 %v1209, %v1237
      %v1246 = vmul.f32 %v1214, %v1238
      %v1247 = vmul.f32 %v1217, %v1239
      %v1248 = vmul.f32 %v1222, %v1240
      %v1249 = vmul.f32 %v1225, %v1241
      %v1250 = vmul.f32 %v1230, %v1242
      %v1251 = vmul.f32 %v1233, %v1243
      %v1252 = vpack.c.bf16 %v1245, %v1244
      %v1253 = vpack.c.bf16 %v1247, %v1246
      %v1254 = vpack.c.bf16 %v1249, %v1248
      %v1255 = vpack.c.bf16 %v1251, %v1250
      %v1260 = vunpack.c.l.b16 %v687
      %v1261 = vunpack.c.l.b16 %v688
      %v1262 = vunpack.c.l.b16 %v689
      %v1263 = vunpack.c.l.b16 %v690
      %v1264 = vpack.c.b16 %v1261, %v1260
      %v1265 = vpack.c.b16 %v1263, %v1262
      %v1269 = vsel %vm703, %v1252, 0
      %v1272 = vsel %vm703, %v1253, 0
      %v1275 = vsel %vm703, %v1254, 0
      %v1278 = vsel %vm703, %v1255, 0
      %1280 = vmatprep.subr.bf16.mxu0 0
      %1281 = vmatpush1.bf16.msra.mxu0 %v1264
      %1282 = vmatprep.subr.bf16.mxu0 0
      %1283 = vmatpush1.bf16.msra.mxu0 %v1265
      %1284 = vmatprep.subr.bf16.mxu0 0
      %1285 = vmatpush1.bf16.msra.mxu0 0
      %1286 = vmatprep.subr.bf16.mxu0 0
      %1287 = vmatpush1.bf16.msra.mxu0 0
      %1288 = vmatprep.subr.bf16.mxu0 0
      %1289 = vmatpush1.bf16.msra.mxu0 0
      %1290 = vmatprep.subr.bf16.mxu0 0
      %1291 = vmatpush1.bf16.msra.mxu0 0
      %1292 = vmatprep.subr.bf16.mxu0 0
      %1293 = vmatpush1.bf16.msra.mxu0 0
      %1294 = vmatprep.subr.bf16.mxu0 0
      %1295 = vmatpush1.bf16.msra.mxu0 0
      %1296 = vmatprep.subr.bf16.mxu0 0
      %1297 = vmatpush1.bf16.msra.mxu0 0
      %1298 = vmatprep.subr.bf16.mxu0 0
      %1299 = vmatpush1.bf16.msra.mxu0 0
      %1300 = vmatprep.subr.bf16.mxu0 0
      %1301 = vmatpush1.bf16.msra.mxu0 0
      %1302 = vmatprep.subr.bf16.mxu0 0
      %1303 = vmatpush1.bf16.msra.mxu0 0
      %1304 = vmatprep.subr.bf16.mxu0 0
      %1305 = vmatpush1.bf16.msra.mxu0 0
      %1306 = vmatprep.subr.bf16.mxu0 0
      %1307 = vmatpush1.bf16.msra.mxu0 0
      %1308 = vmatprep.subr.bf16.mxu0 0
      %1309 = vmatpush1.bf16.msra.mxu0 0
      %1310 = vmatprep.subr.bf16.mxu0 0
      %1311 = vmatpush1.bf16.msra.mxu0 0
      %1312 = vmatprep.mubr.bf16.mxu0 0
      %1313 = vmatmul.mubr.bf16.gmra.mrb[0].mxu0 %v1269
      %v1314 = vpop.f32.mrb[0].mxu0
      %v1315 = vadd.f32 0.0, %v1314
      %v1316 = vpop.f32.mrb[0].mxu0
      %v1317 = vpop.f32.mrb[0].mxu0
      %v1318 = vadd.f32 0.0, %v1317
      %v1319 = vpop.f32.mrb[0].mxu0
      %1320 = vmatprep.mubr.bf16.mxu0 0
      %1321 = vmatmul.mubr.bf16.gmra.mrb[0].mxu0 %v1272
      %v1322 = vpop.f32.mrb[0].mxu0
      %v1323 = vadd.f32 0.0, %v1322
      %v1324 = vpop.f32.mrb[0].mxu0
      %v1325 = vpop.f32.mrb[0].mxu0
      %v1326 = vadd.f32 0.0, %v1325
      %v1327 = vpop.f32.mrb[0].mxu0
      %1328 = vmatprep.mubr.bf16.mxu0 0
      %1329 = vmatmul.mubr.bf16.gmra.mrb[0].mxu0 %v1275
      %v1330 = vpop.f32.mrb[0].mxu0
      %v1331 = vadd.f32 0.0, %v1330
      %v1332 = vpop.f32.mrb[0].mxu0
      %v1333 = vpop.f32.mrb[0].mxu0
      %v1334 = vadd.f32 0.0, %v1333
      %v1335 = vpop.f32.mrb[0].mxu0
      %1336 = vmatprep.mubr.bf16.mxu0 0
      %1337 = vmatmul.mubr.bf16.gmra.mrb[0].mxu0 %v1278
      %v1338 = vpop.f32.mrb[0].mxu0
      %v1339 = vadd.f32 0.0, %v1338
      %v1340 = vpop.f32.mrb[0].mxu0
      %v1341 = vpop.f32.mrb[0].mxu0
      %v1342 = vadd.f32 0.0, %v1341
      %v1343 = vpop.f32.mrb[0].mxu0
      %1344 = vdwg.mxu0
      %v1349 = vunpack.c.l.b16 %v683
      %v1350 = vunpack.c.l.b16 %v684
      %v1351 = vunpack.c.l.b16 %v685
      %v1352 = vunpack.c.l.b16 %v686
      %v1353 = vpack.c.b16 %v1350, %v1349
      %v1354 = vpack.c.b16 %v1352, %v1351
      %v1358 = vsel %vm703, %v972, 0
      %v1361 = vsel %vm703, %v973, 0
      %v1364 = vsel %vm703, %v974, 0
      %v1367 = vsel %vm703, %v975, 0
      %1369 = vmatprep.subr.bf16.mxu0 0
      %1370 = vmatpush1.bf16.msra.mxu0 %v1353
      %1371 = vmatprep.subr.bf16.mxu0 0
      %1372 = vmatpush1.bf16.msra.mxu0 %v1354
      %1373 = vmatprep.subr.bf16.mxu0 0
      %1374 = vmatpush1.bf16.msra.mxu0 0
      %1375 = vmatprep.subr.bf16.mxu0 0
      %1376 = vmatpush1.bf16.msra.mxu0 0
      %1377 = vmatprep.subr.bf16.mxu0 0
      %1378 = vmatpush1.bf16.msra.mxu0 0
      %1379 = vmatprep.subr.bf16.mxu0 0
      %1380 = vmatpush1.bf16.msra.mxu0 0
      %1381 = vmatprep.subr.bf16.mxu0 0
      %1382 = vmatpush1.bf16.msra.mxu0 0
      %1383 = vmatprep.subr.bf16.mxu0 0
      %1384 = vmatpush1.bf16.msra.mxu0 0
      %1385 = vmatprep.subr.bf16.mxu0 0
      %1386 = vmatpush1.bf16.msra.mxu0 0
      %1387 = vmatprep.subr.bf16.mxu0 0
      %1388 = vmatpush1.bf16.msra.mxu0 0
      %1389 = vmatprep.subr.bf16.mxu0 0
      %1390 = vmatpush1.bf16.msra.mxu0 0
      %1391 = vmatprep.subr.bf16.mxu0 0
      %1392 = vmatpush1.bf16.msra.mxu0 0
      %1393 = vmatprep.subr.bf16.mxu0 0
      %1394 = vmatpush1.bf16.msra.mxu0 0
      %1395 = vmatprep.subr.bf16.mxu0 0
      %1396 = vmatpush1.bf16.msra.mxu0 0
      %1397 = vmatprep.subr.bf16.mxu0 0
      %1398 = vmatpush1.bf16.msra.mxu0 0
      %1399 = vmatprep.subr.bf16.mxu0 0
      %1400 = vmatpush1.bf16.msra.mxu0 0
      %1401 = vmatprep.mubr.bf16.mxu0 0
      %1402 = vmatmul.mubr.bf16.gmra.mrb[0].mxu0 %v1358
      %v1403 = vpop.f32.mrb[0].mxu0
      %v1404 = vadd.f32 %v1315, %v1403
      %v1405 = vpop.f32.mrb[0].mxu0
      %v1406 = vpop.f32.mrb[0].mxu0
      %v1407 = vadd.f32 %v1318, %v1406
      %v1408 = vpop.f32.mrb[0].mxu0
      %1409 = vmatprep.mubr.bf16.mxu0 0
      %1410 = vmatmul.mubr.bf16.gmra.mrb[0].mxu0 %v1361
      %v1411 = vpop.f32.mrb[0].mxu0
      %v1412 = vadd.f32 %v1323, %v1411
      %v1413 = vpop.f32.mrb[0].mxu0
      %v1414 = vpop.f32.mrb[0].mxu0
      %v1415 = vadd.f32 %v1326, %v1414
      %v1416 = vpop.f32.mrb[0].mxu0
      %1417 = vmatprep.mubr.bf16.mxu0 0
      %1418 = vmatmul.mubr.bf16.gmra.mrb[0].mxu0 %v1364
      %v1419 = vpop.f32.mrb[0].mxu0
      %v1420 = vadd.f32 %v1331, %v1419
      %v1421 = vpop.f32.mrb[0].mxu0
      %v1422 = vpop.f32.mrb[0].mxu0
      %v1423 = vadd.f32 %v1334, %v1422
      %v1424 = vpop.f32.mrb[0].mxu0
      %1425 = vmatprep.mubr.bf16.mxu0 0
      %1426 = vmatmul.mubr.bf16.gmra.mrb[0].mxu0 %v1367
      %v1427 = vpop.f32.mrb[0].mxu0
      %v1428 = vadd.f32 %v1339, %v1427
      %v1429 = vpop.f32.mrb[0].mxu0
      %v1430 = vpop.f32.mrb[0].mxu0
      %v1431 = vadd.f32 %v1342, %v1430
      %v1432 = vpop.f32.mrb[0].mxu0
      %1433 = vdwg.mxu0
      %v1434 = vadd.f32 %v413, %v1404
      %v1435 = vadd.f32 %v414, %v1407
      %v1436 = vadd.f32 %v415, %v1412
      %v1437 = vadd.f32 %v416, %v1415
      %v1438 = vadd.f32 %v417, %v1420
      %v1439 = vadd.f32 %v418, %v1423
      %v1440 = vadd.f32 %v419, %v1428
      %v1441 = vadd.f32 %v420, %v1431
      %v1442 = vld [vmem:[%s8] sm:$0x1]
      %v1444 = vlaneseq
      %v1445 = vshrl.u32 %v1444, 7
      %v1446 = vsub.s32 0, %v1445
      %v1447 = vrot.slane %v1442, %v1446
      %v1449 = vadd.f32 %v1434, %v1447
      %v1450 = vadd.f32 %v1435, %v1447
      %v1451 = vadd.f32 %v1436, %v1447
      %v1452 = vadd.f32 %v1437, %v1447
      %v1453 = vadd.f32 %v1438, %v1447
      %v1454 = vadd.f32 %v1439, %v1447
      %v1455 = vadd.f32 %v1440, %v1447
      %v1456 = vadd.f32 %v1441, %v1447
      %1457 = vst.msk [vmem:[%s410] sm:$0xff] %vm423, %v1449
      %1458 = vst.msk [vmem:[%s410 + $0x8] sm:$0xff] %vm423, %v1450
      %1459 = vst.msk [vmem:[%s410 + $0x10] sm:$0xff] %vm423, %v1451
      %1460 = vst.msk [vmem:[%s410 + $0x18] sm:$0xff] %vm423, %v1452
      %1461 = vst.msk [vmem:[%s410 + $0x20] sm:$0xff] %vm423, %v1453
      %1462 = vst.msk [vmem:[%s410 + $0x28] sm:$0xff] %vm423, %v1454
      %1463 = vst.msk [vmem:[%s410 + $0x30] sm:$0xff] %vm423, %v1455
      %1464 = vst.msk [vmem:[%s410 + $0x38] sm:$0xff] %vm423, %v1456
      %s1465 = smul.u32 8, %s25
      %p1466 = scmp.lt.s32.totalorder %s24, 1
      %s1467 = scalar_select %p1466, %s24, 1
      %p1468 = scmp.lt.s32.totalorder %s1465, 7
      %s1469 = scalar_select %p1468, %s1465, 7
      %s1470 = smul.addr %s1467, 8
      %s1471 = sadd.s32 %s1469, %s1470
      %s1472 = smul.addr %s1471, 8
      %s1473 = scalar_lea.vmem %s9, %s1472
      // Predicated region
      $region57: #{_lambda_.4} parent=55 // pred_check
        %p1474 = pneg %p258
      $region58: #{_lambda_.4} parent=55 // pred_check_branch
        %1476 = sbr.rel (%p1474) target = $region60
      $region59: #{_lambda_.4} parent=55 // pred_region
        %s1477 = smul.u32 8, %s25
      $region60: #{_lambda_.4} parent=55 // pred_fallthru
        _
    $region56: #{_lambda_.4} parent=5 // pred_fallthru
      _
    %p1478 = scmp.le.s32.totalorder 2, %s15
    // Predicated region
    $region61: #{_lambda_.4} parent=5 // pred_check
      %p1479 = pneg %p1478
    $region62: #{_lambda_.4} parent=5 // pred_check_branch
      %1481 = sbr.rel (%p1479) target = $region64
    $region63: #{_lambda_.4} parent=5 // pred_region
      %s1482 = ssub.s32 %s15, 2
      // Predicated region
      $region65: #{_lambda_.4} parent=63 // pred_check
        %p1483 = pneg %p264
      $region66: #{_lambda_.4} parent=63 // pred_check_branch
        %1485 = sbr.rel (%p1483) target = $region68
      $region67: #{_lambda_.4} parent=63 // pred_region
        %s1486 = smul.u32 8, %s27
        %p1487 = scmp.lt.s32.totalorder %s26, 1
        %s1488 = scalar_select %p1487, %s26, 1
        %p1489 = scmp.lt.s32.totalorder %s1486, 7
        %s1490 = scalar_select %p1489, %s1486, 7
        %s1491 = smul.addr %s1488, 8
        %s1492 = sadd.s32 %s1490, %s1491
        %s1493 = smul.addr %s1492, 8
        %s1494 = scalar_lea.vmem %s9, %s1493
      $region68: #{_lambda_.4} parent=63 // pred_fallthru
        _
    $region64: #{_lambda_.4} parent=5 // pred_fallthru
      _
  $region6: #{_lambda_.4} parent=0 // loop_footer
    %s19 = sadd.s32 1, %s15
  $region7: #{_lambda_.4} parent=0 // loop_footer_branch
    %14 = sbr.rel target = $region3
  $region8: #{_lambda_.4} parent=0 // loop_exit
    _

// kernel: _lambda_.3
$region0: #{_lambda_.3}
  #allocation0 [shape = 'u32[]', space=smem, size = 0x4, offset = 0x4, fixed_abs, tag = 'smem constant byte address 0x4 - core index']
  #allocation1 [shape = 'u32[144,128]{1,0:T(1,128)}', space=vmem, size = 0x12000, scoped, tag = 'internal scratch']
  %s0 = inlined_call_operand.vmem [shape: f32[2,4,16,64], index: 0, kind: input, shape index: {}]
  %s1 = inlined_call_operand.vmem [shape: f32[2,1,64], index: 1, kind: input, shape index: {}]
  %s2 = inlined_call_operand.vmem [shape: f32[1,64], index: 2, kind: input, shape index: {}, may-alias: {2,6}]
  %s3 = inlined_call_operand.vmem [shape: f32[1,64], index: 3, kind: input, shape index: {}, may-alias: {3,7}]
  %s4 = inlined_call_operand.vmem [shape: bf16[4,64,64], index: 4, kind: input, shape index: {}]
  %s5 = inlined_call_operand.vmem [shape: f32[1,64], index: 5, kind: input, shape index: {}]
  %s6 = inlined_call_operand.vmem [shape: f32[1,64], index: 6, kind: input, shape index: {}, may-alias: {2,6}]
  %s7 = inlined_call_operand.vmem [shape: f32[1,64], index: 7, kind: input, shape index: {}, may-alias: {3,7}]
  %s8 = inlined_call_operand.vmem [shape: bf16[64,64], index: 8, kind: input, shape index: {}]
  %s9 = inlined_call_operand.vmem [shape: f32[1,64], index: 9, kind: input, shape index: {}]
  %s10 = inlined_call_operand.vmem [shape: bf16[64,64], index: 10, kind: input, shape index: {}]
  %s11 = inlined_call_operand.vmem [shape: f32[1,64], index: 11, kind: input, shape index: {}]
  %s12 = inlined_call_operand.vmem [shape: bf16[64,64], index: 12, kind: input, shape index: {}]
  %s13 = inlined_call_operand.vmem [shape: f32[1,64], index: 13, kind: input, shape index: {}]
  %s14 = inlined_call_operand.vmem [shape: bf16[64,64], index: 14, kind: input, shape index: {}]
  %s15 = inlined_call_operand.vmem [shape: f32[1,64], index: 15, kind: input, shape index: {}]
  %s16 = inlined_call_operand.vmem [shape: bf16[2,17,64], index: 16, kind: output, shape index: {0}]
  %s17 = inlined_call_operand.vmem [shape: bf16[2,17,64], index: 17, kind: output, shape index: {1}]
  %s18 = inlined_call_operand.hbm [shape: f32[2,1,64], index: 18, kind: output, shape index: {2}]
  %19 = xla_tuple %s16, %s17, %s18
  %s20 = sld [smem:[#allocation0]]
  $region113: #{_lambda_.3} parent=0
    _
  %s22 = ssub.s32 1, %s20
  %s23 = scalar_select 0, %s22, %s20
  $region1: #{_lambda_.3} parent=0
    #allocation2 [shape = 'u8[1024]{0}', space=vmem, size = 0x400, scoped, tag = 'output window, operand 2']
    #allocation3 [shape = 's32[2]{0}', space=sflag, size = 0x8, scoped, tag = 'scoped memory for _lambda_.3']
    %24 = vsyncpa [#allocation3], 0
    %s25 = scalar_lea.sflag [#allocation3], 1
    %26 = vsyncpa %s25, 0
    loop: start=0, step=1, limit=4
    $region2: #{_lambda_.3} parent=1 // loop_pre_header
      _
    $region3: #{_lambda_.3} parent=1 // loop_header
      %s28 = sphi 0, %s32
      %p29 = scmp.ge.s32.totalorder %s28, 4
      %s38 = sphi 0, %s40
      %s41 = sphi 0, %s38
      %s42 = sphi 0, %s41
      %s58 = sphi 0, %s42
      %s64 = sphi 0, %s66
      %s67 = sphi 0, %s64
      %s68 = sphi 0, %s67
      %s84 = sphi 0, %s68
      %s88 = sphi 0, %s88
      %s90 = sphi 0, %s88
      %s91 = sphi 0, %s90
      %s105 = sphi 0, %s91
      %s109 = sphi 0, %s109
      %s111 = sphi 0, %s109
      %s112 = sphi 0, %s111
      %s126 = sphi 0, %s112
      %s130 = sphi 0, %s130
      %s132 = sphi 0, %s130
      %s133 = sphi 0, %s132
      %s147 = sphi 0, %s133
      %s151 = sphi 0, %s151
      %s153 = sphi 0, %s151
      %s154 = sphi 0, %s153
      %s168 = sphi 0, %s154
      %s172 = sphi 0, %s172
      %s174 = sphi 0, %s172
      %s175 = sphi 0, %s174
      %s189 = sphi 0, %s175
      %s193 = sphi 0, %s193
      %s195 = sphi 0, %s193
      %s196 = sphi 0, %s195
      %s210 = sphi 0, %s196
      %s214 = sphi 0, %s214
      %s216 = sphi 0, %s214
      %s217 = sphi 0, %s216
      %s231 = sphi 0, %s217
      %s235 = sphi 0, %s235
      %s237 = sphi 0, %s235
      %s238 = sphi 0, %s237
      %s252 = sphi 0, %s238
      %s256 = sphi 0, %s256
      %s258 = sphi 0, %s256
      %s259 = sphi 0, %s258
      %s273 = sphi 0, %s259
      %s277 = sphi 0, %s277
      %s279 = sphi 0, %s277
      %s280 = sphi 0, %s279
      %s294 = sphi 0, %s280
      %s298 = sphi 0, %s298
      %s300 = sphi 0, %s298
      %s301 = sphi 0, %s300
      %s315 = sphi 0, %s301
      %s319 = sphi 0, %s319
      %s321 = sphi 0, %s319
      %s322 = sphi 0, %s321
      %s336 = sphi 0, %s322
      %s340 = sphi 0, %s340
      %s342 = sphi 0, %s340
      %s343 = sphi 0, %s342
      %s357 = sphi 0, %s343
      %s361 = sphi 0, %s361
      %s363 = sphi 0, %s361
      %s364 = sphi 0, %s363
      %s378 = sphi 0, %s364
      %s384 = sphi 0, %s386
      %s387 = sphi 0, %s384
      %s388 = sphi 0, %s387
      %s404 = sphi 0, %s388
      %s410 = sphi 0, %s412
      %s413 = sphi 0, %s410
      %s414 = sphi 0, %s413
      %s430 = sphi 0, %s414
      %s436 = sphi 0, %s438
      %s439 = sphi 0, %s436
      %s440 = sphi 0, %s439
      %s456 = sphi 0, %s440
    $region4: #{_lambda_.3} parent=1 // loop_header_branch
      %31 = sbr.rel (%p29) target = $region8
    $region5: #{_lambda_.3} parent=1 // loop_body
      %s33 = ssub.s32 %s28, 1
      %s34 = ssub.s32 %s28, 2
      %s35 = sadd.s32 %s28, 1
      %s36 = ssub.s32 %s28, %s35
      %p37 = scmp.eq.s32.totalorder %s36, 0
      %s39 = sadd.s32 %s38, 1
      %s40 = scalar_select %p37, %s38, %s39
      %p43 = pneg %p37
      %p44 = scmp.eq.s32.totalorder %s28, 1
      %p45 = por %p43, %p44
      %p46 = scmp.ne.s32.totalorder %s38, %s41
      %p47 = scmp.eq.s32.totalorder %s28, 0
      %p48 = por %p46, %p47
      %p49 = scmp.ne.s32.totalorder %s38, %s41
      %p50 = scmp.eq.s32.totalorder %s33, 1
      %p51 = por %p49, %p50
      %p52 = scmp.ne.s32.totalorder %s41, %s42
      %p53 = scmp.eq.s32.totalorder %s33, 0
      %p54 = por %p52, %p53
      %p55 = scmp.ne.s32.totalorder %s41, %s42
      %p56 = scmp.eq.s32.totalorder %s34, 1
      %p57 = por %p55, %p56
      %p59 = scmp.ne.s32.totalorder %s42, %s58
      %p60 = scmp.eq.s32.totalorder %s34, 0
      %p61 = por %p59, %p60
      %s62 = ssub.s32 %s28, %s35
      %p63 = scmp.eq.s32.totalorder %s62, 0
      %s65 = sadd.s32 %s64, 1
      %s66 = scalar_select %p63, %s64, %s65
      %p69 = pneg %p63
      %p70 = scmp.eq.s32.totalorder %s28, 1
      %p71 = por %p69, %p70
      %p72 = scmp.ne.s32.totalorder %s64, %s67
      %p73 = scmp.eq.s32.totalorder %s28, 0
      %p74 = por %p72, %p73
      %p75 = scmp.ne.s32.totalorder %s64, %s67
      %p76 = scmp.eq.s32.totalorder %s33, 1
      %p77 = por %p75, %p76
      %p78 = scmp.ne.s32.totalorder %s67, %s68
      %p79 = scmp.eq.s32.totalorder %s33, 0
      %p80 = por %p78, %p79
      %p81 = scmp.ne.s32.totalorder %s67, %s68
      %p82 = scmp.eq.s32.totalorder %s34, 1
      %p83 = por %p81, %p82
      %p85 = scmp.ne.s32.totalorder %s68, %s84
      %p86 = scmp.eq.s32.totalorder %s34, 0
      %p87 = por %p85, %p86
      %s89 = sadd.s32 %s88, 1
      %p92 = scmp.eq.s32.totalorder %s28, 1
      %p93 = scmp.ne.s32.totalorder %s88, %s90
      %p94 = scmp.eq.s32.totalorder %s28, 0
      %p95 = por %p93, %p94
      %p96 = scmp.ne.s32.totalorder %s88, %s90
      %p97 = scmp.eq.s32.totalorder %s33, 1
      %p98 = por %p96, %p97
      %p99 = scmp.ne.s32.totalorder %s90, %s91
      %p100 = scmp.eq.s32.totalorder %s33, 0
      %p101 = por %p99, %p100
      %p102 = scmp.ne.s32.totalorder %s90, %s91
      %p103 = scmp.eq.s32.totalorder %s34, 1
      %p104 = por %p102, %p103
      %p106 = scmp.ne.s32.totalorder %s91, %s105
      %p107 = scmp.eq.s32.totalorder %s34, 0
      %p108 = por %p106, %p107
      %s110 = sadd.s32 %s109, 1
      %p113 = scmp.eq.s32.totalorder %s28, 1
      %p114 = scmp.ne.s32.totalorder %s109, %s111
      %p115 = scmp.eq.s32.totalorder %s28, 0
      %p116 = por %p114, %p115
      %p117 = scmp.ne.s32.totalorder %s109, %s111
      %p118 = scmp.eq.s32.totalorder %s33, 1
      %p119 = por %p117, %p118
      %p120 = scmp.ne.s32.totalorder %s111, %s112
      %p121 = scmp.eq.s32.totalorder %s33, 0
      %p122 = por %p120, %p121
      %p123 = scmp.ne.s32.totalorder %s111, %s112
      %p124 = scmp.eq.s32.totalorder %s34, 1
      %p125 = por %p123, %p124
      %p127 = scmp.ne.s32.totalorder %s112, %s126
      %p128 = scmp.eq.s32.totalorder %s34, 0
      %p129 = por %p127, %p128
      %s131 = sadd.s32 %s130, 1
      %p134 = scmp.eq.s32.totalorder %s28, 1
      %p135 = scmp.ne.s32.totalorder %s130, %s132
      %p136 = scmp.eq.s32.totalorder %s28, 0
      %p137 = por %p135, %p136
      %p138 = scmp.ne.s32.totalorder %s130, %s132
      %p139 = scmp.eq.s32.totalorder %s33, 1
      %p140 = por %p138, %p139
      %p141 = scmp.ne.s32.totalorder %s132, %s133
      %p142 = scmp.eq.s32.totalorder %s33, 0
      %p143 = por %p141, %p142
      %p144 = scmp.ne.s32.totalorder %s132, %s133
      %p145 = scmp.eq.s32.totalorder %s34, 1
      %p146 = por %p144, %p145
      %p148 = scmp.ne.s32.totalorder %s133, %s147
      %p149 = scmp.eq.s32.totalorder %s34, 0
      %p150 = por %p148, %p149
      %s152 = sadd.s32 %s151, 1
      %p155 = scmp.eq.s32.totalorder %s28, 1
      %p156 = scmp.ne.s32.totalorder %s151, %s153
      %p157 = scmp.eq.s32.totalorder %s28, 0
      %p158 = por %p156, %p157
      %p159 = scmp.ne.s32.totalorder %s151, %s153
      %p160 = scmp.eq.s32.totalorder %s33, 1
      %p161 = por %p159, %p160
      %p162 = scmp.ne.s32.totalorder %s153, %s154
      %p163 = scmp.eq.s32.totalorder %s33, 0
      %p164 = por %p162, %p163
      %p165 = scmp.ne.s32.totalorder %s153, %s154
      %p166 = scmp.eq.s32.totalorder %s34, 1
      %p167 = por %p165, %p166
      %p169 = scmp.ne.s32.totalorder %s154, %s168
      %p170 = scmp.eq.s32.totalorder %s34, 0
      %p171 = por %p169, %p170
      %s173 = sadd.s32 %s172, 1
      %p176 = scmp.eq.s32.totalorder %s28, 1
      %p177 = scmp.ne.s32.totalorder %s172, %s174
      %p178 = scmp.eq.s32.totalorder %s28, 0
      %p179 = por %p177, %p178
      %p180 = scmp.ne.s32.totalorder %s172, %s174
      %p181 = scmp.eq.s32.totalorder %s33, 1
      %p182 = por %p180, %p181
      %p183 = scmp.ne.s32.totalorder %s174, %s175
      %p184 = scmp.eq.s32.totalorder %s33, 0
      %p185 = por %p183, %p184
      %p186 = scmp.ne.s32.totalorder %s174, %s175
      %p187 = scmp.eq.s32.totalorder %s34, 1
      %p188 = por %p186, %p187
      %p190 = scmp.ne.s32.totalorder %s175, %s189
      %p191 = scmp.eq.s32.totalorder %s34, 0
      %p192 = por %p190, %p191
      %s194 = sadd.s32 %s193, 1
      %p197 = scmp.eq.s32.totalorder %s28, 1
      %p198 = scmp.ne.s32.totalorder %s193, %s195
      %p199 = scmp.eq.s32.totalorder %s28, 0
      %p200 = por %p198, %p199
      %p201 = scmp.ne.s32.totalorder %s193, %s195
      %p202 = scmp.eq.s32.totalorder %s33, 1
      %p203 = por %p201, %p202
      %p204 = scmp.ne.s32.totalorder %s195, %s196
      %p205 = scmp.eq.s32.totalorder %s33, 0
      %p206 = por %p204, %p205
      %p207 = scmp.ne.s32.totalorder %s195, %s196
      %p208 = scmp.eq.s32.totalorder %s34, 1
      %p209 = por %p207, %p208
      %p211 = scmp.ne.s32.totalorder %s196, %s210
      %p212 = scmp.eq.s32.totalorder %s34, 0
      %p213 = por %p211, %p212
      %s215 = sadd.s32 %s214, 1
      %p218 = scmp.eq.s32.totalorder %s28, 1
      %p219 = scmp.ne.s32.totalorder %s214, %s216
      %p220 = scmp.eq.s32.totalorder %s28, 0
      %p221 = por %p219, %p220
      %p222 = scmp.ne.s32.totalorder %s214, %s216
      %p223 = scmp.eq.s32.totalorder %s33, 1
      %p224 = por %p222, %p223
      %p225 = scmp.ne.s32.totalorder %s216, %s217
      %p226 = scmp.eq.s32.totalorder %s33, 0
      %p227 = por %p225, %p226
      %p228 = scmp.ne.s32.totalorder %s216, %s217
      %p229 = scmp.eq.s32.totalorder %s34, 1
      %p230 = por %p228, %p229
      %p232 = scmp.ne.s32.totalorder %s217, %s231
      %p233 = scmp.eq.s32.totalorder %s34, 0
      %p234 = por %p232, %p233
      %s236 = sadd.s32 %s235, 1
      %p239 = scmp.eq.s32.totalorder %s28, 1
      %p240 = scmp.ne.s32.totalorder %s235, %s237
      %p241 = scmp.eq.s32.totalorder %s28, 0
      %p242 = por %p240, %p241
      %p243 = scmp.ne.s32.totalorder %s235, %s237
      %p244 = scmp.eq.s32.totalorder %s33, 1
      %p245 = por %p243, %p244
      %p246 = scmp.ne.s32.totalorder %s237, %s238
      %p247 = scmp.eq.s32.totalorder %s33, 0
      %p248 = por %p246, %p247
      %p249 = scmp.ne.s32.totalorder %s237, %s238
      %p250 = scmp.eq.s32.totalorder %s34, 1
      %p251 = por %p249, %p250
      %p253 = scmp.ne.s32.totalorder %s238, %s252
      %p254 = scmp.eq.s32.totalorder %s34, 0
      %p255 = por %p253, %p254
      %s257 = sadd.s32 %s256, 1
      %p260 = scmp.eq.s32.totalorder %s28, 1
      %p261 = scmp.ne.s32.totalorder %s256, %s258
      %p262 = scmp.eq.s32.totalorder %s28, 0
      %p263 = por %p261, %p262
      %p264 = scmp.ne.s32.totalorder %s256, %s258
      %p265 = scmp.eq.s32.totalorder %s33, 1
      %p266 = por %p264, %p265
      %p267 = scmp.ne.s32.totalorder %s258, %s259
      %p268 = scmp.eq.s32.totalorder %s33, 0
      %p269 = por %p267, %p268
      %p270 = scmp.ne.s32.totalorder %s258, %s259
      %p271 = scmp.eq.s32.totalorder %s34, 1
      %p272 = por %p270, %p271
      %p274 = scmp.ne.s32.totalorder %s259, %s273
      %p275 = scmp.eq.s32.totalorder %s34, 0
      %p276 = por %p274, %p275
      %s278 = sadd.s32 %s277, 1
      %p281 = scmp.eq.s32.totalorder %s28, 1
      %p282 = scmp.ne.s32.totalorder %s277, %s279
      %p283 = scmp.eq.s32.totalorder %s28, 0
      %p284 = por %p282, %p283
      %p285 = scmp.ne.s32.totalorder %s277, %s279
      %p286 = scmp.eq.s32.totalorder %s33, 1
      %p287 = por %p285, %p286
      %p288 = scmp.ne.s32.totalorder %s279, %s280
      %p289 = scmp.eq.s32.totalorder %s33, 0
      %p290 = por %p288, %p289
      %p291 = scmp.ne.s32.totalorder %s279, %s280
      %p292 = scmp.eq.s32.totalorder %s34, 1
      %p293 = por %p291, %p292
      %p295 = scmp.ne.s32.totalorder %s280, %s294
      %p296 = scmp.eq.s32.totalorder %s34, 0
      %p297 = por %p295, %p296
      %s299 = sadd.s32 %s298, 1
      %p302 = scmp.eq.s32.totalorder %s28, 1
      %p303 = scmp.ne.s32.totalorder %s298, %s300
      %p304 = scmp.eq.s32.totalorder %s28, 0
      %p305 = por %p303, %p304
      %p306 = scmp.ne.s32.totalorder %s298, %s300
      %p307 = scmp.eq.s32.totalorder %s33, 1
      %p308 = por %p306, %p307
      %p309 = scmp.ne.s32.totalorder %s300, %s301
      %p310 = scmp.eq.s32.totalorder %s33, 0
      %p311 = por %p309, %p310
      %p312 = scmp.ne.s32.totalorder %s300, %s301
      %p313 = scmp.eq.s32.totalorder %s34, 1
      %p314 = por %p312, %p313
      %p316 = scmp.ne.s32.totalorder %s301, %s315
      %p317 = scmp.eq.s32.totalorder %s34, 0
      %p318 = por %p316, %p317
      %s320 = sadd.s32 %s319, 1
      %p323 = scmp.eq.s32.totalorder %s28, 1
      %p324 = scmp.ne.s32.totalorder %s319, %s321
      %p325 = scmp.eq.s32.totalorder %s28, 0
      %p326 = por %p324, %p325
      %p327 = scmp.ne.s32.totalorder %s319, %s321
      %p328 = scmp.eq.s32.totalorder %s33, 1
      %p329 = por %p327, %p328
      %p330 = scmp.ne.s32.totalorder %s321, %s322
      %p331 = scmp.eq.s32.totalorder %s33, 0
      %p332 = por %p330, %p331
      %p333 = scmp.ne.s32.totalorder %s321, %s322
      %p334 = scmp.eq.s32.totalorder %s34, 1
      %p335 = por %p333, %p334
      %p337 = scmp.ne.s32.totalorder %s322, %s336
      %p338 = scmp.eq.s32.totalorder %s34, 0
      %p339 = por %p337, %p338
      %s341 = sadd.s32 %s340, 1
      %p344 = scmp.eq.s32.totalorder %s28, 1
      %p345 = scmp.ne.s32.totalorder %s340, %s342
      %p346 = scmp.eq.s32.totalorder %s28, 0
      %p347 = por %p345, %p346
      %p348 = scmp.ne.s32.totalorder %s340, %s342
      %p349 = scmp.eq.s32.totalorder %s33, 1
      %p350 = por %p348, %p349
      %p351 = scmp.ne.s32.totalorder %s342, %s343
      %p352 = scmp.eq.s32.totalorder %s33, 0
      %p353 = por %p351, %p352
      %p354 = scmp.ne.s32.totalorder %s342, %s343
      %p355 = scmp.eq.s32.totalorder %s34, 1
      %p356 = por %p354, %p355
      %p358 = scmp.ne.s32.totalorder %s343, %s357
      %p359 = scmp.eq.s32.totalorder %s34, 0
      %p360 = por %p358, %p359
      %s362 = sadd.s32 %s361, 1
      %p365 = scmp.eq.s32.totalorder %s28, 1
      %p366 = scmp.ne.s32.totalorder %s361, %s363
      %p367 = scmp.eq.s32.totalorder %s28, 0
      %p368 = por %p366, %p367
      %p369 = scmp.ne.s32.totalorder %s361, %s363
      %p370 = scmp.eq.s32.totalorder %s33, 1
      %p371 = por %p369, %p370
      %p372 = scmp.ne.s32.totalorder %s363, %s364
      %p373 = scmp.eq.s32.totalorder %s33, 0
      %p374 = por %p372, %p373
      %p375 = scmp.ne.s32.totalorder %s363, %s364
      %p376 = scmp.eq.s32.totalorder %s34, 1
      %p377 = por %p375, %p376
      %p379 = scmp.ne.s32.totalorder %s364, %s378
      %p380 = scmp.eq.s32.totalorder %s34, 0
      %p381 = por %p379, %p380
      %s382 = ssub.s32 %s28, %s35
      %p383 = scmp.eq.s32.totalorder %s382, 0
      %s385 = sadd.s32 %s384, 1
      %s386 = scalar_select %p383, %s384, %s385
      %p389 = pneg %p383
      %p390 = scmp.eq.s32.totalorder %s28, 1
      %p391 = por %p389, %p390
      %p392 = scmp.ne.s32.totalorder %s384, %s387
      %p393 = scmp.eq.s32.totalorder %s28, 0
      %p394 = por %p392, %p393
      %p395 = scmp.ne.s32.totalorder %s384, %s387
      %p396 = scmp.eq.s32.totalorder %s33, 1
      %p397 = por %p395, %p396
      %p398 = scmp.ne.s32.totalorder %s387, %s388
      %p399 = scmp.eq.s32.totalorder %s33, 0
      %p400 = por %p398, %p399
      %p401 = scmp.ne.s32.totalorder %s387, %s388
      %p402 = scmp.eq.s32.totalorder %s34, 1
      %p403 = por %p401, %p402
      %p405 = scmp.ne.s32.totalorder %s388, %s404
      %p406 = scmp.eq.s32.totalorder %s34, 0
      %p407 = por %p405, %p406
      %s408 = ssub.s32 %s28, %s35
      %p409 = scmp.eq.s32.totalorder %s408, 0
      %s411 = sadd.s32 %s410, 1
      %s412 = scalar_select %p409, %s410, %s411
      %p415 = pneg %p409
      %p416 = scmp.eq.s32.totalorder %s28, 1
      %p417 = por %p415, %p416
      %p418 = scmp.ne.s32.totalorder %s410, %s413
      %p419 = scmp.eq.s32.totalorder %s28, 0
      %p420 = por %p418, %p419
      %p421 = scmp.ne.s32.totalorder %s410, %s413
      %p422 = scmp.eq.s32.totalorder %s33, 1
      %p423 = por %p421, %p422
      %p424 = scmp.ne.s32.totalorder %s413, %s414
      %p425 = scmp.eq.s32.totalorder %s33, 0
      %p426 = por %p424, %p425
      %p427 = scmp.ne.s32.totalorder %s413, %s414
      %p428 = scmp.eq.s32.totalorder %s34, 1
      %p429 = por %p427, %p428
      %p431 = scmp.ne.s32.totalorder %s414, %s430
      %p432 = scmp.eq.s32.totalorder %s34, 0
      %p433 = por %p431, %p432
      %s434 = ssub.s32 %s28, %s35
      %p435 = scmp.eq.s32.totalorder %s434, 0
      %s437 = sadd.s32 %s436, 1
      %s438 = scalar_select %p435, %s436, %s437
      %p441 = pneg %p435
      %p442 = scmp.eq.s32.totalorder %s28, 1
      %p443 = por %p441, %p442
      %p444 = scmp.ne.s32.totalorder %s436, %s439
      %p445 = scmp.eq.s32.totalorder %s28, 0
      %p446 = por %p444, %p445
      %p447 = scmp.ne.s32.totalorder %s436, %s439
      %p448 = scmp.eq.s32.totalorder %s33, 1
      %p449 = por %p447, %p448
      %p450 = scmp.ne.s32.totalorder %s439, %s440
      %p451 = scmp.eq.s32.totalorder %s33, 0
      %p452 = por %p450, %p451
      %p453 = scmp.ne.s32.totalorder %s439, %s440
      %p454 = scmp.eq.s32.totalorder %s34, 1
      %p455 = por %p453, %p454
      %p457 = scmp.ne.s32.totalorder %s440, %s456
      %p458 = scmp.eq.s32.totalorder %s34, 0
      %p459 = por %p457, %p458
      %p460 = scmp.le.s32.totalorder 1, %s28
      %p461 = scmp.lt.s32.totalorder %s28, 3
      %p462 = pnand %p460, %p461
      %p463 = pneg %p462
      // Predicated region
      $region9: #{_lambda_.3} parent=5 // pred_check
        _
      $region10: #{_lambda_.3} parent=5 // pred_check_branch
        %465 = sbr.rel (%p462) target = $region12
      $region11: #{_lambda_.3} parent=5 // pred_region
        %s466 = ssub.s32 %s28, 1
        // Predicated region
        $region13: #{_lambda_.3} parent=11 // pred_check
          %p467 = pneg %p101
        $region14: #{_lambda_.3} parent=11 // pred_check_branch
          %469 = sbr.rel (%p467) target = $region16
        $region15: #{_lambda_.3} parent=11 // pred_region
          _
        $region16: #{_lambda_.3} parent=11 // pred_fallthru
          _
        // Predicated region
        $region17: #{_lambda_.3} parent=11 // pred_check
          %p470 = pneg %p122
        $region18: #{_lambda_.3} parent=11 // pred_check_branch
          %472 = sbr.rel (%p470) target = $region20
        $region19: #{_lambda_.3} parent=11 // pred_region
          _
        $region20: #{_lambda_.3} parent=11 // pred_fallthru
          _
        // Predicated region
        $region21: #{_lambda_.3} parent=11 // pred_check
          %p473 = pneg %p143
        $region22: #{_lambda_.3} parent=11 // pred_check_branch
          %475 = sbr.rel (%p473) target = $region24
        $region23: #{_lambda_.3} parent=11 // pred_region
          _
        $region24: #{_lambda_.3} parent=11 // pred_fallthru
          _
        // Predicated region
        $region25: #{_lambda_.3} parent=11 // pred_check
          %p476 = pneg %p164
        $region26: #{_lambda_.3} parent=11 // pred_check_branch
          %478 = sbr.rel (%p476) target = $region28
        $region27: #{_lambda_.3} parent=11 // pred_region
          _
        $region28: #{_lambda_.3} parent=11 // pred_fallthru
          _
        // Predicated region
        $region29: #{_lambda_.3} parent=11 // pred_check
          %p479 = pneg %p185
        $region30: #{_lambda_.3} parent=11 // pred_check_branch
          %481 = sbr.rel (%p479) target = $region32
        $region31: #{_lambda_.3} parent=11 // pred_region
          _
        $region32: #{_lambda_.3} parent=11 // pred_fallthru
          _
        // Predicated region
        $region33: #{_lambda_.3} parent=11 // pred_check
          %p482 = pneg %p206
        $region34: #{_lambda_.3} parent=11 // pred_check_branch
          %484 = sbr.rel (%p482) target = $region36
        $region35: #{_lambda_.3} parent=11 // pred_region
          _
        $region36: #{_lambda_.3} parent=11 // pred_fallthru
          _
        // Predicated region
        $region37: #{_lambda_.3} parent=11 // pred_check
          %p485 = pneg %p227
        $region38: #{_lambda_.3} parent=11 // pred_check_branch
          %487 = sbr.rel (%p485) target = $region40
        $region39: #{_lambda_.3} parent=11 // pred_region
          _
        $region40: #{_lambda_.3} parent=11 // pred_fallthru
          _
        // Predicated region
        $region41: #{_lambda_.3} parent=11 // pred_check
          %p488 = pneg %p248
        $region42: #{_lambda_.3} parent=11 // pred_check_branch
          %490 = sbr.rel (%p488) target = $region44
        $region43: #{_lambda_.3} parent=11 // pred_region
          _
        $region44: #{_lambda_.3} parent=11 // pred_fallthru
          _
        // Predicated region
        $region45: #{_lambda_.3} parent=11 // pred_check
          %p491 = pneg %p269
        $region46: #{_lambda_.3} parent=11 // pred_check_branch
          %493 = sbr.rel (%p491) target = $region48
        $region47: #{_lambda_.3} parent=11 // pred_region
          _
        $region48: #{_lambda_.3} parent=11 // pred_fallthru
          _
        // Predicated region
        $region49: #{_lambda_.3} parent=11 // pred_check
          %p494 = pneg %p290
        $region50: #{_lambda_.3} parent=11 // pred_check_branch
          %496 = sbr.rel (%p494) target = $region52
        $region51: #{_lambda_.3} parent=11 // pred_region
          _
        $region52: #{_lambda_.3} parent=11 // pred_fallthru
          _
        // Predicated region
        $region53: #{_lambda_.3} parent=11 // pred_check
          %p497 = pneg %p311
        $region54: #{_lambda_.3} parent=11 // pred_check_branch
          %499 = sbr.rel (%p497) target = $region56
        $region55: #{_lambda_.3} parent=11 // pred_region
          _
        $region56: #{_lambda_.3} parent=11 // pred_fallthru
          _
        // Predicated region
        $region57: #{_lambda_.3} parent=11 // pred_check
          %p500 = pneg %p332
        $region58: #{_lambda_.3} parent=11 // pred_check_branch
          %502 = sbr.rel (%p500) target = $region60
        $region59: #{_lambda_.3} parent=11 // pred_region
          _
        $region60: #{_lambda_.3} parent=11 // pred_fallthru
          _
        // Predicated region
        $region61: #{_lambda_.3} parent=11 // pred_check
          %p503 = pneg %p353
        $region62: #{_lambda_.3} parent=11 // pred_check_branch
          %505 = sbr.rel (%p503) target = $region64
        $region63: #{_lambda_.3} parent=11 // pred_region
          _
        $region64: #{_lambda_.3} parent=11 // pred_fallthru
          _
        // Predicated region
        $region65: #{_lambda_.3} parent=11 // pred_check
          %p506 = pneg %p374
        $region66: #{_lambda_.3} parent=11 // pred_check_branch
          %508 = sbr.rel (%p506) target = $region68
        $region67: #{_lambda_.3} parent=11 // pred_region
          _
        $region68: #{_lambda_.3} parent=11 // pred_fallthru
          _
      $region12: #{_lambda_.3} parent=5 // pred_fallthru
        _
      %p509 = scmp.lt.s32.totalorder %s28, 2
      // Predicated region
      $region69: #{_lambda_.3} parent=5 // pred_check
        %p510 = pneg %p509
      $region70: #{_lambda_.3} parent=5 // pred_check_branch
        %512 = sbr.rel (%p510) target = $region72
      $region71: #{_lambda_.3} parent=5 // pred_region
        // Predicated region
        $region73: #{_lambda_.3} parent=71 // pred_check
          %p513 = pneg %p48
        $region74: #{_lambda_.3} parent=71 // pred_check_branch
          %515 = sbr.rel (%p513) target = $region76
        $region75: #{_lambda_.3} parent=71 // pred_region
          %p516 = scmp.lt.s32.totalorder %s28, 1
          %s517 = scalar_select %p516, %s28, 1
          %s518 = smul.addr %s517, 8
          %s519 = smul.addr %s518, 8
          %s520 = scalar_lea.vmem %s0, %s519
        $region76: #{_lambda_.3} parent=71 // pred_fallthru
          _
        // Predicated region
        $region77: #{_lambda_.3} parent=71 // pred_check
          %p521 = pneg %p74
        $region78: #{_lambda_.3} parent=71 // pred_check_branch
          %523 = sbr.rel (%p521) target = $region80
        $region79: #{_lambda_.3} parent=71 // pred_region
          %p524 = scmp.lt.s32.totalorder %s28, 1
          %s525 = scalar_select %p524, %s28, 1
          %s526 = scalar_lea.vmem %s1, %s525
        $region80: #{_lambda_.3} parent=71 // pred_fallthru
          _
      $region72: #{_lambda_.3} parent=5 // pred_fallthru
        _
      %p527 = scmp.le.s32.totalorder 1, %s28
      %p528 = scmp.lt.s32.totalorder %s28, 3
      %p529 = pnand %p527, %p528
      %p530 = pneg %p529
      // Predicated region
      $region81: #{_lambda_.3} parent=5 // pred_check
        _
      $region82: #{_lambda_.3} parent=5 // pred_check_branch
        %532 = sbr.rel (%p529) target = $region84
      $region83: #{_lambda_.3} parent=5 // pred_region
        %s533 = ssub.s32 %s28, 1
        %p534 = scmp.lt.s32.totalorder %s33, 1
        %s535 = scalar_select %p534, %s33, 1
        %s536 = smul.addr %s535, 8
        %s537 = smul.addr %s536, 8
        %s538 = scalar_lea.vmem %s0, %s537
        %p539 = pneg %p54
        %p540 = pneg %p51
        %p541 = scmp.lt.s32.totalorder %s33, 1
        %s542 = scalar_select %p541, %s33, 1
        %s543 = scalar_lea.vmem %s1, %s542
        %p544 = pneg %p80
        %p545 = pneg %p77
        %p546 = pneg %p101
        %p547 = pneg %p98
        %p548 = pneg %p122
        %p549 = pneg %p119
        %p550 = pneg %p143
        %p551 = pneg %p140
        %p552 = pneg %p164
        %p553 = pneg %p161
        %p554 = pneg %p185
        %p555 = pneg %p182
        %p556 = pneg %p206
        %p557 = pneg %p203
        %p558 = pneg %p227
        %p559 = pneg %p224
        %p560 = pneg %p248
        %p561 = pneg %p245
        %p562 = pneg %p269
        %p563 = pneg %p266
        %p564 = pneg %p290
        %p565 = pneg %p287
        %p566 = pneg %p311
        %p567 = pneg %p308
        %p568 = pneg %p332
        %p569 = pneg %p329
        %p570 = pneg %p353
        %p571 = pneg %p350
        %p572 = pneg %p374
        %p573 = pneg %p371
        %p574 = pneg %p400
        %p575 = pneg %p397
        %p576 = scmp.lt.s32.totalorder %s33, 1
        %s577 = scalar_select %p576, %s33, 1
        %s578 = smul.addr %s577, 3
        %s579 = smul.addr %s578, 4
        %s580 = scalar_lea.vmem %s16, %s579
        %p581 = pneg %p426
        %p582 = pneg %p423
        %p583 = scmp.lt.s32.totalorder %s33, 1
        %s584 = scalar_select %p583, %s33, 1
        %s585 = smul.addr %s584, 3
        %s586 = smul.addr %s585, 4
        %s587 = scalar_lea.vmem %s17, %s586
        %p588 = pneg %p452
        %p589 = pneg %p449
        %s590 = sand.u32 %s439, 1
        %s591 = scalar_lea.sflag [#allocation3], %s590
        %s592 = sand.u32 %s439, 1
        %s593 = scalar_lea.vmem [#allocation2], %s592
        %p594 = scmp.lt.s32.totalorder %s33, 1
        %s595 = scalar_select %p594, %s33, 1
        %s596 = smul.addr %s595, 8
        %s597 = smul.addr %s596, 8
        %s598 = scalar_lea.vmem %s0, %s597
        %p599 = scmp.lt.s32.totalorder %s33, 1
        %s600 = scalar_select %p599, %s33, 1
        %s601 = scalar_lea.vmem %s1, %s600
        %p602 = scmp.lt.s32.totalorder %s33, 1
        %s603 = scalar_select %p602, %s33, 1
        %s604 = smul.addr %s603, 3
        %s605 = smul.addr %s604, 4
        %s606 = scalar_lea.vmem %s16, %s605
        %p607 = scmp.lt.s32.totalorder %s33, 1
        %s608 = scalar_select %p607, %s33, 1
        %s609 = smul.addr %s608, 3
        %s610 = smul.addr %s609, 4
        %s611 = scalar_lea.vmem %s17, %s610
        %v613 = vld [vmem:[%s601] sm:$0x1]
        %v614 = vld [vmem:[%s2] sm:$0x1]
        %v615 = vld [vmem:[%s3] sm:$0x1]
        %v616 = vld [vmem:[%s598] sm:$0xff]
        %v617 = vld [vmem:[%s598 + $0x8] sm:$0xff]
        %vm618 = vcmask 523264
        %v619 = vsel %vm618, %v616, 0.0
        %620 = vadd.xlane.f32.xlu0 %v619
        %v621 = vpop.xlane.xlu0 %620
        %v622 = vsel %vm618, %v617, 0.0
        %623 = vadd.xlane.f32.xlu0 %v622
        %v624 = vpop.xlane.xlu0 %623
        %v625 = vrcp.pop 64.0
        %v626 = vmul.f32 %v621, %v625
        %v627 = vmul.f32 %v624, %v625
        %v628 = vsub.f32 %v616, %v626
        %v629 = vsub.f32 %v617, %v627
        %v630 = vmul.f32 %v628, %v628
        %v631 = vmul.f32 %v629, %v629
        %v632 = vsel %vm618, %v630, 0.0
        %633 = vadd.xlane.f32.xlu0 %v632
        %v634 = vpop.xlane.xlu0 %633
        %v635 = vsel %vm618, %v631, 0.0
        %636 = vadd.xlane.f32.xlu0 %v635
        %v637 = vpop.xlane.xlu0 %636
        %v638 = vmul.f32 %v634, %v625
        %v639 = vmul.f32 %v637, %v625
        %v640 = vadd.f32 %v638, 1e-06
        %v641 = vadd.f32 %v639, 1e-06
        %v642 = vrsqrt.pop %v640
        %v643 = vrsqrt.pop %v641
        %v644 = vmul.f32 %v628, %v642
        %v645 = vmul.f32 %v629, %v643
        %v647 = vlaneseq
        %v648 = vshrl.u32 %v647, 7
        %v649 = vsub.s32 0, %v648
        %v650 = vrot.slane %v614, %v649
        %v652 = vmul.f32 %v644, %v650
        %v653 = vmul.f32 %v645, %v650
        %v655 = vlaneseq
        %v656 = vshrl.u32 %v655, 7
        %v657 = vsub.s32 0, %v656
        %v658 = vrot.slane %v615, %v657
        %v660 = vadd.f32 %v652, %v658
        %v661 = vadd.f32 %v653, %v658
        %v662 = vpack.c.bf16 %v661, %v660
        %v663 = vld [vmem:[%s4] sm:$0xf]
        %v664 = vld [vmem:[%s4 + $0x4] sm:$0xf]
        %v665 = vld [vmem:[%s4 + $0x8] sm:$0xf]
        %v666 = vld [vmem:[%s4 + $0xc] sm:$0xf]
        %v667 = vld [vmem:[%s4 + $0x10] sm:$0xf]
        %v668 = vld [vmem:[%s4 + $0x14] sm:$0xf]
        %v669 = vld [vmem:[%s4 + $0x18] sm:$0xf]
        %v670 = vld [vmem:[%s4 + $0x1c] sm:$0xf]
        %s671 = scalar_lea.vmem %s598, 16
        %v672 = vld [vmem:[%s671] sm:$0xff]
        %v673 = vld [vmem:[%s671 + $0x8] sm:$0xff]
        %v674 = vsel %vm618, %v672, 0.0
        %675 = vadd.xlane.f32.xlu0 %v674
        %v676 = vpop.xlane.xlu0 %675
        %v677 = vsel %vm618, %v673, 0.0
        %678 = vadd.xlane.f32.xlu0 %v677
        %v679 = vpop.xlane.xlu0 %678
        %v680 = vmul.f32 %v676, %v625
        %v681 = vmul.f32 %v679, %v625
        %v682 = vsub.f32 %v672, %v680
        %v683 = vsub.f32 %v673, %v681
        %v684 = vmul.f32 %v682, %v682
        %v685 = vmul.f32 %v683, %v683
        %v686 = vsel %vm618, %v684, 0.0
        %687 = vadd.xlane.f32.xlu0 %v686
        %v688 = vpop.xlane.xlu0 %687
        %v689 = vsel %vm618, %v685, 0.0
        %690 = vadd.xlane.f32.xlu0 %v689
        %v691 = vpop.xlane.xlu0 %690
        %v692 = vmul.f32 %v688, %v625
        %v693 = vmul.f32 %v691, %v625
        %v694 = vadd.f32 %v692, 1e-06
        %v695 = vadd.f32 %v693, 1e-06
        %v696 = vrsqrt.pop %v694
        %v697 = vrsqrt.pop %v695
        %v698 = vmul.f32 %v682, %v696
        %v699 = vmul.f32 %v683, %v697
        %v700 = vmul.f32 %v698, %v650
        %v701 = vmul.f32 %v699, %v650
        %v702 = vadd.f32 %v700, %v658
        %v703 = vadd.f32 %v701, %v658
        %v704 = vpack.c.bf16 %v703, %v702
        %s705 = scalar_lea.vmem %s4, 32
        %v706 = vld [vmem:[%s705] sm:$0xf]
        %v707 = vld [vmem:[%s705 + $0x4] sm:$0xf]
        %v708 = vld [vmem:[%s705 + $0x8] sm:$0xf]
        %v709 = vld [vmem:[%s705 + $0xc] sm:$0xf]
        %v710 = vld [vmem:[%s705 + $0x10] sm:$0xf]
        %v711 = vld [vmem:[%s705 + $0x14] sm:$0xf]
        %v712 = vld [vmem:[%s705 + $0x18] sm:$0xf]
        %v713 = vld [vmem:[%s705 + $0x1c] sm:$0xf]
        %v722 = vunpack.c.l.b16 %v706
        %v723 = vunpack.c.l.b16 %v707
        %v724 = vunpack.c.l.b16 %v708
        %v725 = vunpack.c.l.b16 %v709
        %v726 = vunpack.c.l.b16 %v710
        %v727 = vunpack.c.l.b16 %v711
        %v728 = vunpack.c.l.b16 %v712
        %v729 = vunpack.c.l.b16 %v713
        %v730 = vpack.c.b16 %v723, %v722
        %v731 = vpack.c.b16 %v725, %v724
        %v732 = vpack.c.b16 %v727, %v726
        %v733 = vpack.c.b16 %v729, %v728
        %v739 = vsel %vm618, %v704, 0
        %741 = vmatprep.subr.bf16.mxu0 0
        %742 = vmatpush1.bf16.msra.mxu0 %v730
        %743 = vmatprep.subr.bf16.mxu0 0
        %744 = vmatpush1.bf16.msra.mxu0 %v731
        %745 = vmatprep.subr.bf16.mxu0 0
        %746 = vmatpush1.bf16.msra.mxu0 %v732
        %747 = vmatprep.subr.bf16.mxu0 0
        %748 = vmatpush1.bf16.msra.mxu0 %v733
        %749 = vmatprep.subr.bf16.mxu0 0
        %750 = vmatpush1.bf16.msra.mxu0 0
        %751 = vmatprep.subr.bf16.mxu0 0
        %752 = vmatpush1.bf16.msra.mxu0 0
        %753 = vmatprep.subr.bf16.mxu0 0
        %754 = vmatpush1.bf16.msra.mxu0 0
        %755 = vmatprep.subr.bf16.mxu0 0
        %756 = vmatpush1.bf16.msra.mxu0 0
        %757 = vmatprep.subr.bf16.mxu0 0
        %758 = vmatpush1.bf16.msra.mxu0 0
        %759 = vmatprep.subr.bf16.mxu0 0
        %760 = vmatpush1.bf16.msra.mxu0 0
        %761 = vmatprep.subr.bf16.mxu0 0
        %762 = vmatpush1.bf16.msra.mxu0 0
        %763 = vmatprep.subr.bf16.mxu0 0
        %764 = vmatpush1.bf16.msra.mxu0 0
        %765 = vmatprep.subr.bf16.mxu0 0
        %766 = vmatpush1.bf16.msra.mxu0 0
        %767 = vmatprep.subr.bf16.mxu0 0
        %768 = vmatpush1.bf16.msra.mxu0 0
        %769 = vmatprep.subr.bf16.mxu0 0
        %770 = vmatpush1.bf16.msra.mxu0 0
        %771 = vmatprep.subr.bf16.mxu0 0
        %772 = vmatpush1.bf16.msra.mxu0 0
        %773 = vmatprep.mubr.bf16.mxu0 0
        %774 = vmatmul.mubr.bf16.gmra.mrb[0].mxu0 %v739
        %v775 = vpop.f32.mrb[0].mxu0
        %v776 = vadd.f32 0.0, %v775
        %v777 = vpop.f32.mrb[0].mxu0
        %v778 = vpop.f32.mrb[0].mxu0
        %v779 = vadd.f32 0.0, %v778
        %v780 = vpop.f32.mrb[0].mxu0
        %781 = vdwg.mxu0
        %v790 = vunpack.c.l.b16 %v663
        %v791 = vunpack.c.l.b16 %v664
        %v792 = vunpack.c.l.b16 %v665
        %v793 = vunpack.c.l.b16 %v666
        %v794 = vunpack.c.l.b16 %v667
        %v795 = vunpack.c.l.b16 %v668
        %v796 = vunpack.c.l.b16 %v669
        %v797 = vunpack.c.l.b16 %v670
        %v798 = vpack.c.b16 %v791, %v790
        %v799 = vpack.c.b16 %v793, %v792
        %v800 = vpack.c.b16 %v795, %v794
        %v801 = vpack.c.b16 %v797, %v796
        %v807 = vsel %vm618, %v662, 0
        %809 = vmatprep.subr.bf16.mxu0 0
        %810 = vmatpush1.bf16.msra.mxu0 %v798
        %811 = vmatprep.subr.bf16.mxu0 0
        %812 = vmatpush1.bf16.msra.mxu0 %v799
        %813 = vmatprep.subr.bf16.mxu0 0
        %814 = vmatpush1.bf16.msra.mxu0 %v800
        %815 = vmatprep.subr.bf16.mxu0 0
        %816 = vmatpush1.bf16.msra.mxu0 %v801
        %817 = vmatprep.subr.bf16.mxu0 0
        %818 = vmatpush1.bf16.msra.mxu0 0
        %819 = vmatprep.subr.bf16.mxu0 0
        %820 = vmatpush1.bf16.msra.mxu0 0
        %821 = vmatprep.subr.bf16.mxu0 0
        %822 = vmatpush1.bf16.msra.mxu0 0
        %823 = vmatprep.subr.bf16.mxu0 0
        %824 = vmatpush1.bf16.msra.mxu0 0
        %825 = vmatprep.subr.bf16.mxu0 0
        %826 = vmatpush1.bf16.msra.mxu0 0
        %827 = vmatprep.subr.bf16.mxu0 0
        %828 = vmatpush1.bf16.msra.mxu0 0
        %829 = vmatprep.subr.bf16.mxu0 0
        %830 = vmatpush1.bf16.msra.mxu0 0
        %831 = vmatprep.subr.bf16.mxu0 0
        %832 = vmatpush1.bf16.msra.mxu0 0
        %833 = vmatprep.subr.bf16.mxu0 0
        %834 = vmatpush1.bf16.msra.mxu0 0
        %835 = vmatprep.subr.bf16.mxu0 0
        %836 = vmatpush1.bf16.msra.mxu0 0
        %837 = vmatprep.subr.bf16.mxu0 0
        %838 = vmatpush1.bf16.msra.mxu0 0
        %839 = vmatprep.subr.bf16.mxu0 0
        %840 = vmatpush1.bf16.msra.mxu0 0
        %841 = vmatprep.mubr.bf16.mxu0 0
        %842 = vmatmul.mubr.bf16.gmra.mrb[0].mxu0 %v807
        %v843 = vpop.f32.mrb[0].mxu0
        %v844 = vadd.f32 %v776, %v843
        %v845 = vpop.f32.mrb[0].mxu0
        %v846 = vpop.f32.mrb[0].mxu0
        %v847 = vadd.f32 %v779, %v846
        %v848 = vpop.f32.mrb[0].mxu0
        %849 = vdwg.mxu0
        %s850 = scalar_lea.vmem %s598, 32
        %v851 = vld [vmem:[%s850] sm:$0xff]
        %v852 = vld [vmem:[%s850 + $0x8] sm:$0xff]
        %v853 = vsel %vm618, %v851, 0.0
        %854 = vadd.xlane.f32.xlu0 %v853
        %v855 = vpop.xlane.xlu0 %854
        %v856 = vsel %vm618, %v852, 0.0
        %857 = vadd.xlane.f32.xlu0 %v856
        %v858 = vpop.xlane.xlu0 %857
        %v859 = vmul.f32 %v855, %v625
        %v860 = vmul.f32 %v858, %v625
        %v861 = vsub.f32 %v851, %v859
        %v862 = vsub.f32 %v852, %v860
        %v863 = vmul.f32 %v861, %v861
        %v864 = vmul.f32 %v862, %v862
        %v865 = vsel %vm618, %v863, 0.0
        %866 = vadd.xlane.f32.xlu0 %v865
        %v867 = vpop.xlane.xlu0 %866
        %v868 = vsel %vm618, %v864, 0.0
        %869 = vadd.xlane.f32.xlu0 %v868
        %v870 = vpop.xlane.xlu0 %869
        %v871 = vmul.f32 %v867, %v625
        %v872 = vmul.f32 %v870, %v625
        %v873 = vadd.f32 %v871, 1e-06
        %v874 = vadd.f32 %v872, 1e-06
        %v875 = vrsqrt.pop %v873
        %v876 = vrsqrt.pop %v874
        %v877 = vmul.f32 %v861, %v875
        %v878 = vmul.f32 %v862, %v876
        %v879 = vmul.f32 %v877, %v650
        %v880 = vmul.f32 %v878, %v650
        %v881 = vadd.f32 %v879, %v658
        %v882 = vadd.f32 %v880, %v658
        %v883 = vpack.c.bf16 %v882, %v881
        %s884 = scalar_lea.vmem %s4, 64
        %v885 = vld [vmem:[%s884] sm:$0xf]
        %v886 = vld [vmem:[%s884 + $0x4] sm:$0xf]
        %v887 = vld [vmem:[%s884 + $0x8] sm:$0xf]
        %v888 = vld [vmem:[%s884 + $0xc] sm:$0xf]
        %v889 = vld [vmem:[%s884 + $0x10] sm:$0xf]
        %v890 = vld [vmem:[%s884 + $0x14] sm:$0xf]
        %v891 = vld [vmem:[%s884 + $0x18] sm:$0xf]
        %v892 = vld [vmem:[%s884 + $0x1c] sm:$0xf]
        %v901 = vunpack.c.l.b16 %v885
        %v902 = vunpack.c.l.b16 %v886
        %v903 = vunpack.c.l.b16 %v887
        %v904 = vunpack.c.l.b16 %v888
        %v905 = vunpack.c.l.b16 %v889
        %v906 = vunpack.c.l.b16 %v890
        %v907 = vunpack.c.l.b16 %v891
        %v908 = vunpack.c.l.b16 %v892
        %v909 = vpack.c.b16 %v902, %v901
        %v910 = vpack.c.b16 %v904, %v903
        %v911 = vpack.c.b16 %v906, %v905
        %v912 = vpack.c.b16 %v908, %v907
        %v918 = vsel %vm618, %v883, 0
        %920 = vmatprep.subr.bf16.mxu0 0
        %921 = vmatpush1.bf16.msra.mxu0 %v909
        %922 = vmatprep.subr.bf16.mxu0 0
        %923 = vmatpush1.bf16.msra.mxu0 %v910
        %924 = vmatprep.subr.bf16.mxu0 0
        %925 = vmatpush1.bf16.msra.mxu0 %v911
        %926 = vmatprep.subr.bf16.mxu0 0
        %927 = vmatpush1.bf16.msra.mxu0 %v912
        %928 = vmatprep.subr.bf16.mxu0 0
        %929 = vmatpush1.bf16.msra.mxu0 0
        %930 = vmatprep.subr.bf16.mxu0 0
        %931 = vmatpush1.bf16.msra.mxu0 0
        %932 = vmatprep.subr.bf16.mxu0 0
        %933 = vmatpush1.bf16.msra.mxu0 0
        %934 = vmatprep.subr.bf16.mxu0 0
        %935 = vmatpush1.bf16.msra.mxu0 0
        %936 = vmatprep.subr.bf16.mxu0 0
        %937 = vmatpush1.bf16.msra.mxu0 0
        %938 = vmatprep.subr.bf16.mxu0 0
        %939 = vmatpush1.bf16.msra.mxu0 0
        %940 = vmatprep.subr.bf16.mxu0 0
        %941 = vmatpush1.bf16.msra.mxu0 0
        %942 = vmatprep.subr.bf16.mxu0 0
        %943 = vmatpush1.bf16.msra.mxu0 0
        %944 = vmatprep.subr.bf16.mxu0 0
        %945 = vmatpush1.bf16.msra.mxu0 0
        %946 = vmatprep.subr.bf16.mxu0 0
        %947 = vmatpush1.bf16.msra.mxu0 0
        %948 = vmatprep.subr.bf16.mxu0 0
        %949 = vmatpush1.bf16.msra.mxu0 0
        %950 = vmatprep.subr.bf16.mxu0 0
        %951 = vmatpush1.bf16.msra.mxu0 0
        %952 = vmatprep.mubr.bf16.mxu0 0
        %953 = vmatmul.mubr.bf16.gmra.mrb[0].mxu0 %v918
        %v954 = vpop.f32.mrb[0].mxu0
        %v955 = vadd.f32 0.0, %v954
        %v956 = vpop.f32.mrb[0].mxu0
        %v957 = vpop.f32.mrb[0].mxu0
        %v958 = vadd.f32 0.0, %v957
        %v959 = vpop.f32.mrb[0].mxu0
        %960 = vdwg.mxu0
        %v961 = vadd.f32 %v844, %v955
        %v962 = vadd.f32 %v847, %v958
        %s963 = scalar_lea.vmem %s598, 48
        %v964 = vld [vmem:[%s963] sm:$0xff]
        %v965 = vld [vmem:[%s963 + $0x8] sm:$0xff]
        %v966 = vsel %vm618, %v964, 0.0
        %967 = vadd.xlane.f32.xlu0 %v966
        %v968 = vpop.xlane.xlu0 %967
        %v969 = vsel %vm618, %v965, 0.0
        %970 = vadd.xlane.f32.xlu0 %v969
        %v971 = vpop.xlane.xlu0 %970
        %v972 = vmul.f32 %v968, %v625
        %v973 = vmul.f32 %v971, %v625
        %v974 = vsub.f32 %v964, %v972
        %v975 = vsub.f32 %v965, %v973
        %v976 = vmul.f32 %v974, %v974
        %v977 = vmul.f32 %v975, %v975
        %v978 = vsel %vm618, %v976, 0.0
        %979 = vadd.xlane.f32.xlu0 %v978
        %v980 = vpop.xlane.xlu0 %979
        %v981 = vsel %vm618, %v977, 0.0
        %982 = vadd.xlane.f32.xlu0 %v981
        %v983 = vpop.xlane.xlu0 %982
        %v984 = vmul.f32 %v980, %v625
        %v985 = vmul.f32 %v983, %v625
        %v986 = vadd.f32 %v984, 1e-06
        %v987 = vadd.f32 %v985, 1e-06
        %v988 = vrsqrt.pop %v986
        %v989 = vrsqrt.pop %v987
        %v990 = vmul.f32 %v974, %v988
        %v991 = vmul.f32 %v975, %v989
        %v992 = vmul.f32 %v990, %v650
        %v993 = vmul.f32 %v991, %v650
        %v994 = vadd.f32 %v992, %v658
        %v995 = vadd.f32 %v993, %v658
        %v996 = vpack.c.bf16 %v995, %v994
        %s997 = scalar_lea.vmem %s4, 96
        %v998 = vld [vmem:[%s997] sm:$0xf]
        %v999 = vld [vmem:[%s997 + $0x4] sm:$0xf]
        %v1000 = vld [vmem:[%s997 + $0x8] sm:$0xf]
        %v1001 = vld [vmem:[%s997 + $0xc] sm:$0xf]
        %v1002 = vld [vmem:[%s997 + $0x10] sm:$0xf]
        %v1003 = vld [vmem:[%s997 + $0x14] sm:$0xf]
        %v1004 = vld [vmem:[%s997 + $0x18] sm:$0xf]
        %v1005 = vld [vmem:[%s997 + $0x1c] sm:$0xf]
        %v1014 = vunpack.c.l.b16 %v998
        %v1015 = vunpack.c.l.b16 %v999
        %v1016 = vunpack.c.l.b16 %v1000
        %v1017 = vunpack.c.l.b16 %v1001
        %v1018 = vunpack.c.l.b16 %v1002
        %v1019 = vunpack.c.l.b16 %v1003
        %v1020 = vunpack.c.l.b16 %v1004
        %v1021 = vunpack.c.l.b16 %v1005
        %v1022 = vpack.c.b16 %v1015, %v1014
        %v1023 = vpack.c.b16 %v1017, %v1016
        %v1024 = vpack.c.b16 %v1019, %v1018
        %v1025 = vpack.c.b16 %v1021, %v1020
        %v1031 = vsel %vm618, %v996, 0
        %1033 = vmatprep.subr.bf16.mxu0 0
        %1034 = vmatpush1.bf16.msra.mxu0 %v1022
        %1035 = vmatprep.subr.bf16.mxu0 0
        %1036 = vmatpush1.bf16.msra.mxu0 %v1023
        %1037 = vmatprep.subr.bf16.mxu0 0
        %1038 = vmatpush1.bf16.msra.mxu0 %v1024
        %1039 = vmatprep.subr.bf16.mxu0 0
        %1040 = vmatpush1.bf16.msra.mxu0 %v1025
        %1041 = vmatprep.subr.bf16.mxu0 0
        %1042 = vmatpush1.bf16.msra.mxu0 0
        %1043 = vmatprep.subr.bf16.mxu0 0
        %1044 = vmatpush1.bf16.msra.mxu0 0
        %1045 = vmatprep.subr.bf16.mxu0 0
        %1046 = vmatpush1.bf16.msra.mxu0 0
        %1047 = vmatprep.subr.bf16.mxu0 0
        %1048 = vmatpush1.bf16.msra.mxu0 0
        %1049 = vmatprep.subr.bf16.mxu0 0
        %1050 = vmatpush1.bf16.msra.mxu0 0
        %1051 = vmatprep.subr.bf16.mxu0 0
        %1052 = vmatpush1.bf16.msra.mxu0 0
        %1053 = vmatprep.subr.bf16.mxu0 0
        %1054 = vmatpush1.bf16.msra.mxu0 0
        %1055 = vmatprep.subr.bf16.mxu0 0
        %1056 = vmatpush1.bf16.msra.mxu0 0
        %1057 = vmatprep.subr.bf16.mxu0 0
        %1058 = vmatpush1.bf16.msra.mxu0 0
        %1059 = vmatprep.subr.bf16.mxu0 0
        %1060 = vmatpush1.bf16.msra.mxu0 0
        %1061 = vmatprep.subr.bf16.mxu0 0
        %1062 = vmatpush1.bf16.msra.mxu0 0
        %1063 = vmatprep.subr.bf16.mxu0 0
        %1064 = vmatpush1.bf16.msra.mxu0 0
        %1065 = vmatprep.mubr.bf16.mxu0 0
        %1066 = vmatmul.mubr.bf16.gmra.mrb[0].mxu0 %v1031
        %v1067 = vpop.f32.mrb[0].mxu0
        %v1068 = vadd.f32 0.0, %v1067
        %v1069 = vpop.f32.mrb[0].mxu0
        %v1070 = vpop.f32.mrb[0].mxu0
        %v1071 = vadd.f32 0.0, %v1070
        %v1072 = vpop.f32.mrb[0].mxu0
        %1073 = vdwg.mxu0
        %v1074 = vadd.f32 %v961, %v1068
        %v1075 = vadd.f32 %v962, %v1071
        %v1076 = vld [vmem:[%s5] sm:$0x1]
        %v1078 = vlaneseq
        %v1079 = vshrl.u32 %v1078, 7
        %v1080 = vsub.s32 0, %v1079
        %v1081 = vrot.slane %v1076, %v1080
        %v1083 = vadd.f32 %v1074, %v1081
        %v1084 = vadd.f32 %v1075, %v1081
        %v1085 = vld [vmem:[%s6] sm:$0x1]
        %v1086 = vld [vmem:[%s7] sm:$0x1]
        %v1087 = vsel %vm618, %v1083, 0.0
        %1088 = vadd.xlane.f32.xlu0 %v1087
        %v1089 = vpop.xlane.xlu0 %1088
        %v1090 = vsel %vm618, %v1084, 0.0
        %1091 = vadd.xlane.f32.xlu0 %v1090
        %v1092 = vpop.xlane.xlu0 %1091
        %v1093 = vmul.f32 %v1089, %v625
        %v1094 = vmul.f32 %v1092, %v625
        %v1095 = vsub.f32 %v1083, %v1093
        %v1096 = vsub.f32 %v1084, %v1094
        %v1097 = vmul.f32 %v1095, %v1095
        %v1098 = vmul.f32 %v1096, %v1096
        %v1099 = vsel %vm618, %v1097, 0.0
        %1100 = vadd.xlane.f32.xlu0 %v1099
        %v1101 = vpop.xlane.xlu0 %1100
        %v1102 = vsel %vm618, %v1098, 0.0
        %1103 = vadd.xlane.f32.xlu0 %v1102
        %v1104 = vpop.xlane.xlu0 %1103
        %v1105 = vmul.f32 %v1101, %v625
        %v1106 = vmul.f32 %v1104, %v625
        %v1107 = vadd.f32 %v1105, 1e-05
        %v1108 = vadd.f32 %v1106, 1e-05
        %v1109 = vrsqrt.pop %v1107
        %v1110 = vrsqrt.pop %v1108
        %v1111 = vmul.f32 %v1095, %v1109
        %v1112 = vmul.f32 %v1096, %v1110
        %v1114 = vlaneseq
        %v1115 = vshrl.u32 %v1114, 7
        %v1116 = vsub.s32 0, %v1115
        %v1117 = vrot.slane %v1085, %v1116
        %v1119 = vmul.f32 %v1111, %v1117
        %v1120 = vmul.f32 %v1112, %v1117
        %v1122 = vlaneseq
        %v1123 = vshrl.u32 %v1122, 7
        %v1124 = vsub.s32 0, %v1123
        %v1125 = vrot.slane %v1086, %v1124
        %v1127 = vadd.f32 %v1119, %v1125
        %v1128 = vadd.f32 %v1120, %v1125
        %v1129 = vpack.c.bf16 %v1128, %v1127
        %v1130 = vpack.c.bf16 %v613, %v613
        %v1131 = vld [vmem:[%s10] sm:$0xf]
        %v1132 = vld [vmem:[%s10 + $0x4] sm:$0xf]
        %v1133 = vld [vmem:[%s10 + $0x8] sm:$0xf]
        %v1134 = vld [vmem:[%s10 + $0xc] sm:$0xf]
        %v1135 = vld [vmem:[%s10 + $0x10] sm:$0xf]
        %v1136 = vld [vmem:[%s10 + $0x14] sm:$0xf]
        %v1137 = vld [vmem:[%s10 + $0x18] sm:$0xf]
        %v1138 = vld [vmem:[%s10 + $0x1c] sm:$0xf]
        %v1139 = vld [vmem:[%s11] sm:$0x1]
        %v1141 = vlaneseq
        %v1142 = vshrl.u32 %v1141, 7
        %v1143 = vsub.s32 0, %v1142
        %v1144 = vrot.slane %v1139, %v1143
        %v1154 = vunpack.c.l.b16 %v1131
        %v1155 = vunpack.c.l.b16 %v1132
        %v1156 = vunpack.c.l.b16 %v1133
        %v1157 = vunpack.c.l.b16 %v1134
        %v1158 = vunpack.c.l.b16 %v1135
        %v1159 = vunpack.c.l.b16 %v1136
        %v1160 = vunpack.c.l.b16 %v1137
        %v1161 = vunpack.c.l.b16 %v1138
        %v1162 = vpack.c.b16 %v1155, %v1154
        %v1163 = vpack.c.b16 %v1157, %v1156
        %v1164 = vpack.c.b16 %v1159, %v1158
        %v1165 = vpack.c.b16 %v1161, %v1160
        %v1171 = vsel %vm618, %v1129, 0
        %v1174 = vsel %vm618, %v1130, 0
        %1176 = vmatprep.subr.bf16.mxu0 0
        %1177 = vmatpush1.bf16.msra.mxu0 %v1162
        %1178 = vmatprep.subr.bf16.mxu0 0
        %1179 = vmatpush1.bf16.msra.mxu0 %v1163
        %1180 = vmatprep.subr.bf16.mxu0 0
        %1181 = vmatpush1.bf16.msra.mxu0 %v1164
        %1182 = vmatprep.subr.bf16.mxu0 0
        %1183 = vmatpush1.bf16.msra.mxu0 %v1165
        %1184 = vmatprep.subr.bf16.mxu0 0
        %1185 = vmatpush1.bf16.msra.mxu0 0
        %1186 = vmatprep.subr.bf16.mxu0 0
        %1187 = vmatpush1.bf16.msra.mxu0 0
        %1188 = vmatprep.subr.bf16.mxu0 0
        %1189 = vmatpush1.bf16.msra.mxu0 0
        %1190 = vmatprep.subr.bf16.mxu0 0
        %1191 = vmatpush1.bf16.msra.mxu0 0
        %1192 = vmatprep.subr.bf16.mxu0 0
        %1193 = vmatpush1.bf16.msra.mxu0 0
        %1194 = vmatprep.subr.bf16.mxu0 0
        %1195 = vmatpush1.bf16.msra.mxu0 0
        %1196 = vmatprep.subr.bf16.mxu0 0
        %1197 = vmatpush1.bf16.msra.mxu0 0
        %1198 = vmatprep.subr.bf16.mxu0 0
        %1199 = vmatpush1.bf16.msra.mxu0 0
        %1200 = vmatprep.subr.bf16.mxu0 0
        %1201 = vmatpush1.bf16.msra.mxu0 0
        %1202 = vmatprep.subr.bf16.mxu0 0
        %1203 = vmatpush1.bf16.msra.mxu0 0
        %1204 = vmatprep.subr.bf16.mxu0 0
        %1205 = vmatpush1.bf16.msra.mxu0 0
        %1206 = vmatprep.subr.bf16.mxu0 0
        %1207 = vmatpush1.bf16.msra.mxu0 0
        %1208 = vmatprep.mubr.bf16.mxu0 0
        %1209 = vmatmul.mubr.bf16.gmra.mrb[0].mxu0 %v1171
        %v1210 = vpop.f32.mrb[0].mxu0
        %v1211 = vadd.f32 %v1144, %v1210
        %v1212 = vpop.f32.mrb[0].mxu0
        %v1213 = vpop.f32.mrb[0].mxu0
        %v1214 = vadd.f32 %v1144, %v1213
        %v1215 = vpop.f32.mrb[0].mxu0
        %1216 = vmatprep.mubr.bf16.mxu0 0
        %1217 = vmatmul.mubr.bf16.gmra.mrb[0].mxu0 %v1174
        %v1218 = vpop.f32.mrb[0].mxu0
        %v1219 = vadd.f32 %v1144, %v1218
        %v1220 = vpop.f32.mrb[0].mxu0
        %v1221 = vpop.f32.mrb[0].mxu0
        %v1222 = vpop.f32.mrb[0].mxu0
        %1223 = vdwg.mxu0
        %v1224 = vld [vmem:[%s12] sm:$0xf]
        %v1225 = vld [vmem:[%s12 + $0x4] sm:$0xf]
        %v1226 = vld [vmem:[%s12 + $0x8] sm:$0xf]
        %v1227 = vld [vmem:[%s12 + $0xc] sm:$0xf]
        %v1228 = vld [vmem:[%s12 + $0x10] sm:$0xf]
        %v1229 = vld [vmem:[%s12 + $0x14] sm:$0xf]
        %v1230 = vld [vmem:[%s12 + $0x18] sm:$0xf]
        %v1231 = vld [vmem:[%s12 + $0x1c] sm:$0xf]
        %v1232 = vld [vmem:[%s13] sm:$0x1]
        %v1234 = vlaneseq
        %v1235 = vshrl.u32 %v1234, 7
        %v1236 = vsub.s32 0, %v1235
        %v1237 = vrot.slane %v1232, %v1236
        %v1247 = vunpack.c.l.b16 %v1224
        %v1248 = vunpack.c.l.b16 %v1225
        %v1249 = vunpack.c.l.b16 %v1226
        %v1250 = vunpack.c.l.b16 %v1227
        %v1251 = vunpack.c.l.b16 %v1228
        %v1252 = vunpack.c.l.b16 %v1229
        %v1253 = vunpack.c.l.b16 %v1230
        %v1254 = vunpack.c.l.b16 %v1231
        %v1255 = vpack.c.b16 %v1248, %v1247
        %v1256 = vpack.c.b16 %v1250, %v1249
        %v1257 = vpack.c.b16 %v1252, %v1251
        %v1258 = vpack.c.b16 %v1254, %v1253
        %1263 = vmatprep.subr.bf16.mxu0 0
        %1264 = vmatpush1.bf16.msra.mxu0 %v1255
        %1265 = vmatprep.subr.bf16.mxu0 0
        %1266 = vmatpush1.bf16.msra.mxu0 %v1256
        %1267 = vmatprep.subr.bf16.mxu0 0
        %1268 = vmatpush1.bf16.msra.mxu0 %v1257
        %1269 = vmatprep.subr.bf16.mxu0 0
        %1270 = vmatpush1.bf16.msra.mxu0 %v1258
        %1271 = vmatprep.subr.bf16.mxu0 0
        %1272 = vmatpush1.bf16.msra.mxu0 0
        %1273 = vmatprep.subr.bf16.mxu0 0
        %1274 = vmatpush1.bf16.msra.mxu0 0
        %1275 = vmatprep.subr.bf16.mxu0 0
        %1276 = vmatpush1.bf16.msra.mxu0 0
        %1277 = vmatprep.subr.bf16.mxu0 0
        %1278 = vmatpush1.bf16.msra.mxu0 0
        %1279 = vmatprep.subr.bf16.mxu0 0
        %1280 = vmatpush1.bf16.msra.mxu0 0
        %1281 = vmatprep.subr.bf16.mxu0 0
        %1282 = vmatpush1.bf16.msra.mxu0 0
        %1283 = vmatprep.subr.bf16.mxu0 0
        %1284 = vmatpush1.bf16.msra.mxu0 0
        %1285 = vmatprep.subr.bf16.mxu0 0
        %1286 = vmatpush1.bf16.msra.mxu0 0
        %1287 = vmatprep.subr.bf16.mxu0 0
        %1288 = vmatpush1.bf16.msra.mxu0 0
        %1289 = vmatprep.subr.bf16.mxu0 0
        %1290 = vmatpush1.bf16.msra.mxu0 0
        %1291 = vmatprep.subr.bf16.mxu0 0
        %1292 = vmatpush1.bf16.msra.mxu0 0
        %1293 = vmatprep.subr.bf16.mxu0 0
        %1294 = vmatpush1.bf16.msra.mxu0 0
        %1295 = vmatprep.mubr.bf16.mxu0 0
        %1296 = vmatmul.mubr.bf16.gmra.mrb[0].mxu0 %v1171
        %v1297 = vpop.f32.mrb[0].mxu0
        %v1298 = vadd.f32 %v1237, %v1297
        %v1299 = vpop.f32.mrb[0].mxu0
        %v1300 = vpop.f32.mrb[0].mxu0
        %v1301 = vadd.f32 %v1237, %v1300
        %v1302 = vpop.f32.mrb[0].mxu0
        %1303 = vmatprep.mubr.bf16.mxu0 0
        %1304 = vmatmul.mubr.bf16.gmra.mrb[0].mxu0 %v1174
        %v1305 = vpop.f32.mrb[0].mxu0
        %v1306 = vadd.f32 %v1237, %v1305
        %v1307 = vpop.f32.mrb[0].mxu0
        %v1308 = vpop.f32.mrb[0].mxu0
        %v1309 = vpop.f32.mrb[0].mxu0
        %1310 = vdwg.mxu0
        %v1311 = vpack.c.bf16 %v1214, %v1211
        %v1312 = vpack.c.bf16 %v1219, %v1219
        %v1315 = vunpack.c.l.b16 %v1311
        %v1316 = vunpack.c.h.b16 %v1311
        %v1317 = vunpack.c.l.b16 %v1312
        %v1318 = vpack.c.b16 %v1315, %v1315
        %v1319 = vpack.c.b16 %v1316, %v1316
        %v1320 = vpack.c.b16 %v1317, %v1317
        %vm1324 = vcmask 519168
        %1325 = vst.msk [vmem:[%s606] sm:$0xf] %vm1324, %v1318
        %1326 = vst.msk [vmem:[%s606 + $0x4] sm:$0xf] %vm1324, %v1319
        %vm1327 = vcmask 516096
        %vm1328 = vsmask.f32 256
        %vm1329 = vmand %vm1327, %vm1328
        %v1330 = vld [vmem:[%s606 + $0x8] sm:$0x1]
        %v1331 = vsel %vm1329, %v1320, %v1330
        %1332 = vst [vmem:[%s606 + $0x8] sm:$0x1] %v1331
        %v1333 = vpack.c.bf16 %v1301, %v1298
        %v1334 = vpack.c.bf16 %v1306, %v1306
        %v1337 = vunpack.c.l.b16 %v1333
        %v1338 = vunpack.c.h.b16 %v1333
        %v1339 = vunpack.c.l.b16 %v1334
        %v1340 = vpack.c.b16 %v1337, %v1337
        %v1341 = vpack.c.b16 %v1338, %v1338
        %v1342 = vpack.c.b16 %v1339, %v1339
        %1346 = vst.msk [vmem:[%s611] sm:$0xf] %vm1324, %v1340
        %1347 = vst.msk [vmem:[%s611 + $0x4] sm:$0xf] %vm1324, %v1341
        %v1348 = vld [vmem:[%s611 + $0x8] sm:$0x1]
        %v1349 = vsel %vm1329, %v1342, %v1348
        %1350 = vst [vmem:[%s611 + $0x8] sm:$0x1] %v1349
        %v1351 = vld [vmem:[%s8] sm:$0xf]
        %v1352 = vld [vmem:[%s8 + $0x4] sm:$0xf]
        %v1353 = vld [vmem:[%s8 + $0x8] sm:$0xf]
        %v1354 = vld [vmem:[%s8 + $0xc] sm:$0xf]
        %v1355 = vld [vmem:[%s8 + $0x10] sm:$0xf]
        %v1356 = vld [vmem:[%s8 + $0x14] sm:$0xf]
        %v1357 = vld [vmem:[%s8 + $0x18] sm:$0xf]
        %v1358 = vld [vmem:[%s8 + $0x1c] sm:$0xf]
        %v1359 = vld [vmem:[%s9] sm:$0x1]
        %v1368 = vunpack.c.l.b16 %v1351
        %v1369 = vunpack.c.l.b16 %v1352
        %v1370 = vunpack.c.l.b16 %v1353
        %v1371 = vunpack.c.l.b16 %v1354
        %v1372 = vunpack.c.l.b16 %v1355
        %v1373 = vunpack.c.l.b16 %v1356
        %v1374 = vunpack.c.l.b16 %v1357
        %v1375 = vunpack.c.l.b16 %v1358
        %v1376 = vpack.c.b16 %v1369, %v1368
        %v1377 = vpack.c.b16 %v1371, %v1370
        %v1378 = vpack.c.b16 %v1373, %v1372
        %v1379 = vpack.c.b16 %v1375, %v1374
        %1384 = vmatprep.subr.bf16.mxu0 0
        %1385 = vmatpush1.bf16.msra.mxu0 %v1376
        %1386 = vmatprep.subr.bf16.mxu0 0
        %1387 = vmatpush1.bf16.msra.mxu0 %v1377
        %1388 = vmatprep.subr.bf16.mxu0 0
        %1389 = vmatpush1.bf16.msra.mxu0 %v1378
        %1390 = vmatprep.subr.bf16.mxu0 0
        %1391 = vmatpush1.bf16.msra.mxu0 %v1379
        %1392 = vmatprep.subr.bf16.mxu0 0
        %1393 = vmatpush1.bf16.msra.mxu0 0
        %1394 = vmatprep.subr.bf16.mxu0 0
        %1395 = vmatpush1.bf16.msra.mxu0 0
        %1396 = vmatprep.subr.bf16.mxu0 0
        %1397 = vmatpush1.bf16.msra.mxu0 0
        %1398 = vmatprep.subr.bf16.mxu0 0
        %1399 = vmatpush1.bf16.msra.mxu0 0
        %1400 = vmatprep.subr.bf16.mxu0 0
        %1401 = vmatpush1.bf16.msra.mxu0 0
        %1402 = vmatprep.subr.bf16.mxu0 0
        %1403 = vmatpush1.bf16.msra.mxu0 0
        %1404 = vmatprep.subr.bf16.mxu0 0
        %1405 = vmatpush1.bf16.msra.mxu0 0
        %1406 = vmatprep.subr.bf16.mxu0 0
        %1407 = vmatpush1.bf16.msra.mxu0 0
        %1408 = vmatprep.subr.bf16.mxu0 0
        %1409 = vmatpush1.bf16.msra.mxu0 0
        %1410 = vmatprep.subr.bf16.mxu0 0
        %1411 = vmatpush1.bf16.msra.mxu0 0
        %1412 = vmatprep.subr.bf16.mxu0 0
        %1413 = vmatpush1.bf16.msra.mxu0 0
        %1414 = vmatprep.subr.bf16.mxu0 0
        %1415 = vmatpush1.bf16.msra.mxu0 0
        %1416 = vmatprep.mubr.bf16.mxu0 0
        %1417 = vmatmul.mubr.bf16.gmra.mrb[0].mxu0 %v1174
        %v1418 = vpop.f32.mrb[0].mxu0
        %v1419 = vadd.f32 %v1359, %v1418
        %v1420 = vpop.f32.mrb[0].mxu0
        %v1421 = vpop.f32.mrb[0].mxu0
        %v1422 = vpop.f32.mrb[0].mxu0
        %1423 = vdwg.mxu0
        %v1424 = vld [vmem:[%s14] sm:$0xf]
        %v1425 = vld [vmem:[%s14 + $0x4] sm:$0xf]
        %v1426 = vld [vmem:[%s14 + $0x8] sm:$0xf]
        %v1427 = vld [vmem:[%s14 + $0xc] sm:$0xf]
        %v1428 = vld [vmem:[%s14 + $0x10] sm:$0xf]
        %v1429 = vld [vmem:[%s14 + $0x14] sm:$0xf]
        %v1430 = vld [vmem:[%s14 + $0x18] sm:$0xf]
        %v1431 = vld [vmem:[%s14 + $0x1c] sm:$0xf]
        %v1432 = vpack.c.bf16 %v1419, %v1419
        %vm1433 = vcmask 261120
        %v1435 = vsel %vm1433, %v1432, 0
        %v1438 = vsel %vm1433, %v1311, 0
        %v1441 = vsel %vm1433, %v1312, 0
        %1443 = vmatprep.subr.bf16.mxu0 0
        %1444 = vmatpush1.bf16.xpose.msra.mxu0 %v1438
        %1445 = vmatprep.subr.bf16.mxu0 0
        %1446 = vmatpush1.bf16.xpose.msra.mxu0 %v1441
        %1447 = vmatprep.subr.bf16.mxu0 0
        %1448 = vmatpush1.bf16.xpose.msra.mxu0 0
        %1449 = vmatprep.subr.bf16.mxu0 0
        %1450 = vmatpush1.bf16.xpose.msra.mxu0 0
        %1451 = vmatprep.subr.bf16.mxu0 0
        %1452 = vmatpush1.bf16.xpose.msra.mxu0 0
        %1453 = vmatprep.subr.bf16.mxu0 0
        %1454 = vmatpush1.bf16.xpose.msra.mxu0 0
        %1455 = vmatprep.subr.bf16.mxu0 0
        %1456 = vmatpush1.bf16.xpose.msra.mxu0 0
        %1457 = vmatprep.subr.bf16.mxu0 0
        %1458 = vmatpush1.bf16.xpose.msra.mxu0 0
        %1459 = vmatprep.subr.bf16.mxu0 0
        %1460 = vmatpush1.bf16.xpose.msra.mxu0 0
        %1461 = vmatprep.subr.bf16.mxu0 0
        %1462 = vmatpush1.bf16.xpose.msra.mxu0 0
        %1463 = vmatprep.subr.bf16.mxu0 0
        %1464 = vmatpush1.bf16.xpose.msra.mxu0 0
        %1465 = vmatprep.subr.bf16.mxu0 0
        %1466 = vmatpush1.bf16.xpose.msra.mxu0 0
        %1467 = vmatprep.subr.bf16.mxu0 0
        %1468 = vmatpush1.bf16.xpose.msra.mxu0 0
        %1469 = vmatprep.subr.bf16.mxu0 0
        %1470 = vmatpush1.bf16.xpose.msra.mxu0 0
        %1471 = vmatprep.subr.bf16.mxu0 0
        %1472 = vmatpush1.bf16.xpose.msra.mxu0 0
        %1473 = vmatprep.subr.bf16.mxu0 0
        %1474 = vmatpush1.bf16.xpose.msra.mxu0 0
        %1475 = vmatprep.mubr.bf16.mxu0 0
        %1476 = vmatmul.mubr.bf16.gmra.mrb[0].mxu0 %v1435
        %v1477 = vpop.f32.mrb[0].mxu0
        %v1478 = vadd.f32 0.0, %v1477
        %v1479 = vpop.f32.mrb[0].mxu0
        %v1480 = vpop.f32.mrb[0].mxu0
        %v1481 = vpop.f32.mrb[0].mxu0
        %1482 = vdwg.mxu0
        %vm1483 = vcmask 131072
        %v1484 = vsel %vm1483, %v1478, -inf
        %1485 = vmax.xlane.f32.xlu0 %v1484
        %v1486 = vpop.xlane.xlu0 %1485
        %v1487 = vsub.f32 %v1478, %v1486
        %v1488 = vmul.f32 %v1487, 1.442695
        %v1489 = vpow.pop %v1488
        %v1490 = vsel %vm1483, %v1489, 0.0
        %1491 = vadd.xlane.f32.xlu0 %v1490
        %v1492 = vpop.xlane.xlu0 %1491
        %v1493 = vpack.c.bf16 %v1489, %v1489
        %vm1494 = vcmask 138240
        %v1496 = vsel %vm1494, %v1493, 0
        %vm1498 = vcmask 1040384
        %v1499 = vsel 0, 4294967295, 65535
        %v1500 = vsel %vm1498, %v1499, 0
        %v1502 = vand.u32 %v1334, %v1500
        %1504 = vmatprep.subr.bf16.mxu0 0
        %1505 = vmatpush1.bf16.msra.mxu0 %v1333
        %1506 = vmatprep.subr.bf16.mxu0 0
        %1507 = vmatpush1.bf16.msra.mxu0 %v1502
        %1508 = vmatprep.subr.bf16.mxu0 0
        %1509 = vmatpush1.bf16.msra.mxu0 0
        %1510 = vmatprep.subr.bf16.mxu0 0
        %1511 = vmatpush1.bf16.msra.mxu0 0
        %1512 = vmatprep.subr.bf16.mxu0 0
        %1513 = vmatpush1.bf16.msra.mxu0 0
        %1514 = vmatprep.subr.bf16.mxu0 0
        %1515 = vmatpush1.bf16.msra.mxu0 0
        %1516 = vmatprep.subr.bf16.mxu0 0
        %1517 = vmatpush1.bf16.msra.mxu0 0
        %1518 = vmatprep.subr.bf16.mxu0 0
        %1519 = vmatpush1.bf16.msra.mxu0 0
        %1520 = vmatprep.subr.bf16.mxu0 0
        %1521 = vmatpush1.bf16.msra.mxu0 0
        %1522 = vmatprep.subr.bf16.mxu0 0
        %1523 = vmatpush1.bf16.msra.mxu0 0
        %1524 = vmatprep.subr.bf16.mxu0 0
        %1525 = vmatpush1.bf16.msra.mxu0 0
        %1526 = vmatprep.subr.bf16.mxu0 0
        %1527 = vmatpush1.bf16.msra.mxu0 0
        %1528 = vmatprep.subr.bf16.mxu0 0
        %1529 = vmatpush1.bf16.msra.mxu0 0
        %1530 = vmatprep.subr.bf16.mxu0 0
        %1531 = vmatpush1.bf16.msra.mxu0 0
        %1532 = vmatprep.subr.bf16.mxu0 0
        %1533 = vmatpush1.bf16.msra.mxu0 0
        %1534 = vmatprep.subr.bf16.mxu0 0
        %1535 = vmatpush1.bf16.msra.mxu0 0
        %1536 = vmatprep.mubr.bf16.mxu0 0
        %1537 = vmatmul.mubr.bf16.gmra.mrb[0].mxu0 %v1496
        %v1538 = vpop.f32.mrb[0].mxu0
        %v1539 = vadd.f32 0.0, %v1538
        %v1540 = vpop.f32.mrb[0].mxu0
        %v1541 = vpop.f32.mrb[0].mxu0
        %v1542 = vpop.f32.mrb[0].mxu0
        %1543 = vdwg.mxu0
        %v1544 = vrcp.pop %v1492
        %v1545 = vmul.f32 %v1539, %v1544
        %v1546 = vpack.c.bf16 %v1545, %v1545
        %1548 = vrot.lane.b32.xlu0 %v1432, 96
        %v1549 = vpop.permute.xlu0 %1548
        %1550 = vrot.lane.b32.xlu0 %v1311, 96
        %v1551 = vpop.permute.xlu0 %1550
        %1552 = vrot.lane.b32.xlu0 %v1312, 96
        %v1553 = vpop.permute.xlu0 %1552
        %v1555 = vsel %vm1433, %v1549, 0
        %v1558 = vsel %vm1433, %v1551, 0
        %v1561 = vsel %vm1433, %v1553, 0
        %1563 = vmatprep.subr.bf16.mxu0 0
        %1564 = vmatpush1.bf16.xpose.msra.mxu0 %v1558
        %1565 = vmatprep.subr.bf16.mxu0 0
        %1566 = vmatpush1.bf16.xpose.msra.mxu0 %v1561
        %1567 = vmatprep.subr.bf16.mxu0 0
        %1568 = vmatpush1.bf16.xpose.msra.mxu0 0
        %1569 = vmatprep.subr.bf16.mxu0 0
        %1570 = vmatpush1.bf16.xpose.msra.mxu0 0
        %1571 = vmatprep.subr.bf16.mxu0 0
        %1572 = vmatpush1.bf16.xpose.msra.mxu0 0
        %1573 = vmatprep.subr.bf16.mxu0 0
        %1574 = vmatpush1.bf16.xpose.msra.mxu0 0
        %1575 = vmatprep.subr.bf16.mxu0 0
        %1576 = vmatpush1.bf16.xpose.msra.mxu0 0
        %1577 = vmatprep.subr.bf16.mxu0 0
        %1578 = vmatpush1.bf16.xpose.msra.mxu0 0
        %1579 = vmatprep.subr.bf16.mxu0 0
        %1580 = vmatpush1.bf16.xpose.msra.mxu0 0
        %1581 = vmatprep.subr.bf16.mxu0 0
        %1582 = vmatpush1.bf16.xpose.msra.mxu0 0
        %1583 = vmatprep.subr.bf16.mxu0 0
        %1584 = vmatpush1.bf16.xpose.msra.mxu0 0
        %1585 = vmatprep.subr.bf16.mxu0 0
        %1586 = vmatpush1.bf16.xpose.msra.mxu0 0
        %1587 = vmatprep.subr.bf16.mxu0 0
        %1588 = vmatpush1.bf16.xpose.msra.mxu0 0
        %1589 = vmatprep.subr.bf16.mxu0 0
        %1590 = vmatpush1.bf16.xpose.msra.mxu0 0
        %1591 = vmatprep.subr.bf16.mxu0 0
        %1592 = vmatpush1.bf16.xpose.msra.mxu0 0
        %1593 = vmatprep.subr.bf16.mxu0 0
        %1594 = vmatpush1.bf16.xpose.msra.mxu0 0
        %1595 = vmatprep.mubr.bf16.mxu0 0
        %1596 = vmatmul.mubr.bf16.gmra.mrb[0].mxu0 %v1555
        %v1597 = vpop.f32.mrb[0].mxu0
        %v1598 = vadd.f32 0.0, %v1597
        %v1599 = vpop.f32.mrb[0].mxu0
        %v1600 = vpop.f32.mrb[0].mxu0
        %v1601 = vpop.f32.mrb[0].mxu0
        %1602 = vdwg.mxu0
        %v1603 = vsel %vm1483, %v1598, -inf
        %1604 = vmax.xlane.f32.xlu0 %v1603
        %v1605 = vpop.xlane.xlu0 %1604
        %v1606 = vsub.f32 %v1598, %v1605
        %v1607 = vmul.f32 %v1606, 1.442695
        %v1608 = vpow.pop %v1607
        %v1609 = vsel %vm1483, %v1608, 0.0
        %1610 = vadd.xlane.f32.xlu0 %v1609
        %v1611 = vpop.xlane.xlu0 %1610
        %v1612 = vpack.c.bf16 %v1608, %v1608
        %1613 = vrot.lane.b32.xlu0 %v1333, 96
        %v1614 = vpop.permute.xlu0 %1613
        %1615 = vrot.lane.b32.xlu0 %v1334, 96
        %v1616 = vpop.permute.xlu0 %1615
        %v1619 = vsel %vm1494, %v1612, 0
        %v1622 = vand.u32 %v1616, %v1500
        %1624 = vmatprep.subr.bf16.mxu0 0
        %1625 = vmatpush1.bf16.msra.mxu0 %v1614
        %1626 = vmatprep.subr.bf16.mxu0 0
        %1627 = vmatpush1.bf16.msra.mxu0 %v1622
        %1628 = vmatprep.subr.bf16.mxu0 0
        %1629 = vmatpush1.bf16.msra.mxu0 0
        %1630 = vmatprep.subr.bf16.mxu0 0
        %1631 = vmatpush1.bf16.msra.mxu0 0
        %1632 = vmatprep.subr.bf16.mxu0 0
        %1633 = vmatpush1.bf16.msra.mxu0 0
        %1634 = vmatprep.subr.bf16.mxu0 0
        %1635 = vmatpush1.bf16.msra.mxu0 0
        %1636 = vmatprep.subr.bf16.mxu0 0
        %1637 = vmatpush1.bf16.msra.mxu0 0
        %1638 = vmatprep.subr.bf16.mxu0 0
        %1639 = vmatpush1.bf16.msra.mxu0 0
        %1640 = vmatprep.subr.bf16.mxu0 0
        %1641 = vmatpush1.bf16.msra.mxu0 0
        %1642 = vmatprep.subr.bf16.mxu0 0
        %1643 = vmatpush1.bf16.msra.mxu0 0
        %1644 = vmatprep.subr.bf16.mxu0 0
        %1645 = vmatpush1.bf16.msra.mxu0 0
        %1646 = vmatprep.subr.bf16.mxu0 0
        %1647 = vmatpush1.bf16.msra.mxu0 0
        %1648 = vmatprep.subr.bf16.mxu0 0
        %1649 = vmatpush1.bf16.msra.mxu0 0
        %1650 = vmatprep.subr.bf16.mxu0 0
        %1651 = vmatpush1.bf16.msra.mxu0 0
        %1652 = vmatprep.subr.bf16.mxu0 0
        %1653 = vmatpush1.bf16.msra.mxu0 0
        %1654 = vmatprep.subr.bf16.mxu0 0
        %1655 = vmatpush1.bf16.msra.mxu0 0
        %1656 = vmatprep.mubr.bf16.mxu0 0
        %1657 = vmatmul.mubr.bf16.gmra.mrb[0].mxu0 %v1619
        %v1658 = vpop.f32.mrb[0].mxu0
        %v1659 = vadd.f32 0.0, %v1658
        %v1660 = vpop.f32.mrb[0].mxu0
        %v1661 = vpop.f32.mrb[0].mxu0
        %v1662 = vpop.f32.mrb[0].mxu0
        %1663 = vdwg.mxu0
        %v1664 = vrcp.pop %v1611
        %v1665 = vmul.f32 %v1659, %v1664
        %v1666 = vpack.c.bf16 %v1665, %v1665
        %v1671 = vunpack.c.l.b16 %v1428
        %v1672 = vunpack.c.l.b16 %v1429
        %v1673 = vunpack.c.l.b16 %v1430
        %v1674 = vunpack.c.l.b16 %v1431
        %v1675 = vpack.c.b16 %v1672, %v1671
        %v1676 = vpack.c.b16 %v1674, %v1673
        %v1680 = vsel %vm1433, %v1666, 0
        %1682 = vmatprep.subr.bf16.mxu0 0
        %1683 = vmatpush1.bf16.msra.mxu0 %v1675
        %1684 = vmatprep.subr.bf16.mxu0 0
        %1685 = vmatpush1.bf16.msra.mxu0 %v1676
        %1686 = vmatprep.subr.bf16.mxu0 0
        %1687 = vmatpush1.bf16.msra.mxu0 0
        %1688 = vmatprep.subr.bf16.mxu0 0
        %1689 = vmatpush1.bf16.msra.mxu0 0
        %1690 = vmatprep.subr.bf16.mxu0 0
        %1691 = vmatpush1.bf16.msra.mxu0 0
        %1692 = vmatprep.subr.bf16.mxu0 0
        %1693 = vmatpush1.bf16.msra.mxu0 0
        %1694 = vmatprep.subr.bf16.mxu0 0
        %1695 = vmatpush1.bf16.msra.mxu0 0
        %1696 = vmatprep.subr.bf16.mxu0 0
        %1697 = vmatpush1.bf16.msra.mxu0 0
        %1698 = vmatprep.subr.bf16.mxu0 0
        %1699 = vmatpush1.bf16.msra.mxu0 0
        %1700 = vmatprep.subr.bf16.mxu0 0
        %1701 = vmatpush1.bf16.msra.mxu0 0
        %1702 = vmatprep.subr.bf16.mxu0 0
        %1703 = vmatpush1.bf16.msra.mxu0 0
        %1704 = vmatprep.subr.bf16.mxu0 0
        %1705 = vmatpush1.bf16.msra.mxu0 0
        %1706 = vmatprep.subr.bf16.mxu0 0
        %1707 = vmatpush1.bf16.msra.mxu0 0
        %1708 = vmatprep.subr.bf16.mxu0 0
        %1709 = vmatpush1.bf16.msra.mxu0 0
        %1710 = vmatprep.subr.bf16.mxu0 0
        %1711 = vmatpush1.bf16.msra.mxu0 0
        %1712 = vmatprep.subr.bf16.mxu0 0
        %1713 = vmatpush1.bf16.msra.mxu0 0
        %1714 = vmatprep.mubr.bf16.mxu0 0
        %1715 = vmatmul.mubr.bf16.gmra.mrb[0].mxu0 %v1680
        %v1716 = vpop.f32.mrb[0].mxu0
        %v1717 = vadd.f32 0.0, %v1716
        %v1718 = vpop.f32.mrb[0].mxu0
        %v1719 = vpop.f32.mrb[0].mxu0
        %v1720 = vpop.f32.mrb[0].mxu0
        %1721 = vdwg.mxu0
        %v1726 = vunpack.c.l.b16 %v1424
        %v1727 = vunpack.c.l.b16 %v1425
        %v1728 = vunpack.c.l.b16 %v1426
        %v1729 = vunpack.c.l.b16 %v1427
        %v1730 = vpack.c.b16 %v1727, %v1726
        %v1731 = vpack.c.b16 %v1729, %v1728
        %v1735 = vsel %vm1433, %v1546, 0
        %1737 = vmatprep.subr.bf16.mxu0 0
        %1738 = vmatpush1.bf16.msra.mxu0 %v1730
        %1739 = vmatprep.subr.bf16.mxu0 0
        %1740 = vmatpush1.bf16.msra.mxu0 %v1731
        %1741 = vmatprep.subr.bf16.mxu0 0
        %1742 = vmatpush1.bf16.msra.mxu0 0
        %1743 = vmatprep.subr.bf16.mxu0 0
        %1744 = vmatpush1.bf16.msra.mxu0 0
        %1745 = vmatprep.subr.bf16.mxu0 0
        %1746 = vmatpush1.bf16.msra.mxu0 0
        %1747 = vmatprep.subr.bf16.mxu0 0
        %1748 = vmatpush1.bf16.msra.mxu0 0
        %1749 = vmatprep.subr.bf16.mxu0 0
        %1750 = vmatpush1.bf16.msra.mxu0 0
        %1751 = vmatprep.subr.bf16.mxu0 0
        %1752 = vmatpush1.bf16.msra.mxu0 0
        %1753 = vmatprep.subr.bf16.mxu0 0
        %1754 = vmatpush1.bf16.msra.mxu0 0
        %1755 = vmatprep.subr.bf16.mxu0 0
        %1756 = vmatpush1.bf16.msra.mxu0 0
        %1757 = vmatprep.subr.bf16.mxu0 0
        %1758 = vmatpush1.bf16.msra.mxu0 0
        %1759 = vmatprep.subr.bf16.mxu0 0
        %1760 = vmatpush1.bf16.msra.mxu0 0
        %1761 = vmatprep.subr.bf16.mxu0 0
        %1762 = vmatpush1.bf16.msra.mxu0 0
        %1763 = vmatprep.subr.bf16.mxu0 0
        %1764 = vmatpush1.bf16.msra.mxu0 0
        %1765 = vmatprep.subr.bf16.mxu0 0
        %1766 = vmatpush1.bf16.msra.mxu0 0
        %1767 = vmatprep.subr.bf16.mxu0 0
        %1768 = vmatpush1.bf16.msra.mxu0 0
        %1769 = vmatprep.mubr.bf16.mxu0 0
        %1770 = vmatmul.mubr.bf16.gmra.mrb[0].mxu0 %v1735
        %v1771 = vpop.f32.mrb[0].mxu0
        %v1772 = vadd.f32 %v1717, %v1771
        %v1773 = vpop.f32.mrb[0].mxu0
        %v1774 = vpop.f32.mrb[0].mxu0
        %v1775 = vpop.f32.mrb[0].mxu0
        %1776 = vdwg.mxu0
        %v1777 = vld [vmem:[%s15] sm:$0x1]
        %v1778 = vadd.f32 %v1772, %v1777
        %vm1779 = vcmask 516096
        %1780 = vst.msk [vmem:[%s593] sm:$0x1] %vm1779, %v1778
        %p1781 = scmp.lt.s32.totalorder %s33, 1
        %s1782 = scalar_select %p1781, %s33, 1
        %s1783 = smul.addr %s1782, 3
        %s1784 = smul.addr %s1783, 4
        %s1785 = scalar_lea.vmem %s16, %s1784
        %p1786 = scmp.lt.s32.totalorder %s33, 1
        %s1787 = scalar_select %p1786, %s33, 1
        %s1788 = smul.addr %s1787, 3
        %s1789 = smul.addr %s1788, 4
        %s1790 = scalar_lea.vmem %s17, %s1789
        %s1791 = sand.u32 %s439, 1
        %s1792 = scalar_lea.sflag [#allocation3], %s1791
        %s1793 = sand.u32 %s439, 1
        %s1794 = scalar_lea.vmem [#allocation2], %s1793
        // Predicated region
        $region85: #{_lambda_.3} parent=83 // pred_check
          %p1795 = pneg %p397
        $region86: #{_lambda_.3} parent=83 // pred_check_branch
          %1797 = sbr.rel (%p1795) target = $region88
        $region87: #{_lambda_.3} parent=83 // pred_region
          _
        $region88: #{_lambda_.3} parent=83 // pred_fallthru
          _
        // Predicated region
        $region89: #{_lambda_.3} parent=83 // pred_check
          %p1798 = pneg %p423
        $region90: #{_lambda_.3} parent=83 // pred_check_branch
          %1800 = sbr.rel (%p1798) target = $region92
        $region91: #{_lambda_.3} parent=83 // pred_region
          _
        $region92: #{_lambda_.3} parent=83 // pred_fallthru
          _
        // Predicated region
        $region93: #{_lambda_.3} parent=83 // pred_check
          %p1801 = pneg %p449
        $region94: #{_lambda_.3} parent=83 // pred_check_branch
          %1803 = sbr.rel (%p1801) target = $region96
        $region95: #{_lambda_.3} parent=83 // pred_region
          %s1805 = ssub.s32 16, 16
          %1806 = vsyncadd %s1792, %s1805
          %s1807 = smul.addr %s33, 16
          %s1808 = scalar_lea.hbm %s18, %s1807
          %s1810 = sshll.u32 %s1794, 4
          %s1811 = int_to_ptr.vmem [resolvable:$true] %s1810
          %1813 = dma.vmem_to_hbm [thread:$0]  %s1811, 16, %s1808, %s1792
        $region96: #{_lambda_.3} parent=83 // pred_fallthru
          _
      $region84: #{_lambda_.3} parent=5 // pred_fallthru
        _
      %p1814 = scmp.le.s32.totalorder 2, %s28
      // Predicated region
      $region97: #{_lambda_.3} parent=5 // pred_check
        %p1815 = pneg %p1814
      $region98: #{_lambda_.3} parent=5 // pred_check_branch
        %1817 = sbr.rel (%p1815) target = $region100
      $region99: #{_lambda_.3} parent=5 // pred_region
        %s1818 = ssub.s32 %s28, 2
        // Predicated region
        $region101: #{_lambda_.3} parent=99 // pred_check
          %p1819 = pneg %p403
        $region102: #{_lambda_.3} parent=99 // pred_check_branch
          %1821 = sbr.rel (%p1819) target = $region104
        $region103: #{_lambda_.3} parent=99 // pred_region
          %p1822 = scmp.lt.s32.totalorder %s34, 1
          %s1823 = scalar_select %p1822, %s34, 1
          %s1824 = smul.addr %s1823, 3
          %s1825 = smul.addr %s1824, 4
          %s1826 = scalar_lea.vmem %s16, %s1825
        $region104: #{_lambda_.3} parent=99 // pred_fallthru
          _
        // Predicated region
        $region105: #{_lambda_.3} parent=99 // pred_check
          %p1827 = pneg %p429
        $region106: #{_lambda_.3} parent=99 // pred_check_branch
          %1829 = sbr.rel (%p1827) target = $region108
        $region107: #{_lambda_.3} parent=99 // pred_region
          %p1830 = scmp.lt.s32.totalorder %s34, 1
          %s1831 = scalar_select %p1830, %s34, 1
          %s1832 = smul.addr %s1831, 3
          %s1833 = smul.addr %s1832, 4
          %s1834 = scalar_lea.vmem %s17, %s1833
        $region108: #{_lambda_.3} parent=99 // pred_fallthru
          _
        // Predicated region
        $region109: #{_lambda_.3} parent=99 // pred_check
          %p1835 = pneg %p455
        $region110: #{_lambda_.3} parent=99 // pred_check_branch
          %1837 = sbr.rel (%p1835) target = $region112
        $region111: #{_lambda_.3} parent=99 // pred_region
          %s1838 = sand.u32 %s440, 1
          %s1839 = scalar_lea.sflag [#allocation3], %s1838
          %s1840 = sand.u32 %s440, 1
          %s1841 = scalar_lea.vmem [#allocation2], %s1840
          %1842 = dma.done %s1839, 16
        $region112: #{_lambda_.3} parent=99 // pred_fallthru
          _
      $region100: #{_lambda_.3} parent=5 // pred_fallthru
        _
    $region6: #{_lambda_.3} parent=1 // loop_footer
      %s32 = sadd.s32 1, %s28
    $region7: #{_lambda_.3} parent=1 // loop_footer_branch
      %27 = sbr.rel target = $region3
    $region8: #{_lambda_.3} parent=1 // loop_exit
      _
    %1843 = vsyncpa [#allocation3], 1
    %s1844 = scalar_lea.sflag [#allocation3], 1
    %1845 = vsyncpa %s1844, 1

// kernel: _lambda_.5
$region0: #{_lambda_.5}
  #allocation0 [shape = 'u32[]', space=smem, size = 0x4, offset = 0x4, fixed_abs, tag = 'smem constant byte address 0x4 - core index']
  #allocation1 [shape = 'u32[144,128]{1,0:T(1,128)}', space=vmem, size = 0x12000, scoped, tag = 'internal scratch']
  #allocation2 [shape = 'f32[16,64]{1,0:T(8,128)}', space=vmem, size = 0x2000, scoped, tag = 'scratch operand']
  #allocation3 [shape = 'f32[96,256]{1,0:T(8,128)}', space=vmem, size = 0x18000, scoped, tag = 'scratch operand']
  #allocation4 [shape = 's32[2]{0}', space=sflag, size = 0x8, scoped, tag = 'scratch operand']
  #allocation7 [shape = 's32[]', space=sflag, size = 0x4, offset = 0, fixed_abs, tag = 'sflag constant byte address 0x0 - dummy sync flag']
  #allocation8 [shape = 's32[]', space=sflag, size = 0x4, offset = 0, fixed_abs, tag = 'sflag constant byte address 0x0 - dummy sync flag']
  %s0 = inlined_call_operand.vmem [shape: f32[2,64,64], index: 0, kind: input, shape index: {}, may-alias: {0,1}]
  %s1 = inlined_call_operand.vmem [shape: f32[2,64,64], index: 1, kind: input, shape index: {}, may-alias: {0,1}]
  %s2 = inlined_call_operand.vmem [shape: f32[1,64], index: 2, kind: input, shape index: {}]
  %s3 = inlined_call_operand.vmem [shape: f32[1,64], index: 3, kind: input, shape index: {}]
  %s4 = inlined_call_operand.vmem [shape: bf16[64,256], index: 4, kind: input, shape index: {}]
  %s5 = inlined_call_operand.vmem [shape: f32[1,256], index: 5, kind: input, shape index: {}]
  %s6 = inlined_call_operand.vmem [shape: f32[9,1,256], index: 6, kind: input, shape index: {}]
  %s7 = inlined_call_operand.vmem [shape: f32[1,256], index: 7, kind: input, shape index: {}]
  %s8 = inlined_call_operand.vmem [shape: bf16[256,64], index: 8, kind: input, shape index: {}]
  %s9 = inlined_call_operand.vmem [shape: f32[1,64], index: 9, kind: input, shape index: {}]
  %s10 = inlined_call_operand.hbm [shape: f32[2,64,64], index: 10, kind: output, shape index: {}]
  %s11 = sld [smem:[#allocation0]]
  $region157: #{_lambda_.5} parent=0
    _
  %s13 = ssub.s32 1, %s11
  %s14 = scalar_select 0, %s13, %s11
  $region1: #{_lambda_.5} parent=0
    #allocation5 [shape = 'u8[65536]{0}', space=vmem, size = 0x10000, scoped, tag = 'output window, operand 0']
    #allocation6 [shape = 's32[2]{0}', space=sflag, size = 0x8, scoped, tag = 'scoped memory for _lambda_.5']
    %15 = vsyncpa [#allocation6], 0
    %s16 = scalar_lea.sflag [#allocation6], 1
    %17 = vsyncpa %s16, 0
    loop: start=0, step=1, limit=4
    $region2: #{_lambda_.5} parent=1 // loop_pre_header
      _
    $region3: #{_lambda_.5} parent=1 // loop_header
      %s19 = sphi 0, %s23
      %p20 = scmp.ge.s32.totalorder %s19, 4
      %s26 = sphi 0, %s38
      %s27 = sphi 0, %s34
      %s28 = sphi 0, %s26
      %s29 = sphi 0, %s27
      %s30 = sphi 0, %s28
      %s31 = sphi 0, %s29
      %s43 = sphi 0, %s45
      %s46 = sphi 0, %s43
      %s47 = sphi 0, %s46
      %s63 = sphi 0, %s47
      %s67 = sphi 0, %s67
      %s69 = sphi 0, %s67
      %s70 = sphi 0, %s69
      %s84 = sphi 0, %s70
      %s88 = sphi 0, %s88
      %s90 = sphi 0, %s88
      %s91 = sphi 0, %s90
      %s105 = sphi 0, %s91
      %s109 = sphi 0, %s109
      %s111 = sphi 0, %s109
      %s112 = sphi 0, %s111
      %s126 = sphi 0, %s112
      %s130 = sphi 0, %s130
      %s132 = sphi 0, %s130
      %s133 = sphi 0, %s132
      %s147 = sphi 0, %s133
      %s151 = sphi 0, %s151
      %s153 = sphi 0, %s151
      %s154 = sphi 0, %s153
      %s168 = sphi 0, %s154
      %s172 = sphi 0, %s172
      %s174 = sphi 0, %s172
      %s175 = sphi 0, %s174
      %s189 = sphi 0, %s175
      %s193 = sphi 0, %s193
      %s195 = sphi 0, %s193
      %s196 = sphi 0, %s195
      %s210 = sphi 0, %s196
      %s214 = sphi 0, %s214
      %s216 = sphi 0, %s214
      %s217 = sphi 0, %s216
      %s231 = sphi 0, %s217
      %s239 = sphi 0, %s241
      %s242 = sphi 0, %s239
      %s243 = sphi 0, %s242
      %s259 = sphi 0, %s243
    $region4: #{_lambda_.5} parent=1 // loop_header_branch
      %22 = sbr.rel (%p20) target = $region8
    $region5: #{_lambda_.5} parent=1 // loop_body
      %s24 = ssub.s32 %s19, 1
      %s25 = ssub.s32 %s19, 2
      %s32 = sadd.s32 1, %s27
      %p33 = scmp.ge.s32.totalorder %s32, 1
      %s34 = scalar_select %p33, 0, %s32
      %s35 = sadd.s32 1, %s26
      %s36 = scalar_select %p33, %s35, %s26
      %p37 = scmp.ge.s32.totalorder %s36, 2
      %s38 = scalar_select %p37, 0, %s36
      %s39 = ssub.s32 %s26, %s38
      %s40 = ssub.s32 %s27, %s34
      %s41 = sor.u32 %s39, %s40
      %p42 = scmp.eq.s32.totalorder %s41, 0
      %s44 = sadd.s32 %s43, 1
      %s45 = scalar_select %p42, %s43, %s44
      %p48 = pneg %p42
      %p49 = scmp.eq.s32.totalorder %s19, 1
      %p50 = por %p48, %p49
      %p51 = scmp.ne.s32.totalorder %s43, %s46
      %p52 = scmp.eq.s32.totalorder %s19, 0
      %p53 = por %p51, %p52
      %p54 = scmp.ne.s32.totalorder %s43, %s46
      %p55 = scmp.eq.s32.totalorder %s24, 1
      %p56 = por %p54, %p55
      %p57 = scmp.ne.s32.totalorder %s46, %s47
      %p58 = scmp.eq.s32.totalorder %s24, 0
      %p59 = por %p57, %p58
      %p60 = scmp.ne.s32.totalorder %s46, %s47
      %p61 = scmp.eq.s32.totalorder %s25, 1
      %p62 = por %p60, %p61
      %p64 = scmp.ne.s32.totalorder %s47, %s63
      %p65 = scmp.eq.s32.totalorder %s25, 0
      %p66 = por %p64, %p65
      %s68 = sadd.s32 %s67, 1
      %p71 = scmp.eq.s32.totalorder %s19, 1
      %p72 = scmp.ne.s32.totalorder %s67, %s69
      %p73 = scmp.eq.s32.totalorder %s19, 0
      %p74 = por %p72, %p73
      %p75 = scmp.ne.s32.totalorder %s67, %s69
      %p76 = scmp.eq.s32.totalorder %s24, 1
      %p77 = por %p75, %p76
      %p78 = scmp.ne.s32.totalorder %s69, %s70
      %p79 = scmp.eq.s32.totalorder %s24, 0
      %p80 = por %p78, %p79
      %p81 = scmp.ne.s32.totalorder %s69, %s70
      %p82 = scmp.eq.s32.totalorder %s25, 1
      %p83 = por %p81, %p82
      %p85 = scmp.ne.s32.totalorder %s70, %s84
      %p86 = scmp.eq.s32.totalorder %s25, 0
      %p87 = por %p85, %p86
      %s89 = sadd.s32 %s88, 1
      %p92 = scmp.eq.s32.totalorder %s19, 1
      %p93 = scmp.ne.s32.totalorder %s88, %s90
      %p94 = scmp.eq.s32.totalorder %s19, 0
      %p95 = por %p93, %p94
      %p96 = scmp.ne.s32.totalorder %s88, %s90
      %p97 = scmp.eq.s32.totalorder %s24, 1
      %p98 = por %p96, %p97
      %p99 = scmp.ne.s32.totalorder %s90, %s91
      %p100 = scmp.eq.s32.totalorder %s24, 0
      %p101 = por %p99, %p100
      %p102 = scmp.ne.s32.totalorder %s90, %s91
      %p103 = scmp.eq.s32.totalorder %s25, 1
      %p104 = por %p102, %p103
      %p106 = scmp.ne.s32.totalorder %s91, %s105
      %p107 = scmp.eq.s32.totalorder %s25, 0
      %p108 = por %p106, %p107
      %s110 = sadd.s32 %s109, 1
      %p113 = scmp.eq.s32.totalorder %s19, 1
      %p114 = scmp.ne.s32.totalorder %s109, %s111
      %p115 = scmp.eq.s32.totalorder %s19, 0
      %p116 = por %p114, %p115
      %p117 = scmp.ne.s32.totalorder %s109, %s111
      %p118 = scmp.eq.s32.totalorder %s24, 1
      %p119 = por %p117, %p118
      %p120 = scmp.ne.s32.totalorder %s111, %s112
      %p121 = scmp.eq.s32.totalorder %s24, 0
      %p122 = por %p120, %p121
      %p123 = scmp.ne.s32.totalorder %s111, %s112
      %p124 = scmp.eq.s32.totalorder %s25, 1
      %p125 = por %p123, %p124
      %p127 = scmp.ne.s32.totalorder %s112, %s126
      %p128 = scmp.eq.s32.totalorder %s25, 0
      %p129 = por %p127, %p128
      %s131 = sadd.s32 %s130, 1
      %p134 = scmp.eq.s32.totalorder %s19, 1
      %p135 = scmp.ne.s32.totalorder %s130, %s132
      %p136 = scmp.eq.s32.totalorder %s19, 0
      %p137 = por %p135, %p136
      %p138 = scmp.ne.s32.totalorder %s130, %s132
      %p139 = scmp.eq.s32.totalorder %s24, 1
      %p140 = por %p138, %p139
      %p141 = scmp.ne.s32.totalorder %s132, %s133
      %p142 = scmp.eq.s32.totalorder %s24, 0
      %p143 = por %p141, %p142
      %p144 = scmp.ne.s32.totalorder %s132, %s133
      %p145 = scmp.eq.s32.totalorder %s25, 1
      %p146 = por %p144, %p145
      %p148 = scmp.ne.s32.totalorder %s133, %s147
      %p149 = scmp.eq.s32.totalorder %s25, 0
      %p150 = por %p148, %p149
      %s152 = sadd.s32 %s151, 1
      %p155 = scmp.eq.s32.totalorder %s19, 1
      %p156 = scmp.ne.s32.totalorder %s151, %s153
      %p157 = scmp.eq.s32.totalorder %s19, 0
      %p158 = por %p156, %p157
      %p159 = scmp.ne.s32.totalorder %s151, %s153
      %p160 = scmp.eq.s32.totalorder %s24, 1
      %p161 = por %p159, %p160
      %p162 = scmp.ne.s32.totalorder %s153, %s154
      %p163 = scmp.eq.s32.totalorder %s24, 0
      %p164 = por %p162, %p163
      %p165 = scmp.ne.s32.totalorder %s153, %s154
      %p166 = scmp.eq.s32.totalorder %s25, 1
      %p167 = por %p165, %p166
      %p169 = scmp.ne.s32.totalorder %s154, %s168
      %p170 = scmp.eq.s32.totalorder %s25, 0
      %p171 = por %p169, %p170
      %s173 = sadd.s32 %s172, 1
      %p176 = scmp.eq.s32.totalorder %s19, 1
      %p177 = scmp.ne.s32.totalorder %s172, %s174
      %p178 = scmp.eq.s32.totalorder %s19, 0
      %p179 = por %p177, %p178
      %p180 = scmp.ne.s32.totalorder %s172, %s174
      %p181 = scmp.eq.s32.totalorder %s24, 1
      %p182 = por %p180, %p181
      %p183 = scmp.ne.s32.totalorder %s174, %s175
      %p184 = scmp.eq.s32.totalorder %s24, 0
      %p185 = por %p183, %p184
      %p186 = scmp.ne.s32.totalorder %s174, %s175
      %p187 = scmp.eq.s32.totalorder %s25, 1
      %p188 = por %p186, %p187
      %p190 = scmp.ne.s32.totalorder %s175, %s189
      %p191 = scmp.eq.s32.totalorder %s25, 0
      %p192 = por %p190, %p191
      %s194 = sadd.s32 %s193, 1
      %p197 = scmp.eq.s32.totalorder %s19, 1
      %p198 = scmp.ne.s32.totalorder %s193, %s195
      %p199 = scmp.eq.s32.totalorder %s19, 0
      %p200 = por %p198, %p199
      %p201 = scmp.ne.s32.totalorder %s193, %s195
      %p202 = scmp.eq.s32.totalorder %s24, 1
      %p203 = por %p201, %p202
      %p204 = scmp.ne.s32.totalorder %s195, %s196
      %p205 = scmp.eq.s32.totalorder %s24, 0
      %p206 = por %p204, %p205
      %p207 = scmp.ne.s32.totalorder %s195, %s196
      %p208 = scmp.eq.s32.totalorder %s25, 1
      %p209 = por %p207, %p208
      %p211 = scmp.ne.s32.totalorder %s196, %s210
      %p212 = scmp.eq.s32.totalorder %s25, 0
      %p213 = por %p211, %p212
      %s215 = sadd.s32 %s214, 1
      %p218 = scmp.eq.s32.totalorder %s19, 1
      %p219 = scmp.ne.s32.totalorder %s214, %s216
      %p220 = scmp.eq.s32.totalorder %s19, 0
      %p221 = por %p219, %p220
      %p222 = scmp.ne.s32.totalorder %s214, %s216
      %p223 = scmp.eq.s32.totalorder %s24, 1
      %p224 = por %p222, %p223
      %p225 = scmp.ne.s32.totalorder %s216, %s217
      %p226 = scmp.eq.s32.totalorder %s24, 0
      %p227 = por %p225, %p226
      %p228 = scmp.ne.s32.totalorder %s216, %s217
      %p229 = scmp.eq.s32.totalorder %s25, 1
      %p230 = por %p228, %p229
      %p232 = scmp.ne.s32.totalorder %s217, %s231
      %p233 = scmp.eq.s32.totalorder %s25, 0
      %p234 = por %p232, %p233
      %s235 = ssub.s32 %s26, %s38
      %s236 = ssub.s32 %s27, %s34
      %s237 = sor.u32 %s235, %s236
      %p238 = scmp.eq.s32.totalorder %s237, 0
      %s240 = sadd.s32 %s239, 1
      %s241 = scalar_select %p238, %s239, %s240
      %p244 = pneg %p238
      %p245 = scmp.eq.s32.totalorder %s19, 1
      %p246 = por %p244, %p245
      %p247 = scmp.ne.s32.totalorder %s239, %s242
      %p248 = scmp.eq.s32.totalorder %s19, 0
      %p249 = por %p247, %p248
      %p250 = scmp.ne.s32.totalorder %s239, %s242
      %p251 = scmp.eq.s32.totalorder %s24, 1
      %p252 = por %p250, %p251
      %p253 = scmp.ne.s32.totalorder %s242, %s243
      %p254 = scmp.eq.s32.totalorder %s24, 0
      %p255 = por %p253, %p254
      %p256 = scmp.ne.s32.totalorder %s242, %s243
      %p257 = scmp.eq.s32.totalorder %s25, 1
      %p258 = por %p256, %p257
      %p260 = scmp.ne.s32.totalorder %s243, %s259
      %p261 = scmp.eq.s32.totalorder %s25, 0
      %p262 = por %p260, %p261
      %p263 = scmp.le.s32.totalorder 1, %s19
      %p264 = scmp.lt.s32.totalorder %s19, 3
      %p265 = pnand %p263, %p264
      %p266 = pneg %p265
      // Predicated region
      $region9: #{_lambda_.5} parent=5 // pred_check
        _
      $region10: #{_lambda_.5} parent=5 // pred_check_branch
        %268 = sbr.rel (%p265) target = $region12
      $region11: #{_lambda_.5} parent=5 // pred_region
        %s269 = ssub.s32 %s19, 1
        // Predicated region
        $region13: #{_lambda_.5} parent=11 // pred_check
          %p270 = pneg %p80
        $region14: #{_lambda_.5} parent=11 // pred_check_branch
          %272 = sbr.rel (%p270) target = $region16
        $region15: #{_lambda_.5} parent=11 // pred_region
          _
        $region16: #{_lambda_.5} parent=11 // pred_fallthru
          _
        // Predicated region
        $region17: #{_lambda_.5} parent=11 // pred_check
          %p273 = pneg %p101
        $region18: #{_lambda_.5} parent=11 // pred_check_branch
          %275 = sbr.rel (%p273) target = $region20
        $region19: #{_lambda_.5} parent=11 // pred_region
          _
        $region20: #{_lambda_.5} parent=11 // pred_fallthru
          _
        // Predicated region
        $region21: #{_lambda_.5} parent=11 // pred_check
          %p276 = pneg %p122
        $region22: #{_lambda_.5} parent=11 // pred_check_branch
          %278 = sbr.rel (%p276) target = $region24
        $region23: #{_lambda_.5} parent=11 // pred_region
          _
        $region24: #{_lambda_.5} parent=11 // pred_fallthru
          _
        // Predicated region
        $region25: #{_lambda_.5} parent=11 // pred_check
          %p279 = pneg %p143
        $region26: #{_lambda_.5} parent=11 // pred_check_branch
          %281 = sbr.rel (%p279) target = $region28
        $region27: #{_lambda_.5} parent=11 // pred_region
          _
        $region28: #{_lambda_.5} parent=11 // pred_fallthru
          _
        // Predicated region
        $region29: #{_lambda_.5} parent=11 // pred_check
          %p282 = pneg %p164
        $region30: #{_lambda_.5} parent=11 // pred_check_branch
          %284 = sbr.rel (%p282) target = $region32
        $region31: #{_lambda_.5} parent=11 // pred_region
          _
        $region32: #{_lambda_.5} parent=11 // pred_fallthru
          _
        // Predicated region
        $region33: #{_lambda_.5} parent=11 // pred_check
          %p285 = pneg %p185
        $region34: #{_lambda_.5} parent=11 // pred_check_branch
          %287 = sbr.rel (%p285) target = $region36
        $region35: #{_lambda_.5} parent=11 // pred_region
          _
        $region36: #{_lambda_.5} parent=11 // pred_fallthru
          _
        // Predicated region
        $region37: #{_lambda_.5} parent=11 // pred_check
          %p288 = pneg %p206
        $region38: #{_lambda_.5} parent=11 // pred_check_branch
          %290 = sbr.rel (%p288) target = $region40
        $region39: #{_lambda_.5} parent=11 // pred_region
          _
        $region40: #{_lambda_.5} parent=11 // pred_fallthru
          _
        // Predicated region
        $region41: #{_lambda_.5} parent=11 // pred_check
          %p291 = pneg %p227
        $region42: #{_lambda_.5} parent=11 // pred_check_branch
          %293 = sbr.rel (%p291) target = $region44
        $region43: #{_lambda_.5} parent=11 // pred_region
          _
        $region44: #{_lambda_.5} parent=11 // pred_fallthru
          _
      $region12: #{_lambda_.5} parent=5 // pred_fallthru
        _
      %p294 = scmp.lt.s32.totalorder %s19, 2
      // Predicated region
      $region45: #{_lambda_.5} parent=5 // pred_check
        %p295 = pneg %p294
      $region46: #{_lambda_.5} parent=5 // pred_check_branch
        %297 = sbr.rel (%p295) target = $region48
      $region47: #{_lambda_.5} parent=5 // pred_region
        // Predicated region
        $region49: #{_lambda_.5} parent=47 // pred_check
          %p298 = pneg %p53
        $region50: #{_lambda_.5} parent=47 // pred_check_branch
          %300 = sbr.rel (%p298) target = $region52
        $region51: #{_lambda_.5} parent=47 // pred_region
          %s301 = smul.u32 8, %s27
          %p302 = scmp.lt.s32.totalorder %s26, 1
          %s303 = scalar_select %p302, %s26, 1
          %p304 = scmp.lt.s32.totalorder %s301, 7
          %s305 = scalar_select %p304, %s301, 7
          %s306 = smul.addr %s303, 8
          %s307 = sadd.s32 %s305, %s306
          %s308 = smul.addr %s307, 8
          %s309 = scalar_lea.vmem %s0, %s308
          %s310 = smul.u32 8, %s27
        $region52: #{_lambda_.5} parent=47 // pred_fallthru
          _
      $region48: #{_lambda_.5} parent=5 // pred_fallthru
        _
      %p311 = scmp.le.s32.totalorder 1, %s19
      %p312 = scmp.lt.s32.totalorder %s19, 3
      %p313 = pnand %p311, %p312
      %p314 = pneg %p313
      // Predicated region
      $region53: #{_lambda_.5} parent=5 // pred_check
        _
      $region54: #{_lambda_.5} parent=5 // pred_check_branch
        %316 = sbr.rel (%p313) target = $region56
      $region55: #{_lambda_.5} parent=5 // pred_region
        %s317 = ssub.s32 %s19, 1
        %s318 = smul.u32 8, %s29
        %p319 = scmp.lt.s32.totalorder %s28, 1
        %s320 = scalar_select %p319, %s28, 1
        %p321 = scmp.lt.s32.totalorder %s318, 7
        %s322 = scalar_select %p321, %s318, 7
        %s323 = smul.addr %s320, 8
        %s324 = sadd.s32 %s322, %s323
        %s325 = smul.addr %s324, 8
        %s326 = scalar_lea.vmem %s0, %s325
        %p327 = pneg %p59
        %p328 = pneg %p56
        %p329 = pneg %p80
        %p330 = pneg %p77
        %p331 = pneg %p101
        %p332 = pneg %p98
        %p333 = pneg %p122
        %p334 = pneg %p119
        %p335 = pneg %p143
        %p336 = pneg %p140
        %p337 = pneg %p164
        %p338 = pneg %p161
        %p339 = pneg %p185
        %p340 = pneg %p182
        %p341 = pneg %p206
        %p342 = pneg %p203
        %p343 = pneg %p227
        %p344 = pneg %p224
        %p345 = pneg %p255
        %p346 = pneg %p252
        %s347 = sand.u32 %s242, 1
        %s348 = scalar_lea.sflag [#allocation6], %s347
        %s349 = sand.u32 %s242, 1
        %s350 = smul.addr %s349, 64
        %s351 = scalar_lea.vmem [#allocation5], %s350
        %s352 = smul.u32 8, %s29
        %p353 = scmp.lt.s32.totalorder %s28, 1
        %s354 = scalar_select %p353, %s28, 1
        %p355 = scmp.lt.s32.totalorder %s352, 7
        %s356 = scalar_select %p355, %s352, 7
        %s357 = smul.addr %s354, 8
        %s358 = sadd.s32 %s356, %s357
        %s359 = smul.addr %s358, 8
        %s360 = scalar_lea.vmem %s0, %s359
        %s361 = smul.u32 8, %s29
        %s362 = smul.u32 8, %s29
        %s364 = smul.u32 %s29, 64
        %p365 = scmp.gt.s32.totalorder %s29, 0
        // Predicated region
        $region57: #{_lambda_.5} parent=55 // pred_check
          %p366 = pneg %p365
        $region58: #{_lambda_.5} parent=55 // pred_check_branch
          %368 = sbr.rel (%p366) target = $region60
        $region59: #{_lambda_.5} parent=55 // pred_region
          %s369 = ssub.s32 %s364, 8
          %s370 = smul.u32 %s28, 64
          %s371 = sadd.s32 %s369, %s370
          %s372 = scalar_lea.vmem %s1, %s371
          %p374 = scmp.lt.u32.totalorder 8, 8
          %p375 = pneg %p374
          // Predicated region
          $region61: #{_lambda_.5} parent=59 // pred_check
            _
          $region62: #{_lambda_.5} parent=59 // pred_check_branch
            %377 = sbr.rel (%p374) target = $region64
          $region63: #{_lambda_.5} parent=59 // pred_region
            %s392 = sand.u32 8, 7
            %p393 = scmp.eq.s32.totalorder %s392, 0
            // Predicated region
            $region76: #{_lambda_.5} parent=63 // pred_check
              %p394 = pneg %p393
            $region77: #{_lambda_.5} parent=63 // pred_check_branch
              %396 = sbr.rel (%p394) target = $region79
            $region78: #{_lambda_.5} parent=63 // pred_region
              loop: start=0, step=1, limit=1
              $region80: #{_lambda_.5} parent=78 // loop_pre_header
                _
              $region81: #{_lambda_.5} parent=78 // loop_header
                %s398 = sphi 0, %s402
                %p399 = scmp.ge.s32.totalorder %s398, 1
                %s403 = sphi %s372, %s372
                %s404 = sphi [#allocation2], [#allocation2]
              $region82: #{_lambda_.5} parent=78 // loop_header_branch
                %401 = sbr.rel (%p399) target = $region86
              $region83: #{_lambda_.5} parent=78 // loop_body
                %v405 = vld [vmem:[%s403] sm:$0xff]
                %406 = vst [vmem:[%s404] sm:$0xff] %v405
              $region84: #{_lambda_.5} parent=78 // loop_footer
                %s402 = sadd.s32 1, %s398
              $region85: #{_lambda_.5} parent=78 // loop_footer_branch
                %397 = sbr.rel target = $region81
              $region86: #{_lambda_.5} parent=78 // loop_exit
                _
            $region79: #{_lambda_.5} parent=63 // pred_fallthru
              _
            %p407 = pneg %p393
            // Predicated region
            $region87: #{_lambda_.5} parent=63 // pred_check
              _
            $region88: #{_lambda_.5} parent=63 // pred_check_branch
              %409 = sbr.rel (%p393) target = $region90
            $region89: #{_lambda_.5} parent=63 // pred_region
              %s410 = sand.u32 8, 7
            $region90: #{_lambda_.5} parent=63 // pred_fallthru
              _
          $region64: #{_lambda_.5} parent=59 // pred_fallthru
            _
          // Predicated region
          $region65: #{_lambda_.5} parent=59 // pred_check
            %p378 = pneg %p374
          $region66: #{_lambda_.5} parent=59 // pred_check_branch
            %380 = sbr.rel (%p378) target = $region68
          $region67: #{_lambda_.5} parent=59 // pred_region
            %s381 = sshllo.u32 0, 8
            loop: start=0, step=1, limit=1
            $region69: #{_lambda_.5} parent=67 // loop_pre_header
              _
            $region70: #{_lambda_.5} parent=67 // loop_header
              %s383 = sphi 0, %s387
              %p384 = scmp.ge.s32.totalorder %s383, 1
              %s388 = sphi %s372, %s372
              %s389 = sphi [#allocation2], [#allocation2]
            $region71: #{_lambda_.5} parent=67 // loop_header_branch
              %386 = sbr.rel (%p384) target = $region75
            $region72: #{_lambda_.5} parent=67 // loop_body
              %v390 = vld [vmem:[%s388] sm:%s381]
              %391 = vst [vmem:[%s389] sm:%s381] %v390
            $region73: #{_lambda_.5} parent=67 // loop_footer
              %s387 = sadd.s32 1, %s383
            $region74: #{_lambda_.5} parent=67 // loop_footer_branch
              %382 = sbr.rel target = $region70
            $region75: #{_lambda_.5} parent=67 // loop_exit
              _
          $region68: #{_lambda_.5} parent=59 // pred_fallthru
            _
          // Predicated region
          $region91: #{_lambda_.5} parent=59 // pred_check
            _
          $region92: #{_lambda_.5} parent=59 // pred_check_branch
            %413 = sbr.rel (0) target = $region94
          $region93: #{_lambda_.5} parent=59 // pred_region
            %414 = vsyncadd [#allocation4], 128
          $region94: #{_lambda_.5} parent=59 // pred_fallthru
            _
        $region60: #{_lambda_.5} parent=55 // pred_fallthru
          _
        %p415 = scmp.lt.s32.totalorder %s29, 0
        // Predicated region
        $region95: #{_lambda_.5} parent=55 // pred_check
          %p416 = pneg %p415
        $region96: #{_lambda_.5} parent=55 // pred_check_branch
          %418 = sbr.rel (%p416) target = $region98
        $region97: #{_lambda_.5} parent=55 // pred_region
          %s419 = sadd.s32 %s364, 64
          %s420 = smul.u32 %s28, 64
          %s421 = sadd.s32 %s419, %s420
          %s422 = scalar_lea.vmem %s1, %s421
          %s423 = scalar_lea.vmem [#allocation2], 8
          %s424 = scalar_lea.sflag [#allocation4], 1
          %p426 = scmp.lt.u32.totalorder 8, 8
          %p427 = pneg %p426
          // Predicated region
          $region99: #{_lambda_.5} parent=97 // pred_check
            _
          $region100: #{_lambda_.5} parent=97 // pred_check_branch
            %429 = sbr.rel (%p426) target = $region102
          $region101: #{_lambda_.5} parent=97 // pred_region
            %s444 = sand.u32 8, 7
            %p445 = scmp.eq.s32.totalorder %s444, 0
            // Predicated region
            $region114: #{_lambda_.5} parent=101 // pred_check
              %p446 = pneg %p445
            $region115: #{_lambda_.5} parent=101 // pred_check_branch
              %448 = sbr.rel (%p446) target = $region117
            $region116: #{_lambda_.5} parent=101 // pred_region
              loop: start=0, step=1, limit=1
              $region118: #{_lambda_.5} parent=116 // loop_pre_header
                _
              $region119: #{_lambda_.5} parent=116 // loop_header
                %s450 = sphi 0, %s454
                %p451 = scmp.ge.s32.totalorder %s450, 1
                %s455 = sphi %s422, %s422
                %s456 = sphi %s423, %s423
              $region120: #{_lambda_.5} parent=116 // loop_header_branch
                %453 = sbr.rel (%p451) target = $region124
              $region121: #{_lambda_.5} parent=116 // loop_body
                %v457 = vld [vmem:[%s455] sm:$0xff]
                %458 = vst [vmem:[%s456] sm:$0xff] %v457
              $region122: #{_lambda_.5} parent=116 // loop_footer
                %s454 = sadd.s32 1, %s450
              $region123: #{_lambda_.5} parent=116 // loop_footer_branch
                %449 = sbr.rel target = $region119
              $region124: #{_lambda_.5} parent=116 // loop_exit
                _
            $region117: #{_lambda_.5} parent=101 // pred_fallthru
              _
            %p459 = pneg %p445
            // Predicated region
            $region125: #{_lambda_.5} parent=101 // pred_check
              _
            $region126: #{_lambda_.5} parent=101 // pred_check_branch
              %461 = sbr.rel (%p445) target = $region128
            $region127: #{_lambda_.5} parent=101 // pred_region
              %s462 = sand.u32 8, 7
            $region128: #{_lambda_.5} parent=101 // pred_fallthru
              _
          $region102: #{_lambda_.5} parent=97 // pred_fallthru
            _
          // Predicated region
          $region103: #{_lambda_.5} parent=97 // pred_check
            %p430 = pneg %p426
          $region104: #{_lambda_.5} parent=97 // pred_check_branch
            %432 = sbr.rel (%p430) target = $region106
          $region105: #{_lambda_.5} parent=97 // pred_region
            %s433 = sshllo.u32 0, 8
            loop: start=0, step=1, limit=1
            $region107: #{_lambda_.5} parent=105 // loop_pre_header
              _
            $region108: #{_lambda_.5} parent=105 // loop_header
              %s435 = sphi 0, %s439
              %p436 = scmp.ge.s32.totalorder %s435, 1
              %s440 = sphi %s422, %s422
              %s441 = sphi %s423, %s423
            $region109: #{_lambda_.5} parent=105 // loop_header_branch
              %438 = sbr.rel (%p436) target = $region113
            $region110: #{_lambda_.5} parent=105 // loop_body
              %v442 = vld [vmem:[%s440] sm:%s433]
              %443 = vst [vmem:[%s441] sm:%s433] %v442
            $region111: #{_lambda_.5} parent=105 // loop_footer
              %s439 = sadd.s32 1, %s435
            $region112: #{_lambda_.5} parent=105 // loop_footer_branch
              %434 = sbr.rel target = $region108
            $region113: #{_lambda_.5} parent=105 // loop_exit
              _
          $region106: #{_lambda_.5} parent=97 // pred_fallthru
            _
          // Predicated region
          $region129: #{_lambda_.5} parent=97 // pred_check
            _
          $region130: #{_lambda_.5} parent=97 // pred_check_branch
            %465 = sbr.rel (0) target = $region132
          $region131: #{_lambda_.5} parent=97 // pred_region
            %466 = vsyncadd %s424, 128
          $region132: #{_lambda_.5} parent=97 // pred_fallthru
            _
        $region98: #{_lambda_.5} parent=55 // pred_fallthru
          _
        %v467 = vld [vmem:[%s2] sm:$0x1]
        %v468 = vld [vmem:[%s3] sm:$0x1]
        %v469 = vld [vmem:[%s4] sm:$0xff]
        %v470 = vld [vmem:[%s4 + $0x8] sm:$0xff]
        %v471 = vld [vmem:[%s4 + $0x10] sm:$0xff]
        %v472 = vld [vmem:[%s4 + $0x18] sm:$0xff]
        %v473 = vld [vmem:[%s4 + $0x20] sm:$0xff]
        %v474 = vld [vmem:[%s4 + $0x28] sm:$0xff]
        %v475 = vld [vmem:[%s4 + $0x30] sm:$0xff]
        %v476 = vld [vmem:[%s4 + $0x38] sm:$0xff]
        %v477 = vld [vmem:[%s5] sm:$0x3]
        %v478 = vld [vmem:[%s360] sm:$0xff]
        %v479 = vld [vmem:[%s360 + $0x8] sm:$0xff]
        %v480 = vld [vmem:[%s360 + $0x10] sm:$0xff]
        %v481 = vld [vmem:[%s360 + $0x18] sm:$0xff]
        %v482 = vld [vmem:[%s360 + $0x20] sm:$0xff]
        %v483 = vld [vmem:[%s360 + $0x28] sm:$0xff]
        %v484 = vld [vmem:[%s360 + $0x30] sm:$0xff]
        %v485 = vld [vmem:[%s360 + $0x38] sm:$0xff]
        %vm486 = vcmask 523264
        %v487 = vsel %vm486, %v478, 0.0
        %488 = vadd.xlane.f32.xlu0 %v487
        %v489 = vpop.xlane.xlu0 %488
        %v490 = vsel %vm486, %v479, 0.0
        %491 = vadd.xlane.f32.xlu0 %v490
        %v492 = vpop.xlane.xlu0 %491
        %v493 = vsel %vm486, %v480, 0.0
        %494 = vadd.xlane.f32.xlu0 %v493
        %v495 = vpop.xlane.xlu0 %494
        %v496 = vsel %vm486, %v481, 0.0
        %497 = vadd.xlane.f32.xlu0 %v496
        %v498 = vpop.xlane.xlu0 %497
        %v499 = vsel %vm486, %v482, 0.0
        %500 = vadd.xlane.f32.xlu0 %v499
        %v501 = vpop.xlane.xlu0 %500
        %v502 = vsel %vm486, %v483, 0.0
        %503 = vadd.xlane.f32.xlu0 %v502
        %v504 = vpop.xlane.xlu0 %503
        %v505 = vsel %vm486, %v484, 0.0
        %506 = vadd.xlane.f32.xlu0 %v505
        %v507 = vpop.xlane.xlu0 %506
        %v508 = vsel %vm486, %v485, 0.0
        %509 = vadd.xlane.f32.xlu0 %v508
        %v510 = vpop.xlane.xlu0 %509
        %v511 = vrcp.pop 64.0
        %v512 = vmul.f32 %v489, %v511
        %v513 = vmul.f32 %v492, %v511
        %v514 = vmul.f32 %v495, %v511
        %v515 = vmul.f32 %v498, %v511
        %v516 = vmul.f32 %v501, %v511
        %v517 = vmul.f32 %v504, %v511
        %v518 = vmul.f32 %v507, %v511
        %v519 = vmul.f32 %v510, %v511
        %v520 = vsub.f32 %v478, %v512
        %v521 = vsub.f32 %v479, %v513
        %v522 = vsub.f32 %v480, %v514
        %v523 = vsub.f32 %v481, %v515
        %v524 = vsub.f32 %v482, %v516
        %v525 = vsub.f32 %v483, %v517
        %v526 = vsub.f32 %v484, %v518
        %v527 = vsub.f32 %v485, %v519
        %v528 = vmul.f32 %v520, %v520
        %v529 = vmul.f32 %v521, %v521
        %v530 = vmul.f32 %v522, %v522
        %v531 = vmul.f32 %v523, %v523
        %v532 = vmul.f32 %v524, %v524
        %v533 = vmul.f32 %v525, %v525
        %v534 = vmul.f32 %v526, %v526
        %v535 = vmul.f32 %v527, %v527
        %v536 = vsel %vm486, %v528, 0.0
        %537 = vadd.xlane.f32.xlu0 %v536
        %v538 = vpop.xlane.xlu0 %537
        %v539 = vsel %vm486, %v529, 0.0
        %540 = vadd.xlane.f32.xlu0 %v539
        %v541 = vpop.xlane.xlu0 %540
        %v542 = vsel %vm486, %v530, 0.0
        %543 = vadd.xlane.f32.xlu0 %v542
        %v544 = vpop.xlane.xlu0 %543
        %v545 = vsel %vm486, %v531, 0.0
        %546 = vadd.xlane.f32.xlu0 %v545
        %v547 = vpop.xlane.xlu0 %546
        %v548 = vsel %vm486, %v532, 0.0
        %549 = vadd.xlane.f32.xlu0 %v548
        %v550 = vpop.xlane.xlu0 %549
        %v551 = vsel %vm486, %v533, 0.0
        %552 = vadd.xlane.f32.xlu0 %v551
        %v553 = vpop.xlane.xlu0 %552
        %v554 = vsel %vm486, %v534, 0.0
        %555 = vadd.xlane.f32.xlu0 %v554
        %v556 = vpop.xlane.xlu0 %555
        %v557 = vsel %vm486, %v535, 0.0
        %558 = vadd.xlane.f32.xlu0 %v557
        %v559 = vpop.xlane.xlu0 %558
        %v560 = vmul.f32 %v538, %v511
        %v561 = vmul.f32 %v541, %v511
        %v562 = vmul.f32 %v544, %v511
        %v563 = vmul.f32 %v547, %v511
        %v564 = vmul.f32 %v550, %v511
        %v565 = vmul.f32 %v553, %v511
        %v566 = vmul.f32 %v556, %v511
        %v567 = vmul.f32 %v559, %v511
        %v568 = vadd.f32 %v560, 1e-06
        %v569 = vadd.f32 %v561, 1e-06
        %v570 = vadd.f32 %v562, 1e-06
        %v571 = vadd.f32 %v563, 1e-06
        %v572 = vadd.f32 %v564, 1e-06
        %v573 = vadd.f32 %v565, 1e-06
        %v574 = vadd.f32 %v566, 1e-06
        %v575 = vadd.f32 %v567, 1e-06
        %v576 = vrsqrt.pop %v568
        %v577 = vrsqrt.pop %v569
        %v578 = vrsqrt.pop %v570
        %v579 = vrsqrt.pop %v571
        %v580 = vrsqrt.pop %v572
        %v581 = vrsqrt.pop %v573
        %v582 = vrsqrt.pop %v574
        %v583 = vrsqrt.pop %v575
        %v584 = vmul.f32 %v520, %v576
        %v585 = vmul.f32 %v521, %v577
        %v586 = vmul.f32 %v522, %v578
        %v587 = vmul.f32 %v523, %v579
        %v588 = vmul.f32 %v524, %v580
        %v589 = vmul.f32 %v525, %v581
        %v590 = vmul.f32 %v526, %v582
        %v591 = vmul.f32 %v527, %v583
        %v593 = vlaneseq
        %v594 = vshrl.u32 %v593, 7
        %v595 = vsub.s32 0, %v594
        %v596 = vrot.slane %v467, %v595
        %v598 = vmul.f32 %v584, %v596
        %v599 = vmul.f32 %v585, %v596
        %v600 = vmul.f32 %v586, %v596
        %v601 = vmul.f32 %v587, %v596
        %v602 = vmul.f32 %v588, %v596
        %v603 = vmul.f32 %v589, %v596
        %v604 = vmul.f32 %v590, %v596
        %v605 = vmul.f32 %v591, %v596
        %v607 = vlaneseq
        %v608 = vshrl.u32 %v607, 7
        %v609 = vsub.s32 0, %v608
        %v610 = vrot.slane %v468, %v609
        %v612 = vadd.f32 %v598, %v610
        %v613 = vadd.f32 %v599, %v610
        %v614 = vadd.f32 %v600, %v610
        %v615 = vadd.f32 %v601, %v610
        %v616 = vadd.f32 %v602, %v610
        %v617 = vadd.f32 %v603, %v610
        %v618 = vadd.f32 %v604, %v610
        %v619 = vadd.f32 %v605, %v610
        %v620 = vpack.c.bf16 %v613, %v612
        %v621 = vpack.c.bf16 %v615, %v614
        %v622 = vpack.c.bf16 %v617, %v616
        %v623 = vpack.c.bf16 %v619, %v618
        %v625 = vlaneseq
        %v626 = vshrl.u32 %v625, 7
        %v627 = vsub.s32 0, %v626
        %v628 = vrot.slane %v477, %v627
        %v629 = vlaneseq
        %v630 = vshrl.u32 %v629, 7
        %v631 = vsub.s32 1, %v630
        %v632 = vrot.slane %v477, %v631
        %v643 = vunpack.c.l.b16 %v469
        %v644 = vunpack.c.h.b16 %v469
        %v645 = vunpack.c.l.b16 %v470
        %v646 = vunpack.c.h.b16 %v470
        %v647 = vunpack.c.l.b16 %v471
        %v648 = vunpack.c.h.b16 %v471
        %v649 = vunpack.c.l.b16 %v472
        %v650 = vunpack.c.h.b16 %v472
        %v651 = vunpack.c.l.b16 %v473
        %v652 = vunpack.c.h.b16 %v473
        %v653 = vunpack.c.l.b16 %v474
        %v654 = vunpack.c.h.b16 %v474
        %v655 = vunpack.c.l.b16 %v475
        %v656 = vunpack.c.h.b16 %v475
        %v657 = vunpack.c.l.b16 %v476
        %v658 = vunpack.c.h.b16 %v476
        %v659 = vpack.c.b16 %v645, %v643
        %v660 = vpack.c.b16 %v646, %v644
        %v661 = vpack.c.b16 %v649, %v647
        %v662 = vpack.c.b16 %v650, %v648
        %v663 = vpack.c.b16 %v653, %v651
        %v664 = vpack.c.b16 %v654, %v652
        %v665 = vpack.c.b16 %v657, %v655
        %v666 = vpack.c.b16 %v658, %v656
        %v676 = vsel %vm486, %v620, 0
        %v679 = vsel %vm486, %v621, 0
        %v682 = vsel %vm486, %v622, 0
        %v685 = vsel %vm486, %v623, 0
        %687 = vmatprep.subr.bf16.mxu0 %v660
        %688 = vmatpush1.bf16.msra.mxu0 %v659
        %689 = vmatprep.subr.bf16.mxu0 %v662
        %690 = vmatpush1.bf16.msra.mxu0 %v661
        %691 = vmatprep.subr.bf16.mxu0 %v664
        %692 = vmatpush1.bf16.msra.mxu0 %v663
        %693 = vmatprep.subr.bf16.mxu0 %v666
        %694 = vmatpush1.bf16.msra.mxu0 %v665
        %695 = vmatprep.subr.bf16.mxu0 0
        %696 = vmatpush1.bf16.msra.mxu0 0
        %697 = vmatprep.subr.bf16.mxu0 0
        %698 = vmatpush1.bf16.msra.mxu0 0
        %699 = vmatprep.subr.bf16.mxu0 0
        %700 = vmatpush1.bf16.msra.mxu0 0
        %701 = vmatprep.subr.bf16.mxu0 0
        %702 = vmatpush1.bf16.msra.mxu0 0
        %703 = vmatprep.subr.bf16.mxu0 0
        %704 = vmatpush1.bf16.msra.mxu0 0
        %705 = vmatprep.subr.bf16.mxu0 0
        %706 = vmatpush1.bf16.msra.mxu0 0
        %707 = vmatprep.subr.bf16.mxu0 0
        %708 = vmatpush1.bf16.msra.mxu0 0
        %709 = vmatprep.subr.bf16.mxu0 0
        %710 = vmatpush1.bf16.msra.mxu0 0
        %711 = vmatprep.subr.bf16.mxu0 0
        %712 = vmatpush1.bf16.msra.mxu0 0
        %713 = vmatprep.subr.bf16.mxu0 0
        %714 = vmatpush1.bf16.msra.mxu0 0
        %715 = vmatprep.subr.bf16.mxu0 0
        %716 = vmatpush1.bf16.msra.mxu0 0
        %717 = vmatprep.subr.bf16.mxu0 0
        %718 = vmatpush1.bf16.msra.mxu0 0
        %719 = vmatprep.mubr.bf16.mxu0 0
        %720 = vmatmul.mubr.bf16.gmra.mrb[0].mxu0 %v676
        %v721 = vpop.f32.mrb[0].mxu0
        %v722 = vadd.f32 %v628, %v721
        %v723 = vpop.f32.mrb[0].mxu0
        %v724 = vadd.f32 %v632, %v723
        %v725 = vpop.f32.mrb[0].mxu0
        %v726 = vadd.f32 %v628, %v725
        %v727 = vpop.f32.mrb[0].mxu0
        %v728 = vadd.f32 %v632, %v727
        %729 = vmatprep.mubr.bf16.mxu0 0
        %730 = vmatmul.mubr.bf16.gmra.mrb[0].mxu0 %v679
        %v731 = vpop.f32.mrb[0].mxu0
        %v732 = vadd.f32 %v628, %v731
        %v733 = vpop.f32.mrb[0].mxu0
        %v734 = vadd.f32 %v632, %v733
        %v735 = vpop.f32.mrb[0].mxu0
        %v736 = vadd.f32 %v628, %v735
        %v737 = vpop.f32.mrb[0].mxu0
        %v738 = vadd.f32 %v632, %v737
        %739 = vmatprep.mubr.bf16.mxu0 0
        %740 = vmatmul.mubr.bf16.gmra.mrb[0].mxu0 %v682
        %v741 = vpop.f32.mrb[0].mxu0
        %v742 = vadd.f32 %v628, %v741
        %v743 = vpop.f32.mrb[0].mxu0
        %v744 = vadd.f32 %v632, %v743
        %v745 = vpop.f32.mrb[0].mxu0
        %v746 = vadd.f32 %v628, %v745
        %v747 = vpop.f32.mrb[0].mxu0
        %v748 = vadd.f32 %v632, %v747
        %749 = vmatprep.mubr.bf16.mxu0 0
        %750 = vmatmul.mubr.bf16.gmra.mrb[0].mxu0 %v685
        %v751 = vpop.f32.mrb[0].mxu0
        %v752 = vadd.f32 %v628, %v751
        %v753 = vpop.f32.mrb[0].mxu0
        %v754 = vadd.f32 %v632, %v753
        %v755 = vpop.f32.mrb[0].mxu0
        %v756 = vadd.f32 %v628, %v755
        %v757 = vpop.f32.mrb[0].mxu0
        %v758 = vadd.f32 %v632, %v757
        %759 = vdwg.mxu0
        %760 = vst [vmem:[#allocation3 + $0x20] sm:$0xff] %v722
        %761 = vst [vmem:[#allocation3 + $0x28] sm:$0xff] %v724
        %762 = vst [vmem:[#allocation3 + $0x30] sm:$0xff] %v726
        %763 = vst [vmem:[#allocation3 + $0x38] sm:$0xff] %v728
        %764 = vst [vmem:[#allocation3 + $0x40] sm:$0xff] %v732
        %765 = vst [vmem:[#allocation3 + $0x48] sm:$0xff] %v734
        %766 = vst [vmem:[#allocation3 + $0x50] sm:$0xff] %v736
        %767 = vst [vmem:[#allocation3 + $0x58] sm:$0xff] %v738
        %768 = vst [vmem:[#allocation3 + $0x60] sm:$0xff] %v742
        %769 = vst [vmem:[#allocation3 + $0x68] sm:$0xff] %v744
        %770 = vst [vmem:[#allocation3 + $0x70] sm:$0xff] %v746
        %771 = vst [vmem:[#allocation3 + $0x78] sm:$0xff] %v748
        %772 = vst [vmem:[#allocation3 + $0x80] sm:$0xff] %v752
        %773 = vst [vmem:[#allocation3 + $0x88] sm:$0xff] %v754
        %774 = vst [vmem:[#allocation3 + $0x90] sm:$0xff] %v756
        %775 = vst [vmem:[#allocation3 + $0x98] sm:$0xff] %v758
        // Predicated region
        $region133: #{_lambda_.5} parent=55 // pred_check
          %p776 = pneg %p365
        $region134: #{_lambda_.5} parent=55 // pred_check_branch
          %778 = sbr.rel (%p776) target = $region136
        $region135: #{_lambda_.5} parent=55 // pred_region
          %s779 = smul.u32 8, 1
          %s780 = sshll.u32 %s779, 4
          %781 = dma.done [#allocation4], %s780
        $region136: #{_lambda_.5} parent=55 // pred_fallthru
          _
        // Predicated region
        $region137: #{_lambda_.5} parent=55 // pred_check
          %p782 = pneg %p415
        $region138: #{_lambda_.5} parent=55 // pred_check_branch
          %784 = sbr.rel (%p782) target = $region140
        $region139: #{_lambda_.5} parent=55 // pred_region
          %s785 = scalar_lea.sflag [#allocation4], 1
          %s786 = smul.u32 8, 1
          %s787 = sshll.u32 %s786, 4
          %788 = dma.done %s785, %s787
        $region140: #{_lambda_.5} parent=55 // pred_fallthru
          _
        %v789 = vld [vmem:[#allocation2] sm:$0xff]
        %v790 = vld [vmem:[#allocation2 + $0x8] sm:$0xff]
        %v791 = vsel %vm486, %v789, 0.0
        %792 = vadd.xlane.f32.xlu0 %v791
        %v793 = vpop.xlane.xlu0 %792
        %v794 = vsel %vm486, %v790, 0.0
        %795 = vadd.xlane.f32.xlu0 %v794
        %v796 = vpop.xlane.xlu0 %795
        %v797 = vmul.f32 %v793, %v511
        %v798 = vmul.f32 %v796, %v511
        %v799 = vsub.f32 %v789, %v797
        %v800 = vsub.f32 %v790, %v798
        %v801 = vmul.f32 %v799, %v799
        %v802 = vmul.f32 %v800, %v800
        %v803 = vsel %vm486, %v801, 0.0
        %804 = vadd.xlane.f32.xlu0 %v803
        %v805 = vpop.xlane.xlu0 %804
        %v806 = vsel %vm486, %v802, 0.0
        %807 = vadd.xlane.f32.xlu0 %v806
        %v808 = vpop.xlane.xlu0 %807
        %v809 = vmul.f32 %v805, %v511
        %v810 = vmul.f32 %v808, %v511
        %v811 = vadd.f32 %v809, 1e-06
        %v812 = vadd.f32 %v810, 1e-06
        %v813 = vrsqrt.pop %v811
        %v814 = vrsqrt.pop %v812
        %v815 = vmul.f32 %v799, %v813
        %v816 = vmul.f32 %v800, %v814
        %v817 = vmul.f32 %v815, %v596
        %v818 = vmul.f32 %v816, %v596
        %v819 = vadd.f32 %v817, %v610
        %v820 = vadd.f32 %v818, %v610
        %v821 = vpack.c.bf16 %v820, %v819
        %v823 = vsel %vm486, %v821, 0
        %825 = vmatprep.subr.bf16.mxu0 %v660
        %826 = vmatpush1.bf16.msra.mxu0 %v659
        %827 = vmatprep.subr.bf16.mxu0 %v662
        %828 = vmatpush1.bf16.msra.mxu0 %v661
        %829 = vmatprep.subr.bf16.mxu0 %v664
        %830 = vmatpush1.bf16.msra.mxu0 %v663
        %831 = vmatprep.subr.bf16.mxu0 %v666
        %832 = vmatpush1.bf16.msra.mxu0 %v665
        %833 = vmatprep.subr.bf16.mxu0 0
        %834 = vmatpush1.bf16.msra.mxu0 0
        %835 = vmatprep.subr.bf16.mxu0 0
        %836 = vmatpush1.bf16.msra.mxu0 0
        %837 = vmatprep.subr.bf16.mxu0 0
        %838 = vmatpush1.bf16.msra.mxu0 0
        %839 = vmatprep.subr.bf16.mxu0 0
        %840 = vmatpush1.bf16.msra.mxu0 0
        %841 = vmatprep.subr.bf16.mxu0 0
        %842 = vmatpush1.bf16.msra.mxu0 0
        %843 = vmatprep.subr.bf16.mxu0 0
        %844 = vmatpush1.bf16.msra.mxu0 0
        %845 = vmatprep.subr.bf16.mxu0 0
        %846 = vmatpush1.bf16.msra.mxu0 0
        %847 = vmatprep.subr.bf16.mxu0 0
        %848 = vmatpush1.bf16.msra.mxu0 0
        %849 = vmatprep.subr.bf16.mxu0 0
        %850 = vmatpush1.bf16.msra.mxu0 0
        %851 = vmatprep.subr.bf16.mxu0 0
        %852 = vmatpush1.bf16.msra.mxu0 0
        %853 = vmatprep.subr.bf16.mxu0 0
        %854 = vmatpush1.bf16.msra.mxu0 0
        %855 = vmatprep.subr.bf16.mxu0 0
        %856 = vmatpush1.bf16.msra.mxu0 0
        %857 = vmatprep.mubr.bf16.mxu0 0
        %858 = vmatmul.mubr.bf16.gmra.mrb[0].mxu0 %v823
        %v859 = vpop.f32.mrb[0].mxu0
        %v860 = vadd.f32 %v628, %v859
        %v861 = vpop.f32.mrb[0].mxu0
        %v862 = vadd.f32 %v632, %v861
        %v863 = vpop.f32.mrb[0].mxu0
        %v864 = vadd.f32 %v628, %v863
        %v865 = vpop.f32.mrb[0].mxu0
        %v866 = vadd.f32 %v632, %v865
        %867 = vdwg.mxu0
        %868 = vst [vmem:[#allocation3 + $0x10] sm:$0xff] %v860
        %869 = vst [vmem:[#allocation3 + $0x18] sm:$0xff] %v862
        %870 = vst [vmem:[#allocation3 + $0xa0] sm:$0xff] %v864
        %871 = vst [vmem:[#allocation3 + $0xa8] sm:$0xff] %v866
        %p872 = scmp.eq.s32.totalorder %s29, 0
        // Predicated region
        $region141: #{_lambda_.5} parent=55 // pred_check
          %p873 = pneg %p872
        $region142: #{_lambda_.5} parent=55 // pred_check_branch
          %875 = sbr.rel (%p873) target = $region144
        $region143: #{_lambda_.5} parent=55 // pred_region
          %876 = vst [vmem:[#allocation3 + $0x10] sm:$0xff] 0.0
          %877 = vst [vmem:[#allocation3 + $0x18] sm:$0xff] 0.0
          %878 = vst [vmem:[#allocation3 + $0xa0] sm:$0xff] 0.0
          %879 = vst [vmem:[#allocation3 + $0xa8] sm:$0xff] 0.0
        $region144: #{_lambda_.5} parent=55 // pred_fallthru
          _
        %v880 = vlaneseq
        %v881 = vshrl.u32 %v880, 7
        %v882 = vadd.s32 %v881, 8
        %v883 = vadd.s32 %v881, 16
        %v884 = vadd.s32 %v881, 24
        %v885 = vadd.s32 %v881, 32
        %v886 = vadd.s32 %v881, 40
        %v887 = vadd.s32 %v881, 48
        %v888 = vadd.s32 %v881, 56
        %vm889 = vcmp.lt.s32.totalorder %v881, 0
        %v890 = vsub.s32 0, %v881
        %v891 = vsel %vm889, %v890, %v881
        %v892 = vshrl.u32 %v891, 3
        %v893 = vand.u32 %v891, 7
        %v894 = vsub.s32 0, %v893
        %v895 = vsel %vm889, %v894, %v893
        %vm896 = vcmp.lt.s32.totalorder %v882, 0
        %v897 = vsub.s32 0, %v882
        %v898 = vsel %vm896, %v897, %v882
        %v899 = vshrl.u32 %v898, 3
        %v900 = vand.u32 %v898, 7
        %v901 = vsub.s32 0, %v900
        %v902 = vsel %vm896, %v901, %v900
        %vm903 = vcmp.lt.s32.totalorder %v883, 0
        %v904 = vsub.s32 0, %v883
        %v905 = vsel %vm903, %v904, %v883
        %v906 = vshrl.u32 %v905, 3
        %v907 = vand.u32 %v905, 7
        %v908 = vsub.s32 0, %v907
        %v909 = vsel %vm903, %v908, %v907
        %vm910 = vcmp.lt.s32.totalorder %v884, 0
        %v911 = vsub.s32 0, %v884
        %v912 = vsel %vm910, %v911, %v884
        %v913 = vshrl.u32 %v912, 3
        %v914 = vand.u32 %v912, 7
        %v915 = vsub.s32 0, %v914
        %v916 = vsel %vm910, %v915, %v914
        %vm917 = vcmp.lt.s32.totalorder %v885, 0
        %v918 = vsub.s32 0, %v885
        %v919 = vsel %vm917, %v918, %v885
        %v920 = vshrl.u32 %v919, 3
        %v921 = vand.u32 %v919, 7
        %v922 = vsub.s32 0, %v921
        %v923 = vsel %vm917, %v922, %v921
        %vm924 = vcmp.lt.s32.totalorder %v886, 0
        %v925 = vsub.s32 0, %v886
        %v926 = vsel %vm924, %v925, %v886
        %v927 = vshrl.u32 %v926, 3
        %v928 = vand.u32 %v926, 7
        %v929 = vsub.s32 0, %v928
        %v930 = vsel %vm924, %v929, %v928
        %vm931 = vcmp.lt.s32.totalorder %v887, 0
        %v932 = vsub.s32 0, %v887
        %v933 = vsel %vm931, %v932, %v887
        %v934 = vshrl.u32 %v933, 3
        %v935 = vand.u32 %v933, 7
        %v936 = vsub.s32 0, %v935
        %v937 = vsel %vm931, %v936, %v935
        %vm938 = vcmp.lt.s32.totalorder %v888, 0
        %v939 = vsub.s32 0, %v888
        %v940 = vsel %vm938, %v939, %v888
        %v941 = vshrl.u32 %v940, 3
        %v942 = vand.u32 %v940, 7
        %v943 = vsub.s32 0, %v942
        %v944 = vsel %vm938, %v943, %v942
        %vm945 = vcmp.ne.s32.totalorder %v895, 0
        %vm946 = vcmp.ne.s32.totalorder %v902, 0
        %vm947 = vcmp.ne.s32.totalorder %v909, 0
        %vm948 = vcmp.ne.s32.totalorder %v916, 0
        %vm949 = vcmp.ne.s32.totalorder %v923, 0
        %vm950 = vcmp.ne.s32.totalorder %v930, 0
        %vm951 = vcmp.ne.s32.totalorder %v937, 0
        %vm952 = vcmp.ne.s32.totalorder %v944, 0
        %vm953 = vcmp.lt.s32.totalorder %v895, 0
        %vm954 = vcmp.lt.s32.totalorder %v902, 0
        %vm955 = vcmp.lt.s32.totalorder %v909, 0
        %vm956 = vcmp.lt.s32.totalorder %v916, 0
        %vm957 = vcmp.lt.s32.totalorder %v923, 0
        %vm958 = vcmp.lt.s32.totalorder %v930, 0
        %vm959 = vcmp.lt.s32.totalorder %v937, 0
        %vm960 = vcmp.lt.s32.totalorder %v944, 0
        %vm961 = vmand %vm953, %vm945
        %vm962 = vmand %vm954, %vm946
        %vm963 = vmand %vm955, %vm947
        %vm964 = vmand %vm956, %vm948
        %vm965 = vmand %vm957, %vm949
        %vm966 = vmand %vm958, %vm950
        %vm967 = vmand %vm959, %vm951
        %vm968 = vmand %vm960, %vm952
        %v969 = vadd.s32 %v895, 8
        %v970 = vadd.s32 %v902, 8
        %v971 = vadd.s32 %v909, 8
        %v972 = vadd.s32 %v916, 8
        %v973 = vadd.s32 %v923, 8
        %v974 = vadd.s32 %v930, 8
        %v975 = vadd.s32 %v937, 8
        %v976 = vadd.s32 %v944, 8
        %v977 = vsel %vm961, %v969, %v895
        %v978 = vsel %vm962, %v970, %v902
        %v979 = vsel %vm963, %v971, %v909
        %v980 = vsel %vm964, %v972, %v916
        %v981 = vsel %vm965, %v973, %v923
        %v982 = vsel %vm966, %v974, %v930
        %v983 = vsel %vm967, %v975, %v937
        %v984 = vsel %vm968, %v976, %v944
        %vm985 = vcmp.gt.s32.totalorder %v977, 0
        %vm986 = vcmp.gt.s32.totalorder %v978, 0
        %vm987 = vcmp.gt.s32.totalorder %v979, 0
        %vm988 = vcmp.gt.s32.totalorder %v980, 0
        %vm989 = vcmp.gt.s32.totalorder %v981, 0
        %vm990 = vcmp.gt.s32.totalorder %v982, 0
        %vm991 = vcmp.gt.s32.totalorder %v983, 0
        %vm992 = vcmp.gt.s32.totalorder %v984, 0
        %vm993 = vcmp.lt.s32.totalorder %v977, 7
        %vm994 = vcmp.lt.s32.totalorder %v978, 7
        %vm995 = vcmp.lt.s32.totalorder %v979, 7
        %vm996 = vcmp.lt.s32.totalorder %v980, 7
        %vm997 = vcmp.lt.s32.totalorder %v981, 7
        %vm998 = vcmp.lt.s32.totalorder %v982, 7
        %vm999 = vcmp.lt.s32.totalorder %v983, 7
        %vm1000 = vcmp.lt.s32.totalorder %v984, 7
        %v1001 = vld [vmem:[#allocation3] sm:$0x80]
        %v1002 = vld [vmem:[#allocation3 + $0x8] sm:$0x80]
        %v1003 = vld [vmem:[#allocation3 + $0x10] sm:$0xff]
        %v1004 = vld [vmem:[#allocation3 + $0x18] sm:$0xff]
        %v1005 = vld [vmem:[#allocation3 + $0x20] sm:$0xff]
        %v1006 = vld [vmem:[#allocation3 + $0x28] sm:$0xff]
        %v1007 = vld [vmem:[#allocation3 + $0x30] sm:$0xff]
        %v1008 = vld [vmem:[#allocation3 + $0x38] sm:$0xff]
        %v1009 = vld [vmem:[#allocation3 + $0x40] sm:$0xff]
        %v1010 = vld [vmem:[#allocation3 + $0x48] sm:$0xff]
        %v1011 = vld [vmem:[#allocation3 + $0x50] sm:$0xff]
        %v1012 = vld [vmem:[#allocation3 + $0x58] sm:$0xff]
        %v1013 = vld [vmem:[#allocation3 + $0x60] sm:$0xff]
        %v1014 = vld [vmem:[#allocation3 + $0x68] sm:$0xff]
        %v1015 = vld [vmem:[#allocation3 + $0x70] sm:$0xff]
        %v1016 = vld [vmem:[#allocation3 + $0x78] sm:$0xff]
        %v1017 = vld [vmem:[#allocation3 + $0x80] sm:$0x7f]
        %v1018 = vld [vmem:[#allocation3 + $0x88] sm:$0x7f]
        %v1019 = vsel %vm985, 1, 0
        %v1020 = vsel %vm986, 1, 0
        %v1021 = vsel %vm987, 1, 0
        %v1022 = vsel %vm988, 1, 0
        %v1023 = vsel %vm989, 1, 0
        %v1024 = vsel %vm990, 1, 0
        %v1025 = vsel %vm991, 1, 0
        %v1026 = vsel %vm992, 1, 0
        %vm1027 = vcmp.eq.s32.totalorder %v1019, 1
        %vm1028 = vcmp.eq.s32.totalorder %v1020, 1
        %vm1029 = vcmp.eq.s32.totalorder %v1021, 1
        %vm1030 = vcmp.eq.s32.totalorder %v1022, 1
        %vm1031 = vcmp.eq.s32.totalorder %v1023, 1
        %vm1032 = vcmp.eq.s32.totalorder %v1024, 1
        %vm1033 = vcmp.eq.s32.totalorder %v1025, 1
        %vm1034 = vcmp.eq.s32.totalorder %v1026, 1
        %vm1053 = vcmask 1040384
        %v1054 = vrot.slane %v1001, 7
        %v1055 = vrot.slane %v1003, 7
        %v1056 = vsel %vm1053, %v1054, %v1055
        %v1057 = vrot.slane %v1002, 7
        %v1058 = vrot.slane %v1004, 7
        %v1059 = vsel %vm1053, %v1057, %v1058
        %v1060 = vrot.slane %v1005, 7
        %v1061 = vsel %vm1053, %v1055, %v1060
        %v1062 = vrot.slane %v1006, 7
        %v1063 = vsel %vm1053, %v1058, %v1062
        %v1064 = vrot.slane %v1007, 7
        %v1065 = vsel %vm1053, %v1060, %v1064
        %v1066 = vrot.slane %v1008, 7
        %v1067 = vsel %vm1053, %v1062, %v1066
        %v1068 = vrot.slane %v1009, 7
        %v1069 = vsel %vm1053, %v1064, %v1068
        %v1070 = vrot.slane %v1010, 7
        %v1071 = vsel %vm1053, %v1066, %v1070
        %v1072 = vrot.slane %v1011, 7
        %v1073 = vsel %vm1053, %v1068, %v1072
        %v1074 = vrot.slane %v1012, 7
        %v1075 = vsel %vm1053, %v1070, %v1074
        %v1076 = vrot.slane %v1013, 7
        %v1077 = vsel %vm1053, %v1072, %v1076
        %v1078 = vrot.slane %v1014, 7
        %v1079 = vsel %vm1053, %v1074, %v1078
        %v1080 = vrot.slane %v1015, 7
        %v1081 = vsel %vm1053, %v1076, %v1080
        %v1082 = vrot.slane %v1016, 7
        %v1083 = vsel %vm1053, %v1078, %v1082
        %v1084 = vrot.slane %v1017, 7
        %v1085 = vsel %vm1053, %v1080, %v1084
        %v1086 = vrot.slane %v1018, 7
        %v1087 = vsel %vm1053, %v1082, %v1086
        %v1104 = vsel %vm1027, %v1056, 0.0
        %v1105 = vsel %vm1027, %v1059, 0.0
        %v1106 = vsel %vm1028, %v1061, 0.0
        %v1107 = vsel %vm1028, %v1063, 0.0
        %v1108 = vsel %vm1029, %v1065, 0.0
        %v1109 = vsel %vm1029, %v1067, 0.0
        %v1110 = vsel %vm1030, %v1069, 0.0
        %v1111 = vsel %vm1030, %v1071, 0.0
        %v1112 = vsel %vm1031, %v1073, 0.0
        %v1113 = vsel %vm1031, %v1075, 0.0
        %v1114 = vsel %vm1032, %v1077, 0.0
        %v1115 = vsel %vm1032, %v1079, 0.0
        %v1116 = vsel %vm1033, %v1081, 0.0
        %v1117 = vsel %vm1033, %v1083, 0.0
        %v1118 = vsel %vm1034, %v1085, 0.0
        %v1119 = vsel %vm1034, %v1087, 0.0
        %v1120 = vld [vmem:[%s6] sm:$0x3]
        %v1122 = vlaneseq
        %v1123 = vshrl.u32 %v1122, 7
        %v1124 = vsub.s32 0, %v1123
        %v1125 = vrot.slane %v1120, %v1124
        %v1126 = vlaneseq
        %v1127 = vshrl.u32 %v1126, 7
        %v1128 = vsub.s32 1, %v1127
        %v1129 = vrot.slane %v1120, %v1128
        %v1132 = vmul.f32 %v1104, %v1125
        %v1133 = vmul.f32 %v1105, %v1129
        %v1134 = vmul.f32 %v1106, %v1125
        %v1135 = vmul.f32 %v1107, %v1129
        %v1136 = vmul.f32 %v1108, %v1125
        %v1137 = vmul.f32 %v1109, %v1129
        %v1138 = vmul.f32 %v1110, %v1125
        %v1139 = vmul.f32 %v1111, %v1129
        %v1140 = vmul.f32 %v1112, %v1125
        %v1141 = vmul.f32 %v1113, %v1129
        %v1142 = vmul.f32 %v1114, %v1125
        %v1143 = vmul.f32 %v1115, %v1129
        %v1144 = vmul.f32 %v1116, %v1125
        %v1145 = vmul.f32 %v1117, %v1129
        %v1146 = vmul.f32 %v1118, %v1125
        %v1147 = vmul.f32 %v1119, %v1129
        %v1148 = vadd.f32 %v1132, 0.0
        %v1149 = vadd.f32 %v1133, 0.0
        %v1150 = vadd.f32 %v1134, 0.0
        %v1151 = vadd.f32 %v1135, 0.0
        %v1152 = vadd.f32 %v1136, 0.0
        %v1153 = vadd.f32 %v1137, 0.0
        %v1154 = vadd.f32 %v1138, 0.0
        %v1155 = vadd.f32 %v1139, 0.0
        %v1156 = vadd.f32 %v1140, 0.0
        %v1157 = vadd.f32 %v1141, 0.0
        %v1158 = vadd.f32 %v1142, 0.0
        %v1159 = vadd.f32 %v1143, 0.0
        %v1160 = vadd.f32 %v1144, 0.0
        %v1161 = vadd.f32 %v1145, 0.0
        %v1162 = vadd.f32 %v1146, 0.0
        %v1163 = vadd.f32 %v1147, 0.0
        %v1164 = vld [vmem:[#allocation3 + $0x80] sm:$0xff]
        %v1165 = vld [vmem:[#allocation3 + $0x88] sm:$0xff]
        %s1166 = scalar_lea.vmem %s6, 2
        %v1167 = vld [vmem:[%s1166] sm:$0x3]
        %v1169 = vlaneseq
        %v1170 = vshrl.u32 %v1169, 7
        %v1171 = vsub.s32 0, %v1170
        %v1172 = vrot.slane %v1167, %v1171
        %v1173 = vlaneseq
        %v1174 = vshrl.u32 %v1173, 7
        %v1175 = vsub.s32 1, %v1174
        %v1176 = vrot.slane %v1167, %v1175
        %v1179 = vmul.f32 %v1003, %v1172
        %v1180 = vmul.f32 %v1004, %v1176
        %v1181 = vmul.f32 %v1005, %v1172
        %v1182 = vmul.f32 %v1006, %v1176
        %v1183 = vmul.f32 %v1007, %v1172
        %v1184 = vmul.f32 %v1008, %v1176
        %v1185 = vmul.f32 %v1009, %v1172
        %v1186 = vmul.f32 %v1010, %v1176
        %v1187 = vmul.f32 %v1011, %v1172
        %v1188 = vmul.f32 %v1012, %v1176
        %v1189 = vmul.f32 %v1013, %v1172
        %v1190 = vmul.f32 %v1014, %v1176
        %v1191 = vmul.f32 %v1015, %v1172
        %v1192 = vmul.f32 %v1016, %v1176
        %v1193 = vmul.f32 %v1164, %v1172
        %v1194 = vmul.f32 %v1165, %v1176
        %v1195 = vadd.f32 %v1148, %v1179
        %v1196 = vadd.f32 %v1149, %v1180
        %v1197 = vadd.f32 %v1150, %v1181
        %v1198 = vadd.f32 %v1151, %v1182
        %v1199 = vadd.f32 %v1152, %v1183
        %v1200 = vadd.f32 %v1153, %v1184
        %v1201 = vadd.f32 %v1154, %v1185
        %v1202 = vadd.f32 %v1155, %v1186
        %v1203 = vadd.f32 %v1156, %v1187
        %v1204 = vadd.f32 %v1157, %v1188
        %v1205 = vadd.f32 %v1158, %v1189
        %v1206 = vadd.f32 %v1159, %v1190
        %v1207 = vadd.f32 %v1160, %v1191
        %v1208 = vadd.f32 %v1161, %v1192
        %v1209 = vadd.f32 %v1162, %v1193
        %v1210 = vadd.f32 %v1163, %v1194
        %v1211 = vld [vmem:[#allocation3 + $0x10] sm:$0xfe]
        %v1212 = vld [vmem:[#allocation3 + $0x18] sm:$0xfe]
        %v1213 = vld [vmem:[#allocation3 + $0x90] sm:$0x1]
        %v1214 = vld [vmem:[#allocation3 + $0x98] sm:$0x1]
        %v1215 = vsel %vm993, 1, 0
        %v1216 = vsel %vm994, 1, 0
        %v1217 = vsel %vm995, 1, 0
        %v1218 = vsel %vm996, 1, 0
        %v1219 = vsel %vm997, 1, 0
        %v1220 = vsel %vm998, 1, 0
        %v1221 = vsel %vm999, 1, 0
        %v1222 = vsel %vm1000, 1, 0
        %vm1223 = vcmp.eq.s32.totalorder %v1215, 1
        %vm1224 = vcmp.eq.s32.totalorder %v1216, 1
        %vm1225 = vcmp.eq.s32.totalorder %v1217, 1
        %vm1226 = vcmp.eq.s32.totalorder %v1218, 1
        %vm1227 = vcmp.eq.s32.totalorder %v1219, 1
        %vm1228 = vcmp.eq.s32.totalorder %v1220, 1
        %vm1229 = vcmp.eq.s32.totalorder %v1221, 1
        %vm1230 = vcmp.eq.s32.totalorder %v1222, 1
        %vm1237 = vcmask 1046528
        %v1238 = vrot.slane %v1211, 1
        %v1239 = vrot.slane %v1005, 1
        %v1240 = vsel %vm1237, %v1238, %v1239
        %v1241 = vrot.slane %v1212, 1
        %v1242 = vrot.slane %v1006, 1
        %v1243 = vsel %vm1237, %v1241, %v1242
        %v1244 = vrot.slane %v1007, 1
        %v1245 = vsel %vm1237, %v1239, %v1244
        %v1246 = vrot.slane %v1008, 1
        %v1247 = vsel %vm1237, %v1242, %v1246
        %v1248 = vrot.slane %v1009, 1
        %v1249 = vsel %vm1237, %v1244, %v1248
        %v1250 = vrot.slane %v1010, 1
        %v1251 = vsel %vm1237, %v1246, %v1250
        %v1252 = vrot.slane %v1011, 1
        %v1253 = vsel %vm1237, %v1248, %v1252
        %v1254 = vrot.slane %v1012, 1
        %v1255 = vsel %vm1237, %v1250, %v1254
        %v1256 = vrot.slane %v1013, 1
        %v1257 = vsel %vm1237, %v1252, %v1256
        %v1258 = vrot.slane %v1014, 1
        %v1259 = vsel %vm1237, %v1254, %v1258
        %v1260 = vrot.slane %v1015, 1
        %v1261 = vsel %vm1237, %v1256, %v1260
        %v1262 = vrot.slane %v1016, 1
        %v1263 = vsel %vm1237, %v1258, %v1262
        %v1264 = vrot.slane %v1164, 1
        %v1265 = vsel %vm1237, %v1260, %v1264
        %v1266 = vrot.slane %v1165, 1
        %v1267 = vsel %vm1237, %v1262, %v1266
        %v1268 = vrot.slane %v1213, 1
        %v1269 = vsel %vm1237, %v1264, %v1268
        %v1270 = vrot.slane %v1214, 1
        %v1271 = vsel %vm1237, %v1266, %v1270
        %v1288 = vsel %vm1223, %v1240, 0.0
        %v1289 = vsel %vm1223, %v1243, 0.0
        %v1290 = vsel %vm1224, %v1245, 0.0
        %v1291 = vsel %vm1224, %v1247, 0.0
        %v1292 = vsel %vm1225, %v1249, 0.0
        %v1293 = vsel %vm1225, %v1251, 0.0
        %v1294 = vsel %vm1226, %v1253, 0.0
        %v1295 = vsel %vm1226, %v1255, 0.0
        %v1296 = vsel %vm1227, %v1257, 0.0
        %v1297 = vsel %vm1227, %v1259, 0.0
        %v1298 = vsel %vm1228, %v1261, 0.0
        %v1299 = vsel %vm1228, %v1263, 0.0
        %v1300 = vsel %vm1229, %v1265, 0.0
        %v1301 = vsel %vm1229, %v1267, 0.0
        %v1302 = vsel %vm1230, %v1269, 0.0
        %v1303 = vsel %vm1230, %v1271, 0.0
        %s1304 = scalar_lea.vmem %s6, 4
        %v1305 = vld [vmem:[%s1304] sm:$0x3]
        %v1307 = vlaneseq
        %v1308 = vshrl.u32 %v1307, 7
        %v1309 = vsub.s32 0, %v1308
        %v1310 = vrot.slane %v1305, %v1309
        %v1311 = vlaneseq
        %v1312 = vshrl.u32 %v1311, 7
        %v1313 = vsub.s32 1, %v1312
        %v1314 = vrot.slane %v1305, %v1313
        %v1317 = vmul.f32 %v1288, %v1310
        %v1318 = vmul.f32 %v1289, %v1314
        %v1319 = vmul.f32 %v1290, %v1310
        %v1320 = vmul.f32 %v1291, %v1314
        %v1321 = vmul.f32 %v1292, %v1310
        %v1322 = vmul.f32 %v1293, %v1314
        %v1323 = vmul.f32 %v1294, %v1310
        %v1324 = vmul.f32 %v1295, %v1314
        %v1325 = vmul.f32 %v1296, %v1310
        %v1326 = vmul.f32 %v1297, %v1314
        %v1327 = vmul.f32 %v1298, %v1310
        %v1328 = vmul.f32 %v1299, %v1314
        %v1329 = vmul.f32 %v1300, %v1310
        %v1330 = vmul.f32 %v1301, %v1314
        %v1331 = vmul.f32 %v1302, %v1310
        %v1332 = vmul.f32 %v1303, %v1314
        %v1333 = vadd.f32 %v1195, %v1317
        %v1334 = vadd.f32 %v1196, %v1318
        %v1335 = vadd.f32 %v1197, %v1319
        %v1336 = vadd.f32 %v1198, %v1320
        %v1337 = vadd.f32 %v1199, %v1321
        %v1338 = vadd.f32 %v1200, %v1322
        %v1339 = vadd.f32 %v1201, %v1323
        %v1340 = vadd.f32 %v1202, %v1324
        %v1341 = vadd.f32 %v1203, %v1325
        %v1342 = vadd.f32 %v1204, %v1326
        %v1343 = vadd.f32 %v1205, %v1327
        %v1344 = vadd.f32 %v1206, %v1328
        %v1345 = vadd.f32 %v1207, %v1329
        %v1346 = vadd.f32 %v1208, %v1330
        %v1347 = vadd.f32 %v1209, %v1331
        %v1348 = vadd.f32 %v1210, %v1332
        %v1349 = vld [vmem:[#allocation3 + $0x10] sm:$0x80]
        %v1350 = vld [vmem:[#allocation3 + $0x18] sm:$0x80]
        %v1351 = vld [vmem:[#allocation3 + $0x90] sm:$0x7f]
        %v1352 = vld [vmem:[#allocation3 + $0x98] sm:$0x7f]
        %v1357 = vrot.slane %v1349, 7
        %v1358 = vsel %vm1053, %v1357, %v1060
        %v1359 = vrot.slane %v1350, 7
        %v1360 = vsel %vm1053, %v1359, %v1062
        %v1361 = vrot.slane %v1164, 7
        %v1362 = vsel %vm1053, %v1080, %v1361
        %v1363 = vrot.slane %v1165, 7
        %v1364 = vsel %vm1053, %v1082, %v1363
        %v1365 = vrot.slane %v1351, 7
        %v1366 = vsel %vm1053, %v1361, %v1365
        %v1367 = vrot.slane %v1352, 7
        %v1368 = vsel %vm1053, %v1363, %v1367
        %v1375 = vsel %vm1027, %v1358, 0.0
        %v1376 = vsel %vm1027, %v1360, 0.0
        %v1377 = vsel %vm1028, %v1065, 0.0
        %v1378 = vsel %vm1028, %v1067, 0.0
        %v1379 = vsel %vm1029, %v1069, 0.0
        %v1380 = vsel %vm1029, %v1071, 0.0
        %v1381 = vsel %vm1030, %v1073, 0.0
        %v1382 = vsel %vm1030, %v1075, 0.0
        %v1383 = vsel %vm1031, %v1077, 0.0
        %v1384 = vsel %vm1031, %v1079, 0.0
        %v1385 = vsel %vm1032, %v1081, 0.0
        %v1386 = vsel %vm1032, %v1083, 0.0
        %v1387 = vsel %vm1033, %v1362, 0.0
        %v1388 = vsel %vm1033, %v1364, 0.0
        %v1389 = vsel %vm1034, %v1366, 0.0
        %v1390 = vsel %vm1034, %v1368, 0.0
        %s1391 = scalar_lea.vmem %s6, 6
        %v1392 = vld [vmem:[%s1391] sm:$0x3]
        %v1394 = vlaneseq
        %v1395 = vshrl.u32 %v1394, 7
        %v1396 = vsub.s32 0, %v1395
        %v1397 = vrot.slane %v1392, %v1396
        %v1398 = vlaneseq
        %v1399 = vshrl.u32 %v1398, 7
        %v1400 = vsub.s32 1, %v1399
        %v1401 = vrot.slane %v1392, %v1400
        %v1404 = vmul.f32 %v1375, %v1397
        %v1405 = vmul.f32 %v1376, %v1401
        %v1406 = vmul.f32 %v1377, %v1397
        %v1407 = vmul.f32 %v1378, %v1401
        %v1408 = vmul.f32 %v1379, %v1397
        %v1409 = vmul.f32 %v1380, %v1401
        %v1410 = vmul.f32 %v1381, %v1397
        %v1411 = vmul.f32 %v1382, %v1401
        %v1412 = vmul.f32 %v1383, %v1397
        %v1413 = vmul.f32 %v1384, %v1401
        %v1414 = vmul.f32 %v1385, %v1397
        %v1415 = vmul.f32 %v1386, %v1401
        %v1416 = vmul.f32 %v1387, %v1397
        %v1417 = vmul.f32 %v1388, %v1401
        %v1418 = vmul.f32 %v1389, %v1397
        %v1419 = vmul.f32 %v1390, %v1401
        %v1420 = vadd.f32 %v1333, %v1404
        %v1421 = vadd.f32 %v1334, %v1405
        %v1422 = vadd.f32 %v1335, %v1406
        %v1423 = vadd.f32 %v1336, %v1407
        %v1424 = vadd.f32 %v1337, %v1408
        %v1425 = vadd.f32 %v1338, %v1409
        %v1426 = vadd.f32 %v1339, %v1410
        %v1427 = vadd.f32 %v1340, %v1411
        %v1428 = vadd.f32 %v1341, %v1412
        %v1429 = vadd.f32 %v1342, %v1413
        %v1430 = vadd.f32 %v1343, %v1414
        %v1431 = vadd.f32 %v1344, %v1415
        %v1432 = vadd.f32 %v1345, %v1416
        %v1433 = vadd.f32 %v1346, %v1417
        %v1434 = vadd.f32 %v1347, %v1418
        %v1435 = vadd.f32 %v1348, %v1419
        %v1436 = vld [vmem:[#allocation3 + $0x90] sm:$0xff]
        %v1437 = vld [vmem:[#allocation3 + $0x98] sm:$0xff]
        %s1438 = scalar_lea.vmem %s6, 8
        %v1439 = vld [vmem:[%s1438] sm:$0x3]
        %v1441 = vlaneseq
        %v1442 = vshrl.u32 %v1441, 7
        %v1443 = vsub.s32 0, %v1442
        %v1444 = vrot.slane %v1439, %v1443
        %v1445 = vlaneseq
        %v1446 = vshrl.u32 %v1445, 7
        %v1447 = vsub.s32 1, %v1446
        %v1448 = vrot.slane %v1439, %v1447
        %v1451 = vmul.f32 %v1005, %v1444
        %v1452 = vmul.f32 %v1006, %v1448
        %v1453 = vmul.f32 %v1007, %v1444
        %v1454 = vmul.f32 %v1008, %v1448
        %v1455 = vmul.f32 %v1009, %v1444
        %v1456 = vmul.f32 %v1010, %v1448
        %v1457 = vmul.f32 %v1011, %v1444
        %v1458 = vmul.f32 %v1012, %v1448
        %v1459 = vmul.f32 %v1013, %v1444
        %v1460 = vmul.f32 %v1014, %v1448
        %v1461 = vmul.f32 %v1015, %v1444
        %v1462 = vmul.f32 %v1016, %v1448
        %v1463 = vmul.f32 %v1164, %v1444
        %v1464 = vmul.f32 %v1165, %v1448
        %v1465 = vmul.f32 %v1436, %v1444
        %v1466 = vmul.f32 %v1437, %v1448
        %v1467 = vadd.f32 %v1420, %v1451
        %v1468 = vadd.f32 %v1421, %v1452
        %v1469 = vadd.f32 %v1422, %v1453
        %v1470 = vadd.f32 %v1423, %v1454
        %v1471 = vadd.f32 %v1424, %v1455
        %v1472 = vadd.f32 %v1425, %v1456
        %v1473 = vadd.f32 %v1426, %v1457
        %v1474 = vadd.f32 %v1427, %v1458
        %v1475 = vadd.f32 %v1428, %v1459
        %v1476 = vadd.f32 %v1429, %v1460
        %v1477 = vadd.f32 %v1430, %v1461
        %v1478 = vadd.f32 %v1431, %v1462
        %v1479 = vadd.f32 %v1432, %v1463
        %v1480 = vadd.f32 %v1433, %v1464
        %v1481 = vadd.f32 %v1434, %v1465
        %v1482 = vadd.f32 %v1435, %v1466
        %v1483 = vld [vmem:[#allocation3 + $0x20] sm:$0xfe]
        %v1484 = vld [vmem:[#allocation3 + $0x28] sm:$0xfe]
        %v1485 = vld [vmem:[#allocation3 + $0xa0] sm:$0x1]
        %v1486 = vld [vmem:[#allocation3 + $0xa8] sm:$0x1]
        %v1493 = vrot.slane %v1483, 1
        %v1494 = vsel %vm1237, %v1493, %v1244
        %v1495 = vrot.slane %v1484, 1
        %v1496 = vsel %vm1237, %v1495, %v1246
        %v1497 = vrot.slane %v1436, 1
        %v1498 = vsel %vm1237, %v1264, %v1497
        %v1499 = vrot.slane %v1437, 1
        %v1500 = vsel %vm1237, %v1266, %v1499
        %v1501 = vrot.slane %v1485, 1
        %v1502 = vsel %vm1237, %v1497, %v1501
        %v1503 = vrot.slane %v1486, 1
        %v1504 = vsel %vm1237, %v1499, %v1503
        %v1511 = vsel %vm1223, %v1494, 0.0
        %v1512 = vsel %vm1223, %v1496, 0.0
        %v1513 = vsel %vm1224, %v1249, 0.0
        %v1514 = vsel %vm1224, %v1251, 0.0
        %v1515 = vsel %vm1225, %v1253, 0.0
        %v1516 = vsel %vm1225, %v1255, 0.0
        %v1517 = vsel %vm1226, %v1257, 0.0
        %v1518 = vsel %vm1226, %v1259, 0.0
        %v1519 = vsel %vm1227, %v1261, 0.0
        %v1520 = vsel %vm1227, %v1263, 0.0
        %v1521 = vsel %vm1228, %v1265, 0.0
        %v1522 = vsel %vm1228, %v1267, 0.0
        %v1523 = vsel %vm1229, %v1498, 0.0
        %v1524 = vsel %vm1229, %v1500, 0.0
        %v1525 = vsel %vm1230, %v1502, 0.0
        %v1526 = vsel %vm1230, %v1504, 0.0
        %s1527 = scalar_lea.vmem %s6, 10
        %v1528 = vld [vmem:[%s1527] sm:$0x3]
        %v1530 = vlaneseq
        %v1531 = vshrl.u32 %v1530, 7
        %v1532 = vsub.s32 0, %v1531
        %v1533 = vrot.slane %v1528, %v1532
        %v1534 = vlaneseq
        %v1535 = vshrl.u32 %v1534, 7
        %v1536 = vsub.s32 1, %v1535
        %v1537 = vrot.slane %v1528, %v1536
        %v1540 = vmul.f32 %v1511, %v1533
        %v1541 = vmul.f32 %v1512, %v1537
        %v1542 = vmul.f32 %v1513, %v1533
        %v1543 = vmul.f32 %v1514, %v1537
        %v1544 = vmul.f32 %v1515, %v1533
        %v1545 = vmul.f32 %v1516, %v1537
        %v1546 = vmul.f32 %v1517, %v1533
        %v1547 = vmul.f32 %v1518, %v1537
        %v1548 = vmul.f32 %v1519, %v1533
        %v1549 = vmul.f32 %v1520, %v1537
        %v1550 = vmul.f32 %v1521, %v1533
        %v1551 = vmul.f32 %v1522, %v1537
        %v1552 = vmul.f32 %v1523, %v1533
        %v1553 = vmul.f32 %v1524, %v1537
        %v1554 = vmul.f32 %v1525, %v1533
        %v1555 = vmul.f32 %v1526, %v1537
        %v1556 = vadd.f32 %v1467, %v1540
        %v1557 = vadd.f32 %v1468, %v1541
        %v1558 = vadd.f32 %v1469, %v1542
        %v1559 = vadd.f32 %v1470, %v1543
        %v1560 = vadd.f32 %v1471, %v1544
        %v1561 = vadd.f32 %v1472, %v1545
        %v1562 = vadd.f32 %v1473, %v1546
        %v1563 = vadd.f32 %v1474, %v1547
        %v1564 = vadd.f32 %v1475, %v1548
        %v1565 = vadd.f32 %v1476, %v1549
        %v1566 = vadd.f32 %v1477, %v1550
        %v1567 = vadd.f32 %v1478, %v1551
        %v1568 = vadd.f32 %v1479, %v1552
        %v1569 = vadd.f32 %v1480, %v1553
        %v1570 = vadd.f32 %v1481, %v1554
        %v1571 = vadd.f32 %v1482, %v1555
        %v1572 = vld [vmem:[#allocation3 + $0x20] sm:$0x80]
        %v1573 = vld [vmem:[#allocation3 + $0x28] sm:$0x80]
        %v1574 = vld [vmem:[#allocation3 + $0xa0] sm:$0x7f]
        %v1575 = vld [vmem:[#allocation3 + $0xa8] sm:$0x7f]
        %v1580 = vrot.slane %v1572, 7
        %v1581 = vsel %vm1053, %v1580, %v1064
        %v1582 = vrot.slane %v1573, 7
        %v1583 = vsel %vm1053, %v1582, %v1066
        %v1584 = vrot.slane %v1436, 7
        %v1585 = vsel %vm1053, %v1361, %v1584
        %v1586 = vrot.slane %v1437, 7
        %v1587 = vsel %vm1053, %v1363, %v1586
        %v1588 = vrot.slane %v1574, 7
        %v1589 = vsel %vm1053, %v1584, %v1588
        %v1590 = vrot.slane %v1575, 7
        %v1591 = vsel %vm1053, %v1586, %v1590
        %v1598 = vsel %vm1027, %v1581, 0.0
        %v1599 = vsel %vm1027, %v1583, 0.0
        %v1600 = vsel %vm1028, %v1069, 0.0
        %v1601 = vsel %vm1028, %v1071, 0.0
        %v1602 = vsel %vm1029, %v1073, 0.0
        %v1603 = vsel %vm1029, %v1075, 0.0
        %v1604 = vsel %vm1030, %v1077, 0.0
        %v1605 = vsel %vm1030, %v1079, 0.0
        %v1606 = vsel %vm1031, %v1081, 0.0
        %v1607 = vsel %vm1031, %v1083, 0.0
        %v1608 = vsel %vm1032, %v1362, 0.0
        %v1609 = vsel %vm1032, %v1364, 0.0
        %v1610 = vsel %vm1033, %v1585, 0.0
        %v1611 = vsel %vm1033, %v1587, 0.0
        %v1612 = vsel %vm1034, %v1589, 0.0
        %v1613 = vsel %vm1034, %v1591, 0.0
        %s1614 = scalar_lea.vmem %s6, 12
        %v1615 = vld [vmem:[%s1614] sm:$0x3]
        %v1617 = vlaneseq
        %v1618 = vshrl.u32 %v1617, 7
        %v1619 = vsub.s32 0, %v1618
        %v1620 = vrot.slane %v1615, %v1619
        %v1621 = vlaneseq
        %v1622 = vshrl.u32 %v1621, 7
        %v1623 = vsub.s32 1, %v1622
        %v1624 = vrot.slane %v1615, %v1623
        %v1627 = vmul.f32 %v1598, %v1620
        %v1628 = vmul.f32 %v1599, %v1624
        %v1629 = vmul.f32 %v1600, %v1620
        %v1630 = vmul.f32 %v1601, %v1624
        %v1631 = vmul.f32 %v1602, %v1620
        %v1632 = vmul.f32 %v1603, %v1624
        %v1633 = vmul.f32 %v1604, %v1620
        %v1634 = vmul.f32 %v1605, %v1624
        %v1635 = vmul.f32 %v1606, %v1620
        %v1636 = vmul.f32 %v1607, %v1624
        %v1637 = vmul.f32 %v1608, %v1620
        %v1638 = vmul.f32 %v1609, %v1624
        %v1639 = vmul.f32 %v1610, %v1620
        %v1640 = vmul.f32 %v1611, %v1624
        %v1641 = vmul.f32 %v1612, %v1620
        %v1642 = vmul.f32 %v1613, %v1624
        %v1643 = vadd.f32 %v1556, %v1627
        %v1644 = vadd.f32 %v1557, %v1628
        %v1645 = vadd.f32 %v1558, %v1629
        %v1646 = vadd.f32 %v1559, %v1630
        %v1647 = vadd.f32 %v1560, %v1631
        %v1648 = vadd.f32 %v1561, %v1632
        %v1649 = vadd.f32 %v1562, %v1633
        %v1650 = vadd.f32 %v1563, %v1634
        %v1651 = vadd.f32 %v1564, %v1635
        %v1652 = vadd.f32 %v1565, %v1636
        %v1653 = vadd.f32 %v1566, %v1637
        %v1654 = vadd.f32 %v1567, %v1638
        %v1655 = vadd.f32 %v1568, %v1639
        %v1656 = vadd.f32 %v1569, %v1640
        %v1657 = vadd.f32 %v1570, %v1641
        %v1658 = vadd.f32 %v1571, %v1642
        %v1659 = vld [vmem:[#allocation3 + $0xa0] sm:$0xff]
        %v1660 = vld [vmem:[#allocation3 + $0xa8] sm:$0xff]
        %s1661 = scalar_lea.vmem %s6, 14
        %v1662 = vld [vmem:[%s1661] sm:$0x3]
        %v1664 = vlaneseq
        %v1665 = vshrl.u32 %v1664, 7
        %v1666 = vsub.s32 0, %v1665
        %v1667 = vrot.slane %v1662, %v1666
        %v1668 = vlaneseq
        %v1669 = vshrl.u32 %v1668, 7
        %v1670 = vsub.s32 1, %v1669
        %v1671 = vrot.slane %v1662, %v1670
        %v1674 = vmul.f32 %v1007, %v1667
        %v1675 = vmul.f32 %v1008, %v1671
        %v1676 = vmul.f32 %v1009, %v1667
        %v1677 = vmul.f32 %v1010, %v1671
        %v1678 = vmul.f32 %v1011, %v1667
        %v1679 = vmul.f32 %v1012, %v1671
        %v1680 = vmul.f32 %v1013, %v1667
        %v1681 = vmul.f32 %v1014, %v1671
        %v1682 = vmul.f32 %v1015, %v1667
        %v1683 = vmul.f32 %v1016, %v1671
        %v1684 = vmul.f32 %v1164, %v1667
        %v1685 = vmul.f32 %v1165, %v1671
        %v1686 = vmul.f32 %v1436, %v1667
        %v1687 = vmul.f32 %v1437, %v1671
        %v1688 = vmul.f32 %v1659, %v1667
        %v1689 = vmul.f32 %v1660, %v1671
        %v1690 = vadd.f32 %v1643, %v1674
        %v1691 = vadd.f32 %v1644, %v1675
        %v1692 = vadd.f32 %v1645, %v1676
        %v1693 = vadd.f32 %v1646, %v1677
        %v1694 = vadd.f32 %v1647, %v1678
        %v1695 = vadd.f32 %v1648, %v1679
        %v1696 = vadd.f32 %v1649, %v1680
        %v1697 = vadd.f32 %v1650, %v1681
        %v1698 = vadd.f32 %v1651, %v1682
        %v1699 = vadd.f32 %v1652, %v1683
        %v1700 = vadd.f32 %v1653, %v1684
        %v1701 = vadd.f32 %v1654, %v1685
        %v1702 = vadd.f32 %v1655, %v1686
        %v1703 = vadd.f32 %v1656, %v1687
        %v1704 = vadd.f32 %v1657, %v1688
        %v1705 = vadd.f32 %v1658, %v1689
        %v1706 = vld [vmem:[#allocation3 + $0x30] sm:$0xfe]
        %v1707 = vld [vmem:[#allocation3 + $0x38] sm:$0xfe]
        %v1708 = vld [vmem:[#allocation3 + $0x40] sm:$0xff]
        %v1709 = vld [vmem:[#allocation3 + $0x48] sm:$0xff]
        %v1710 = vld [vmem:[#allocation3 + $0x50] sm:$0xff]
        %v1711 = vld [vmem:[#allocation3 + $0x58] sm:$0xff]
        %v1712 = vld [vmem:[#allocation3 + $0x60] sm:$0xff]
        %v1713 = vld [vmem:[#allocation3 + $0x68] sm:$0xff]
        %v1714 = vld [vmem:[#allocation3 + $0x70] sm:$0xff]
        %v1715 = vld [vmem:[#allocation3 + $0x78] sm:$0xff]
        %v1716 = vld [vmem:[#allocation3 + $0x80] sm:$0xff]
        %v1717 = vld [vmem:[#allocation3 + $0x88] sm:$0xff]
        %v1718 = vld [vmem:[#allocation3 + $0x90] sm:$0xff]
        %v1719 = vld [vmem:[#allocation3 + $0x98] sm:$0xff]
        %v1720 = vld [vmem:[#allocation3 + $0xa0] sm:$0xff]
        %v1721 = vld [vmem:[#allocation3 + $0xa8] sm:$0xff]
        %v1722 = vld [vmem:[#allocation3 + $0xb0] sm:$0x1]
        %v1723 = vld [vmem:[#allocation3 + $0xb8] sm:$0x1]
        %v1742 = vrot.slane %v1706, 1
        %v1743 = vrot.slane %v1708, 1
        %v1744 = vsel %vm1237, %v1742, %v1743
        %v1745 = vrot.slane %v1707, 1
        %v1746 = vrot.slane %v1709, 1
        %v1747 = vsel %vm1237, %v1745, %v1746
        %v1748 = vrot.slane %v1710, 1
        %v1749 = vsel %vm1237, %v1743, %v1748
        %v1750 = vrot.slane %v1711, 1
        %v1751 = vsel %vm1237, %v1746, %v1750
        %v1752 = vrot.slane %v1712, 1
        %v1753 = vsel %vm1237, %v1748, %v1752
        %v1754 = vrot.slane %v1713, 1
        %v1755 = vsel %vm1237, %v1750, %v1754
        %v1756 = vrot.slane %v1714, 1
        %v1757 = vsel %vm1237, %v1752, %v1756
        %v1758 = vrot.slane %v1715, 1
        %v1759 = vsel %vm1237, %v1754, %v1758
        %v1760 = vrot.slane %v1716, 1
        %v1761 = vsel %vm1237, %v1756, %v1760
        %v1762 = vrot.slane %v1717, 1
        %v1763 = vsel %vm1237, %v1758, %v1762
        %v1764 = vrot.slane %v1718, 1
        %v1765 = vsel %vm1237, %v1760, %v1764
        %v1766 = vrot.slane %v1719, 1
        %v1767 = vsel %vm1237, %v1762, %v1766
        %v1768 = vrot.slane %v1720, 1
        %v1769 = vsel %vm1237, %v1764, %v1768
        %v1770 = vrot.slane %v1721, 1
        %v1771 = vsel %vm1237, %v1766, %v1770
        %v1772 = vrot.slane %v1722, 1
        %v1773 = vsel %vm1237, %v1768, %v1772
        %v1774 = vrot.slane %v1723, 1
        %v1775 = vsel %vm1237, %v1770, %v1774
        %v1792 = vsel %vm1223, %v1744, 0.0
        %v1793 = vsel %vm1223, %v1747, 0.0
        %v1794 = vsel %vm1224, %v1749, 0.0
        %v1795 = vsel %vm1224, %v1751, 0.0
        %v1796 = vsel %vm1225, %v1753, 0.0
        %v1797 = vsel %vm1225, %v1755, 0.0
        %v1798 = vsel %vm1226, %v1757, 0.0
        %v1799 = vsel %vm1226, %v1759, 0.0
        %v1800 = vsel %vm1227, %v1761, 0.0
        %v1801 = vsel %vm1227, %v1763, 0.0
        %v1802 = vsel %vm1228, %v1765, 0.0
        %v1803 = vsel %vm1228, %v1767, 0.0
        %v1804 = vsel %vm1229, %v1769, 0.0
        %v1805 = vsel %vm1229, %v1771, 0.0
        %v1806 = vsel %vm1230, %v1773, 0.0
        %v1807 = vsel %vm1230, %v1775, 0.0
        %s1808 = scalar_lea.vmem %s6, 16
        %v1809 = vld [vmem:[%s1808] sm:$0x3]
        %v1811 = vlaneseq
        %v1812 = vshrl.u32 %v1811, 7
        %v1813 = vsub.s32 0, %v1812
        %v1814 = vrot.slane %v1809, %v1813
        %v1815 = vlaneseq
        %v1816 = vshrl.u32 %v1815, 7
        %v1817 = vsub.s32 1, %v1816
        %v1818 = vrot.slane %v1809, %v1817
        %v1821 = vmul.f32 %v1792, %v1814
        %v1822 = vmul.f32 %v1793, %v1818
        %v1823 = vmul.f32 %v1794, %v1814
        %v1824 = vmul.f32 %v1795, %v1818
        %v1825 = vmul.f32 %v1796, %v1814
        %v1826 = vmul.f32 %v1797, %v1818
        %v1827 = vmul.f32 %v1798, %v1814
        %v1828 = vmul.f32 %v1799, %v1818
        %v1829 = vmul.f32 %v1800, %v1814
        %v1830 = vmul.f32 %v1801, %v1818
        %v1831 = vmul.f32 %v1802, %v1814
        %v1832 = vmul.f32 %v1803, %v1818
        %v1833 = vmul.f32 %v1804, %v1814
        %v1834 = vmul.f32 %v1805, %v1818
        %v1835 = vmul.f32 %v1806, %v1814
        %v1836 = vmul.f32 %v1807, %v1818
        %v1837 = vadd.f32 %v1690, %v1821
        %v1838 = vadd.f32 %v1691, %v1822
        %v1839 = vadd.f32 %v1692, %v1823
        %v1840 = vadd.f32 %v1693, %v1824
        %v1841 = vadd.f32 %v1694, %v1825
        %v1842 = vadd.f32 %v1695, %v1826
        %v1843 = vadd.f32 %v1696, %v1827
        %v1844 = vadd.f32 %v1697, %v1828
        %v1845 = vadd.f32 %v1698, %v1829
        %v1846 = vadd.f32 %v1699, %v1830
        %v1847 = vadd.f32 %v1700, %v1831
        %v1848 = vadd.f32 %v1701, %v1832
        %v1849 = vadd.f32 %v1702, %v1833
        %v1850 = vadd.f32 %v1703, %v1834
        %v1851 = vadd.f32 %v1704, %v1835
        %v1852 = vadd.f32 %v1705, %v1836
        %v1853 = vld [vmem:[%s7] sm:$0x3]
        %v1855 = vlaneseq
        %v1856 = vshrl.u32 %v1855, 7
        %v1857 = vsub.s32 0, %v1856
        %v1858 = vrot.slane %v1853, %v1857
        %v1859 = vlaneseq
        %v1860 = vshrl.u32 %v1859, 7
        %v1861 = vsub.s32 1, %v1860
        %v1862 = vrot.slane %v1853, %v1861
        %v1865 = vadd.f32 %v1837, %v1858
        %v1866 = vadd.f32 %v1838, %v1862
        %v1867 = vadd.f32 %v1839, %v1858
        %v1868 = vadd.f32 %v1840, %v1862
        %v1869 = vadd.f32 %v1841, %v1858
        %v1870 = vadd.f32 %v1842, %v1862
        %v1871 = vadd.f32 %v1843, %v1858
        %v1872 = vadd.f32 %v1844, %v1862
        %v1873 = vadd.f32 %v1845, %v1858
        %v1874 = vadd.f32 %v1846, %v1862
        %v1875 = vadd.f32 %v1847, %v1858
        %v1876 = vadd.f32 %v1848, %v1862
        %v1877 = vadd.f32 %v1849, %v1858
        %v1878 = vadd.f32 %v1850, %v1862
        %v1879 = vadd.f32 %v1851, %v1858
        %v1880 = vadd.f32 %v1852, %v1862
        %v1881 = vmul.f32 %v1865, 0.5
        %v1882 = vmul.f32 %v1866, 0.5
        %v1883 = vmul.f32 %v1867, 0.5
        %v1884 = vmul.f32 %v1868, 0.5
        %v1885 = vmul.f32 %v1869, 0.5
        %v1886 = vmul.f32 %v1870, 0.5
        %v1887 = vmul.f32 %v1871, 0.5
        %v1888 = vmul.f32 %v1872, 0.5
        %v1889 = vmul.f32 %v1873, 0.5
        %v1890 = vmul.f32 %v1874, 0.5
        %v1891 = vmul.f32 %v1875, 0.5
        %v1892 = vmul.f32 %v1876, 0.5
        %v1893 = vmul.f32 %v1877, 0.5
        %v1894 = vmul.f32 %v1878, 0.5
        %v1895 = vmul.f32 %v1879, 0.5
        %v1896 = vmul.f32 %v1880, 0.5
        %v1897 = vmul.f32 %v1865, %v1865
        %v1898 = vmul.f32 %v1866, %v1866
        %v1899 = vmul.f32 %v1867, %v1867
        %v1900 = vmul.f32 %v1868, %v1868
        %v1901 = vmul.f32 %v1869, %v1869
        %v1902 = vmul.f32 %v1870, %v1870
        %v1903 = vmul.f32 %v1871, %v1871
        %v1904 = vmul.f32 %v1872, %v1872
        %v1905 = vmul.f32 %v1873, %v1873
        %v1906 = vmul.f32 %v1874, %v1874
        %v1907 = vmul.f32 %v1875, %v1875
        %v1908 = vmul.f32 %v1876, %v1876
        %v1909 = vmul.f32 %v1877, %v1877
        %v1910 = vmul.f32 %v1878, %v1878
        %v1911 = vmul.f32 %v1879, %v1879
        %v1912 = vmul.f32 %v1880, %v1880
        %v1913 = vmul.f32 %v1897, %v1865
        %v1914 = vmul.f32 %v1898, %v1866
        %v1915 = vmul.f32 %v1899, %v1867
        %v1916 = vmul.f32 %v1900, %v1868
        %v1917 = vmul.f32 %v1901, %v1869
        %v1918 = vmul.f32 %v1902, %v1870
        %v1919 = vmul.f32 %v1903, %v1871
        %v1920 = vmul.f32 %v1904, %v1872
        %v1921 = vmul.f32 %v1905, %v1873
        %v1922 = vmul.f32 %v1906, %v1874
        %v1923 = vmul.f32 %v1907, %v1875
        %v1924 = vmul.f32 %v1908, %v1876
        %v1925 = vmul.f32 %v1909, %v1877
        %v1926 = vmul.f32 %v1910, %v1878
        %v1927 = vmul.f32 %v1911, %v1879
        %v1928 = vmul.f32 %v1912, %v1880
        %v1929 = vmul.f32 %v1913, 0.044715
        %v1930 = vmul.f32 %v1914, 0.044715
        %v1931 = vmul.f32 %v1915, 0.044715
        %v1932 = vmul.f32 %v1916, 0.044715
        %v1933 = vmul.f32 %v1917, 0.044715
        %v1934 = vmul.f32 %v1918, 0.044715
        %v1935 = vmul.f32 %v1919, 0.044715
        %v1936 = vmul.f32 %v1920, 0.044715
        %v1937 = vmul.f32 %v1921, 0.044715
        %v1938 = vmul.f32 %v1922, 0.044715
        %v1939 = vmul.f32 %v1923, 0.044715
        %v1940 = vmul.f32 %v1924, 0.044715
        %v1941 = vmul.f32 %v1925, 0.044715
        %v1942 = vmul.f32 %v1926, 0.044715
        %v1943 = vmul.f32 %v1927, 0.044715
        %v1944 = vmul.f32 %v1928, 0.044715
        %v1945 = vadd.f32 %v1865, %v1929
        %v1946 = vadd.f32 %v1866, %v1930
        %v1947 = vadd.f32 %v1867, %v1931
        %v1948 = vadd.f32 %v1868, %v1932
        %v1949 = vadd.f32 %v1869, %v1933
        %v1950 = vadd.f32 %v1870, %v1934
        %v1951 = vadd.f32 %v1871, %v1935
        %v1952 = vadd.f32 %v1872, %v1936
        %v1953 = vadd.f32 %v1873, %v1937
        %v1954 = vadd.f32 %v1874, %v1938
        %v1955 = vadd.f32 %v1875, %v1939
        %v1956 = vadd.f32 %v1876, %v1940
        %v1957 = vadd.f32 %v1877, %v1941
        %v1958 = vadd.f32 %v1878, %v1942
        %v1959 = vadd.f32 %v1879, %v1943
        %v1960 = vadd.f32 %v1880, %v1944
        %v1961 = vmul.f32 %v1945, 0.7978846
        %v1962 = vmul.f32 %v1946, 0.7978846
        %v1963 = vmul.f32 %v1947, 0.7978846
        %v1964 = vmul.f32 %v1948, 0.7978846
        %v1965 = vmul.f32 %v1949, 0.7978846
        %v1966 = vmul.f32 %v1950, 0.7978846
        %v1967 = vmul.f32 %v1951, 0.7978846
        %v1968 = vmul.f32 %v1952, 0.7978846
        %v1969 = vmul.f32 %v1953, 0.7978846
        %v1970 = vmul.f32 %v1954, 0.7978846
        %v1971 = vmul.f32 %v1955, 0.7978846
        %v1972 = vmul.f32 %v1956, 0.7978846
        %v1973 = vmul.f32 %v1957, 0.7978846
        %v1974 = vmul.f32 %v1958, 0.7978846
        %v1975 = vmul.f32 %v1959, 0.7978846
        %v1976 = vmul.f32 %v1960, 0.7978846
        %v1977 = vtanh.pop %v1961
        %v1978 = vtanh.pop %v1962
        %v1979 = vtanh.pop %v1963
        %v1980 = vtanh.pop %v1964
        %v1981 = vtanh.pop %v1965
        %v1982 = vtanh.pop %v1966
        %v1983 = vtanh.pop %v1967
        %v1984 = vtanh.pop %v1968
        %v1985 = vtanh.pop %v1969
        %v1986 = vtanh.pop %v1970
        %v1987 = vtanh.pop %v1971
        %v1988 = vtanh.pop %v1972
        %v1989 = vtanh.pop %v1973
        %v1990 = vtanh.pop %v1974
        %v1991 = vtanh.pop %v1975
        %v1992 = vtanh.pop %v1976
        %v1993 = vadd.f32 %v1977, 1.0
        %v1994 = vadd.f32 %v1978, 1.0
        %v1995 = vadd.f32 %v1979, 1.0
        %v1996 = vadd.f32 %v1980, 1.0
        %v1997 = vadd.f32 %v1981, 1.0
        %v1998 = vadd.f32 %v1982, 1.0
        %v1999 = vadd.f32 %v1983, 1.0
        %v2000 = vadd.f32 %v1984, 1.0
        %v2001 = vadd.f32 %v1985, 1.0
        %v2002 = vadd.f32 %v1986, 1.0
        %v2003 = vadd.f32 %v1987, 1.0
        %v2004 = vadd.f32 %v1988, 1.0
        %v2005 = vadd.f32 %v1989, 1.0
        %v2006 = vadd.f32 %v1990, 1.0
        %v2007 = vadd.f32 %v1991, 1.0
        %v2008 = vadd.f32 %v1992, 1.0
        %v2009 = vmul.f32 %v1881, %v1993
        %v2010 = vmul.f32 %v1882, %v1994
        %v2011 = vmul.f32 %v1883, %v1995
        %v2012 = vmul.f32 %v1884, %v1996
        %v2013 = vmul.f32 %v1885, %v1997
        %v2014 = vmul.f32 %v1886, %v1998
        %v2015 = vmul.f32 %v1887, %v1999
        %v2016 = vmul.f32 %v1888, %v2000
        %v2017 = vmul.f32 %v1889, %v2001
        %v2018 = vmul.f32 %v1890, %v2002
        %v2019 = vmul.f32 %v1891, %v2003
        %v2020 = vmul.f32 %v1892, %v2004
        %v2021 = vmul.f32 %v1893, %v2005
        %v2022 = vmul.f32 %v1894, %v2006
        %v2023 = vmul.f32 %v1895, %v2007
        %v2024 = vmul.f32 %v1896, %v2008
        %v2025 = vpack.c.bf16 %v2011, %v2009
        %v2026 = vpack.c.bf16 %v2012, %v2010
        %v2027 = vpack.c.bf16 %v2015, %v2013
        %v2028 = vpack.c.bf16 %v2016, %v2014
        %v2029 = vpack.c.bf16 %v2019, %v2017
        %v2030 = vpack.c.bf16 %v2020, %v2018
        %v2031 = vpack.c.bf16 %v2023, %v2021
        %v2032 = vpack.c.bf16 %v2024, %v2022
        %v2033 = vld [vmem:[%s8] sm:$0xf]
        %v2034 = vld [vmem:[%s8 + $0x4] sm:$0xf]
        %v2035 = vld [vmem:[%s8 + $0x8] sm:$0xf]
        %v2036 = vld [vmem:[%s8 + $0xc] sm:$0xf]
        %v2037 = vld [vmem:[%s8 + $0x10] sm:$0xf]
        %v2038 = vld [vmem:[%s8 + $0x14] sm:$0xf]
        %v2039 = vld [vmem:[%s8 + $0x18] sm:$0xf]
        %v2040 = vld [vmem:[%s8 + $0x1c] sm:$0xf]
        %v2041 = vld [vmem:[%s8 + $0x20] sm:$0xf]
        %v2042 = vld [vmem:[%s8 + $0x24] sm:$0xf]
        %v2043 = vld [vmem:[%s8 + $0x28] sm:$0xf]
        %v2044 = vld [vmem:[%s8 + $0x2c] sm:$0xf]
        %v2045 = vld [vmem:[%s8 + $0x30] sm:$0xf]
        %v2046 = vld [vmem:[%s8 + $0x34] sm:$0xf]
        %v2047 = vld [vmem:[%s8 + $0x38] sm:$0xf]
        %v2048 = vld [vmem:[%s8 + $0x3c] sm:$0xf]
        %v2049 = vld [vmem:[%s8 + $0x40] sm:$0xf]
        %v2050 = vld [vmem:[%s8 + $0x44] sm:$0xf]
        %v2051 = vld [vmem:[%s8 + $0x48] sm:$0xf]
        %v2052 = vld [vmem:[%s8 + $0x4c] sm:$0xf]
        %v2053 = vld [vmem:[%s8 + $0x50] sm:$0xf]
        %v2054 = vld [vmem:[%s8 + $0x54] sm:$0xf]
        %v2055 = vld [vmem:[%s8 + $0x58] sm:$0xf]
        %v2056 = vld [vmem:[%s8 + $0x5c] sm:$0xf]
        %v2057 = vld [vmem:[%s8 + $0x60] sm:$0xf]
        %v2058 = vld [vmem:[%s8 + $0x64] sm:$0xf]
        %v2059 = vld [vmem:[%s8 + $0x68] sm:$0xf]
        %v2060 = vld [vmem:[%s8 + $0x6c] sm:$0xf]
        %v2061 = vld [vmem:[%s8 + $0x70] sm:$0xf]
        %v2062 = vld [vmem:[%s8 + $0x74] sm:$0xf]
        %v2063 = vld [vmem:[%s8 + $0x78] sm:$0xf]
        %v2064 = vld [vmem:[%s8 + $0x7c] sm:$0xf]
        %v2065 = vld [vmem:[%s9] sm:$0x1]
        %v2067 = vlaneseq
        %v2068 = vshrl.u32 %v2067, 7
        %v2069 = vsub.s32 0, %v2068
        %v2070 = vrot.slane %v2065, %v2069
        %v2104 = vunpack.c.l.b16 %v2033
        %v2105 = vunpack.c.l.b16 %v2034
        %v2106 = vunpack.c.l.b16 %v2035
        %v2107 = vunpack.c.l.b16 %v2036
        %v2108 = vunpack.c.l.b16 %v2037
        %v2109 = vunpack.c.l.b16 %v2038
        %v2110 = vunpack.c.l.b16 %v2039
        %v2111 = vunpack.c.l.b16 %v2040
        %v2112 = vunpack.c.l.b16 %v2041
        %v2113 = vunpack.c.l.b16 %v2042
        %v2114 = vunpack.c.l.b16 %v2043
        %v2115 = vunpack.c.l.b16 %v2044
        %v2116 = vunpack.c.l.b16 %v2045
        %v2117 = vunpack.c.l.b16 %v2046
        %v2118 = vunpack.c.l.b16 %v2047
        %v2119 = vunpack.c.l.b16 %v2048
        %v2120 = vunpack.c.l.b16 %v2049
        %v2121 = vunpack.c.l.b16 %v2050
        %v2122 = vunpack.c.l.b16 %v2051
        %v2123 = vunpack.c.l.b16 %v2052
        %v2124 = vunpack.c.l.b16 %v2053
        %v2125 = vunpack.c.l.b16 %v2054
        %v2126 = vunpack.c.l.b16 %v2055
        %v2127 = vunpack.c.l.b16 %v2056
        %v2128 = vunpack.c.l.b16 %v2057
        %v2129 = vunpack.c.l.b16 %v2058
        %v2130 = vunpack.c.l.b16 %v2059
        %v2131 = vunpack.c.l.b16 %v2060
        %v2132 = vunpack.c.l.b16 %v2061
        %v2133 = vunpack.c.l.b16 %v2062
        %v2134 = vunpack.c.l.b16 %v2063
        %v2135 = vunpack.c.l.b16 %v2064
        %v2136 = vpack.c.b16 %v2105, %v2104
        %v2137 = vpack.c.b16 %v2107, %v2106
        %v2138 = vpack.c.b16 %v2109, %v2108
        %v2139 = vpack.c.b16 %v2111, %v2110
        %v2140 = vpack.c.b16 %v2113, %v2112
        %v2141 = vpack.c.b16 %v2115, %v2114
        %v2142 = vpack.c.b16 %v2117, %v2116
        %v2143 = vpack.c.b16 %v2119, %v2118
        %v2144 = vpack.c.b16 %v2121, %v2120
        %v2145 = vpack.c.b16 %v2123, %v2122
        %v2146 = vpack.c.b16 %v2125, %v2124
        %v2147 = vpack.c.b16 %v2127, %v2126
        %v2148 = vpack.c.b16 %v2129, %v2128
        %v2149 = vpack.c.b16 %v2131, %v2130
        %v2150 = vpack.c.b16 %v2133, %v2132
        %v2151 = vpack.c.b16 %v2135, %v2134
        %2168 = vmatprep.subr.bf16.mxu0 0
        %2169 = vmatpush1.bf16.msra.mxu0 %v2136
        %2170 = vmatprep.subr.bf16.mxu0 0
        %2171 = vmatpush1.bf16.msra.mxu0 %v2137
        %2172 = vmatprep.subr.bf16.mxu0 0
        %2173 = vmatpush1.bf16.msra.mxu0 %v2138
        %2174 = vmatprep.subr.bf16.mxu0 0
        %2175 = vmatpush1.bf16.msra.mxu0 %v2139
        %2176 = vmatprep.subr.bf16.mxu0 0
        %2177 = vmatpush1.bf16.msra.mxu0 %v2140
        %2178 = vmatprep.subr.bf16.mxu0 0
        %2179 = vmatpush1.bf16.msra.mxu0 %v2141
        %2180 = vmatprep.subr.bf16.mxu0 0
        %2181 = vmatpush1.bf16.msra.mxu0 %v2142
        %2182 = vmatprep.subr.bf16.mxu0 0
        %2183 = vmatpush1.bf16.msra.mxu0 %v2143
        %2184 = vmatprep.subr.bf16.mxu0 0
        %2185 = vmatpush1.bf16.msra.mxu0 %v2144
        %2186 = vmatprep.subr.bf16.mxu0 0
        %2187 = vmatpush1.bf16.msra.mxu0 %v2145
        %2188 = vmatprep.subr.bf16.mxu0 0
        %2189 = vmatpush1.bf16.msra.mxu0 %v2146
        %2190 = vmatprep.subr.bf16.mxu0 0
        %2191 = vmatpush1.bf16.msra.mxu0 %v2147
        %2192 = vmatprep.subr.bf16.mxu0 0
        %2193 = vmatpush1.bf16.msra.mxu0 %v2148
        %2194 = vmatprep.subr.bf16.mxu0 0
        %2195 = vmatpush1.bf16.msra.mxu0 %v2149
        %2196 = vmatprep.subr.bf16.mxu0 0
        %2197 = vmatpush1.bf16.msra.mxu0 %v2150
        %2198 = vmatprep.subr.bf16.mxu0 0
        %2199 = vmatpush1.bf16.msra.mxu0 %v2151
        %2200 = vmatprep.mubr.bf16.mxu0 %v2026
        %2201 = vmatmul.mubr.bf16.gmra.mrb[0].mxu0 %v2025
        %v2202 = vpop.f32.mrb[0].mxu0
        %v2203 = vadd.f32 %v2070, %v2202
        %v2204 = vpop.f32.mrb[0].mxu0
        %v2205 = vpop.f32.mrb[0].mxu0
        %v2206 = vadd.f32 %v2070, %v2205
        %v2207 = vpop.f32.mrb[0].mxu0
        %2208 = vmatprep.mubr.bf16.mxu0 %v2028
        %2209 = vmatmul.mubr.bf16.gmra.mrb[0].mxu0 %v2027
        %v2210 = vpop.f32.mrb[0].mxu0
        %v2211 = vadd.f32 %v2070, %v2210
        %v2212 = vpop.f32.mrb[0].mxu0
        %v2213 = vpop.f32.mrb[0].mxu0
        %v2214 = vadd.f32 %v2070, %v2213
        %v2215 = vpop.f32.mrb[0].mxu0
        %2216 = vmatprep.mubr.bf16.mxu0 %v2030
        %2217 = vmatmul.mubr.bf16.gmra.mrb[0].mxu0 %v2029
        %v2218 = vpop.f32.mrb[0].mxu0
        %v2219 = vadd.f32 %v2070, %v2218
        %v2220 = vpop.f32.mrb[0].mxu0
        %v2221 = vpop.f32.mrb[0].mxu0
        %v2222 = vadd.f32 %v2070, %v2221
        %v2223 = vpop.f32.mrb[0].mxu0
        %2224 = vmatprep.mubr.bf16.mxu0 %v2032
        %2225 = vmatmul.mubr.bf16.gmra.mrb[0].mxu0 %v2031
        %v2226 = vpop.f32.mrb[0].mxu0
        %v2227 = vadd.f32 %v2070, %v2226
        %v2228 = vpop.f32.mrb[0].mxu0
        %v2229 = vpop.f32.mrb[0].mxu0
        %v2230 = vadd.f32 %v2070, %v2229
        %v2231 = vpop.f32.mrb[0].mxu0
        %2232 = vdwg.mxu0
        %v2233 = vadd.f32 %v478, %v2203
        %v2234 = vadd.f32 %v479, %v2206
        %v2235 = vadd.f32 %v480, %v2211
        %v2236 = vadd.f32 %v481, %v2214
        %v2237 = vadd.f32 %v482, %v2219
        %v2238 = vadd.f32 %v483, %v2222
        %v2239 = vadd.f32 %v484, %v2227
        %v2240 = vadd.f32 %v485, %v2230
        %2241 = vst.msk [vmem:[%s351] sm:$0xff] %vm486, %v2233
        %2242 = vst.msk [vmem:[%s351 + $0x8] sm:$0xff] %vm486, %v2234
        %2243 = vst.msk [vmem:[%s351 + $0x10] sm:$0xff] %vm486, %v2235
        %2244 = vst.msk [vmem:[%s351 + $0x18] sm:$0xff] %vm486, %v2236
        %2245 = vst.msk [vmem:[%s351 + $0x20] sm:$0xff] %vm486, %v2237
        %2246 = vst.msk [vmem:[%s351 + $0x28] sm:$0xff] %vm486, %v2238
        %2247 = vst.msk [vmem:[%s351 + $0x30] sm:$0xff] %vm486, %v2239
        %2248 = vst.msk [vmem:[%s351 + $0x38] sm:$0xff] %vm486, %v2240
        %s2249 = sand.u32 %s242, 1
        %s2250 = scalar_lea.sflag [#allocation6], %s2249
        %s2251 = sand.u32 %s242, 1
        %s2252 = smul.addr %s2251, 64
        %s2253 = scalar_lea.vmem [#allocation5], %s2252
        // Predicated region
        $region145: #{_lambda_.5} parent=55 // pred_check
          %p2254 = pneg %p252
        $region146: #{_lambda_.5} parent=55 // pred_check_branch
          %2256 = sbr.rel (%p2254) target = $region148
        $region147: #{_lambda_.5} parent=55 // pred_region
          %s2257 = smul.u32 8, %s29
          %s2259 = ssub.s32 1024, 1024
          %2260 = vsyncadd %s2250, %s2259
          %s2261 = smul.addr %s28, 8
          %s2262 = sadd.s32 %s2257, %s2261
          %s2263 = smul.addr %s2262, 128
          %s2264 = scalar_lea.hbm %s10, %s2263
          %s2265 = sshll.u32 %s2253, 4
          %s2266 = int_to_ptr.vmem [resolvable:$true] %s2265
          %2271 = dma.vmem_to_hbm [thread:$0]  %s2266, 1024, %s2264, %s2250, 128, 128, 8
        $region148: #{_lambda_.5} parent=55 // pred_fallthru
          _
      $region56: #{_lambda_.5} parent=5 // pred_fallthru
        _
      %p2272 = scmp.le.s32.totalorder 2, %s19
      // Predicated region
      $region149: #{_lambda_.5} parent=5 // pred_check
        %p2273 = pneg %p2272
      $region150: #{_lambda_.5} parent=5 // pred_check_branch
        %2275 = sbr.rel (%p2273) target = $region152
      $region151: #{_lambda_.5} parent=5 // pred_region
        %s2276 = ssub.s32 %s19, 2
        // Predicated region
        $region153: #{_lambda_.5} parent=151 // pred_check
          %p2277 = pneg %p258
        $region154: #{_lambda_.5} parent=151 // pred_check_branch
          %2279 = sbr.rel (%p2277) target = $region156
        $region155: #{_lambda_.5} parent=151 // pred_region
          %s2280 = sand.u32 %s243, 1
          %s2281 = scalar_lea.sflag [#allocation6], %s2280
          %s2282 = sand.u32 %s243, 1
          %s2283 = smul.addr %s2282, 64
          %s2284 = scalar_lea.vmem [#allocation5], %s2283
          %2285 = dma.done %s2281, 1024
        $region156: #{_lambda_.5} parent=151 // pred_fallthru
          _
      $region152: #{_lambda_.5} parent=5 // pred_fallthru
        _
    $region6: #{_lambda_.5} parent=1 // loop_footer
      %s23 = sadd.s32 1, %s19
    $region7: #{_lambda_.5} parent=1 // loop_footer_branch
      %18 = sbr.rel target = $region3
    $region8: #{_lambda_.5} parent=1 // loop_exit
      _
    %2286 = vsyncpa [#allocation6], 1
    %s2287 = scalar_lea.sflag [#allocation6], 1
    %2288 = vsyncpa %s2287, 1
  %2289 = vsyncmov [#allocation4]
  %s2290 = vpop.sfrf %2289
  %p2291 = scmp.eq.s32.totalorder %s2290, 0
  %p2292 = pneg %p2291
  %2294 = shalt.err (%p2292)
  %s2295 = scalar_lea.sflag [#allocation4], 1
  %2296 = vsyncmov %s2295
  %s2297 = vpop.sfrf %2296
  %p2298 = scmp.eq.s32.totalorder %s2297, 0
  %p2299 = pneg %p2298
  %2301 = shalt.err (%p2299)

</llo_original>
